<compile_context>
chip_gen: v5e
topology: v5e:2x2
jax: 0.10.0
libtpu: 0.0.40
codegen_flags: <defaults>
</compile_context>

<pallas_src>
import functools

import jax
import jax.numpy as jnp
from jax.experimental import pallas as pl
from jax.experimental.pallas import tpu as pltpu


# ---------------------------------------------------------------------------
# Pallas kernel
# ---------------------------------------------------------------------------

def _sigmoid(x):
    # Exact identity sigmoid(x) = 0.5 * (tanh(x/2) + 1): one EUP op per element.
    return 0.5 * jnp.tanh(0.5 * x) + 0.5


def _fused_lstm_fc_kernel(*refs, num_layers, batch_pad):
    """Whole-model forward in one kernel invocation (no grid).

    refs layout (Bp = padded batch, T = seq len, H = hidden, L = num_layers):
      [0]             x        (T*Bp, D)   f32, flattened time-major input
      [1 + 3l + 0]    W_ih_l^T (D_l, 4H)   bf16
      [1 + 3l + 1]    W_hh_l^T (H, 4H)     bf16
      [1 + 3l + 2]    b_l      (1, 4H)     f32 = b_ih + b_hh
      [1 + 3L]        W_fc     (O, H)      f32 (PyTorch layout)
      [2 + 3L]        b_fc     (1, O)      f32
      [3 + 3L]        out      (B, O)      <- output
      [4 + 3L]        proj     (T*Bp, 4H)  f32 VMEM scratch (hoisted projections)
      [5 + 3L]        seq      (T*Bp, H)   f32 VMEM scratch (inter-layer hidden)
    """
    x_ref = refs[0]
    layer_refs = refs[1:1 + 3 * num_layers]
    w_fc_ref = refs[1 + 3 * num_layers]
    b_fc_ref = refs[2 + 3 * num_layers]
    out_ref = refs[3 + 3 * num_layers]
    proj_ref = refs[4 + 3 * num_layers]
    seq_ref = refs[5 + 3 * num_layers]

    Bp = batch_pad
    T = x_ref.shape[0] // Bp
    H = layer_refs[1].shape[0]

    h_last = None
    for layer in range(num_layers):
        w_ih_ref = layer_refs[3 * layer + 0]   # (D_l, 4H) bf16
        w_hh_ref = layer_refs[3 * layer + 1]   # (H, 4H)   bf16
        b_ref = layer_refs[3 * layer + 2]      # (1, 4H)   f32

        # Hoisted input projection: ONE MXU matmul covering all T timesteps,
        # bf16 operands, f32 accumulate + bias.
        if layer == 0:
            inp = x_ref[...].astype(jnp.bfloat16)             # (T*Bp, D)
        else:
            inp = seq_ref[...].astype(jnp.bfloat16)           # (T*Bp, H)
        proj_ref[...] = (
            jnp.dot(inp, w_ih_ref[...], preferred_element_type=jnp.float32)
            + b_ref[...]
        )                                                     # (T*Bp, 4H) f32

        h = jnp.zeros((Bp, H), jnp.float32)
        c = jnp.zeros((Bp, H), jnp.float32)

        # Fully unrolled time recurrence.  W_hh is read from VMEM *inside*
        # each step (no multi-vreg weight value held live across the unrolled
        # loop); only h @ W_hh^T + gate math is on the sequential path.
        for t in range(T):
            gates = proj_ref[t * Bp:(t + 1) * Bp, :] + jnp.dot(
                h.astype(jnp.bfloat16), w_hh_ref[...],
                preferred_element_type=jnp.float32)           # (Bp, 4H) f32

            # Per-128-lane gate blocks; c-update chain (i, f, g) issued first,
            # o-gate sigmoid afterwards.  All gate math stays f32 (v5e EUP/VPU).
            i_g = _sigmoid(gates[:, 0:H])
            f_g = _sigmoid(gates[:, H:2 * H])
            g_g = jnp.tanh(gates[:, 2 * H:3 * H])
            c = f_g * c + i_g * g_g
            o_g = _sigmoid(gates[:, 3 * H:4 * H])
            h = o_g * jnp.tanh(c)

            if layer < num_layers - 1:
                seq_ref[t * Bp:(t + 1) * Bp, :] = h  # next layer's input
        h_last = h                                   # last timestep's hidden

    # Fused Linear head on out[:, -1, :].
    w_fc = w_fc_ref[...]                             # (O, H)
    b_fc = b_fc_ref[...]                             # (1, O)
    B = out_ref.shape[0]
    if w_fc.shape[0] == 1:
        # O == 1: a lane reduction is cheaper than an N=1 MXU matmul.
        y = jnp.sum(h_last * w_fc, axis=-1, keepdims=True) + b_fc     # (Bp, 1)
    else:
        y = jax.lax.dot_general(
            h_last, w_fc, (((1,), (1,)), ((), ())),
            preferred_element_type=jnp.float32) + b_fc                # (Bp, O)
    out_ref[...] = y[:B, :]


# ---------------------------------------------------------------------------
# Wrapper
# ---------------------------------------------------------------------------

@jax.jit
def lstm_model_forward(x, params):
    """x: (B, T, input_size), batch_first — matches the PyTorch module."""
    B, T, D = x.shape
    Bp = ((B + 7) // 8) * 8                      # pad batch to sublane multiple
    x_tm = jnp.transpose(x, (1, 0, 2))           # -> (T, B, D) time-major
    if Bp != B:
        x_tm = jnp.pad(x_tm, ((0, 0), (0, Bp - B), (0, 0)))
    x_flat = x_tm.reshape(T * Bp, D)

    lstm_params = params["lstm"]
    num_layers = len(lstm_params)
    H = lstm_params[0][1].shape[0]
    O = params["fc_w"].shape[0]

    flat_args = [x_flat]
    for w_ih_t, w_hh_t, b in lstm_params:
        flat_args += [w_ih_t, w_hh_t, b]
    flat_args += [params["fc_w"], params["fc_b"]]

    kernel = functools.partial(
        _fused_lstm_fc_kernel, num_layers=num_layers, batch_pad=Bp)

    vmem_spec = pl.BlockSpec(memory_space=pltpu.MemorySpace.VMEM)
    return pl.pallas_call(
        kernel,
        out_shape=jax.ShapeDtypeStruct((B, O), jnp.float32),
        in_specs=[vmem_spec] * len(flat_args),
        out_specs=vmem_spec,
        scratch_shapes=[
            pltpu.VMEM((T * Bp, 4 * H), jnp.float32),   # hoisted gate projections
            pltpu.VMEM((T * Bp, H), jnp.float32),       # inter-layer hidden sequence
        ],
        compiler_params=pltpu.CompilerParams(
            vmem_limit_bytes=16 * 1024 * 1024),          # ~2 MiB actually used
    )(*flat_args)


# ---------------------------------------------------------------------------
# Deterministic parameter init (PyTorch-style U(-1/sqrt(H), 1/sqrt(H)))
# Stored in kernel-ready layout: W_ih^T (D,4H) bf16, W_hh^T (H,4H) bf16,
# b = b_ih + b_hh (1,4H) f32, fc_w (O,H) f32, fc_b (1,O) f32.
# ---------------------------------------------------------------------------

def init_params(key, input_size=8, hidden_size=128, num_layers=3, output_size=1):
    bound = hidden_size ** -0.5
    lstm = []
    for layer in range(num_layers):
        in_dim = input_size if layer == 0 else hidden_size
        key, k1, k2, k3, k4 = jax.random.split(key, 5)
        w_ih = jax.random.uniform(k1, (4 * hidden_size, in_dim),
                                  minval=-bound, maxval=bound, dtype=jnp.float32)
        w_hh = jax.random.uniform(k2, (4 * hidden_size, hidden_size),
                                  minval=-bound, maxval=bound, dtype=jnp.float32)
        b_ih = jax.random.uniform(k3, (4 * hidden_size,),
                                  minval=-bound, maxval=bound, dtype=jnp.float32)
        b_hh = jax.random.uniform(k4, (4 * hidden_size,),
                                  minval=-bound, maxval=bound, dtype=jnp.float32)
        # Pre-transpose, pre-sum biases, and pre-cast matmul weights to bf16
        # ONCE at init (MXU default precision is a single bf16 pass anyway).
        lstm.append((w_ih.T.astype(jnp.bfloat16),
                     w_hh.T.astype(jnp.bfloat16),
                     (b_ih + b_hh)[None, :]))
    key, k5, k6 = jax.random.split(key, 3)
    fc_w = jax.random.uniform(k5, (output_size, hidden_size),
                              minval=-bound, maxval=bound, dtype=jnp.float32)
    fc_b = jax.random.uniform(k6, (output_size,),
                              minval=-bound, maxval=bound, dtype=jnp.float32)
    return {"lstm": lstm, "fc_w": fc_w, "fc_b": fc_b[None, :]}


if __name__ == "__main__":
    key = jax.random.PRNGKey(0)
    k_param, k_x = jax.random.split(key)

    B, T, INPUT, HIDDEN, LAYERS, OUT = 2, 8, 8, 128, 3, 1
    params = init_params(k_param, INPUT, HIDDEN, LAYERS, OUT)
    x = jax.random.normal(k_x, (B, T, INPUT), dtype=jnp.float32)

    y = lstm_model_forward(x, params)
    jax.block_until_ready(y)
    assert y.shape == (B, OUT), y.shape
    assert bool(jnp.all(jnp.isfinite(y))), "non-finite output"
    print("KERNEL_OK")
</pallas_src>

<mosaic_0001>
module attributes {stable_mosaic.version = 11 : i64} {
  func.func @_fused_lstm_fc_kernel(%arg0: memref<64x8xf32, #tpu.memory_space<vmem>>, %arg1: memref<8x512xbf16, #tpu.memory_space<vmem>>, %arg2: memref<128x512xbf16, #tpu.memory_space<vmem>>, %arg3: memref<1x512xf32, #tpu.memory_space<vmem>>, %arg4: memref<128x512xbf16, #tpu.memory_space<vmem>>, %arg5: memref<128x512xbf16, #tpu.memory_space<vmem>>, %arg6: memref<1x512xf32, #tpu.memory_space<vmem>>, %arg7: memref<128x512xbf16, #tpu.memory_space<vmem>>, %arg8: memref<128x512xbf16, #tpu.memory_space<vmem>>, %arg9: memref<1x512xf32, #tpu.memory_space<vmem>>, %arg10: memref<1x128xf32, #tpu.memory_space<vmem>>, %arg11: memref<1x1xf32, #tpu.memory_space<vmem>>, %arg12: memref<2x1xf32, #tpu.memory_space<vmem>>, %arg13: memref<64x512xf32, #tpu.memory_space<vmem>>, %arg14: memref<64x128xf32, #tpu.memory_space<vmem>>) attributes {dimension_semantics = [], scalar_prefetch = 0 : i64, scratch_operands = 2 : i64, tpu.core_type = #tpu.core_type<tc>} {
    %c0 = arith.constant 0 : index
    %c0_0 = arith.constant 0 : index
    %0 = vector.load %arg0[%c0, %c0_0] : memref<64x8xf32, #tpu.memory_space<vmem>>, vector<64x8xf32>
    %1 = arith.truncf %0 : vector<64x8xf32> to vector<64x8xbf16>
    %c0_1 = arith.constant 0 : index
    %c0_2 = arith.constant 0 : index
    %2 = vector.load %arg1[%c0_1, %c0_2] : memref<8x512xbf16, #tpu.memory_space<vmem>>, vector<8x512xbf16>
    %cst = arith.constant dense<0.000000e+00> : vector<64x512xf32>
    %3 = tpu.matmul %1, %2, %cst {dimension_numbers = #tpu.dot_dimension_numbers<[1], [0], [0], [1], [0, 0, 1, 1], [], []>} : vector<64x8xbf16>, vector<8x512xbf16>, vector<64x512xf32> -> vector<64x512xf32>
    %c0_3 = arith.constant 0 : index
    %c0_4 = arith.constant 0 : index
    %4 = vector.load %arg3[%c0_3, %c0_4] : memref<1x512xf32, #tpu.memory_space<vmem>>, vector<1x512xf32>
    %5 = vector.broadcast %4 : vector<1x512xf32> to vector<64x512xf32>
    %6 = arith.addf %3, %5 : vector<64x512xf32>
    %c0_5 = arith.constant 0 : index
    %c0_6 = arith.constant 0 : index
    %7 = vector.load %arg13[%c0_5, %c0_6] : memref<64x512xf32, #tpu.memory_space<vmem>>, vector<64x512xf32>
    tpu.vector_store %arg13[%c0_5, %c0_6], %6 {strides = array<i32>} : memref<64x512xf32, #tpu.memory_space<vmem>>, vector<64x512xf32>,
    %cst_7 = arith.constant 0.000000e+00 : f32
    %8 = vector.broadcast %cst_7 : f32 to vector<8x128xf32>
    %cst_8 = arith.constant 0.000000e+00 : f32
    %9 = vector.broadcast %cst_8 : f32 to vector<8x128xf32>
    %c0_9 = arith.constant 0 : index
    %c0_10 = arith.constant 0 : index
    %10 = vector.load %arg13[%c0_9, %c0_10] : memref<64x512xf32, #tpu.memory_space<vmem>>, vector<8x512xf32>
    %11 = arith.truncf %8 : vector<8x128xf32> to vector<8x128xbf16>
    %c0_11 = arith.constant 0 : index
    %c0_12 = arith.constant 0 : index
    %12 = vector.load %arg2[%c0_11, %c0_12] : memref<128x512xbf16, #tpu.memory_space<vmem>>, vector<128x512xbf16>
    %cst_13 = arith.constant dense<0.000000e+00> : vector<8x512xf32>
    %13 = tpu.matmul %11, %12, %cst_13 {dimension_numbers = #tpu.dot_dimension_numbers<[1], [0], [0], [1], [0, 0, 1, 1], [], []>} : vector<8x128xbf16>, vector<128x512xbf16>, vector<8x512xf32> -> vector<8x512xf32>
    %14 = arith.addf %10, %13 : vector<8x512xf32>
    %15 = vector.extract_strided_slice %14 {offsets = [0, 0], sizes = [8, 128], strides = [1, 1]} : vector<8x512xf32> to vector<8x128xf32>
    %cst_14 = arith.constant 5.000000e-01 : f32
    %16 = vector.broadcast %cst_14 : f32 to vector<8x128xf32>
    %17 = arith.mulf %16, %15 : vector<8x128xf32>
    %18 = math.tanh %17 : vector<8x128xf32>
    %cst_15 = arith.constant 5.000000e-01 : f32
    %19 = vector.broadcast %cst_15 : f32 to vector<8x128xf32>
    %20 = arith.mulf %19, %18 : vector<8x128xf32>
    %cst_16 = arith.constant 5.000000e-01 : f32
    %21 = vector.broadcast %cst_16 : f32 to vector<8x128xf32>
    %22 = arith.addf %20, %21 : vector<8x128xf32>
    %23 = vector.extract_strided_slice %14 {offsets = [0, 128], sizes = [8, 128], strides = [1, 1]} : vector<8x512xf32> to vector<8x128xf32>
    %cst_17 = arith.constant 5.000000e-01 : f32
    %24 = vector.broadcast %cst_17 : f32 to vector<8x128xf32>
    %25 = arith.mulf %24, %23 : vector<8x128xf32>
    %26 = math.tanh %25 : vector<8x128xf32>
    %cst_18 = arith.constant 5.000000e-01 : f32
    %27 = vector.broadcast %cst_18 : f32 to vector<8x128xf32>
    %28 = arith.mulf %27, %26 : vector<8x128xf32>
    %cst_19 = arith.constant 5.000000e-01 : f32
    %29 = vector.broadcast %cst_19 : f32 to vector<8x128xf32>
    %30 = arith.addf %28, %29 : vector<8x128xf32>
    %31 = vector.extract_strided_slice %14 {offsets = [0, 256], sizes = [8, 128], strides = [1, 1]} : vector<8x512xf32> to vector<8x128xf32>
    %32 = math.tanh %31 : vector<8x128xf32>
    %33 = arith.mulf %30, %9 : vector<8x128xf32>
    %34 = arith.mulf %22, %32 : vector<8x128xf32>
    %35 = arith.addf %33, %34 : vector<8x128xf32>
    %36 = vector.extract_strided_slice %14 {offsets = [0, 384], sizes = [8, 128], strides = [1, 1]} : vector<8x512xf32> to vector<8x128xf32>
    %cst_20 = arith.constant 5.000000e-01 : f32
    %37 = vector.broadcast %cst_20 : f32 to vector<8x128xf32>
    %38 = arith.mulf %37, %36 : vector<8x128xf32>
    %39 = math.tanh %38 : vector<8x128xf32>
    %cst_21 = arith.constant 5.000000e-01 : f32
    %40 = vector.broadcast %cst_21 : f32 to vector<8x128xf32>
    %41 = arith.mulf %40, %39 : vector<8x128xf32>
    %cst_22 = arith.constant 5.000000e-01 : f32
    %42 = vector.broadcast %cst_22 : f32 to vector<8x128xf32>
    %43 = arith.addf %41, %42 : vector<8x128xf32>
    %44 = math.tanh %35 : vector<8x128xf32>
    %45 = arith.mulf %43, %44 : vector<8x128xf32>
    %c0_23 = arith.constant 0 : index
    %c0_24 = arith.constant 0 : index
    %46 = vector.load %arg14[%c0_23, %c0_24] : memref<64x128xf32, #tpu.memory_space<vmem>>, vector<8x128xf32>
    tpu.vector_store %arg14[%c0_23, %c0_24], %45 {strides = array<i32>} : memref<64x128xf32, #tpu.memory_space<vmem>>, vector<8x128xf32>,
    %c8 = arith.constant 8 : index
    %c0_25 = arith.constant 0 : index
    %47 = vector.load %arg13[%c8, %c0_25] : memref<64x512xf32, #tpu.memory_space<vmem>>, vector<8x512xf32>
    %48 = arith.truncf %45 : vector<8x128xf32> to vector<8x128xbf16>
    %c0_26 = arith.constant 0 : index
    %c0_27 = arith.constant 0 : index
    %49 = vector.load %arg2[%c0_26, %c0_27] : memref<128x512xbf16, #tpu.memory_space<vmem>>, vector<128x512xbf16>
    %cst_28 = arith.constant dense<0.000000e+00> : vector<8x512xf32>
    %50 = tpu.matmul %48, %49, %cst_28 {dimension_numbers = #tpu.dot_dimension_numbers<[1], [0], [0], [1], [0, 0, 1, 1], [], []>} : vector<8x128xbf16>, vector<128x512xbf16>, vector<8x512xf32> -> vector<8x512xf32>
    %51 = arith.addf %47, %50 : vector<8x512xf32>
    %52 = vector.extract_strided_slice %51 {offsets = [0, 0], sizes = [8, 128], strides = [1, 1]} : vector<8x512xf32> to vector<8x128xf32>
    %cst_29 = arith.constant 5.000000e-01 : f32
    %53 = vector.broadcast %cst_29 : f32 to vector<8x128xf32>
    %54 = arith.mulf %53, %52 : vector<8x128xf32>
    %55 = math.tanh %54 : vector<8x128xf32>
    %cst_30 = arith.constant 5.000000e-01 : f32
    %56 = vector.broadcast %cst_30 : f32 to vector<8x128xf32>
    %57 = arith.mulf %56, %55 : vector<8x128xf32>
    %cst_31 = arith.constant 5.000000e-01 : f32
    %58 = vector.broadcast %cst_31 : f32 to vector<8x128xf32>
    %59 = arith.addf %57, %58 : vector<8x128xf32>
    %60 = vector.extract_strided_slice %51 {offsets = [0, 128], sizes = [8, 128], strides = [1, 1]} : vector<8x512xf32> to vector<8x128xf32>
    %cst_32 = arith.constant 5.000000e-01 : f32
    %61 = vector.broadcast %cst_32 : f32 to vector<8x128xf32>
    %62 = arith.mulf %61, %60 : vector<8x128xf32>
    %63 = math.tanh %62 : vector<8x128xf32>
    %cst_33 = arith.constant 5.000000e-01 : f32
    %64 = vector.broadcast %cst_33 : f32 to vector<8x128xf32>
    %65 = arith.mulf %64, %63 : vector<8x128xf32>
    %cst_34 = arith.constant 5.000000e-01 : f32
    %66 = vector.broadcast %cst_34 : f32 to vector<8x128xf32>
    %67 = arith.addf %65, %66 : vector<8x128xf32>
    %68 = vector.extract_strided_slice %51 {offsets = [0, 256], sizes = [8, 128], strides = [1, 1]} : vector<8x512xf32> to vector<8x128xf32>
    %69 = math.tanh %68 : vector<8x128xf32>
    %70 = arith.mulf %67, %35 : vector<8x128xf32>
    %71 = arith.mulf %59, %69 : vector<8x128xf32>
    %72 = arith.addf %70, %71 : vector<8x128xf32>
    %73 = vector.extract_strided_slice %51 {offsets = [0, 384], sizes = [8, 128], strides = [1, 1]} : vector<8x512xf32> to vector<8x128xf32>
    %cst_35 = arith.constant 5.000000e-01 : f32
    %74 = vector.broadcast %cst_35 : f32 to vector<8x128xf32>
    %75 = arith.mulf %74, %73 : vector<8x128xf32>
    %76 = math.tanh %75 : vector<8x128xf32>
    %cst_36 = arith.constant 5.000000e-01 : f32
    %77 = vector.broadcast %cst_36 : f32 to vector<8x128xf32>
    %78 = arith.mulf %77, %76 : vector<8x128xf32>
    %cst_37 = arith.constant 5.000000e-01 : f32
    %79 = vector.broadcast %cst_37 : f32 to vector<8x128xf32>
    %80 = arith.addf %78, %79 : vector<8x128xf32>
    %81 = math.tanh %72 : vector<8x128xf32>
    %82 = arith.mulf %80, %81 : vector<8x128xf32>
    %c8_38 = arith.constant 8 : index
    %c0_39 = arith.constant 0 : index
    %83 = vector.load %arg14[%c8_38, %c0_39] : memref<64x128xf32, #tpu.memory_space<vmem>>, vector<8x128xf32>
    tpu.vector_store %arg14[%c8_38, %c0_39], %82 {strides = array<i32>} : memref<64x128xf32, #tpu.memory_space<vmem>>, vector<8x128xf32>,
    %c16 = arith.constant 16 : index
    %c0_40 = arith.constant 0 : index
    %84 = vector.load %arg13[%c16, %c0_40] : memref<64x512xf32, #tpu.memory_space<vmem>>, vector<8x512xf32>
    %85 = arith.truncf %82 : vector<8x128xf32> to vector<8x128xbf16>
    %c0_41 = arith.constant 0 : index
    %c0_42 = arith.constant 0 : index
    %86 = vector.load %arg2[%c0_41, %c0_42] : memref<128x512xbf16, #tpu.memory_space<vmem>>, vector<128x512xbf16>
    %cst_43 = arith.constant dense<0.000000e+00> : vector<8x512xf32>
    %87 = tpu.matmul %85, %86, %cst_43 {dimension_numbers = #tpu.dot_dimension_numbers<[1], [0], [0], [1], [0, 0, 1, 1], [], []>} : vector<8x128xbf16>, vector<128x512xbf16>, vector<8x512xf32> -> vector<8x512xf32>
    %88 = arith.addf %84, %87 : vector<8x512xf32>
    %89 = vector.extract_strided_slice %88 {offsets = [0, 0], sizes = [8, 128], strides = [1, 1]} : vector<8x512xf32> to vector<8x128xf32>
    %cst_44 = arith.constant 5.000000e-01 : f32
    %90 = vector.broadcast %cst_44 : f32 to vector<8x128xf32>
    %91 = arith.mulf %90, %89 : vector<8x128xf32>
    %92 = math.tanh %91 : vector<8x128xf32>
    %cst_45 = arith.constant 5.000000e-01 : f32
    %93 = vector.broadcast %cst_45 : f32 to vector<8x128xf32>
    %94 = arith.mulf %93, %92 : vector<8x128xf32>
    %cst_46 = arith.constant 5.000000e-01 : f32
    %95 = vector.broadcast %cst_46 : f32 to vector<8x128xf32>
    %96 = arith.addf %94, %95 : vector<8x128xf32>
    %97 = vector.extract_strided_slice %88 {offsets = [0, 128], sizes = [8, 128], strides = [1, 1]} : vector<8x512xf32> to vector<8x128xf32>
    %cst_47 = arith.constant 5.000000e-01 : f32
    %98 = vector.broadcast %cst_47 : f32 to vector<8x128xf32>
    %99 = arith.mulf %98, %97 : vector<8x128xf32>
    %100 = math.tanh %99 : vector<8x128xf32>
    %cst_48 = arith.constant 5.000000e-01 : f32
    %101 = vector.broadcast %cst_48 : f32 to vector<8x128xf32>
    %102 = arith.mulf %101, %100 : vector<8x128xf32>
    %cst_49 = arith.constant 5.000000e-01 : f32
    %103 = vector.broadcast %cst_49 : f32 to vector<8x128xf32>
    %104 = arith.addf %102, %103 : vector<8x128xf32>
    %105 = vector.extract_strided_slice %88 {offsets = [0, 256], sizes = [8, 128], strides = [1, 1]} : vector<8x512xf32> to vector<8x128xf32>
    %106 = math.tanh %105 : vector<8x128xf32>
    %107 = arith.mulf %104, %72 : vector<8x128xf32>
    %108 = arith.mulf %96, %106 : vector<8x128xf32>
    %109 = arith.addf %107, %108 : vector<8x128xf32>
    %110 = vector.extract_strided_slice %88 {offsets = [0, 384], sizes = [8, 128], strides = [1, 1]} : vector<8x512xf32> to vector<8x128xf32>
    %cst_50 = arith.constant 5.000000e-01 : f32
    %111 = vector.broadcast %cst_50 : f32 to vector<8x128xf32>
    %112 = arith.mulf %111, %110 : vector<8x128xf32>
    %113 = math.tanh %112 : vector<8x128xf32>
    %cst_51 = arith.constant 5.000000e-01 : f32
    %114 = vector.broadcast %cst_51 : f32 to vector<8x128xf32>
    %115 = arith.mulf %114, %113 : vector<8x128xf32>
    %cst_52 = arith.constant 5.000000e-01 : f32
    %116 = vector.broadcast %cst_52 : f32 to vector<8x128xf32>
    %117 = arith.addf %115, %116 : vector<8x128xf32>
    %118 = math.tanh %109 : vector<8x128xf32>
    %119 = arith.mulf %117, %118 : vector<8x128xf32>
    %c16_53 = arith.constant 16 : index
    %c0_54 = arith.constant 0 : index
    %120 = vector.load %arg14[%c16_53, %c0_54] : memref<64x128xf32, #tpu.memory_space<vmem>>, vector<8x128xf32>
    tpu.vector_store %arg14[%c16_53, %c0_54], %119 {strides = array<i32>} : memref<64x128xf32, #tpu.memory_space<vmem>>, vector<8x128xf32>,
    %c24 = arith.constant 24 : index
    %c0_55 = arith.constant 0 : index
    %121 = vector.load %arg13[%c24, %c0_55] : memref<64x512xf32, #tpu.memory_space<vmem>>, vector<8x512xf32>
    %122 = arith.truncf %119 : vector<8x128xf32> to vector<8x128xbf16>
    %c0_56 = arith.constant 0 : index
    %c0_57 = arith.constant 0 : index
    %123 = vector.load %arg2[%c0_56, %c0_57] : memref<128x512xbf16, #tpu.memory_space<vmem>>, vector<128x512xbf16>
    %cst_58 = arith.constant dense<0.000000e+00> : vector<8x512xf32>
    %124 = tpu.matmul %122, %123, %cst_58 {dimension_numbers = #tpu.dot_dimension_numbers<[1], [0], [0], [1], [0, 0, 1, 1], [], []>} : vector<8x128xbf16>, vector<128x512xbf16>, vector<8x512xf32> -> vector<8x512xf32>
    %125 = arith.addf %121, %124 : vector<8x512xf32>
    %126 = vector.extract_strided_slice %125 {offsets = [0, 0], sizes = [8, 128], strides = [1, 1]} : vector<8x512xf32> to vector<8x128xf32>
    %cst_59 = arith.constant 5.000000e-01 : f32
    %127 = vector.broadcast %cst_59 : f32 to vector<8x128xf32>
    %128 = arith.mulf %127, %126 : vector<8x128xf32>
    %129 = math.tanh %128 : vector<8x128xf32>
    %cst_60 = arith.constant 5.000000e-01 : f32
    %130 = vector.broadcast %cst_60 : f32 to vector<8x128xf32>
    %131 = arith.mulf %130, %129 : vector<8x128xf32>
    %cst_61 = arith.constant 5.000000e-01 : f32
    %132 = vector.broadcast %cst_61 : f32 to vector<8x128xf32>
    %133 = arith.addf %131, %132 : vector<8x128xf32>
    %134 = vector.extract_strided_slice %125 {offsets = [0, 128], sizes = [8, 128], strides = [1, 1]} : vector<8x512xf32> to vector<8x128xf32>
    %cst_62 = arith.constant 5.000000e-01 : f32
    %135 = vector.broadcast %cst_62 : f32 to vector<8x128xf32>
    %136 = arith.mulf %135, %134 : vector<8x128xf32>
    %137 = math.tanh %136 : vector<8x128xf32>
    %cst_63 = arith.constant 5.000000e-01 : f32
    %138 = vector.broadcast %cst_63 : f32 to vector<8x128xf32>
    %139 = arith.mulf %138, %137 : vector<8x128xf32>
    %cst_64 = arith.constant 5.000000e-01 : f32
    %140 = vector.broadcast %cst_64 : f32 to vector<8x128xf32>
    %141 = arith.addf %139, %140 : vector<8x128xf32>
    %142 = vector.extract_strided_slice %125 {offsets = [0, 256], sizes = [8, 128], strides = [1, 1]} : vector<8x512xf32> to vector<8x128xf32>
    %143 = math.tanh %142 : vector<8x128xf32>
    %144 = arith.mulf %141, %109 : vector<8x128xf32>
    %145 = arith.mulf %133, %143 : vector<8x128xf32>
    %146 = arith.addf %144, %145 : vector<8x128xf32>
    %147 = vector.extract_strided_slice %125 {offsets = [0, 384], sizes = [8, 128], strides = [1, 1]} : vector<8x512xf32> to vector<8x128xf32>
    %cst_65 = arith.constant 5.000000e-01 : f32
    %148 = vector.broadcast %cst_65 : f32 to vector<8x128xf32>
    %149 = arith.mulf %148, %147 : vector<8x128xf32>
    %150 = math.tanh %149 : vector<8x128xf32>
    %cst_66 = arith.constant 5.000000e-01 : f32
    %151 = vector.broadcast %cst_66 : f32 to vector<8x128xf32>
    %152 = arith.mulf %151, %150 : vector<8x128xf32>
    %cst_67 = arith.constant 5.000000e-01 : f32
    %153 = vector.broadcast %cst_67 : f32 to vector<8x128xf32>
    %154 = arith.addf %152, %153 : vector<8x128xf32>
    %155 = math.tanh %146 : vector<8x128xf32>
    %156 = arith.mulf %154, %155 : vector<8x128xf32>
    %c24_68 = arith.constant 24 : index
    %c0_69 = arith.constant 0 : index
    %157 = vector.load %arg14[%c24_68, %c0_69] : memref<64x128xf32, #tpu.memory_space<vmem>>, vector<8x128xf32>
    tpu.vector_store %arg14[%c24_68, %c0_69], %156 {strides = array<i32>} : memref<64x128xf32, #tpu.memory_space<vmem>>, vector<8x128xf32>,
    %c32 = arith.constant 32 : index
    %c0_70 = arith.constant 0 : index
    %158 = vector.load %arg13[%c32, %c0_70] : memref<64x512xf32, #tpu.memory_space<vmem>>, vector<8x512xf32>
    %159 = arith.truncf %156 : vector<8x128xf32> to vector<8x128xbf16>
    %c0_71 = arith.constant 0 : index
    %c0_72 = arith.constant 0 : index
    %160 = vector.load %arg2[%c0_71, %c0_72] : memref<128x512xbf16, #tpu.memory_space<vmem>>, vector<128x512xbf16>
    %cst_73 = arith.constant dense<0.000000e+00> : vector<8x512xf32>
    %161 = tpu.matmul %159, %160, %cst_73 {dimension_numbers = #tpu.dot_dimension_numbers<[1], [0], [0], [1], [0, 0, 1, 1], [], []>} : vector<8x128xbf16>, vector<128x512xbf16>, vector<8x512xf32> -> vector<8x512xf32>
    %162 = arith.addf %158, %161 : vector<8x512xf32>
    %163 = vector.extract_strided_slice %162 {offsets = [0, 0], sizes = [8, 128], strides = [1, 1]} : vector<8x512xf32> to vector<8x128xf32>
    %cst_74 = arith.constant 5.000000e-01 : f32
    %164 = vector.broadcast %cst_74 : f32 to vector<8x128xf32>
    %165 = arith.mulf %164, %163 : vector<8x128xf32>
    %166 = math.tanh %165 : vector<8x128xf32>
    %cst_75 = arith.constant 5.000000e-01 : f32
    %167 = vector.broadcast %cst_75 : f32 to vector<8x128xf32>
    %168 = arith.mulf %167, %166 : vector<8x128xf32>
    %cst_76 = arith.constant 5.000000e-01 : f32
    %169 = vector.broadcast %cst_76 : f32 to vector<8x128xf32>
    %170 = arith.addf %168, %169 : vector<8x128xf32>
    %171 = vector.extract_strided_slice %162 {offsets = [0, 128], sizes = [8, 128], strides = [1, 1]} : vector<8x512xf32> to vector<8x128xf32>
    %cst_77 = arith.constant 5.000000e-01 : f32
    %172 = vector.broadcast %cst_77 : f32 to vector<8x128xf32>
    %173 = arith.mulf %172, %171 : vector<8x128xf32>
    %174 = math.tanh %173 : vector<8x128xf32>
    %cst_78 = arith.constant 5.000000e-01 : f32
    %175 = vector.broadcast %cst_78 : f32 to vector<8x128xf32>
    %176 = arith.mulf %175, %174 : vector<8x128xf32>
    %cst_79 = arith.constant 5.000000e-01 : f32
    %177 = vector.broadcast %cst_79 : f32 to vector<8x128xf32>
    %178 = arith.addf %176, %177 : vector<8x128xf32>
    %179 = vector.extract_strided_slice %162 {offsets = [0, 256], sizes = [8, 128], strides = [1, 1]} : vector<8x512xf32> to vector<8x128xf32>
    %180 = math.tanh %179 : vector<8x128xf32>
    %181 = arith.mulf %178, %146 : vector<8x128xf32>
    %182 = arith.mulf %170, %180 : vector<8x128xf32>
    %183 = arith.addf %181, %182 : vector<8x128xf32>
    %184 = vector.extract_strided_slice %162 {offsets = [0, 384], sizes = [8, 128], strides = [1, 1]} : vector<8x512xf32> to vector<8x128xf32>
    %cst_80 = arith.constant 5.000000e-01 : f32
    %185 = vector.broadcast %cst_80 : f32 to vector<8x128xf32>
    %186 = arith.mulf %185, %184 : vector<8x128xf32>
    %187 = math.tanh %186 : vector<8x128xf32>
    %cst_81 = arith.constant 5.000000e-01 : f32
    %188 = vector.broadcast %cst_81 : f32 to vector<8x128xf32>
    %189 = arith.mulf %188, %187 : vector<8x128xf32>
    %cst_82 = arith.constant 5.000000e-01 : f32
    %190 = vector.broadcast %cst_82 : f32 to vector<8x128xf32>
    %191 = arith.addf %189, %190 : vector<8x128xf32>
    %192 = math.tanh %183 : vector<8x128xf32>
    %193 = arith.mulf %191, %192 : vector<8x128xf32>
    %c32_83 = arith.constant 32 : index
    %c0_84 = arith.constant 0 : index
    %194 = vector.load %arg14[%c32_83, %c0_84] : memref<64x128xf32, #tpu.memory_space<vmem>>, vector<8x128xf32>
    tpu.vector_store %arg14[%c32_83, %c0_84], %193 {strides = array<i32>} : memref<64x128xf32, #tpu.memory_space<vmem>>, vector<8x128xf32>,
    %c40 = arith.constant 40 : index
    %c0_85 = arith.constant 0 : index
    %195 = vector.load %arg13[%c40, %c0_85] : memref<64x512xf32, #tpu.memory_space<vmem>>, vector<8x512xf32>
    %196 = arith.truncf %193 : vector<8x128xf32> to vector<8x128xbf16>
    %c0_86 = arith.constant 0 : index
    %c0_87 = arith.constant 0 : index
    %197 = vector.load %arg2[%c0_86, %c0_87] : memref<128x512xbf16, #tpu.memory_space<vmem>>, vector<128x512xbf16>
    %cst_88 = arith.constant dense<0.000000e+00> : vector<8x512xf32>
    %198 = tpu.matmul %196, %197, %cst_88 {dimension_numbers = #tpu.dot_dimension_numbers<[1], [0], [0], [1], [0, 0, 1, 1], [], []>} : vector<8x128xbf16>, vector<128x512xbf16>, vector<8x512xf32> -> vector<8x512xf32>
    %199 = arith.addf %195, %198 : vector<8x512xf32>
    %200 = vector.extract_strided_slice %199 {offsets = [0, 0], sizes = [8, 128], strides = [1, 1]} : vector<8x512xf32> to vector<8x128xf32>
    %cst_89 = arith.constant 5.000000e-01 : f32
    %201 = vector.broadcast %cst_89 : f32 to vector<8x128xf32>
    %202 = arith.mulf %201, %200 : vector<8x128xf32>
    %203 = math.tanh %202 : vector<8x128xf32>
    %cst_90 = arith.constant 5.000000e-01 : f32
    %204 = vector.broadcast %cst_90 : f32 to vector<8x128xf32>
    %205 = arith.mulf %204, %203 : vector<8x128xf32>
    %cst_91 = arith.constant 5.000000e-01 : f32
    %206 = vector.broadcast %cst_91 : f32 to vector<8x128xf32>
    %207 = arith.addf %205, %206 : vector<8x128xf32>
    %208 = vector.extract_strided_slice %199 {offsets = [0, 128], sizes = [8, 128], strides = [1, 1]} : vector<8x512xf32> to vector<8x128xf32>
    %cst_92 = arith.constant 5.000000e-01 : f32
    %209 = vector.broadcast %cst_92 : f32 to vector<8x128xf32>
    %210 = arith.mulf %209, %208 : vector<8x128xf32>
    %211 = math.tanh %210 : vector<8x128xf32>
    %cst_93 = arith.constant 5.000000e-01 : f32
    %212 = vector.broadcast %cst_93 : f32 to vector<8x128xf32>
    %213 = arith.mulf %212, %211 : vector<8x128xf32>
    %cst_94 = arith.constant 5.000000e-01 : f32
    %214 = vector.broadcast %cst_94 : f32 to vector<8x128xf32>
    %215 = arith.addf %213, %214 : vector<8x128xf32>
    %216 = vector.extract_strided_slice %199 {offsets = [0, 256], sizes = [8, 128], strides = [1, 1]} : vector<8x512xf32> to vector<8x128xf32>
    %217 = math.tanh %216 : vector<8x128xf32>
    %218 = arith.mulf %215, %183 : vector<8x128xf32>
    %219 = arith.mulf %207, %217 : vector<8x128xf32>
    %220 = arith.addf %218, %219 : vector<8x128xf32>
    %221 = vector.extract_strided_slice %199 {offsets = [0, 384], sizes = [8, 128], strides = [1, 1]} : vector<8x512xf32> to vector<8x128xf32>
    %cst_95 = arith.constant 5.000000e-01 : f32
    %222 = vector.broadcast %cst_95 : f32 to vector<8x128xf32>
    %223 = arith.mulf %222, %221 : vector<8x128xf32>
    %224 = math.tanh %223 : vector<8x128xf32>
    %cst_96 = arith.constant 5.000000e-01 : f32
    %225 = vector.broadcast %cst_96 : f32 to vector<8x128xf32>
    %226 = arith.mulf %225, %224 : vector<8x128xf32>
    %cst_97 = arith.constant 5.000000e-01 : f32
    %227 = vector.broadcast %cst_97 : f32 to vector<8x128xf32>
    %228 = arith.addf %226, %227 : vector<8x128xf32>
    %229 = math.tanh %220 : vector<8x128xf32>
    %230 = arith.mulf %228, %229 : vector<8x128xf32>
    %c40_98 = arith.constant 40 : index
    %c0_99 = arith.constant 0 : index
    %231 = vector.load %arg14[%c40_98, %c0_99] : memref<64x128xf32, #tpu.memory_space<vmem>>, vector<8x128xf32>
    tpu.vector_store %arg14[%c40_98, %c0_99], %230 {strides = array<i32>} : memref<64x128xf32, #tpu.memory_space<vmem>>, vector<8x128xf32>,
    %c48 = arith.constant 48 : index
    %c0_100 = arith.constant 0 : index
    %232 = vector.load %arg13[%c48, %c0_100] : memref<64x512xf32, #tpu.memory_space<vmem>>, vector<8x512xf32>
    %233 = arith.truncf %230 : vector<8x128xf32> to vector<8x128xbf16>
    %c0_101 = arith.constant 0 : index
    %c0_102 = arith.constant 0 : index
    %234 = vector.load %arg2[%c0_101, %c0_102] : memref<128x512xbf16, #tpu.memory_space<vmem>>, vector<128x512xbf16>
    %cst_103 = arith.constant dense<0.000000e+00> : vector<8x512xf32>
    %235 = tpu.matmul %233, %234, %cst_103 {dimension_numbers = #tpu.dot_dimension_numbers<[1], [0], [0], [1], [0, 0, 1, 1], [], []>} : vector<8x128xbf16>, vector<128x512xbf16>, vector<8x512xf32> -> vector<8x512xf32>
    %236 = arith.addf %232, %235 : vector<8x512xf32>
    %237 = vector.extract_strided_slice %236 {offsets = [0, 0], sizes = [8, 128], strides = [1, 1]} : vector<8x512xf32> to vector<8x128xf32>
    %cst_104 = arith.constant 5.000000e-01 : f32
    %238 = vector.broadcast %cst_104 : f32 to vector<8x128xf32>
    %239 = arith.mulf %238, %237 : vector<8x128xf32>
    %240 = math.tanh %239 : vector<8x128xf32>
    %cst_105 = arith.constant 5.000000e-01 : f32
    %241 = vector.broadcast %cst_105 : f32 to vector<8x128xf32>
    %242 = arith.mulf %241, %240 : vector<8x128xf32>
    %cst_106 = arith.constant 5.000000e-01 : f32
    %243 = vector.broadcast %cst_106 : f32 to vector<8x128xf32>
    %244 = arith.addf %242, %243 : vector<8x128xf32>
    %245 = vector.extract_strided_slice %236 {offsets = [0, 128], sizes = [8, 128], strides = [1, 1]} : vector<8x512xf32> to vector<8x128xf32>
    %cst_107 = arith.constant 5.000000e-01 : f32
    %246 = vector.broadcast %cst_107 : f32 to vector<8x128xf32>
    %247 = arith.mulf %246, %245 : vector<8x128xf32>
    %248 = math.tanh %247 : vector<8x128xf32>
    %cst_108 = arith.constant 5.000000e-01 : f32
    %249 = vector.broadcast %cst_108 : f32 to vector<8x128xf32>
    %250 = arith.mulf %249, %248 : vector<8x128xf32>
    %cst_109 = arith.constant 5.000000e-01 : f32
    %251 = vector.broadcast %cst_109 : f32 to vector<8x128xf32>
    %252 = arith.addf %250, %251 : vector<8x128xf32>
    %253 = vector.extract_strided_slice %236 {offsets = [0, 256], sizes = [8, 128], strides = [1, 1]} : vector<8x512xf32> to vector<8x128xf32>
    %254 = math.tanh %253 : vector<8x128xf32>
    %255 = arith.mulf %252, %220 : vector<8x128xf32>
    %256 = arith.mulf %244, %254 : vector<8x128xf32>
    %257 = arith.addf %255, %256 : vector<8x128xf32>
    %258 = vector.extract_strided_slice %236 {offsets = [0, 384], sizes = [8, 128], strides = [1, 1]} : vector<8x512xf32> to vector<8x128xf32>
    %cst_110 = arith.constant 5.000000e-01 : f32
    %259 = vector.broadcast %cst_110 : f32 to vector<8x128xf32>
    %260 = arith.mulf %259, %258 : vector<8x128xf32>
    %261 = math.tanh %260 : vector<8x128xf32>
    %cst_111 = arith.constant 5.000000e-01 : f32
    %262 = vector.broadcast %cst_111 : f32 to vector<8x128xf32>
    %263 = arith.mulf %262, %261 : vector<8x128xf32>
    %cst_112 = arith.constant 5.000000e-01 : f32
    %264 = vector.broadcast %cst_112 : f32 to vector<8x128xf32>
    %265 = arith.addf %263, %264 : vector<8x128xf32>
    %266 = math.tanh %257 : vector<8x128xf32>
    %267 = arith.mulf %265, %266 : vector<8x128xf32>
    %c48_113 = arith.constant 48 : index
    %c0_114 = arith.constant 0 : index
    %268 = vector.load %arg14[%c48_113, %c0_114] : memref<64x128xf32, #tpu.memory_space<vmem>>, vector<8x128xf32>
    tpu.vector_store %arg14[%c48_113, %c0_114], %267 {strides = array<i32>} : memref<64x128xf32, #tpu.memory_space<vmem>>, vector<8x128xf32>,
    %c56 = arith.constant 56 : index
    %c0_115 = arith.constant 0 : index
    %269 = vector.load %arg13[%c56, %c0_115] : memref<64x512xf32, #tpu.memory_space<vmem>>, vector<8x512xf32>
    %270 = arith.truncf %267 : vector<8x128xf32> to vector<8x128xbf16>
    %c0_116 = arith.constant 0 : index
    %c0_117 = arith.constant 0 : index
    %271 = vector.load %arg2[%c0_116, %c0_117] : memref<128x512xbf16, #tpu.memory_space<vmem>>, vector<128x512xbf16>
    %cst_118 = arith.constant dense<0.000000e+00> : vector<8x512xf32>
    %272 = tpu.matmul %270, %271, %cst_118 {dimension_numbers = #tpu.dot_dimension_numbers<[1], [0], [0], [1], [0, 0, 1, 1], [], []>} : vector<8x128xbf16>, vector<128x512xbf16>, vector<8x512xf32> -> vector<8x512xf32>
    %273 = arith.addf %269, %272 : vector<8x512xf32>
    %274 = vector.extract_strided_slice %273 {offsets = [0, 0], sizes = [8, 128], strides = [1, 1]} : vector<8x512xf32> to vector<8x128xf32>
    %cst_119 = arith.constant 5.000000e-01 : f32
    %275 = vector.broadcast %cst_119 : f32 to vector<8x128xf32>
    %276 = arith.mulf %275, %274 : vector<8x128xf32>
    %277 = math.tanh %276 : vector<8x128xf32>
    %cst_120 = arith.constant 5.000000e-01 : f32
    %278 = vector.broadcast %cst_120 : f32 to vector<8x128xf32>
    %279 = arith.mulf %278, %277 : vector<8x128xf32>
    %cst_121 = arith.constant 5.000000e-01 : f32
    %280 = vector.broadcast %cst_121 : f32 to vector<8x128xf32>
    %281 = arith.addf %279, %280 : vector<8x128xf32>
    %282 = vector.extract_strided_slice %273 {offsets = [0, 128], sizes = [8, 128], strides = [1, 1]} : vector<8x512xf32> to vector<8x128xf32>
    %cst_122 = arith.constant 5.000000e-01 : f32
    %283 = vector.broadcast %cst_122 : f32 to vector<8x128xf32>
    %284 = arith.mulf %283, %282 : vector<8x128xf32>
    %285 = math.tanh %284 : vector<8x128xf32>
    %cst_123 = arith.constant 5.000000e-01 : f32
    %286 = vector.broadcast %cst_123 : f32 to vector<8x128xf32>
    %287 = arith.mulf %286, %285 : vector<8x128xf32>
    %cst_124 = arith.constant 5.000000e-01 : f32
    %288 = vector.broadcast %cst_124 : f32 to vector<8x128xf32>
    %289 = arith.addf %287, %288 : vector<8x128xf32>
    %290 = vector.extract_strided_slice %273 {offsets = [0, 256], sizes = [8, 128], strides = [1, 1]} : vector<8x512xf32> to vector<8x128xf32>
    %291 = math.tanh %290 : vector<8x128xf32>
    %292 = arith.mulf %289, %257 : vector<8x128xf32>
    %293 = arith.mulf %281, %291 : vector<8x128xf32>
    %294 = arith.addf %292, %293 : vector<8x128xf32>
    %295 = vector.extract_strided_slice %273 {offsets = [0, 384], sizes = [8, 128], strides = [1, 1]} : vector<8x512xf32> to vector<8x128xf32>
    %cst_125 = arith.constant 5.000000e-01 : f32
    %296 = vector.broadcast %cst_125 : f32 to vector<8x128xf32>
    %297 = arith.mulf %296, %295 : vector<8x128xf32>
    %298 = math.tanh %297 : vector<8x128xf32>
    %cst_126 = arith.constant 5.000000e-01 : f32
    %299 = vector.broadcast %cst_126 : f32 to vector<8x128xf32>
    %300 = arith.mulf %299, %298 : vector<8x128xf32>
    %cst_127 = arith.constant 5.000000e-01 : f32
    %301 = vector.broadcast %cst_127 : f32 to vector<8x128xf32>
    %302 = arith.addf %300, %301 : vector<8x128xf32>
    %303 = math.tanh %294 : vector<8x128xf32>
    %304 = arith.mulf %302, %303 : vector<8x128xf32>
    %c56_128 = arith.constant 56 : index
    %c0_129 = arith.constant 0 : index
    %305 = vector.load %arg14[%c56_128, %c0_129] : memref<64x128xf32, #tpu.memory_space<vmem>>, vector<8x128xf32>
    tpu.vector_store %arg14[%c56_128, %c0_129], %304 {strides = array<i32>} : memref<64x128xf32, #tpu.memory_space<vmem>>, vector<8x128xf32>,
    %c0_130 = arith.constant 0 : index
    %c0_131 = arith.constant 0 : index
    %306 = vector.load %arg14[%c0_130, %c0_131] : memref<64x128xf32, #tpu.memory_space<vmem>>, vector<64x128xf32>
    %307 = arith.truncf %306 : vector<64x128xf32> to vector<64x128xbf16>
    %c0_132 = arith.constant 0 : index
    %c0_133 = arith.constant 0 : index
    %308 = vector.load %arg4[%c0_132, %c0_133] : memref<128x512xbf16, #tpu.memory_space<vmem>>, vector<128x512xbf16>
    %cst_134 = arith.constant dense<0.000000e+00> : vector<64x512xf32>
    %309 = tpu.matmul %307, %308, %cst_134 {dimension_numbers = #tpu.dot_dimension_numbers<[1], [0], [0], [1], [0, 0, 1, 1], [], []>} : vector<64x128xbf16>, vector<128x512xbf16>, vector<64x512xf32> -> vector<64x512xf32>
    %c0_135 = arith.constant 0 : index
    %c0_136 = arith.constant 0 : index
    %310 = vector.load %arg6[%c0_135, %c0_136] : memref<1x512xf32, #tpu.memory_space<vmem>>, vector<1x512xf32>
    %311 = vector.broadcast %310 : vector<1x512xf32> to vector<64x512xf32>
    %312 = arith.addf %309, %311 : vector<64x512xf32>
    %c0_137 = arith.constant 0 : index
    %c0_138 = arith.constant 0 : index
    %313 = vector.load %arg13[%c0_137, %c0_138] : memref<64x512xf32, #tpu.memory_space<vmem>>, vector<64x512xf32>
    tpu.vector_store %arg13[%c0_137, %c0_138], %312 {strides = array<i32>} : memref<64x512xf32, #tpu.memory_space<vmem>>, vector<64x512xf32>,
    %cst_139 = arith.constant 0.000000e+00 : f32
    %314 = vector.broadcast %cst_139 : f32 to vector<8x128xf32>
    %cst_140 = arith.constant 0.000000e+00 : f32
    %315 = vector.broadcast %cst_140 : f32 to vector<8x128xf32>
    %c0_141 = arith.constant 0 : index
    %c0_142 = arith.constant 0 : index
    %316 = vector.load %arg13[%c0_141, %c0_142] : memref<64x512xf32, #tpu.memory_space<vmem>>, vector<8x512xf32>
    %317 = arith.truncf %314 : vector<8x128xf32> to vector<8x128xbf16>
    %c0_143 = arith.constant 0 : index
    %c0_144 = arith.constant 0 : index
    %318 = vector.load %arg5[%c0_143, %c0_144] : memref<128x512xbf16, #tpu.memory_space<vmem>>, vector<128x512xbf16>
    %cst_145 = arith.constant dense<0.000000e+00> : vector<8x512xf32>
    %319 = tpu.matmul %317, %318, %cst_145 {dimension_numbers = #tpu.dot_dimension_numbers<[1], [0], [0], [1], [0, 0, 1, 1], [], []>} : vector<8x128xbf16>, vector<128x512xbf16>, vector<8x512xf32> -> vector<8x512xf32>
    %320 = arith.addf %316, %319 : vector<8x512xf32>
    %321 = vector.extract_strided_slice %320 {offsets = [0, 0], sizes = [8, 128], strides = [1, 1]} : vector<8x512xf32> to vector<8x128xf32>
    %cst_146 = arith.constant 5.000000e-01 : f32
    %322 = vector.broadcast %cst_146 : f32 to vector<8x128xf32>
    %323 = arith.mulf %322, %321 : vector<8x128xf32>
    %324 = math.tanh %323 : vector<8x128xf32>
    %cst_147 = arith.constant 5.000000e-01 : f32
    %325 = vector.broadcast %cst_147 : f32 to vector<8x128xf32>
    %326 = arith.mulf %325, %324 : vector<8x128xf32>
    %cst_148 = arith.constant 5.000000e-01 : f32
    %327 = vector.broadcast %cst_148 : f32 to vector<8x128xf32>
    %328 = arith.addf %326, %327 : vector<8x128xf32>
    %329 = vector.extract_strided_slice %320 {offsets = [0, 128], sizes = [8, 128], strides = [1, 1]} : vector<8x512xf32> to vector<8x128xf32>
    %cst_149 = arith.constant 5.000000e-01 : f32
    %330 = vector.broadcast %cst_149 : f32 to vector<8x128xf32>
    %331 = arith.mulf %330, %329 : vector<8x128xf32>
    %332 = math.tanh %331 : vector<8x128xf32>
    %cst_150 = arith.constant 5.000000e-01 : f32
    %333 = vector.broadcast %cst_150 : f32 to vector<8x128xf32>
    %334 = arith.mulf %333, %332 : vector<8x128xf32>
    %cst_151 = arith.constant 5.000000e-01 : f32
    %335 = vector.broadcast %cst_151 : f32 to vector<8x128xf32>
    %336 = arith.addf %334, %335 : vector<8x128xf32>
    %337 = vector.extract_strided_slice %320 {offsets = [0, 256], sizes = [8, 128], strides = [1, 1]} : vector<8x512xf32> to vector<8x128xf32>
    %338 = math.tanh %337 : vector<8x128xf32>
    %339 = arith.mulf %336, %315 : vector<8x128xf32>
    %340 = arith.mulf %328, %338 : vector<8x128xf32>
    %341 = arith.addf %339, %340 : vector<8x128xf32>
    %342 = vector.extract_strided_slice %320 {offsets = [0, 384], sizes = [8, 128], strides = [1, 1]} : vector<8x512xf32> to vector<8x128xf32>
    %cst_152 = arith.constant 5.000000e-01 : f32
    %343 = vector.broadcast %cst_152 : f32 to vector<8x128xf32>
    %344 = arith.mulf %343, %342 : vector<8x128xf32>
    %345 = math.tanh %344 : vector<8x128xf32>
    %cst_153 = arith.constant 5.000000e-01 : f32
    %346 = vector.broadcast %cst_153 : f32 to vector<8x128xf32>
    %347 = arith.mulf %346, %345 : vector<8x128xf32>
    %cst_154 = arith.constant 5.000000e-01 : f32
    %348 = vector.broadcast %cst_154 : f32 to vector<8x128xf32>
    %349 = arith.addf %347, %348 : vector<8x128xf32>
    %350 = math.tanh %341 : vector<8x128xf32>
    %351 = arith.mulf %349, %350 : vector<8x128xf32>
    %c0_155 = arith.constant 0 : index
    %c0_156 = arith.constant 0 : index
    %352 = vector.load %arg14[%c0_155, %c0_156] : memref<64x128xf32, #tpu.memory_space<vmem>>, vector<8x128xf32>
    tpu.vector_store %arg14[%c0_155, %c0_156], %351 {strides = array<i32>} : memref<64x128xf32, #tpu.memory_space<vmem>>, vector<8x128xf32>,
    %c8_157 = arith.constant 8 : index
    %c0_158 = arith.constant 0 : index
    %353 = vector.load %arg13[%c8_157, %c0_158] : memref<64x512xf32, #tpu.memory_space<vmem>>, vector<8x512xf32>
    %354 = arith.truncf %351 : vector<8x128xf32> to vector<8x128xbf16>
    %c0_159 = arith.constant 0 : index
    %c0_160 = arith.constant 0 : index
    %355 = vector.load %arg5[%c0_159, %c0_160] : memref<128x512xbf16, #tpu.memory_space<vmem>>, vector<128x512xbf16>
    %cst_161 = arith.constant dense<0.000000e+00> : vector<8x512xf32>
    %356 = tpu.matmul %354, %355, %cst_161 {dimension_numbers = #tpu.dot_dimension_numbers<[1], [0], [0], [1], [0, 0, 1, 1], [], []>} : vector<8x128xbf16>, vector<128x512xbf16>, vector<8x512xf32> -> vector<8x512xf32>
    %357 = arith.addf %353, %356 : vector<8x512xf32>
    %358 = vector.extract_strided_slice %357 {offsets = [0, 0], sizes = [8, 128], strides = [1, 1]} : vector<8x512xf32> to vector<8x128xf32>
    %cst_162 = arith.constant 5.000000e-01 : f32
    %359 = vector.broadcast %cst_162 : f32 to vector<8x128xf32>
    %360 = arith.mulf %359, %358 : vector<8x128xf32>
    %361 = math.tanh %360 : vector<8x128xf32>
    %cst_163 = arith.constant 5.000000e-01 : f32
    %362 = vector.broadcast %cst_163 : f32 to vector<8x128xf32>
    %363 = arith.mulf %362, %361 : vector<8x128xf32>
    %cst_164 = arith.constant 5.000000e-01 : f32
    %364 = vector.broadcast %cst_164 : f32 to vector<8x128xf32>
    %365 = arith.addf %363, %364 : vector<8x128xf32>
    %366 = vector.extract_strided_slice %357 {offsets = [0, 128], sizes = [8, 128], strides = [1, 1]} : vector<8x512xf32> to vector<8x128xf32>
    %cst_165 = arith.constant 5.000000e-01 : f32
    %367 = vector.broadcast %cst_165 : f32 to vector<8x128xf32>
    %368 = arith.mulf %367, %366 : vector<8x128xf32>
    %369 = math.tanh %368 : vector<8x128xf32>
    %cst_166 = arith.constant 5.000000e-01 : f32
    %370 = vector.broadcast %cst_166 : f32 to vector<8x128xf32>
    %371 = arith.mulf %370, %369 : vector<8x128xf32>
    %cst_167 = arith.constant 5.000000e-01 : f32
    %372 = vector.broadcast %cst_167 : f32 to vector<8x128xf32>
    %373 = arith.addf %371, %372 : vector<8x128xf32>
    %374 = vector.extract_strided_slice %357 {offsets = [0, 256], sizes = [8, 128], strides = [1, 1]} : vector<8x512xf32> to vector<8x128xf32>
    %375 = math.tanh %374 : vector<8x128xf32>
    %376 = arith.mulf %373, %341 : vector<8x128xf32>
    %377 = arith.mulf %365, %375 : vector<8x128xf32>
    %378 = arith.addf %376, %377 : vector<8x128xf32>
    %379 = vector.extract_strided_slice %357 {offsets = [0, 384], sizes = [8, 128], strides = [1, 1]} : vector<8x512xf32> to vector<8x128xf32>
    %cst_168 = arith.constant 5.000000e-01 : f32
    %380 = vector.broadcast %cst_168 : f32 to vector<8x128xf32>
    %381 = arith.mulf %380, %379 : vector<8x128xf32>
    %382 = math.tanh %381 : vector<8x128xf32>
    %cst_169 = arith.constant 5.000000e-01 : f32
    %383 = vector.broadcast %cst_169 : f32 to vector<8x128xf32>
    %384 = arith.mulf %383, %382 : vector<8x128xf32>
    %cst_170 = arith.constant 5.000000e-01 : f32
    %385 = vector.broadcast %cst_170 : f32 to vector<8x128xf32>
    %386 = arith.addf %384, %385 : vector<8x128xf32>
    %387 = math.tanh %378 : vector<8x128xf32>
    %388 = arith.mulf %386, %387 : vector<8x128xf32>
    %c8_171 = arith.constant 8 : index
    %c0_172 = arith.constant 0 : index
    %389 = vector.load %arg14[%c8_171, %c0_172] : memref<64x128xf32, #tpu.memory_space<vmem>>, vector<8x128xf32>
    tpu.vector_store %arg14[%c8_171, %c0_172], %388 {strides = array<i32>} : memref<64x128xf32, #tpu.memory_space<vmem>>, vector<8x128xf32>,
    %c16_173 = arith.constant 16 : index
    %c0_174 = arith.constant 0 : index
    %390 = vector.load %arg13[%c16_173, %c0_174] : memref<64x512xf32, #tpu.memory_space<vmem>>, vector<8x512xf32>
    %391 = arith.truncf %388 : vector<8x128xf32> to vector<8x128xbf16>
    %c0_175 = arith.constant 0 : index
    %c0_176 = arith.constant 0 : index
    %392 = vector.load %arg5[%c0_175, %c0_176] : memref<128x512xbf16, #tpu.memory_space<vmem>>, vector<128x512xbf16>
    %cst_177 = arith.constant dense<0.000000e+00> : vector<8x512xf32>
    %393 = tpu.matmul %391, %392, %cst_177 {dimension_numbers = #tpu.dot_dimension_numbers<[1], [0], [0], [1], [0, 0, 1, 1], [], []>} : vector<8x128xbf16>, vector<128x512xbf16>, vector<8x512xf32> -> vector<8x512xf32>
    %394 = arith.addf %390, %393 : vector<8x512xf32>
    %395 = vector.extract_strided_slice %394 {offsets = [0, 0], sizes = [8, 128], strides = [1, 1]} : vector<8x512xf32> to vector<8x128xf32>
    %cst_178 = arith.constant 5.000000e-01 : f32
    %396 = vector.broadcast %cst_178 : f32 to vector<8x128xf32>
    %397 = arith.mulf %396, %395 : vector<8x128xf32>
    %398 = math.tanh %397 : vector<8x128xf32>
    %cst_179 = arith.constant 5.000000e-01 : f32
    %399 = vector.broadcast %cst_179 : f32 to vector<8x128xf32>
    %400 = arith.mulf %399, %398 : vector<8x128xf32>
    %cst_180 = arith.constant 5.000000e-01 : f32
    %401 = vector.broadcast %cst_180 : f32 to vector<8x128xf32>
    %402 = arith.addf %400, %401 : vector<8x128xf32>
    %403 = vector.extract_strided_slice %394 {offsets = [0, 128], sizes = [8, 128], strides = [1, 1]} : vector<8x512xf32> to vector<8x128xf32>
    %cst_181 = arith.constant 5.000000e-01 : f32
    %404 = vector.broadcast %cst_181 : f32 to vector<8x128xf32>
    %405 = arith.mulf %404, %403 : vector<8x128xf32>
    %406 = math.tanh %405 : vector<8x128xf32>
    %cst_182 = arith.constant 5.000000e-01 : f32
    %407 = vector.broadcast %cst_182 : f32 to vector<8x128xf32>
    %408 = arith.mulf %407, %406 : vector<8x128xf32>
    %cst_183 = arith.constant 5.000000e-01 : f32
    %409 = vector.broadcast %cst_183 : f32 to vector<8x128xf32>
    %410 = arith.addf %408, %409 : vector<8x128xf32>
    %411 = vector.extract_strided_slice %394 {offsets = [0, 256], sizes = [8, 128], strides = [1, 1]} : vector<8x512xf32> to vector<8x128xf32>
    %412 = math.tanh %411 : vector<8x128xf32>
    %413 = arith.mulf %410, %378 : vector<8x128xf32>
    %414 = arith.mulf %402, %412 : vector<8x128xf32>
    %415 = arith.addf %413, %414 : vector<8x128xf32>
    %416 = vector.extract_strided_slice %394 {offsets = [0, 384], sizes = [8, 128], strides = [1, 1]} : vector<8x512xf32> to vector<8x128xf32>
    %cst_184 = arith.constant 5.000000e-01 : f32
    %417 = vector.broadcast %cst_184 : f32 to vector<8x128xf32>
    %418 = arith.mulf %417, %416 : vector<8x128xf32>
    %419 = math.tanh %418 : vector<8x128xf32>
    %cst_185 = arith.constant 5.000000e-01 : f32
    %420 = vector.broadcast %cst_185 : f32 to vector<8x128xf32>
    %421 = arith.mulf %420, %419 : vector<8x128xf32>
    %cst_186 = arith.constant 5.000000e-01 : f32
    %422 = vector.broadcast %cst_186 : f32 to vector<8x128xf32>
    %423 = arith.addf %421, %422 : vector<8x128xf32>
    %424 = math.tanh %415 : vector<8x128xf32>
    %425 = arith.mulf %423, %424 : vector<8x128xf32>
    %c16_187 = arith.constant 16 : index
    %c0_188 = arith.constant 0 : index
    %426 = vector.load %arg14[%c16_187, %c0_188] : memref<64x128xf32, #tpu.memory_space<vmem>>, vector<8x128xf32>
    tpu.vector_store %arg14[%c16_187, %c0_188], %425 {strides = array<i32>} : memref<64x128xf32, #tpu.memory_space<vmem>>, vector<8x128xf32>,
    %c24_189 = arith.constant 24 : index
    %c0_190 = arith.constant 0 : index
    %427 = vector.load %arg13[%c24_189, %c0_190] : memref<64x512xf32, #tpu.memory_space<vmem>>, vector<8x512xf32>
    %428 = arith.truncf %425 : vector<8x128xf32> to vector<8x128xbf16>
    %c0_191 = arith.constant 0 : index
    %c0_192 = arith.constant 0 : index
    %429 = vector.load %arg5[%c0_191, %c0_192] : memref<128x512xbf16, #tpu.memory_space<vmem>>, vector<128x512xbf16>
    %cst_193 = arith.constant dense<0.000000e+00> : vector<8x512xf32>
    %430 = tpu.matmul %428, %429, %cst_193 {dimension_numbers = #tpu.dot_dimension_numbers<[1], [0], [0], [1], [0, 0, 1, 1], [], []>} : vector<8x128xbf16>, vector<128x512xbf16>, vector<8x512xf32> -> vector<8x512xf32>
    %431 = arith.addf %427, %430 : vector<8x512xf32>
    %432 = vector.extract_strided_slice %431 {offsets = [0, 0], sizes = [8, 128], strides = [1, 1]} : vector<8x512xf32> to vector<8x128xf32>
    %cst_194 = arith.constant 5.000000e-01 : f32
    %433 = vector.broadcast %cst_194 : f32 to vector<8x128xf32>
    %434 = arith.mulf %433, %432 : vector<8x128xf32>
    %435 = math.tanh %434 : vector<8x128xf32>
    %cst_195 = arith.constant 5.000000e-01 : f32
    %436 = vector.broadcast %cst_195 : f32 to vector<8x128xf32>
    %437 = arith.mulf %436, %435 : vector<8x128xf32>
    %cst_196 = arith.constant 5.000000e-01 : f32
    %438 = vector.broadcast %cst_196 : f32 to vector<8x128xf32>
    %439 = arith.addf %437, %438 : vector<8x128xf32>
    %440 = vector.extract_strided_slice %431 {offsets = [0, 128], sizes = [8, 128], strides = [1, 1]} : vector<8x512xf32> to vector<8x128xf32>
    %cst_197 = arith.constant 5.000000e-01 : f32
    %441 = vector.broadcast %cst_197 : f32 to vector<8x128xf32>
    %442 = arith.mulf %441, %440 : vector<8x128xf32>
    %443 = math.tanh %442 : vector<8x128xf32>
    %cst_198 = arith.constant 5.000000e-01 : f32
    %444 = vector.broadcast %cst_198 : f32 to vector<8x128xf32>
    %445 = arith.mulf %444, %443 : vector<8x128xf32>
    %cst_199 = arith.constant 5.000000e-01 : f32
    %446 = vector.broadcast %cst_199 : f32 to vector<8x128xf32>
    %447 = arith.addf %445, %446 : vector<8x128xf32>
    %448 = vector.extract_strided_slice %431 {offsets = [0, 256], sizes = [8, 128], strides = [1, 1]} : vector<8x512xf32> to vector<8x128xf32>
    %449 = math.tanh %448 : vector<8x128xf32>
    %450 = arith.mulf %447, %415 : vector<8x128xf32>
    %451 = arith.mulf %439, %449 : vector<8x128xf32>
    %452 = arith.addf %450, %451 : vector<8x128xf32>
    %453 = vector.extract_strided_slice %431 {offsets = [0, 384], sizes = [8, 128], strides = [1, 1]} : vector<8x512xf32> to vector<8x128xf32>
    %cst_200 = arith.constant 5.000000e-01 : f32
    %454 = vector.broadcast %cst_200 : f32 to vector<8x128xf32>
    %455 = arith.mulf %454, %453 : vector<8x128xf32>
    %456 = math.tanh %455 : vector<8x128xf32>
    %cst_201 = arith.constant 5.000000e-01 : f32
    %457 = vector.broadcast %cst_201 : f32 to vector<8x128xf32>
    %458 = arith.mulf %457, %456 : vector<8x128xf32>
    %cst_202 = arith.constant 5.000000e-01 : f32
    %459 = vector.broadcast %cst_202 : f32 to vector<8x128xf32>
    %460 = arith.addf %458, %459 : vector<8x128xf32>
    %461 = math.tanh %452 : vector<8x128xf32>
    %462 = arith.mulf %460, %461 : vector<8x128xf32>
    %c24_203 = arith.constant 24 : index
    %c0_204 = arith.constant 0 : index
    %463 = vector.load %arg14[%c24_203, %c0_204] : memref<64x128xf32, #tpu.memory_space<vmem>>, vector<8x128xf32>
    tpu.vector_store %arg14[%c24_203, %c0_204], %462 {strides = array<i32>} : memref<64x128xf32, #tpu.memory_space<vmem>>, vector<8x128xf32>,
    %c32_205 = arith.constant 32 : index
    %c0_206 = arith.constant 0 : index
    %464 = vector.load %arg13[%c32_205, %c0_206] : memref<64x512xf32, #tpu.memory_space<vmem>>, vector<8x512xf32>
    %465 = arith.truncf %462 : vector<8x128xf32> to vector<8x128xbf16>
    %c0_207 = arith.constant 0 : index
    %c0_208 = arith.constant 0 : index
    %466 = vector.load %arg5[%c0_207, %c0_208] : memref<128x512xbf16, #tpu.memory_space<vmem>>, vector<128x512xbf16>
    %cst_209 = arith.constant dense<0.000000e+00> : vector<8x512xf32>
    %467 = tpu.matmul %465, %466, %cst_209 {dimension_numbers = #tpu.dot_dimension_numbers<[1], [0], [0], [1], [0, 0, 1, 1], [], []>} : vector<8x128xbf16>, vector<128x512xbf16>, vector<8x512xf32> -> vector<8x512xf32>
    %468 = arith.addf %464, %467 : vector<8x512xf32>
    %469 = vector.extract_strided_slice %468 {offsets = [0, 0], sizes = [8, 128], strides = [1, 1]} : vector<8x512xf32> to vector<8x128xf32>
    %cst_210 = arith.constant 5.000000e-01 : f32
    %470 = vector.broadcast %cst_210 : f32 to vector<8x128xf32>
    %471 = arith.mulf %470, %469 : vector<8x128xf32>
    %472 = math.tanh %471 : vector<8x128xf32>
    %cst_211 = arith.constant 5.000000e-01 : f32
    %473 = vector.broadcast %cst_211 : f32 to vector<8x128xf32>
    %474 = arith.mulf %473, %472 : vector<8x128xf32>
    %cst_212 = arith.constant 5.000000e-01 : f32
    %475 = vector.broadcast %cst_212 : f32 to vector<8x128xf32>
    %476 = arith.addf %474, %475 : vector<8x128xf32>
    %477 = vector.extract_strided_slice %468 {offsets = [0, 128], sizes = [8, 128], strides = [1, 1]} : vector<8x512xf32> to vector<8x128xf32>
    %cst_213 = arith.constant 5.000000e-01 : f32
    %478 = vector.broadcast %cst_213 : f32 to vector<8x128xf32>
    %479 = arith.mulf %478, %477 : vector<8x128xf32>
    %480 = math.tanh %479 : vector<8x128xf32>
    %cst_214 = arith.constant 5.000000e-01 : f32
    %481 = vector.broadcast %cst_214 : f32 to vector<8x128xf32>
    %482 = arith.mulf %481, %480 : vector<8x128xf32>
    %cst_215 = arith.constant 5.000000e-01 : f32
    %483 = vector.broadcast %cst_215 : f32 to vector<8x128xf32>
    %484 = arith.addf %482, %483 : vector<8x128xf32>
    %485 = vector.extract_strided_slice %468 {offsets = [0, 256], sizes = [8, 128], strides = [1, 1]} : vector<8x512xf32> to vector<8x128xf32>
    %486 = math.tanh %485 : vector<8x128xf32>
    %487 = arith.mulf %484, %452 : vector<8x128xf32>
    %488 = arith.mulf %476, %486 : vector<8x128xf32>
    %489 = arith.addf %487, %488 : vector<8x128xf32>
    %490 = vector.extract_strided_slice %468 {offsets = [0, 384], sizes = [8, 128], strides = [1, 1]} : vector<8x512xf32> to vector<8x128xf32>
    %cst_216 = arith.constant 5.000000e-01 : f32
    %491 = vector.broadcast %cst_216 : f32 to vector<8x128xf32>
    %492 = arith.mulf %491, %490 : vector<8x128xf32>
    %493 = math.tanh %492 : vector<8x128xf32>
    %cst_217 = arith.constant 5.000000e-01 : f32
    %494 = vector.broadcast %cst_217 : f32 to vector<8x128xf32>
    %495 = arith.mulf %494, %493 : vector<8x128xf32>
    %cst_218 = arith.constant 5.000000e-01 : f32
    %496 = vector.broadcast %cst_218 : f32 to vector<8x128xf32>
    %497 = arith.addf %495, %496 : vector<8x128xf32>
    %498 = math.tanh %489 : vector<8x128xf32>
    %499 = arith.mulf %497, %498 : vector<8x128xf32>
    %c32_219 = arith.constant 32 : index
    %c0_220 = arith.constant 0 : index
    %500 = vector.load %arg14[%c32_219, %c0_220] : memref<64x128xf32, #tpu.memory_space<vmem>>, vector<8x128xf32>
    tpu.vector_store %arg14[%c32_219, %c0_220], %499 {strides = array<i32>} : memref<64x128xf32, #tpu.memory_space<vmem>>, vector<8x128xf32>,
    %c40_221 = arith.constant 40 : index
    %c0_222 = arith.constant 0 : index
    %501 = vector.load %arg13[%c40_221, %c0_222] : memref<64x512xf32, #tpu.memory_space<vmem>>, vector<8x512xf32>
    %502 = arith.truncf %499 : vector<8x128xf32> to vector<8x128xbf16>
    %c0_223 = arith.constant 0 : index
    %c0_224 = arith.constant 0 : index
    %503 = vector.load %arg5[%c0_223, %c0_224] : memref<128x512xbf16, #tpu.memory_space<vmem>>, vector<128x512xbf16>
    %cst_225 = arith.constant dense<0.000000e+00> : vector<8x512xf32>
    %504 = tpu.matmul %502, %503, %cst_225 {dimension_numbers = #tpu.dot_dimension_numbers<[1], [0], [0], [1], [0, 0, 1, 1], [], []>} : vector<8x128xbf16>, vector<128x512xbf16>, vector<8x512xf32> -> vector<8x512xf32>
    %505 = arith.addf %501, %504 : vector<8x512xf32>
    %506 = vector.extract_strided_slice %505 {offsets = [0, 0], sizes = [8, 128], strides = [1, 1]} : vector<8x512xf32> to vector<8x128xf32>
    %cst_226 = arith.constant 5.000000e-01 : f32
    %507 = vector.broadcast %cst_226 : f32 to vector<8x128xf32>
    %508 = arith.mulf %507, %506 : vector<8x128xf32>
    %509 = math.tanh %508 : vector<8x128xf32>
    %cst_227 = arith.constant 5.000000e-01 : f32
    %510 = vector.broadcast %cst_227 : f32 to vector<8x128xf32>
    %511 = arith.mulf %510, %509 : vector<8x128xf32>
    %cst_228 = arith.constant 5.000000e-01 : f32
    %512 = vector.broadcast %cst_228 : f32 to vector<8x128xf32>
    %513 = arith.addf %511, %512 : vector<8x128xf32>
    %514 = vector.extract_strided_slice %505 {offsets = [0, 128], sizes = [8, 128], strides = [1, 1]} : vector<8x512xf32> to vector<8x128xf32>
    %cst_229 = arith.constant 5.000000e-01 : f32
    %515 = vector.broadcast %cst_229 : f32 to vector<8x128xf32>
    %516 = arith.mulf %515, %514 : vector<8x128xf32>
    %517 = math.tanh %516 : vector<8x128xf32>
    %cst_230 = arith.constant 5.000000e-01 : f32
    %518 = vector.broadcast %cst_230 : f32 to vector<8x128xf32>
    %519 = arith.mulf %518, %517 : vector<8x128xf32>
    %cst_231 = arith.constant 5.000000e-01 : f32
    %520 = vector.broadcast %cst_231 : f32 to vector<8x128xf32>
    %521 = arith.addf %519, %520 : vector<8x128xf32>
    %522 = vector.extract_strided_slice %505 {offsets = [0, 256], sizes = [8, 128], strides = [1, 1]} : vector<8x512xf32> to vector<8x128xf32>
    %523 = math.tanh %522 : vector<8x128xf32>
    %524 = arith.mulf %521, %489 : vector<8x128xf32>
    %525 = arith.mulf %513, %523 : vector<8x128xf32>
    %526 = arith.addf %524, %525 : vector<8x128xf32>
    %527 = vector.extract_strided_slice %505 {offsets = [0, 384], sizes = [8, 128], strides = [1, 1]} : vector<8x512xf32> to vector<8x128xf32>
    %cst_232 = arith.constant 5.000000e-01 : f32
    %528 = vector.broadcast %cst_232 : f32 to vector<8x128xf32>
    %529 = arith.mulf %528, %527 : vector<8x128xf32>
    %530 = math.tanh %529 : vector<8x128xf32>
    %cst_233 = arith.constant 5.000000e-01 : f32
    %531 = vector.broadcast %cst_233 : f32 to vector<8x128xf32>
    %532 = arith.mulf %531, %530 : vector<8x128xf32>
    %cst_234 = arith.constant 5.000000e-01 : f32
    %533 = vector.broadcast %cst_234 : f32 to vector<8x128xf32>
    %534 = arith.addf %532, %533 : vector<8x128xf32>
    %535 = math.tanh %526 : vector<8x128xf32>
    %536 = arith.mulf %534, %535 : vector<8x128xf32>
    %c40_235 = arith.constant 40 : index
    %c0_236 = arith.constant 0 : index
    %537 = vector.load %arg14[%c40_235, %c0_236] : memref<64x128xf32, #tpu.memory_space<vmem>>, vector<8x128xf32>
    tpu.vector_store %arg14[%c40_235, %c0_236], %536 {strides = array<i32>} : memref<64x128xf32, #tpu.memory_space<vmem>>, vector<8x128xf32>,
    %c48_237 = arith.constant 48 : index
    %c0_238 = arith.constant 0 : index
    %538 = vector.load %arg13[%c48_237, %c0_238] : memref<64x512xf32, #tpu.memory_space<vmem>>, vector<8x512xf32>
    %539 = arith.truncf %536 : vector<8x128xf32> to vector<8x128xbf16>
    %c0_239 = arith.constant 0 : index
    %c0_240 = arith.constant 0 : index
    %540 = vector.load %arg5[%c0_239, %c0_240] : memref<128x512xbf16, #tpu.memory_space<vmem>>, vector<128x512xbf16>
    %cst_241 = arith.constant dense<0.000000e+00> : vector<8x512xf32>
    %541 = tpu.matmul %539, %540, %cst_241 {dimension_numbers = #tpu.dot_dimension_numbers<[1], [0], [0], [1], [0, 0, 1, 1], [], []>} : vector<8x128xbf16>, vector<128x512xbf16>, vector<8x512xf32> -> vector<8x512xf32>
    %542 = arith.addf %538, %541 : vector<8x512xf32>
    %543 = vector.extract_strided_slice %542 {offsets = [0, 0], sizes = [8, 128], strides = [1, 1]} : vector<8x512xf32> to vector<8x128xf32>
    %cst_242 = arith.constant 5.000000e-01 : f32
    %544 = vector.broadcast %cst_242 : f32 to vector<8x128xf32>
    %545 = arith.mulf %544, %543 : vector<8x128xf32>
    %546 = math.tanh %545 : vector<8x128xf32>
    %cst_243 = arith.constant 5.000000e-01 : f32
    %547 = vector.broadcast %cst_243 : f32 to vector<8x128xf32>
    %548 = arith.mulf %547, %546 : vector<8x128xf32>
    %cst_244 = arith.constant 5.000000e-01 : f32
    %549 = vector.broadcast %cst_244 : f32 to vector<8x128xf32>
    %550 = arith.addf %548, %549 : vector<8x128xf32>
    %551 = vector.extract_strided_slice %542 {offsets = [0, 128], sizes = [8, 128], strides = [1, 1]} : vector<8x512xf32> to vector<8x128xf32>
    %cst_245 = arith.constant 5.000000e-01 : f32
    %552 = vector.broadcast %cst_245 : f32 to vector<8x128xf32>
    %553 = arith.mulf %552, %551 : vector<8x128xf32>
    %554 = math.tanh %553 : vector<8x128xf32>
    %cst_246 = arith.constant 5.000000e-01 : f32
    %555 = vector.broadcast %cst_246 : f32 to vector<8x128xf32>
    %556 = arith.mulf %555, %554 : vector<8x128xf32>
    %cst_247 = arith.constant 5.000000e-01 : f32
    %557 = vector.broadcast %cst_247 : f32 to vector<8x128xf32>
    %558 = arith.addf %556, %557 : vector<8x128xf32>
    %559 = vector.extract_strided_slice %542 {offsets = [0, 256], sizes = [8, 128], strides = [1, 1]} : vector<8x512xf32> to vector<8x128xf32>
    %560 = math.tanh %559 : vector<8x128xf32>
    %561 = arith.mulf %558, %526 : vector<8x128xf32>
    %562 = arith.mulf %550, %560 : vector<8x128xf32>
    %563 = arith.addf %561, %562 : vector<8x128xf32>
    %564 = vector.extract_strided_slice %542 {offsets = [0, 384], sizes = [8, 128], strides = [1, 1]} : vector<8x512xf32> to vector<8x128xf32>
    %cst_248 = arith.constant 5.000000e-01 : f32
    %565 = vector.broadcast %cst_248 : f32 to vector<8x128xf32>
    %566 = arith.mulf %565, %564 : vector<8x128xf32>
    %567 = math.tanh %566 : vector<8x128xf32>
    %cst_249 = arith.constant 5.000000e-01 : f32
    %568 = vector.broadcast %cst_249 : f32 to vector<8x128xf32>
    %569 = arith.mulf %568, %567 : vector<8x128xf32>
    %cst_250 = arith.constant 5.000000e-01 : f32
    %570 = vector.broadcast %cst_250 : f32 to vector<8x128xf32>
    %571 = arith.addf %569, %570 : vector<8x128xf32>
    %572 = math.tanh %563 : vector<8x128xf32>
    %573 = arith.mulf %571, %572 : vector<8x128xf32>
    %c48_251 = arith.constant 48 : index
    %c0_252 = arith.constant 0 : index
    %574 = vector.load %arg14[%c48_251, %c0_252] : memref<64x128xf32, #tpu.memory_space<vmem>>, vector<8x128xf32>
    tpu.vector_store %arg14[%c48_251, %c0_252], %573 {strides = array<i32>} : memref<64x128xf32, #tpu.memory_space<vmem>>, vector<8x128xf32>,
    %c56_253 = arith.constant 56 : index
    %c0_254 = arith.constant 0 : index
    %575 = vector.load %arg13[%c56_253, %c0_254] : memref<64x512xf32, #tpu.memory_space<vmem>>, vector<8x512xf32>
    %576 = arith.truncf %573 : vector<8x128xf32> to vector<8x128xbf16>
    %c0_255 = arith.constant 0 : index
    %c0_256 = arith.constant 0 : index
    %577 = vector.load %arg5[%c0_255, %c0_256] : memref<128x512xbf16, #tpu.memory_space<vmem>>, vector<128x512xbf16>
    %cst_257 = arith.constant dense<0.000000e+00> : vector<8x512xf32>
    %578 = tpu.matmul %576, %577, %cst_257 {dimension_numbers = #tpu.dot_dimension_numbers<[1], [0], [0], [1], [0, 0, 1, 1], [], []>} : vector<8x128xbf16>, vector<128x512xbf16>, vector<8x512xf32> -> vector<8x512xf32>
    %579 = arith.addf %575, %578 : vector<8x512xf32>
    %580 = vector.extract_strided_slice %579 {offsets = [0, 0], sizes = [8, 128], strides = [1, 1]} : vector<8x512xf32> to vector<8x128xf32>
    %cst_258 = arith.constant 5.000000e-01 : f32
    %581 = vector.broadcast %cst_258 : f32 to vector<8x128xf32>
    %582 = arith.mulf %581, %580 : vector<8x128xf32>
    %583 = math.tanh %582 : vector<8x128xf32>
    %cst_259 = arith.constant 5.000000e-01 : f32
    %584 = vector.broadcast %cst_259 : f32 to vector<8x128xf32>
    %585 = arith.mulf %584, %583 : vector<8x128xf32>
    %cst_260 = arith.constant 5.000000e-01 : f32
    %586 = vector.broadcast %cst_260 : f32 to vector<8x128xf32>
    %587 = arith.addf %585, %586 : vector<8x128xf32>
    %588 = vector.extract_strided_slice %579 {offsets = [0, 128], sizes = [8, 128], strides = [1, 1]} : vector<8x512xf32> to vector<8x128xf32>
    %cst_261 = arith.constant 5.000000e-01 : f32
    %589 = vector.broadcast %cst_261 : f32 to vector<8x128xf32>
    %590 = arith.mulf %589, %588 : vector<8x128xf32>
    %591 = math.tanh %590 : vector<8x128xf32>
    %cst_262 = arith.constant 5.000000e-01 : f32
    %592 = vector.broadcast %cst_262 : f32 to vector<8x128xf32>
    %593 = arith.mulf %592, %591 : vector<8x128xf32>
    %cst_263 = arith.constant 5.000000e-01 : f32
    %594 = vector.broadcast %cst_263 : f32 to vector<8x128xf32>
    %595 = arith.addf %593, %594 : vector<8x128xf32>
    %596 = vector.extract_strided_slice %579 {offsets = [0, 256], sizes = [8, 128], strides = [1, 1]} : vector<8x512xf32> to vector<8x128xf32>
    %597 = math.tanh %596 : vector<8x128xf32>
    %598 = arith.mulf %595, %563 : vector<8x128xf32>
    %599 = arith.mulf %587, %597 : vector<8x128xf32>
    %600 = arith.addf %598, %599 : vector<8x128xf32>
    %601 = vector.extract_strided_slice %579 {offsets = [0, 384], sizes = [8, 128], strides = [1, 1]} : vector<8x512xf32> to vector<8x128xf32>
    %cst_264 = arith.constant 5.000000e-01 : f32
    %602 = vector.broadcast %cst_264 : f32 to vector<8x128xf32>
    %603 = arith.mulf %602, %601 : vector<8x128xf32>
    %604 = math.tanh %603 : vector<8x128xf32>
    %cst_265 = arith.constant 5.000000e-01 : f32
    %605 = vector.broadcast %cst_265 : f32 to vector<8x128xf32>
    %606 = arith.mulf %605, %604 : vector<8x128xf32>
    %cst_266 = arith.constant 5.000000e-01 : f32
    %607 = vector.broadcast %cst_266 : f32 to vector<8x128xf32>
    %608 = arith.addf %606, %607 : vector<8x128xf32>
    %609 = math.tanh %600 : vector<8x128xf32>
    %610 = arith.mulf %608, %609 : vector<8x128xf32>
    %c56_267 = arith.constant 56 : index
    %c0_268 = arith.constant 0 : index
    %611 = vector.load %arg14[%c56_267, %c0_268] : memref<64x128xf32, #tpu.memory_space<vmem>>, vector<8x128xf32>
    tpu.vector_store %arg14[%c56_267, %c0_268], %610 {strides = array<i32>} : memref<64x128xf32, #tpu.memory_space<vmem>>, vector<8x128xf32>,
    %c0_269 = arith.constant 0 : index
    %c0_270 = arith.constant 0 : index
    %612 = vector.load %arg14[%c0_269, %c0_270] : memref<64x128xf32, #tpu.memory_space<vmem>>, vector<64x128xf32>
    %613 = arith.truncf %612 : vector<64x128xf32> to vector<64x128xbf16>
    %c0_271 = arith.constant 0 : index
    %c0_272 = arith.constant 0 : index
    %614 = vector.load %arg7[%c0_271, %c0_272] : memref<128x512xbf16, #tpu.memory_space<vmem>>, vector<128x512xbf16>
    %cst_273 = arith.constant dense<0.000000e+00> : vector<64x512xf32>
    %615 = tpu.matmul %613, %614, %cst_273 {dimension_numbers = #tpu.dot_dimension_numbers<[1], [0], [0], [1], [0, 0, 1, 1], [], []>} : vector<64x128xbf16>, vector<128x512xbf16>, vector<64x512xf32> -> vector<64x512xf32>
    %c0_274 = arith.constant 0 : index
    %c0_275 = arith.constant 0 : index
    %616 = vector.load %arg9[%c0_274, %c0_275] : memref<1x512xf32, #tpu.memory_space<vmem>>, vector<1x512xf32>
    %617 = vector.broadcast %616 : vector<1x512xf32> to vector<64x512xf32>
    %618 = arith.addf %615, %617 : vector<64x512xf32>
    %c0_276 = arith.constant 0 : index
    %c0_277 = arith.constant 0 : index
    %619 = vector.load %arg13[%c0_276, %c0_277] : memref<64x512xf32, #tpu.memory_space<vmem>>, vector<64x512xf32>
    tpu.vector_store %arg13[%c0_276, %c0_277], %618 {strides = array<i32>} : memref<64x512xf32, #tpu.memory_space<vmem>>, vector<64x512xf32>,
    %cst_278 = arith.constant 0.000000e+00 : f32
    %620 = vector.broadcast %cst_278 : f32 to vector<8x128xf32>
    %cst_279 = arith.constant 0.000000e+00 : f32
    %621 = vector.broadcast %cst_279 : f32 to vector<8x128xf32>
    %c0_280 = arith.constant 0 : index
    %c0_281 = arith.constant 0 : index
    %622 = vector.load %arg13[%c0_280, %c0_281] : memref<64x512xf32, #tpu.memory_space<vmem>>, vector<8x512xf32>
    %623 = arith.truncf %620 : vector<8x128xf32> to vector<8x128xbf16>
    %c0_282 = arith.constant 0 : index
    %c0_283 = arith.constant 0 : index
    %624 = vector.load %arg8[%c0_282, %c0_283] : memref<128x512xbf16, #tpu.memory_space<vmem>>, vector<128x512xbf16>
    %cst_284 = arith.constant dense<0.000000e+00> : vector<8x512xf32>
    %625 = tpu.matmul %623, %624, %cst_284 {dimension_numbers = #tpu.dot_dimension_numbers<[1], [0], [0], [1], [0, 0, 1, 1], [], []>} : vector<8x128xbf16>, vector<128x512xbf16>, vector<8x512xf32> -> vector<8x512xf32>
    %626 = arith.addf %622, %625 : vector<8x512xf32>
    %627 = vector.extract_strided_slice %626 {offsets = [0, 0], sizes = [8, 128], strides = [1, 1]} : vector<8x512xf32> to vector<8x128xf32>
    %cst_285 = arith.constant 5.000000e-01 : f32
    %628 = vector.broadcast %cst_285 : f32 to vector<8x128xf32>
    %629 = arith.mulf %628, %627 : vector<8x128xf32>
    %630 = math.tanh %629 : vector<8x128xf32>
    %cst_286 = arith.constant 5.000000e-01 : f32
    %631 = vector.broadcast %cst_286 : f32 to vector<8x128xf32>
    %632 = arith.mulf %631, %630 : vector<8x128xf32>
    %cst_287 = arith.constant 5.000000e-01 : f32
    %633 = vector.broadcast %cst_287 : f32 to vector<8x128xf32>
    %634 = arith.addf %632, %633 : vector<8x128xf32>
    %635 = vector.extract_strided_slice %626 {offsets = [0, 128], sizes = [8, 128], strides = [1, 1]} : vector<8x512xf32> to vector<8x128xf32>
    %cst_288 = arith.constant 5.000000e-01 : f32
    %636 = vector.broadcast %cst_288 : f32 to vector<8x128xf32>
    %637 = arith.mulf %636, %635 : vector<8x128xf32>
    %638 = math.tanh %637 : vector<8x128xf32>
    %cst_289 = arith.constant 5.000000e-01 : f32
    %639 = vector.broadcast %cst_289 : f32 to vector<8x128xf32>
    %640 = arith.mulf %639, %638 : vector<8x128xf32>
    %cst_290 = arith.constant 5.000000e-01 : f32
    %641 = vector.broadcast %cst_290 : f32 to vector<8x128xf32>
    %642 = arith.addf %640, %641 : vector<8x128xf32>
    %643 = vector.extract_strided_slice %626 {offsets = [0, 256], sizes = [8, 128], strides = [1, 1]} : vector<8x512xf32> to vector<8x128xf32>
    %644 = math.tanh %643 : vector<8x128xf32>
    %645 = arith.mulf %642, %621 : vector<8x128xf32>
    %646 = arith.mulf %634, %644 : vector<8x128xf32>
    %647 = arith.addf %645, %646 : vector<8x128xf32>
    %648 = vector.extract_strided_slice %626 {offsets = [0, 384], sizes = [8, 128], strides = [1, 1]} : vector<8x512xf32> to vector<8x128xf32>
    %cst_291 = arith.constant 5.000000e-01 : f32
    %649 = vector.broadcast %cst_291 : f32 to vector<8x128xf32>
    %650 = arith.mulf %649, %648 : vector<8x128xf32>
    %651 = math.tanh %650 : vector<8x128xf32>
    %cst_292 = arith.constant 5.000000e-01 : f32
    %652 = vector.broadcast %cst_292 : f32 to vector<8x128xf32>
    %653 = arith.mulf %652, %651 : vector<8x128xf32>
    %cst_293 = arith.constant 5.000000e-01 : f32
    %654 = vector.broadcast %cst_293 : f32 to vector<8x128xf32>
    %655 = arith.addf %653, %654 : vector<8x128xf32>
    %656 = math.tanh %647 : vector<8x128xf32>
    %657 = arith.mulf %655, %656 : vector<8x128xf32>
    %c8_294 = arith.constant 8 : index
    %c0_295 = arith.constant 0 : index
    %658 = vector.load %arg13[%c8_294, %c0_295] : memref<64x512xf32, #tpu.memory_space<vmem>>, vector<8x512xf32>
    %659 = arith.truncf %657 : vector<8x128xf32> to vector<8x128xbf16>
    %c0_296 = arith.constant 0 : index
    %c0_297 = arith.constant 0 : index
    %660 = vector.load %arg8[%c0_296, %c0_297] : memref<128x512xbf16, #tpu.memory_space<vmem>>, vector<128x512xbf16>
    %cst_298 = arith.constant dense<0.000000e+00> : vector<8x512xf32>
    %661 = tpu.matmul %659, %660, %cst_298 {dimension_numbers = #tpu.dot_dimension_numbers<[1], [0], [0], [1], [0, 0, 1, 1], [], []>} : vector<8x128xbf16>, vector<128x512xbf16>, vector<8x512xf32> -> vector<8x512xf32>
    %662 = arith.addf %658, %661 : vector<8x512xf32>
    %663 = vector.extract_strided_slice %662 {offsets = [0, 0], sizes = [8, 128], strides = [1, 1]} : vector<8x512xf32> to vector<8x128xf32>
    %cst_299 = arith.constant 5.000000e-01 : f32
    %664 = vector.broadcast %cst_299 : f32 to vector<8x128xf32>
    %665 = arith.mulf %664, %663 : vector<8x128xf32>
    %666 = math.tanh %665 : vector<8x128xf32>
    %cst_300 = arith.constant 5.000000e-01 : f32
    %667 = vector.broadcast %cst_300 : f32 to vector<8x128xf32>
    %668 = arith.mulf %667, %666 : vector<8x128xf32>
    %cst_301 = arith.constant 5.000000e-01 : f32
    %669 = vector.broadcast %cst_301 : f32 to vector<8x128xf32>
    %670 = arith.addf %668, %669 : vector<8x128xf32>
    %671 = vector.extract_strided_slice %662 {offsets = [0, 128], sizes = [8, 128], strides = [1, 1]} : vector<8x512xf32> to vector<8x128xf32>
    %cst_302 = arith.constant 5.000000e-01 : f32
    %672 = vector.broadcast %cst_302 : f32 to vector<8x128xf32>
    %673 = arith.mulf %672, %671 : vector<8x128xf32>
    %674 = math.tanh %673 : vector<8x128xf32>
    %cst_303 = arith.constant 5.000000e-01 : f32
    %675 = vector.broadcast %cst_303 : f32 to vector<8x128xf32>
    %676 = arith.mulf %675, %674 : vector<8x128xf32>
    %cst_304 = arith.constant 5.000000e-01 : f32
    %677 = vector.broadcast %cst_304 : f32 to vector<8x128xf32>
    %678 = arith.addf %676, %677 : vector<8x128xf32>
    %679 = vector.extract_strided_slice %662 {offsets = [0, 256], sizes = [8, 128], strides = [1, 1]} : vector<8x512xf32> to vector<8x128xf32>
    %680 = math.tanh %679 : vector<8x128xf32>
    %681 = arith.mulf %678, %647 : vector<8x128xf32>
    %682 = arith.mulf %670, %680 : vector<8x128xf32>
    %683 = arith.addf %681, %682 : vector<8x128xf32>
    %684 = vector.extract_strided_slice %662 {offsets = [0, 384], sizes = [8, 128], strides = [1, 1]} : vector<8x512xf32> to vector<8x128xf32>
    %cst_305 = arith.constant 5.000000e-01 : f32
    %685 = vector.broadcast %cst_305 : f32 to vector<8x128xf32>
    %686 = arith.mulf %685, %684 : vector<8x128xf32>
    %687 = math.tanh %686 : vector<8x128xf32>
    %cst_306 = arith.constant 5.000000e-01 : f32
    %688 = vector.broadcast %cst_306 : f32 to vector<8x128xf32>
    %689 = arith.mulf %688, %687 : vector<8x128xf32>
    %cst_307 = arith.constant 5.000000e-01 : f32
    %690 = vector.broadcast %cst_307 : f32 to vector<8x128xf32>
    %691 = arith.addf %689, %690 : vector<8x128xf32>
    %692 = math.tanh %683 : vector<8x128xf32>
    %693 = arith.mulf %691, %692 : vector<8x128xf32>
    %c16_308 = arith.constant 16 : index
    %c0_309 = arith.constant 0 : index
    %694 = vector.load %arg13[%c16_308, %c0_309] : memref<64x512xf32, #tpu.memory_space<vmem>>, vector<8x512xf32>
    %695 = arith.truncf %693 : vector<8x128xf32> to vector<8x128xbf16>
    %c0_310 = arith.constant 0 : index
    %c0_311 = arith.constant 0 : index
    %696 = vector.load %arg8[%c0_310, %c0_311] : memref<128x512xbf16, #tpu.memory_space<vmem>>, vector<128x512xbf16>
    %cst_312 = arith.constant dense<0.000000e+00> : vector<8x512xf32>
    %697 = tpu.matmul %695, %696, %cst_312 {dimension_numbers = #tpu.dot_dimension_numbers<[1], [0], [0], [1], [0, 0, 1, 1], [], []>} : vector<8x128xbf16>, vector<128x512xbf16>, vector<8x512xf32> -> vector<8x512xf32>
    %698 = arith.addf %694, %697 : vector<8x512xf32>
    %699 = vector.extract_strided_slice %698 {offsets = [0, 0], sizes = [8, 128], strides = [1, 1]} : vector<8x512xf32> to vector<8x128xf32>
    %cst_313 = arith.constant 5.000000e-01 : f32
    %700 = vector.broadcast %cst_313 : f32 to vector<8x128xf32>
    %701 = arith.mulf %700, %699 : vector<8x128xf32>
    %702 = math.tanh %701 : vector<8x128xf32>
    %cst_314 = arith.constant 5.000000e-01 : f32
    %703 = vector.broadcast %cst_314 : f32 to vector<8x128xf32>
    %704 = arith.mulf %703, %702 : vector<8x128xf32>
    %cst_315 = arith.constant 5.000000e-01 : f32
    %705 = vector.broadcast %cst_315 : f32 to vector<8x128xf32>
    %706 = arith.addf %704, %705 : vector<8x128xf32>
    %707 = vector.extract_strided_slice %698 {offsets = [0, 128], sizes = [8, 128], strides = [1, 1]} : vector<8x512xf32> to vector<8x128xf32>
    %cst_316 = arith.constant 5.000000e-01 : f32
    %708 = vector.broadcast %cst_316 : f32 to vector<8x128xf32>
    %709 = arith.mulf %708, %707 : vector<8x128xf32>
    %710 = math.tanh %709 : vector<8x128xf32>
    %cst_317 = arith.constant 5.000000e-01 : f32
    %711 = vector.broadcast %cst_317 : f32 to vector<8x128xf32>
    %712 = arith.mulf %711, %710 : vector<8x128xf32>
    %cst_318 = arith.constant 5.000000e-01 : f32
    %713 = vector.broadcast %cst_318 : f32 to vector<8x128xf32>
    %714 = arith.addf %712, %713 : vector<8x128xf32>
    %715 = vector.extract_strided_slice %698 {offsets = [0, 256], sizes = [8, 128], strides = [1, 1]} : vector<8x512xf32> to vector<8x128xf32>
    %716 = math.tanh %715 : vector<8x128xf32>
    %717 = arith.mulf %714, %683 : vector<8x128xf32>
    %718 = arith.mulf %706, %716 : vector<8x128xf32>
    %719 = arith.addf %717, %718 : vector<8x128xf32>
    %720 = vector.extract_strided_slice %698 {offsets = [0, 384], sizes = [8, 128], strides = [1, 1]} : vector<8x512xf32> to vector<8x128xf32>
    %cst_319 = arith.constant 5.000000e-01 : f32
    %721 = vector.broadcast %cst_319 : f32 to vector<8x128xf32>
    %722 = arith.mulf %721, %720 : vector<8x128xf32>
    %723 = math.tanh %722 : vector<8x128xf32>
    %cst_320 = arith.constant 5.000000e-01 : f32
    %724 = vector.broadcast %cst_320 : f32 to vector<8x128xf32>
    %725 = arith.mulf %724, %723 : vector<8x128xf32>
    %cst_321 = arith.constant 5.000000e-01 : f32
    %726 = vector.broadcast %cst_321 : f32 to vector<8x128xf32>
    %727 = arith.addf %725, %726 : vector<8x128xf32>
    %728 = math.tanh %719 : vector<8x128xf32>
    %729 = arith.mulf %727, %728 : vector<8x128xf32>
    %c24_322 = arith.constant 24 : index
    %c0_323 = arith.constant 0 : index
    %730 = vector.load %arg13[%c24_322, %c0_323] : memref<64x512xf32, #tpu.memory_space<vmem>>, vector<8x512xf32>
    %731 = arith.truncf %729 : vector<8x128xf32> to vector<8x128xbf16>
    %c0_324 = arith.constant 0 : index
    %c0_325 = arith.constant 0 : index
    %732 = vector.load %arg8[%c0_324, %c0_325] : memref<128x512xbf16, #tpu.memory_space<vmem>>, vector<128x512xbf16>
    %cst_326 = arith.constant dense<0.000000e+00> : vector<8x512xf32>
    %733 = tpu.matmul %731, %732, %cst_326 {dimension_numbers = #tpu.dot_dimension_numbers<[1], [0], [0], [1], [0, 0, 1, 1], [], []>} : vector<8x128xbf16>, vector<128x512xbf16>, vector<8x512xf32> -> vector<8x512xf32>
    %734 = arith.addf %730, %733 : vector<8x512xf32>
    %735 = vector.extract_strided_slice %734 {offsets = [0, 0], sizes = [8, 128], strides = [1, 1]} : vector<8x512xf32> to vector<8x128xf32>
    %cst_327 = arith.constant 5.000000e-01 : f32
    %736 = vector.broadcast %cst_327 : f32 to vector<8x128xf32>
    %737 = arith.mulf %736, %735 : vector<8x128xf32>
    %738 = math.tanh %737 : vector<8x128xf32>
    %cst_328 = arith.constant 5.000000e-01 : f32
    %739 = vector.broadcast %cst_328 : f32 to vector<8x128xf32>
    %740 = arith.mulf %739, %738 : vector<8x128xf32>
    %cst_329 = arith.constant 5.000000e-01 : f32
    %741 = vector.broadcast %cst_329 : f32 to vector<8x128xf32>
    %742 = arith.addf %740, %741 : vector<8x128xf32>
    %743 = vector.extract_strided_slice %734 {offsets = [0, 128], sizes = [8, 128], strides = [1, 1]} : vector<8x512xf32> to vector<8x128xf32>
    %cst_330 = arith.constant 5.000000e-01 : f32
    %744 = vector.broadcast %cst_330 : f32 to vector<8x128xf32>
    %745 = arith.mulf %744, %743 : vector<8x128xf32>
    %746 = math.tanh %745 : vector<8x128xf32>
    %cst_331 = arith.constant 5.000000e-01 : f32
    %747 = vector.broadcast %cst_331 : f32 to vector<8x128xf32>
    %748 = arith.mulf %747, %746 : vector<8x128xf32>
    %cst_332 = arith.constant 5.000000e-01 : f32
    %749 = vector.broadcast %cst_332 : f32 to vector<8x128xf32>
    %750 = arith.addf %748, %749 : vector<8x128xf32>
    %751 = vector.extract_strided_slice %734 {offsets = [0, 256], sizes = [8, 128], strides = [1, 1]} : vector<8x512xf32> to vector<8x128xf32>
    %752 = math.tanh %751 : vector<8x128xf32>
    %753 = arith.mulf %750, %719 : vector<8x128xf32>
    %754 = arith.mulf %742, %752 : vector<8x128xf32>
    %755 = arith.addf %753, %754 : vector<8x128xf32>
    %756 = vector.extract_strided_slice %734 {offsets = [0, 384], sizes = [8, 128], strides = [1, 1]} : vector<8x512xf32> to vector<8x128xf32>
    %cst_333 = arith.constant 5.000000e-01 : f32
    %757 = vector.broadcast %cst_333 : f32 to vector<8x128xf32>
    %758 = arith.mulf %757, %756 : vector<8x128xf32>
    %759 = math.tanh %758 : vector<8x128xf32>
    %cst_334 = arith.constant 5.000000e-01 : f32
    %760 = vector.broadcast %cst_334 : f32 to vector<8x128xf32>
    %761 = arith.mulf %760, %759 : vector<8x128xf32>
    %cst_335 = arith.constant 5.000000e-01 : f32
    %762 = vector.broadcast %cst_335 : f32 to vector<8x128xf32>
    %763 = arith.addf %761, %762 : vector<8x128xf32>
    %764 = math.tanh %755 : vector<8x128xf32>
    %765 = arith.mulf %763, %764 : vector<8x128xf32>
    %c32_336 = arith.constant 32 : index
    %c0_337 = arith.constant 0 : index
    %766 = vector.load %arg13[%c32_336, %c0_337] : memref<64x512xf32, #tpu.memory_space<vmem>>, vector<8x512xf32>
    %767 = arith.truncf %765 : vector<8x128xf32> to vector<8x128xbf16>
    %c0_338 = arith.constant 0 : index
    %c0_339 = arith.constant 0 : index
    %768 = vector.load %arg8[%c0_338, %c0_339] : memref<128x512xbf16, #tpu.memory_space<vmem>>, vector<128x512xbf16>
    %cst_340 = arith.constant dense<0.000000e+00> : vector<8x512xf32>
    %769 = tpu.matmul %767, %768, %cst_340 {dimension_numbers = #tpu.dot_dimension_numbers<[1], [0], [0], [1], [0, 0, 1, 1], [], []>} : vector<8x128xbf16>, vector<128x512xbf16>, vector<8x512xf32> -> vector<8x512xf32>
    %770 = arith.addf %766, %769 : vector<8x512xf32>
    %771 = vector.extract_strided_slice %770 {offsets = [0, 0], sizes = [8, 128], strides = [1, 1]} : vector<8x512xf32> to vector<8x128xf32>
    %cst_341 = arith.constant 5.000000e-01 : f32
    %772 = vector.broadcast %cst_341 : f32 to vector<8x128xf32>
    %773 = arith.mulf %772, %771 : vector<8x128xf32>
    %774 = math.tanh %773 : vector<8x128xf32>
    %cst_342 = arith.constant 5.000000e-01 : f32
    %775 = vector.broadcast %cst_342 : f32 to vector<8x128xf32>
    %776 = arith.mulf %775, %774 : vector<8x128xf32>
    %cst_343 = arith.constant 5.000000e-01 : f32
    %777 = vector.broadcast %cst_343 : f32 to vector<8x128xf32>
    %778 = arith.addf %776, %777 : vector<8x128xf32>
    %779 = vector.extract_strided_slice %770 {offsets = [0, 128], sizes = [8, 128], strides = [1, 1]} : vector<8x512xf32> to vector<8x128xf32>
    %cst_344 = arith.constant 5.000000e-01 : f32
    %780 = vector.broadcast %cst_344 : f32 to vector<8x128xf32>
    %781 = arith.mulf %780, %779 : vector<8x128xf32>
    %782 = math.tanh %781 : vector<8x128xf32>
    %cst_345 = arith.constant 5.000000e-01 : f32
    %783 = vector.broadcast %cst_345 : f32 to vector<8x128xf32>
    %784 = arith.mulf %783, %782 : vector<8x128xf32>
    %cst_346 = arith.constant 5.000000e-01 : f32
    %785 = vector.broadcast %cst_346 : f32 to vector<8x128xf32>
    %786 = arith.addf %784, %785 : vector<8x128xf32>
    %787 = vector.extract_strided_slice %770 {offsets = [0, 256], sizes = [8, 128], strides = [1, 1]} : vector<8x512xf32> to vector<8x128xf32>
    %788 = math.tanh %787 : vector<8x128xf32>
    %789 = arith.mulf %786, %755 : vector<8x128xf32>
    %790 = arith.mulf %778, %788 : vector<8x128xf32>
    %791 = arith.addf %789, %790 : vector<8x128xf32>
    %792 = vector.extract_strided_slice %770 {offsets = [0, 384], sizes = [8, 128], strides = [1, 1]} : vector<8x512xf32> to vector<8x128xf32>
    %cst_347 = arith.constant 5.000000e-01 : f32
    %793 = vector.broadcast %cst_347 : f32 to vector<8x128xf32>
    %794 = arith.mulf %793, %792 : vector<8x128xf32>
    %795 = math.tanh %794 : vector<8x128xf32>
    %cst_348 = arith.constant 5.000000e-01 : f32
    %796 = vector.broadcast %cst_348 : f32 to vector<8x128xf32>
    %797 = arith.mulf %796, %795 : vector<8x128xf32>
    %cst_349 = arith.constant 5.000000e-01 : f32
    %798 = vector.broadcast %cst_349 : f32 to vector<8x128xf32>
    %799 = arith.addf %797, %798 : vector<8x128xf32>
    %800 = math.tanh %791 : vector<8x128xf32>
    %801 = arith.mulf %799, %800 : vector<8x128xf32>
    %c40_350 = arith.constant 40 : index
    %c0_351 = arith.constant 0 : index
    %802 = vector.load %arg13[%c40_350, %c0_351] : memref<64x512xf32, #tpu.memory_space<vmem>>, vector<8x512xf32>
    %803 = arith.truncf %801 : vector<8x128xf32> to vector<8x128xbf16>
    %c0_352 = arith.constant 0 : index
    %c0_353 = arith.constant 0 : index
    %804 = vector.load %arg8[%c0_352, %c0_353] : memref<128x512xbf16, #tpu.memory_space<vmem>>, vector<128x512xbf16>
    %cst_354 = arith.constant dense<0.000000e+00> : vector<8x512xf32>
    %805 = tpu.matmul %803, %804, %cst_354 {dimension_numbers = #tpu.dot_dimension_numbers<[1], [0], [0], [1], [0, 0, 1, 1], [], []>} : vector<8x128xbf16>, vector<128x512xbf16>, vector<8x512xf32> -> vector<8x512xf32>
    %806 = arith.addf %802, %805 : vector<8x512xf32>
    %807 = vector.extract_strided_slice %806 {offsets = [0, 0], sizes = [8, 128], strides = [1, 1]} : vector<8x512xf32> to vector<8x128xf32>
    %cst_355 = arith.constant 5.000000e-01 : f32
    %808 = vector.broadcast %cst_355 : f32 to vector<8x128xf32>
    %809 = arith.mulf %808, %807 : vector<8x128xf32>
    %810 = math.tanh %809 : vector<8x128xf32>
    %cst_356 = arith.constant 5.000000e-01 : f32
    %811 = vector.broadcast %cst_356 : f32 to vector<8x128xf32>
    %812 = arith.mulf %811, %810 : vector<8x128xf32>
    %cst_357 = arith.constant 5.000000e-01 : f32
    %813 = vector.broadcast %cst_357 : f32 to vector<8x128xf32>
    %814 = arith.addf %812, %813 : vector<8x128xf32>
    %815 = vector.extract_strided_slice %806 {offsets = [0, 128], sizes = [8, 128], strides = [1, 1]} : vector<8x512xf32> to vector<8x128xf32>
    %cst_358 = arith.constant 5.000000e-01 : f32
    %816 = vector.broadcast %cst_358 : f32 to vector<8x128xf32>
    %817 = arith.mulf %816, %815 : vector<8x128xf32>
    %818 = math.tanh %817 : vector<8x128xf32>
    %cst_359 = arith.constant 5.000000e-01 : f32
    %819 = vector.broadcast %cst_359 : f32 to vector<8x128xf32>
    %820 = arith.mulf %819, %818 : vector<8x128xf32>
    %cst_360 = arith.constant 5.000000e-01 : f32
    %821 = vector.broadcast %cst_360 : f32 to vector<8x128xf32>
    %822 = arith.addf %820, %821 : vector<8x128xf32>
    %823 = vector.extract_strided_slice %806 {offsets = [0, 256], sizes = [8, 128], strides = [1, 1]} : vector<8x512xf32> to vector<8x128xf32>
    %824 = math.tanh %823 : vector<8x128xf32>
    %825 = arith.mulf %822, %791 : vector<8x128xf32>
    %826 = arith.mulf %814, %824 : vector<8x128xf32>
    %827 = arith.addf %825, %826 : vector<8x128xf32>
    %828 = vector.extract_strided_slice %806 {offsets = [0, 384], sizes = [8, 128], strides = [1, 1]} : vector<8x512xf32> to vector<8x128xf32>
    %cst_361 = arith.constant 5.000000e-01 : f32
    %829 = vector.broadcast %cst_361 : f32 to vector<8x128xf32>
    %830 = arith.mulf %829, %828 : vector<8x128xf32>
    %831 = math.tanh %830 : vector<8x128xf32>
    %cst_362 = arith.constant 5.000000e-01 : f32
    %832 = vector.broadcast %cst_362 : f32 to vector<8x128xf32>
    %833 = arith.mulf %832, %831 : vector<8x128xf32>
    %cst_363 = arith.constant 5.000000e-01 : f32
    %834 = vector.broadcast %cst_363 : f32 to vector<8x128xf32>
    %835 = arith.addf %833, %834 : vector<8x128xf32>
    %836 = math.tanh %827 : vector<8x128xf32>
    %837 = arith.mulf %835, %836 : vector<8x128xf32>
    %c48_364 = arith.constant 48 : index
    %c0_365 = arith.constant 0 : index
    %838 = vector.load %arg13[%c48_364, %c0_365] : memref<64x512xf32, #tpu.memory_space<vmem>>, vector<8x512xf32>
    %839 = arith.truncf %837 : vector<8x128xf32> to vector<8x128xbf16>
    %c0_366 = arith.constant 0 : index
    %c0_367 = arith.constant 0 : index
    %840 = vector.load %arg8[%c0_366, %c0_367] : memref<128x512xbf16, #tpu.memory_space<vmem>>, vector<128x512xbf16>
    %cst_368 = arith.constant dense<0.000000e+00> : vector<8x512xf32>
    %841 = tpu.matmul %839, %840, %cst_368 {dimension_numbers = #tpu.dot_dimension_numbers<[1], [0], [0], [1], [0, 0, 1, 1], [], []>} : vector<8x128xbf16>, vector<128x512xbf16>, vector<8x512xf32> -> vector<8x512xf32>
    %842 = arith.addf %838, %841 : vector<8x512xf32>
    %843 = vector.extract_strided_slice %842 {offsets = [0, 0], sizes = [8, 128], strides = [1, 1]} : vector<8x512xf32> to vector<8x128xf32>
    %cst_369 = arith.constant 5.000000e-01 : f32
    %844 = vector.broadcast %cst_369 : f32 to vector<8x128xf32>
    %845 = arith.mulf %844, %843 : vector<8x128xf32>
    %846 = math.tanh %845 : vector<8x128xf32>
    %cst_370 = arith.constant 5.000000e-01 : f32
    %847 = vector.broadcast %cst_370 : f32 to vector<8x128xf32>
    %848 = arith.mulf %847, %846 : vector<8x128xf32>
    %cst_371 = arith.constant 5.000000e-01 : f32
    %849 = vector.broadcast %cst_371 : f32 to vector<8x128xf32>
    %850 = arith.addf %848, %849 : vector<8x128xf32>
    %851 = vector.extract_strided_slice %842 {offsets = [0, 128], sizes = [8, 128], strides = [1, 1]} : vector<8x512xf32> to vector<8x128xf32>
    %cst_372 = arith.constant 5.000000e-01 : f32
    %852 = vector.broadcast %cst_372 : f32 to vector<8x128xf32>
    %853 = arith.mulf %852, %851 : vector<8x128xf32>
    %854 = math.tanh %853 : vector<8x128xf32>
    %cst_373 = arith.constant 5.000000e-01 : f32
    %855 = vector.broadcast %cst_373 : f32 to vector<8x128xf32>
    %856 = arith.mulf %855, %854 : vector<8x128xf32>
    %cst_374 = arith.constant 5.000000e-01 : f32
    %857 = vector.broadcast %cst_374 : f32 to vector<8x128xf32>
    %858 = arith.addf %856, %857 : vector<8x128xf32>
    %859 = vector.extract_strided_slice %842 {offsets = [0, 256], sizes = [8, 128], strides = [1, 1]} : vector<8x512xf32> to vector<8x128xf32>
    %860 = math.tanh %859 : vector<8x128xf32>
    %861 = arith.mulf %858, %827 : vector<8x128xf32>
    %862 = arith.mulf %850, %860 : vector<8x128xf32>
    %863 = arith.addf %861, %862 : vector<8x128xf32>
    %864 = vector.extract_strided_slice %842 {offsets = [0, 384], sizes = [8, 128], strides = [1, 1]} : vector<8x512xf32> to vector<8x128xf32>
    %cst_375 = arith.constant 5.000000e-01 : f32
    %865 = vector.broadcast %cst_375 : f32 to vector<8x128xf32>
    %866 = arith.mulf %865, %864 : vector<8x128xf32>
    %867 = math.tanh %866 : vector<8x128xf32>
    %cst_376 = arith.constant 5.000000e-01 : f32
    %868 = vector.broadcast %cst_376 : f32 to vector<8x128xf32>
    %869 = arith.mulf %868, %867 : vector<8x128xf32>
    %cst_377 = arith.constant 5.000000e-01 : f32
    %870 = vector.broadcast %cst_377 : f32 to vector<8x128xf32>
    %871 = arith.addf %869, %870 : vector<8x128xf32>
    %872 = math.tanh %863 : vector<8x128xf32>
    %873 = arith.mulf %871, %872 : vector<8x128xf32>
    %c56_378 = arith.constant 56 : index
    %c0_379 = arith.constant 0 : index
    %874 = vector.load %arg13[%c56_378, %c0_379] : memref<64x512xf32, #tpu.memory_space<vmem>>, vector<8x512xf32>
    %875 = arith.truncf %873 : vector<8x128xf32> to vector<8x128xbf16>
    %c0_380 = arith.constant 0 : index
    %c0_381 = arith.constant 0 : index
    %876 = vector.load %arg8[%c0_380, %c0_381] : memref<128x512xbf16, #tpu.memory_space<vmem>>, vector<128x512xbf16>
    %cst_382 = arith.constant dense<0.000000e+00> : vector<8x512xf32>
    %877 = tpu.matmul %875, %876, %cst_382 {dimension_numbers = #tpu.dot_dimension_numbers<[1], [0], [0], [1], [0, 0, 1, 1], [], []>} : vector<8x128xbf16>, vector<128x512xbf16>, vector<8x512xf32> -> vector<8x512xf32>
    %878 = arith.addf %874, %877 : vector<8x512xf32>
    %879 = vector.extract_strided_slice %878 {offsets = [0, 0], sizes = [8, 128], strides = [1, 1]} : vector<8x512xf32> to vector<8x128xf32>
    %cst_383 = arith.constant 5.000000e-01 : f32
    %880 = vector.broadcast %cst_383 : f32 to vector<8x128xf32>
    %881 = arith.mulf %880, %879 : vector<8x128xf32>
    %882 = math.tanh %881 : vector<8x128xf32>
    %cst_384 = arith.constant 5.000000e-01 : f32
    %883 = vector.broadcast %cst_384 : f32 to vector<8x128xf32>
    %884 = arith.mulf %883, %882 : vector<8x128xf32>
    %cst_385 = arith.constant 5.000000e-01 : f32
    %885 = vector.broadcast %cst_385 : f32 to vector<8x128xf32>
    %886 = arith.addf %884, %885 : vector<8x128xf32>
    %887 = vector.extract_strided_slice %878 {offsets = [0, 128], sizes = [8, 128], strides = [1, 1]} : vector<8x512xf32> to vector<8x128xf32>
    %cst_386 = arith.constant 5.000000e-01 : f32
    %888 = vector.broadcast %cst_386 : f32 to vector<8x128xf32>
    %889 = arith.mulf %888, %887 : vector<8x128xf32>
    %890 = math.tanh %889 : vector<8x128xf32>
    %cst_387 = arith.constant 5.000000e-01 : f32
    %891 = vector.broadcast %cst_387 : f32 to vector<8x128xf32>
    %892 = arith.mulf %891, %890 : vector<8x128xf32>
    %cst_388 = arith.constant 5.000000e-01 : f32
    %893 = vector.broadcast %cst_388 : f32 to vector<8x128xf32>
    %894 = arith.addf %892, %893 : vector<8x128xf32>
    %895 = vector.extract_strided_slice %878 {offsets = [0, 256], sizes = [8, 128], strides = [1, 1]} : vector<8x512xf32> to vector<8x128xf32>
    %896 = math.tanh %895 : vector<8x128xf32>
    %897 = arith.mulf %894, %863 : vector<8x128xf32>
    %898 = arith.mulf %886, %896 : vector<8x128xf32>
    %899 = arith.addf %897, %898 : vector<8x128xf32>
    %900 = vector.extract_strided_slice %878 {offsets = [0, 384], sizes = [8, 128], strides = [1, 1]} : vector<8x512xf32> to vector<8x128xf32>
    %cst_389 = arith.constant 5.000000e-01 : f32
    %901 = vector.broadcast %cst_389 : f32 to vector<8x128xf32>
    %902 = arith.mulf %901, %900 : vector<8x128xf32>
    %903 = math.tanh %902 : vector<8x128xf32>
    %cst_390 = arith.constant 5.000000e-01 : f32
    %904 = vector.broadcast %cst_390 : f32 to vector<8x128xf32>
    %905 = arith.mulf %904, %903 : vector<8x128xf32>
    %cst_391 = arith.constant 5.000000e-01 : f32
    %906 = vector.broadcast %cst_391 : f32 to vector<8x128xf32>
    %907 = arith.addf %905, %906 : vector<8x128xf32>
    %908 = math.tanh %899 : vector<8x128xf32>
    %909 = arith.mulf %907, %908 : vector<8x128xf32>
    %c0_392 = arith.constant 0 : index
    %c0_393 = arith.constant 0 : index
    %910 = vector.load %arg10[%c0_392, %c0_393] : memref<1x128xf32, #tpu.memory_space<vmem>>, vector<1x128xf32>
    %c0_394 = arith.constant 0 : index
    %c0_395 = arith.constant 0 : index
    %911 = vector.load %arg11[%c0_394, %c0_395] : memref<1x1xf32, #tpu.memory_space<vmem>>, vector<1x1xf32>
    %912 = vector.broadcast %910 : vector<1x128xf32> to vector<8x128xf32>
    %913 = arith.mulf %909, %912 : vector<8x128xf32>
    %cst_396 = arith.constant dense<0.000000e+00> : vector<8xf32>
    %914 = vector.multi_reduction <add>, %913, %cst_396 [1] : vector<8x128xf32> to vector<8xf32>
    %915 = vector.shape_cast %914 : vector<8xf32> to vector<8x1xf32>
    %916 = vector.broadcast %911 : vector<1x1xf32> to vector<8x1xf32>
    %917 = arith.addf %915, %916 : vector<8x1xf32>
    %918 = vector.extract_strided_slice %917 {offsets = [0, 0], sizes = [2, 1], strides = [1, 1]} : vector<8x1xf32> to vector<2x1xf32>
    %c0_397 = arith.constant 0 : index
    %c0_398 = arith.constant 0 : index
    %919 = vector.load %arg12[%c0_397, %c0_398] : memref<2x1xf32, #tpu.memory_space<vmem>>, vector<2x1xf32>
    tpu.vector_store %arg12[%c0_397, %c0_398], %918 {strides = array<i32>} : memref<2x1xf32, #tpu.memory_space<vmem>>, vector<2x1xf32>,
    return
  }
}

</mosaic_0001>

<llo_original>
// kernel: lstm_model_forward.1
$region0: #{lstm_model_forward.1}
  #allocation0 [shape = 'u32[]', space=smem, size = 0x4, offset = 0x4, fixed_abs, tag = 'smem constant byte address 0x4 - core index']
  #allocation1 [shape = 'u32[72,128]{1,0:T(1,128)}', space=vmem, size = 0x9000, scoped, tag = 'internal scratch']
  #allocation2 [shape = 'f32[64,512]{1,0:T(8,128)}', space=vmem, size = 0x20000, scoped, tag = 'scratch operand']
  #allocation3 [shape = 'f32[64,128]{1,0:T(8,128)}', space=vmem, size = 0x8000, scoped, tag = 'scratch operand']
  #allocation4 [shape = 'f32[1,1]{1,0:T(1,128)S(1)}', space=vmem, size = 0x200, scoped, tag = 'scoped memory for lstm_model_forward.1']
  %s0 = inlined_call_operand.vmem [shape: f32[64,8], index: 0, kind: input, shape index: {}]
  %s1 = inlined_call_operand.vmem [shape: bf16[8,512], index: 1, kind: input, shape index: {}]
  %s2 = inlined_call_operand.hbm [shape: bf16[128,512], index: 2, kind: input, shape index: {}]
  %s3 = inlined_call_operand.vmem [shape: f32[1,512], index: 3, kind: input, shape index: {}]
  %s4 = inlined_call_operand.hbm [shape: bf16[128,512], index: 4, kind: input, shape index: {}]
  %s5 = inlined_call_operand.hbm [shape: bf16[128,512], index: 5, kind: input, shape index: {}]
  %s6 = inlined_call_operand.vmem [shape: f32[1,512], index: 6, kind: input, shape index: {}]
  %s7 = inlined_call_operand.hbm [shape: bf16[128,512], index: 7, kind: input, shape index: {}]
  %s8 = inlined_call_operand.hbm [shape: bf16[128,512], index: 8, kind: input, shape index: {}]
  %s9 = inlined_call_operand.vmem [shape: f32[1,512], index: 9, kind: input, shape index: {}]
  %s10 = inlined_call_operand.vmem [shape: f32[1,128], index: 10, kind: input, shape index: {}]
  %s11 = inlined_call_operand.<no memory space> [shape: f32[1,1], index: 11, kind: input, shape index: {}]
  %s12 = inlined_call_operand.vmem [shape: f32[2,1], index: 12, kind: output, shape index: {}]
  %s13 = sld [smem:[#allocation0]]
  $region78: #{lstm_model_forward.1} parent=0
    _
  %s15 = ssub.s32 1, %s13
  %s16 = scalar_select 0, %s15, %s13
  %v17 = vstv %s11
  %18 = vst [vmem:[#allocation4] sm:$0x1] %v17
  $region1: #{lstm_model_forward.1} parent=0
    #allocation5 [shape = 'u8[131072]{0}', space=vmem, size = 0x20000, scoped, tag = 'input window, operand 2, single buffered']
    #allocation6 [shape = 's32[1]{0}', space=sflag, size = 0x4, scoped, tag = 'scoped memory for lstm_model_forward.1']
    #allocation7 [shape = 'u8[131072]{0}', space=vmem, size = 0x20000, scoped, tag = 'input window, operand 4, single buffered']
    #allocation8 [shape = 's32[1]{0}', space=sflag, size = 0x4, scoped, tag = 'scoped memory for lstm_model_forward.1']
    #allocation9 [shape = 'u8[131072]{0}', space=vmem, size = 0x20000, scoped, tag = 'input window, operand 5, single buffered']
    #allocation10 [shape = 'u8[131072]{0}', space=vmem, size = 0x20000, scoped, tag = 'input window, operand 7, single buffered']
    #allocation11 [shape = 's32[1]{0}', space=sflag, size = 0x4, scoped, tag = 'scoped memory for lstm_model_forward.1']
    #allocation12 [shape = 'u8[131072]{0}', space=vmem, size = 0x20000, scoped, tag = 'input window, operand 8, single buffered']
    %19 = vsyncpa [#allocation6], 0
    %20 = vsyncpa [#allocation8], 0
    %21 = vsyncpa [#allocation11], 0
    // Predicated region
    $region2: #{lstm_model_forward.1} parent=1 // pred_check
      _
    $region3: #{lstm_model_forward.1} parent=1 // pred_check_branch
      %23 = sbr.rel (0) target = $region5
    $region4: #{lstm_model_forward.1} parent=1 // pred_region
      _
    $region5: #{lstm_model_forward.1} parent=1 // pred_fallthru
      _
    // Predicated region
    $region6: #{lstm_model_forward.1} parent=1 // pred_check
      _
    $region7: #{lstm_model_forward.1} parent=1 // pred_check_branch
      %25 = sbr.rel (0) target = $region9
    $region8: #{lstm_model_forward.1} parent=1 // pred_region
      _
    $region9: #{lstm_model_forward.1} parent=1 // pred_fallthru
      _
    // Predicated region
    $region10: #{lstm_model_forward.1} parent=1 // pred_check
      _
    $region11: #{lstm_model_forward.1} parent=1 // pred_check_branch
      %27 = sbr.rel (0) target = $region13
    $region12: #{lstm_model_forward.1} parent=1 // pred_region
      %29 = vsyncadd [#allocation6], 0
      %s30 = sshll.u32 %s2, 4
      %s31 = int_to_ptr.hbm [resolvable:$true] %s30
      %s32 = sshll.u32 [#allocation5], 4
      %s33 = int_to_ptr.vmem [resolvable:$true] %s32
      %38 = dma.hbm_to_vmem [thread:$0]  %s31, 4096, %s33, [#allocation6], 256, 256, 16
    $region13: #{lstm_model_forward.1} parent=1 // pred_fallthru
      _
    // Predicated region
    $region14: #{lstm_model_forward.1} parent=1 // pred_check
      _
    $region15: #{lstm_model_forward.1} parent=1 // pred_check_branch
      %40 = sbr.rel (0) target = $region17
    $region16: #{lstm_model_forward.1} parent=1 // pred_region
      _
    $region17: #{lstm_model_forward.1} parent=1 // pred_fallthru
      _
    // Predicated region
    $region18: #{lstm_model_forward.1} parent=1 // pred_check
      _
    $region19: #{lstm_model_forward.1} parent=1 // pred_check_branch
      %42 = sbr.rel (0) target = $region21
    $region20: #{lstm_model_forward.1} parent=1 // pred_region
      %44 = vsyncadd [#allocation8], 0
      %s45 = sshll.u32 %s4, 4
      %s46 = int_to_ptr.hbm [resolvable:$true] %s45
      %s47 = sshll.u32 [#allocation7], 4
      %s48 = int_to_ptr.vmem [resolvable:$true] %s47
      %53 = dma.hbm_to_vmem [thread:$0]  %s46, 4096, %s48, [#allocation8], 256, 256, 16
    $region21: #{lstm_model_forward.1} parent=1 // pred_fallthru
      _
    // Predicated region
    $region22: #{lstm_model_forward.1} parent=1 // pred_check
      _
    $region23: #{lstm_model_forward.1} parent=1 // pred_check_branch
      %55 = sbr.rel (0) target = $region25
    $region24: #{lstm_model_forward.1} parent=1 // pred_region
      %57 = vsyncadd [#allocation8], 0
      %s58 = sshll.u32 %s5, 4
      %s59 = int_to_ptr.hbm [resolvable:$true] %s58
      %s60 = sshll.u32 [#allocation9], 4
      %s61 = int_to_ptr.vmem [resolvable:$true] %s60
      %66 = dma.hbm_to_vmem [thread:$0]  %s59, 4096, %s61, [#allocation8], 256, 256, 16
    $region25: #{lstm_model_forward.1} parent=1 // pred_fallthru
      _
    // Predicated region
    $region26: #{lstm_model_forward.1} parent=1 // pred_check
      _
    $region27: #{lstm_model_forward.1} parent=1 // pred_check_branch
      %68 = sbr.rel (0) target = $region29
    $region28: #{lstm_model_forward.1} parent=1 // pred_region
      _
    $region29: #{lstm_model_forward.1} parent=1 // pred_fallthru
      _
    // Predicated region
    $region30: #{lstm_model_forward.1} parent=1 // pred_check
      _
    $region31: #{lstm_model_forward.1} parent=1 // pred_check_branch
      %70 = sbr.rel (0) target = $region33
    $region32: #{lstm_model_forward.1} parent=1 // pred_region
      %72 = vsyncadd [#allocation11], 0
      %s73 = sshll.u32 %s7, 4
      %s74 = int_to_ptr.hbm [resolvable:$true] %s73
      %s75 = sshll.u32 [#allocation10], 4
      %s76 = int_to_ptr.vmem [resolvable:$true] %s75
      %81 = dma.hbm_to_vmem [thread:$0]  %s74, 4096, %s76, [#allocation11], 256, 256, 16
    $region33: #{lstm_model_forward.1} parent=1 // pred_fallthru
      _
    // Predicated region
    $region34: #{lstm_model_forward.1} parent=1 // pred_check
      _
    $region35: #{lstm_model_forward.1} parent=1 // pred_check_branch
      %83 = sbr.rel (0) target = $region37
    $region36: #{lstm_model_forward.1} parent=1 // pred_region
      %85 = vsyncadd [#allocation11], 0
      %s86 = sshll.u32 %s8, 4
      %s87 = int_to_ptr.hbm [resolvable:$true] %s86
      %s88 = sshll.u32 [#allocation12], 4
      %s89 = int_to_ptr.vmem [resolvable:$true] %s88
      %94 = dma.hbm_to_vmem [thread:$0]  %s87, 4096, %s89, [#allocation11], 256, 256, 16
    $region37: #{lstm_model_forward.1} parent=1 // pred_fallthru
      _
    // Predicated region
    $region38: #{lstm_model_forward.1} parent=1 // pred_check
      _
    $region39: #{lstm_model_forward.1} parent=1 // pred_check_branch
      %96 = sbr.rel (0) target = $region41
    $region40: #{lstm_model_forward.1} parent=1 // pred_region
      _
    $region41: #{lstm_model_forward.1} parent=1 // pred_fallthru
      _
    // Predicated region
    $region42: #{lstm_model_forward.1} parent=1 // pred_check
      _
    $region43: #{lstm_model_forward.1} parent=1 // pred_check_branch
      %98 = sbr.rel (0) target = $region45
    $region44: #{lstm_model_forward.1} parent=1 // pred_region
      _
    $region45: #{lstm_model_forward.1} parent=1 // pred_fallthru
      _
    // Predicated region
    $region46: #{lstm_model_forward.1} parent=1 // pred_check
      _
    $region47: #{lstm_model_forward.1} parent=1 // pred_check_branch
      %100 = sbr.rel (0) target = $region49
    $region48: #{lstm_model_forward.1} parent=1 // pred_region
      _
    $region49: #{lstm_model_forward.1} parent=1 // pred_fallthru
      _
    // Predicated region
    $region50: #{lstm_model_forward.1} parent=1 // pred_check
      _
    $region51: #{lstm_model_forward.1} parent=1 // pred_check_branch
      %102 = sbr.rel (0) target = $region53
    $region52: #{lstm_model_forward.1} parent=1 // pred_region
      %104 = dma.done [#allocation6], 4096
    $region53: #{lstm_model_forward.1} parent=1 // pred_fallthru
      _
    // Predicated region
    $region54: #{lstm_model_forward.1} parent=1 // pred_check
      _
    $region55: #{lstm_model_forward.1} parent=1 // pred_check_branch
      %106 = sbr.rel (0) target = $region57
    $region56: #{lstm_model_forward.1} parent=1 // pred_region
      %108 = dma.done [#allocation8], 4096
    $region57: #{lstm_model_forward.1} parent=1 // pred_fallthru
      _
    // Predicated region
    $region58: #{lstm_model_forward.1} parent=1 // pred_check
      _
    $region59: #{lstm_model_forward.1} parent=1 // pred_check_branch
      %110 = sbr.rel (0) target = $region61
    $region60: #{lstm_model_forward.1} parent=1 // pred_region
      %112 = dma.done [#allocation8], 4096
    $region61: #{lstm_model_forward.1} parent=1 // pred_fallthru
      _
    // Predicated region
    $region62: #{lstm_model_forward.1} parent=1 // pred_check
      _
    $region63: #{lstm_model_forward.1} parent=1 // pred_check_branch
      %114 = sbr.rel (0) target = $region65
    $region64: #{lstm_model_forward.1} parent=1 // pred_region
      %116 = dma.done [#allocation11], 4096
    $region65: #{lstm_model_forward.1} parent=1 // pred_fallthru
      _
    // Predicated region
    $region66: #{lstm_model_forward.1} parent=1 // pred_check
      _
    $region67: #{lstm_model_forward.1} parent=1 // pred_check_branch
      %118 = sbr.rel (0) target = $region69
    $region68: #{lstm_model_forward.1} parent=1 // pred_region
      %120 = dma.done [#allocation11], 4096
    $region69: #{lstm_model_forward.1} parent=1 // pred_fallthru
      _
    %v122 = vld [vmem:[%s0] sm:$0xff]
    %v123 = vld [vmem:[%s0 + $0x8] sm:$0xff]
    %v124 = vld [vmem:[%s0 + $0x10] sm:$0xff]
    %v125 = vld [vmem:[%s0 + $0x18] sm:$0xff]
    %v126 = vld [vmem:[%s0 + $0x20] sm:$0xff]
    %v127 = vld [vmem:[%s0 + $0x28] sm:$0xff]
    %v128 = vld [vmem:[%s0 + $0x30] sm:$0xff]
    %v129 = vld [vmem:[%s0 + $0x38] sm:$0xff]
    %v130 = vpack.c.bf16 %v123, %v122
    %v131 = vpack.c.bf16 %v125, %v124
    %v132 = vpack.c.bf16 %v127, %v126
    %v133 = vpack.c.bf16 %v129, %v128
    %v134 = vld [vmem:[%s1] sm:$0xff]
    %v135 = vld [vmem:[%s1 + $0x8] sm:$0xff]
    %v136 = vld [vmem:[%s3] sm:$0xf]
    %v138 = vperm.slane %v136, 0
    %v139 = vperm.slane %v136, 1
    %v140 = vperm.slane %v136, 2
    %v141 = vperm.slane %v136, 3
    %v148 = vunpack.c.l.b16 %v134
    %v149 = vunpack.c.h.b16 %v134
    %v150 = vunpack.c.l.b16 %v135
    %v151 = vunpack.c.h.b16 %v135
    %v152 = vpack.c.b16 %v148, %v148
    %v153 = vpack.c.b16 %v149, %v149
    %v154 = vpack.c.b16 %v150, %v150
    %v155 = vpack.c.b16 %v151, %v151
    %vm156 = vcmask 64512
    %v158 = vsel %vm156, %v130, 0
    %v161 = vsel %vm156, %v131, 0
    %v164 = vsel %vm156, %v132, 0
    %v167 = vsel %vm156, %v133, 0
    %vm169 = vcmask 1043456
    %v171 = vsel %vm169, %v152, 0
    %v174 = vsel %vm169, %v153, 0
    %v177 = vsel %vm169, %v154, 0
    %v180 = vsel %vm169, %v155, 0
    %182 = vmatpush.bf16.msra.mxu0 0
    %183 = vmatpush.bf16.msra.mxu0 0
    %184 = vmatpush.bf16.msra.mxu0 0
    %185 = vmatpush.bf16.msra.mxu0 0
    %186 = vmatpush.bf16.msra.mxu0 0
    %187 = vmatpush.bf16.msra.mxu0 0
    %188 = vmatpush.bf16.msra.mxu0 0
    %189 = vmatpush.bf16.msra.mxu0 %v171
    %190 = vmatmul.bf16.gmra.mxu0 %v158
    %v191 = vpop.f32.mrf.mxu0
    %v192 = vadd.f32 %v138, %v191
    %v193 = vpop.f32.mrf.mxu0
    %v194 = vadd.f32 %v138, %v193
    %195 = vmatmul.bf16.gmra.mxu0 %v161
    %v196 = vpop.f32.mrf.mxu0
    %v197 = vadd.f32 %v138, %v196
    %v198 = vpop.f32.mrf.mxu0
    %v199 = vadd.f32 %v138, %v198
    %200 = vmatmul.bf16.gmra.mxu0 %v164
    %v201 = vpop.f32.mrf.mxu0
    %v202 = vadd.f32 %v138, %v201
    %v203 = vpop.f32.mrf.mxu0
    %v204 = vadd.f32 %v138, %v203
    %205 = vmatmul.bf16.gmra.mxu0 %v167
    %v206 = vpop.f32.mrf.mxu0
    %v207 = vadd.f32 %v138, %v206
    %v208 = vpop.f32.mrf.mxu0
    %v209 = vadd.f32 %v138, %v208
    %210 = vdwg.mxu0
    %211 = vmatpush.bf16.msra.mxu0 0
    %212 = vmatpush.bf16.msra.mxu0 0
    %213 = vmatpush.bf16.msra.mxu0 0
    %214 = vmatpush.bf16.msra.mxu0 0
    %215 = vmatpush.bf16.msra.mxu0 0
    %216 = vmatpush.bf16.msra.mxu0 0
    %217 = vmatpush.bf16.msra.mxu0 0
    %218 = vmatpush.bf16.msra.mxu0 %v174
    %219 = vmatmul.bf16.gmra.mxu0 %v158
    %v220 = vpop.f32.mrf.mxu0
    %v221 = vadd.f32 %v139, %v220
    %v222 = vpop.f32.mrf.mxu0
    %v223 = vadd.f32 %v139, %v222
    %224 = vmatmul.bf16.gmra.mxu0 %v161
    %v225 = vpop.f32.mrf.mxu0
    %v226 = vadd.f32 %v139, %v225
    %v227 = vpop.f32.mrf.mxu0
    %v228 = vadd.f32 %v139, %v227
    %229 = vmatmul.bf16.gmra.mxu0 %v164
    %v230 = vpop.f32.mrf.mxu0
    %v231 = vadd.f32 %v139, %v230
    %v232 = vpop.f32.mrf.mxu0
    %v233 = vadd.f32 %v139, %v232
    %234 = vmatmul.bf16.gmra.mxu0 %v167
    %v235 = vpop.f32.mrf.mxu0
    %v236 = vadd.f32 %v139, %v235
    %v237 = vpop.f32.mrf.mxu0
    %v238 = vadd.f32 %v139, %v237
    %239 = vdwg.mxu0
    %240 = vmatpush.bf16.msra.mxu0 0
    %241 = vmatpush.bf16.msra.mxu0 0
    %242 = vmatpush.bf16.msra.mxu0 0
    %243 = vmatpush.bf16.msra.mxu0 0
    %244 = vmatpush.bf16.msra.mxu0 0
    %245 = vmatpush.bf16.msra.mxu0 0
    %246 = vmatpush.bf16.msra.mxu0 0
    %247 = vmatpush.bf16.msra.mxu0 %v177
    %248 = vmatmul.bf16.gmra.mxu0 %v158
    %v249 = vpop.f32.mrf.mxu0
    %v250 = vadd.f32 %v140, %v249
    %v251 = vpop.f32.mrf.mxu0
    %v252 = vadd.f32 %v140, %v251
    %253 = vmatmul.bf16.gmra.mxu0 %v161
    %v254 = vpop.f32.mrf.mxu0
    %v255 = vadd.f32 %v140, %v254
    %v256 = vpop.f32.mrf.mxu0
    %v257 = vadd.f32 %v140, %v256
    %258 = vmatmul.bf16.gmra.mxu0 %v164
    %v259 = vpop.f32.mrf.mxu0
    %v260 = vadd.f32 %v140, %v259
    %v261 = vpop.f32.mrf.mxu0
    %v262 = vadd.f32 %v140, %v261
    %263 = vmatmul.bf16.gmra.mxu0 %v167
    %v264 = vpop.f32.mrf.mxu0
    %v265 = vadd.f32 %v140, %v264
    %v266 = vpop.f32.mrf.mxu0
    %v267 = vadd.f32 %v140, %v266
    %268 = vdwg.mxu0
    %269 = vmatpush.bf16.msra.mxu0 0
    %270 = vmatpush.bf16.msra.mxu0 0
    %271 = vmatpush.bf16.msra.mxu0 0
    %272 = vmatpush.bf16.msra.mxu0 0
    %273 = vmatpush.bf16.msra.mxu0 0
    %274 = vmatpush.bf16.msra.mxu0 0
    %275 = vmatpush.bf16.msra.mxu0 0
    %276 = vmatpush.bf16.msra.mxu0 %v180
    %277 = vmatmul.bf16.gmra.mxu0 %v158
    %v278 = vpop.f32.mrf.mxu0
    %v279 = vadd.f32 %v141, %v278
    %v280 = vpop.f32.mrf.mxu0
    %v281 = vadd.f32 %v141, %v280
    %282 = vmatmul.bf16.gmra.mxu0 %v161
    %v283 = vpop.f32.mrf.mxu0
    %v284 = vadd.f32 %v141, %v283
    %v285 = vpop.f32.mrf.mxu0
    %v286 = vadd.f32 %v141, %v285
    %287 = vmatmul.bf16.gmra.mxu0 %v164
    %v288 = vpop.f32.mrf.mxu0
    %v289 = vadd.f32 %v141, %v288
    %v290 = vpop.f32.mrf.mxu0
    %v291 = vadd.f32 %v141, %v290
    %292 = vmatmul.bf16.gmra.mxu0 %v167
    %v293 = vpop.f32.mrf.mxu0
    %v294 = vadd.f32 %v141, %v293
    %v295 = vpop.f32.mrf.mxu0
    %v296 = vadd.f32 %v141, %v295
    %297 = vdwg.mxu0
    %298 = vst [vmem:[#allocation2] sm:$0xff] %v192
    %299 = vst [vmem:[#allocation2 + $0x8] sm:$0xff] %v221
    %300 = vst [vmem:[#allocation2 + $0x10] sm:$0xff] %v250
    %301 = vst [vmem:[#allocation2 + $0x18] sm:$0xff] %v279
    %302 = vst [vmem:[#allocation2 + $0x20] sm:$0xff] %v194
    %303 = vst [vmem:[#allocation2 + $0x28] sm:$0xff] %v223
    %304 = vst [vmem:[#allocation2 + $0x30] sm:$0xff] %v252
    %305 = vst [vmem:[#allocation2 + $0x38] sm:$0xff] %v281
    %306 = vst [vmem:[#allocation2 + $0x40] sm:$0xff] %v197
    %307 = vst [vmem:[#allocation2 + $0x48] sm:$0xff] %v226
    %308 = vst [vmem:[#allocation2 + $0x50] sm:$0xff] %v255
    %309 = vst [vmem:[#allocation2 + $0x58] sm:$0xff] %v284
    %310 = vst [vmem:[#allocation2 + $0x60] sm:$0xff] %v199
    %311 = vst [vmem:[#allocation2 + $0x68] sm:$0xff] %v228
    %312 = vst [vmem:[#allocation2 + $0x70] sm:$0xff] %v257
    %313 = vst [vmem:[#allocation2 + $0x78] sm:$0xff] %v286
    %314 = vst [vmem:[#allocation2 + $0x80] sm:$0xff] %v202
    %315 = vst [vmem:[#allocation2 + $0x88] sm:$0xff] %v231
    %316 = vst [vmem:[#allocation2 + $0x90] sm:$0xff] %v260
    %317 = vst [vmem:[#allocation2 + $0x98] sm:$0xff] %v289
    %318 = vst [vmem:[#allocation2 + $0xa0] sm:$0xff] %v204
    %319 = vst [vmem:[#allocation2 + $0xa8] sm:$0xff] %v233
    %320 = vst [vmem:[#allocation2 + $0xb0] sm:$0xff] %v262
    %321 = vst [vmem:[#allocation2 + $0xb8] sm:$0xff] %v291
    %322 = vst [vmem:[#allocation2 + $0xc0] sm:$0xff] %v207
    %323 = vst [vmem:[#allocation2 + $0xc8] sm:$0xff] %v236
    %324 = vst [vmem:[#allocation2 + $0xd0] sm:$0xff] %v265
    %325 = vst [vmem:[#allocation2 + $0xd8] sm:$0xff] %v294
    %326 = vst [vmem:[#allocation2 + $0xe0] sm:$0xff] %v209
    %327 = vst [vmem:[#allocation2 + $0xe8] sm:$0xff] %v238
    %328 = vst [vmem:[#allocation2 + $0xf0] sm:$0xff] %v267
    %329 = vst [vmem:[#allocation2 + $0xf8] sm:$0xff] %v296
    %v330 = vld [vmem:[#allocation2] sm:$0xff]
    %v331 = vld [vmem:[#allocation2 + $0x8] sm:$0xff]
    %v332 = vld [vmem:[#allocation2 + $0x10] sm:$0xff]
    %v333 = vld [vmem:[#allocation2 + $0x18] sm:$0xff]
    %v334 = vld [vmem:[#allocation5] sm:$0xff]
    %v335 = vld [vmem:[#allocation5 + $0x8] sm:$0xff]
    %v336 = vld [vmem:[#allocation5 + $0x10] sm:$0xff]
    %v337 = vld [vmem:[#allocation5 + $0x18] sm:$0xff]
    %v338 = vld [vmem:[#allocation5 + $0x20] sm:$0xff]
    %v339 = vld [vmem:[#allocation5 + $0x28] sm:$0xff]
    %v340 = vld [vmem:[#allocation5 + $0x30] sm:$0xff]
    %v341 = vld [vmem:[#allocation5 + $0x38] sm:$0xff]
    %v342 = vld [vmem:[#allocation5 + $0x40] sm:$0xff]
    %v343 = vld [vmem:[#allocation5 + $0x48] sm:$0xff]
    %v344 = vld [vmem:[#allocation5 + $0x50] sm:$0xff]
    %v345 = vld [vmem:[#allocation5 + $0x58] sm:$0xff]
    %v346 = vld [vmem:[#allocation5 + $0x60] sm:$0xff]
    %v347 = vld [vmem:[#allocation5 + $0x68] sm:$0xff]
    %v348 = vld [vmem:[#allocation5 + $0x70] sm:$0xff]
    %v349 = vld [vmem:[#allocation5 + $0x78] sm:$0xff]
    %v350 = vld [vmem:[#allocation5 + $0x80] sm:$0xff]
    %v351 = vld [vmem:[#allocation5 + $0x88] sm:$0xff]
    %v352 = vld [vmem:[#allocation5 + $0x90] sm:$0xff]
    %v353 = vld [vmem:[#allocation5 + $0x98] sm:$0xff]
    %v354 = vld [vmem:[#allocation5 + $0xa0] sm:$0xff]
    %v355 = vld [vmem:[#allocation5 + $0xa8] sm:$0xff]
    %v356 = vld [vmem:[#allocation5 + $0xb0] sm:$0xff]
    %v357 = vld [vmem:[#allocation5 + $0xb8] sm:$0xff]
    %v358 = vld [vmem:[#allocation5 + $0xc0] sm:$0xff]
    %v359 = vld [vmem:[#allocation5 + $0xc8] sm:$0xff]
    %v360 = vld [vmem:[#allocation5 + $0xd0] sm:$0xff]
    %v361 = vld [vmem:[#allocation5 + $0xd8] sm:$0xff]
    %v362 = vld [vmem:[#allocation5 + $0xe0] sm:$0xff]
    %v363 = vld [vmem:[#allocation5 + $0xe8] sm:$0xff]
    %v364 = vld [vmem:[#allocation5 + $0xf0] sm:$0xff]
    %v365 = vld [vmem:[#allocation5 + $0xf8] sm:$0xff]
    %v398 = vunpack.c.l.b16 %v334
    %v399 = vunpack.c.h.b16 %v334
    %v400 = vunpack.c.l.b16 %v335
    %v401 = vunpack.c.h.b16 %v335
    %v402 = vunpack.c.l.b16 %v336
    %v403 = vunpack.c.h.b16 %v336
    %v404 = vunpack.c.l.b16 %v337
    %v405 = vunpack.c.h.b16 %v337
    %v406 = vunpack.c.l.b16 %v338
    %v407 = vunpack.c.h.b16 %v338
    %v408 = vunpack.c.l.b16 %v339
    %v409 = vunpack.c.h.b16 %v339
    %v410 = vunpack.c.l.b16 %v340
    %v411 = vunpack.c.h.b16 %v340
    %v412 = vunpack.c.l.b16 %v341
    %v413 = vunpack.c.h.b16 %v341
    %v414 = vunpack.c.l.b16 %v342
    %v415 = vunpack.c.h.b16 %v342
    %v416 = vunpack.c.l.b16 %v343
    %v417 = vunpack.c.h.b16 %v343
    %v418 = vunpack.c.l.b16 %v344
    %v419 = vunpack.c.h.b16 %v344
    %v420 = vunpack.c.l.b16 %v345
    %v421 = vunpack.c.h.b16 %v345
    %v422 = vunpack.c.l.b16 %v346
    %v423 = vunpack.c.h.b16 %v346
    %v424 = vunpack.c.l.b16 %v347
    %v425 = vunpack.c.h.b16 %v347
    %v426 = vunpack.c.l.b16 %v348
    %v427 = vunpack.c.h.b16 %v348
    %v428 = vunpack.c.l.b16 %v349
    %v429 = vunpack.c.h.b16 %v349
    %v430 = vunpack.c.l.b16 %v350
    %v431 = vunpack.c.h.b16 %v350
    %v432 = vunpack.c.l.b16 %v351
    %v433 = vunpack.c.h.b16 %v351
    %v434 = vunpack.c.l.b16 %v352
    %v435 = vunpack.c.h.b16 %v352
    %v436 = vunpack.c.l.b16 %v353
    %v437 = vunpack.c.h.b16 %v353
    %v438 = vunpack.c.l.b16 %v354
    %v439 = vunpack.c.h.b16 %v354
    %v440 = vunpack.c.l.b16 %v355
    %v441 = vunpack.c.h.b16 %v355
    %v442 = vunpack.c.l.b16 %v356
    %v443 = vunpack.c.h.b16 %v356
    %v444 = vunpack.c.l.b16 %v357
    %v445 = vunpack.c.h.b16 %v357
    %v446 = vunpack.c.l.b16 %v358
    %v447 = vunpack.c.h.b16 %v358
    %v448 = vunpack.c.l.b16 %v359
    %v449 = vunpack.c.h.b16 %v359
    %v450 = vunpack.c.l.b16 %v360
    %v451 = vunpack.c.h.b16 %v360
    %v452 = vunpack.c.l.b16 %v361
    %v453 = vunpack.c.h.b16 %v361
    %v454 = vunpack.c.l.b16 %v362
    %v455 = vunpack.c.h.b16 %v362
    %v456 = vunpack.c.l.b16 %v363
    %v457 = vunpack.c.h.b16 %v363
    %v458 = vunpack.c.l.b16 %v364
    %v459 = vunpack.c.h.b16 %v364
    %v460 = vunpack.c.l.b16 %v365
    %v461 = vunpack.c.h.b16 %v365
    %v462 = vpack.c.b16 %v402, %v398
    %v463 = vpack.c.b16 %v403, %v399
    %v464 = vpack.c.b16 %v404, %v400
    %v465 = vpack.c.b16 %v405, %v401
    %v466 = vpack.c.b16 %v410, %v406
    %v467 = vpack.c.b16 %v411, %v407
    %v468 = vpack.c.b16 %v412, %v408
    %v469 = vpack.c.b16 %v413, %v409
    %v470 = vpack.c.b16 %v418, %v414
    %v471 = vpack.c.b16 %v419, %v415
    %v472 = vpack.c.b16 %v420, %v416
    %v473 = vpack.c.b16 %v421, %v417
    %v474 = vpack.c.b16 %v426, %v422
    %v475 = vpack.c.b16 %v427, %v423
    %v476 = vpack.c.b16 %v428, %v424
    %v477 = vpack.c.b16 %v429, %v425
    %v478 = vpack.c.b16 %v434, %v430
    %v479 = vpack.c.b16 %v435, %v431
    %v480 = vpack.c.b16 %v436, %v432
    %v481 = vpack.c.b16 %v437, %v433
    %v482 = vpack.c.b16 %v442, %v438
    %v483 = vpack.c.b16 %v443, %v439
    %v484 = vpack.c.b16 %v444, %v440
    %v485 = vpack.c.b16 %v445, %v441
    %v486 = vpack.c.b16 %v450, %v446
    %v487 = vpack.c.b16 %v451, %v447
    %v488 = vpack.c.b16 %v452, %v448
    %v489 = vpack.c.b16 %v453, %v449
    %v490 = vpack.c.b16 %v458, %v454
    %v491 = vpack.c.b16 %v459, %v455
    %v492 = vpack.c.b16 %v460, %v456
    %v493 = vpack.c.b16 %v461, %v457
    %526 = vmatpush.bf16.msra.mxu0 %v490
    %527 = vmatpush.bf16.msra.mxu0 %v486
    %528 = vmatpush.bf16.msra.mxu0 %v482
    %529 = vmatpush.bf16.msra.mxu0 %v478
    %530 = vmatpush.bf16.msra.mxu0 %v474
    %531 = vmatpush.bf16.msra.mxu0 %v470
    %532 = vmatpush.bf16.msra.mxu0 %v466
    %533 = vmatpush.bf16.msra.mxu0 %v462
    %534 = vmatmul.bf16.gmra.mxu0 0
    %v535 = vpop.f32.mrf.mxu0
    %v536 = vadd.f32 0.0, %v535
    %v537 = vpop.f32.mrf.mxu0
    %538 = vdwg.mxu0
    %539 = vmatpush.bf16.msra.mxu0 %v491
    %540 = vmatpush.bf16.msra.mxu0 %v487
    %541 = vmatpush.bf16.msra.mxu0 %v483
    %542 = vmatpush.bf16.msra.mxu0 %v479
    %543 = vmatpush.bf16.msra.mxu0 %v475
    %544 = vmatpush.bf16.msra.mxu0 %v471
    %545 = vmatpush.bf16.msra.mxu0 %v467
    %546 = vmatpush.bf16.msra.mxu0 %v463
    %547 = vmatmul.bf16.gmra.mxu0 0
    %v548 = vpop.f32.mrf.mxu0
    %v549 = vadd.f32 0.0, %v548
    %v550 = vpop.f32.mrf.mxu0
    %551 = vdwg.mxu0
    %552 = vmatpush.bf16.msra.mxu0 %v492
    %553 = vmatpush.bf16.msra.mxu0 %v488
    %554 = vmatpush.bf16.msra.mxu0 %v484
    %555 = vmatpush.bf16.msra.mxu0 %v480
    %556 = vmatpush.bf16.msra.mxu0 %v476
    %557 = vmatpush.bf16.msra.mxu0 %v472
    %558 = vmatpush.bf16.msra.mxu0 %v468
    %559 = vmatpush.bf16.msra.mxu0 %v464
    %560 = vmatmul.bf16.gmra.mxu0 0
    %v561 = vpop.f32.mrf.mxu0
    %v562 = vadd.f32 0.0, %v561
    %v563 = vpop.f32.mrf.mxu0
    %564 = vdwg.mxu0
    %565 = vmatpush.bf16.msra.mxu0 %v493
    %566 = vmatpush.bf16.msra.mxu0 %v489
    %567 = vmatpush.bf16.msra.mxu0 %v485
    %568 = vmatpush.bf16.msra.mxu0 %v481
    %569 = vmatpush.bf16.msra.mxu0 %v477
    %570 = vmatpush.bf16.msra.mxu0 %v473
    %571 = vmatpush.bf16.msra.mxu0 %v469
    %572 = vmatpush.bf16.msra.mxu0 %v465
    %573 = vmatmul.bf16.gmra.mxu0 0
    %v574 = vpop.f32.mrf.mxu0
    %v575 = vadd.f32 0.0, %v574
    %v576 = vpop.f32.mrf.mxu0
    %577 = vdwg.mxu0
    %v578 = vadd.f32 %v330, %v536
    %v579 = vadd.f32 %v331, %v549
    %v580 = vadd.f32 %v332, %v562
    %v581 = vadd.f32 %v333, %v575
    %v582 = vmul.f32 %v578, 0.5
    %v583 = vtanh.pop %v582
    %v584 = vmul.f32 %v583, 0.5
    %v585 = vadd.f32 %v584, 0.5
    %v586 = vmul.f32 %v579, 0.5
    %v587 = vtanh.pop %v586
    %v588 = vmul.f32 %v587, 0.5
    %v589 = vadd.f32 %v588, 0.5
    %v590 = vtanh.pop %v580
    %v591 = vmul.f32 %v589, 0.0
    %v592 = vmul.f32 %v585, %v590
    %v593 = vadd.f32 %v591, %v592
    %v594 = vmul.f32 %v581, 0.5
    %v595 = vtanh.pop %v594
    %v596 = vmul.f32 %v595, 0.5
    %v597 = vadd.f32 %v596, 0.5
    %v598 = vtanh.pop %v593
    %v599 = vmul.f32 %v597, %v598
    %600 = vst [vmem:[#allocation3] sm:$0xff] %v599
    %v601 = vld [vmem:[#allocation2 + $0x20] sm:$0xff]
    %v602 = vld [vmem:[#allocation2 + $0x28] sm:$0xff]
    %v603 = vld [vmem:[#allocation2 + $0x30] sm:$0xff]
    %v604 = vld [vmem:[#allocation2 + $0x38] sm:$0xff]
    %v605 = vpack.c.bf16 %v599, %v599
    %v606 = vld [vmem:[#allocation5] sm:$0xff]
    %v607 = vld [vmem:[#allocation5 + $0x8] sm:$0xff]
    %v608 = vld [vmem:[#allocation5 + $0x10] sm:$0xff]
    %v609 = vld [vmem:[#allocation5 + $0x18] sm:$0xff]
    %v610 = vld [vmem:[#allocation5 + $0x20] sm:$0xff]
    %v611 = vld [vmem:[#allocation5 + $0x28] sm:$0xff]
    %v612 = vld [vmem:[#allocation5 + $0x30] sm:$0xff]
    %v613 = vld [vmem:[#allocation5 + $0x38] sm:$0xff]
    %v614 = vld [vmem:[#allocation5 + $0x40] sm:$0xff]
    %v615 = vld [vmem:[#allocation5 + $0x48] sm:$0xff]
    %v616 = vld [vmem:[#allocation5 + $0x50] sm:$0xff]
    %v617 = vld [vmem:[#allocation5 + $0x58] sm:$0xff]
    %v618 = vld [vmem:[#allocation5 + $0x60] sm:$0xff]
    %v619 = vld [vmem:[#allocation5 + $0x68] sm:$0xff]
    %v620 = vld [vmem:[#allocation5 + $0x70] sm:$0xff]
    %v621 = vld [vmem:[#allocation5 + $0x78] sm:$0xff]
    %v622 = vld [vmem:[#allocation5 + $0x80] sm:$0xff]
    %v623 = vld [vmem:[#allocation5 + $0x88] sm:$0xff]
    %v624 = vld [vmem:[#allocation5 + $0x90] sm:$0xff]
    %v625 = vld [vmem:[#allocation5 + $0x98] sm:$0xff]
    %v626 = vld [vmem:[#allocation5 + $0xa0] sm:$0xff]
    %v627 = vld [vmem:[#allocation5 + $0xa8] sm:$0xff]
    %v628 = vld [vmem:[#allocation5 + $0xb0] sm:$0xff]
    %v629 = vld [vmem:[#allocation5 + $0xb8] sm:$0xff]
    %v630 = vld [vmem:[#allocation5 + $0xc0] sm:$0xff]
    %v631 = vld [vmem:[#allocation5 + $0xc8] sm:$0xff]
    %v632 = vld [vmem:[#allocation5 + $0xd0] sm:$0xff]
    %v633 = vld [vmem:[#allocation5 + $0xd8] sm:$0xff]
    %v634 = vld [vmem:[#allocation5 + $0xe0] sm:$0xff]
    %v635 = vld [vmem:[#allocation5 + $0xe8] sm:$0xff]
    %v636 = vld [vmem:[#allocation5 + $0xf0] sm:$0xff]
    %v637 = vld [vmem:[#allocation5 + $0xf8] sm:$0xff]
    %v670 = vunpack.c.l.b16 %v606
    %v671 = vunpack.c.h.b16 %v606
    %v672 = vunpack.c.l.b16 %v607
    %v673 = vunpack.c.h.b16 %v607
    %v674 = vunpack.c.l.b16 %v608
    %v675 = vunpack.c.h.b16 %v608
    %v676 = vunpack.c.l.b16 %v609
    %v677 = vunpack.c.h.b16 %v609
    %v678 = vunpack.c.l.b16 %v610
    %v679 = vunpack.c.h.b16 %v610
    %v680 = vunpack.c.l.b16 %v611
    %v681 = vunpack.c.h.b16 %v611
    %v682 = vunpack.c.l.b16 %v612
    %v683 = vunpack.c.h.b16 %v612
    %v684 = vunpack.c.l.b16 %v613
    %v685 = vunpack.c.h.b16 %v613
    %v686 = vunpack.c.l.b16 %v614
    %v687 = vunpack.c.h.b16 %v614
    %v688 = vunpack.c.l.b16 %v615
    %v689 = vunpack.c.h.b16 %v615
    %v690 = vunpack.c.l.b16 %v616
    %v691 = vunpack.c.h.b16 %v616
    %v692 = vunpack.c.l.b16 %v617
    %v693 = vunpack.c.h.b16 %v617
    %v694 = vunpack.c.l.b16 %v618
    %v695 = vunpack.c.h.b16 %v618
    %v696 = vunpack.c.l.b16 %v619
    %v697 = vunpack.c.h.b16 %v619
    %v698 = vunpack.c.l.b16 %v620
    %v699 = vunpack.c.h.b16 %v620
    %v700 = vunpack.c.l.b16 %v621
    %v701 = vunpack.c.h.b16 %v621
    %v702 = vunpack.c.l.b16 %v622
    %v703 = vunpack.c.h.b16 %v622
    %v704 = vunpack.c.l.b16 %v623
    %v705 = vunpack.c.h.b16 %v623
    %v706 = vunpack.c.l.b16 %v624
    %v707 = vunpack.c.h.b16 %v624
    %v708 = vunpack.c.l.b16 %v625
    %v709 = vunpack.c.h.b16 %v625
    %v710 = vunpack.c.l.b16 %v626
    %v711 = vunpack.c.h.b16 %v626
    %v712 = vunpack.c.l.b16 %v627
    %v713 = vunpack.c.h.b16 %v627
    %v714 = vunpack.c.l.b16 %v628
    %v715 = vunpack.c.h.b16 %v628
    %v716 = vunpack.c.l.b16 %v629
    %v717 = vunpack.c.h.b16 %v629
    %v718 = vunpack.c.l.b16 %v630
    %v719 = vunpack.c.h.b16 %v630
    %v720 = vunpack.c.l.b16 %v631
    %v721 = vunpack.c.h.b16 %v631
    %v722 = vunpack.c.l.b16 %v632
    %v723 = vunpack.c.h.b16 %v632
    %v724 = vunpack.c.l.b16 %v633
    %v725 = vunpack.c.h.b16 %v633
    %v726 = vunpack.c.l.b16 %v634
    %v727 = vunpack.c.h.b16 %v634
    %v728 = vunpack.c.l.b16 %v635
    %v729 = vunpack.c.h.b16 %v635
    %v730 = vunpack.c.l.b16 %v636
    %v731 = vunpack.c.h.b16 %v636
    %v732 = vunpack.c.l.b16 %v637
    %v733 = vunpack.c.h.b16 %v637
    %v734 = vpack.c.b16 %v674, %v670
    %v735 = vpack.c.b16 %v675, %v671
    %v736 = vpack.c.b16 %v676, %v672
    %v737 = vpack.c.b16 %v677, %v673
    %v738 = vpack.c.b16 %v682, %v678
    %v739 = vpack.c.b16 %v683, %v679
    %v740 = vpack.c.b16 %v684, %v680
    %v741 = vpack.c.b16 %v685, %v681
    %v742 = vpack.c.b16 %v690, %v686
    %v743 = vpack.c.b16 %v691, %v687
    %v744 = vpack.c.b16 %v692, %v688
    %v745 = vpack.c.b16 %v693, %v689
    %v746 = vpack.c.b16 %v698, %v694
    %v747 = vpack.c.b16 %v699, %v695
    %v748 = vpack.c.b16 %v700, %v696
    %v749 = vpack.c.b16 %v701, %v697
    %v750 = vpack.c.b16 %v706, %v702
    %v751 = vpack.c.b16 %v707, %v703
    %v752 = vpack.c.b16 %v708, %v704
    %v753 = vpack.c.b16 %v709, %v705
    %v754 = vpack.c.b16 %v714, %v710
    %v755 = vpack.c.b16 %v715, %v711
    %v756 = vpack.c.b16 %v716, %v712
    %v757 = vpack.c.b16 %v717, %v713
    %v758 = vpack.c.b16 %v722, %v718
    %v759 = vpack.c.b16 %v723, %v719
    %v760 = vpack.c.b16 %v724, %v720
    %v761 = vpack.c.b16 %v725, %v721
    %v762 = vpack.c.b16 %v730, %v726
    %v763 = vpack.c.b16 %v731, %v727
    %v764 = vpack.c.b16 %v732, %v728
    %v765 = vpack.c.b16 %v733, %v729
    %798 = vmatpush.bf16.msra.mxu0 %v762
    %799 = vmatpush.bf16.msra.mxu0 %v758
    %800 = vmatpush.bf16.msra.mxu0 %v754
    %801 = vmatpush.bf16.msra.mxu0 %v750
    %802 = vmatpush.bf16.msra.mxu0 %v746
    %803 = vmatpush.bf16.msra.mxu0 %v742
    %804 = vmatpush.bf16.msra.mxu0 %v738
    %805 = vmatpush.bf16.msra.mxu0 %v734
    %806 = vmatmul.bf16.gmra.mxu0 %v605
    %v807 = vpop.f32.mrf.mxu0
    %v808 = vadd.f32 0.0, %v807
    %v809 = vpop.f32.mrf.mxu0
    %810 = vdwg.mxu0
    %811 = vmatpush.bf16.msra.mxu0 %v763
    %812 = vmatpush.bf16.msra.mxu0 %v759
    %813 = vmatpush.bf16.msra.mxu0 %v755
    %814 = vmatpush.bf16.msra.mxu0 %v751
    %815 = vmatpush.bf16.msra.mxu0 %v747
    %816 = vmatpush.bf16.msra.mxu0 %v743
    %817 = vmatpush.bf16.msra.mxu0 %v739
    %818 = vmatpush.bf16.msra.mxu0 %v735
    %819 = vmatmul.bf16.gmra.mxu0 %v605
    %v820 = vpop.f32.mrf.mxu0
    %v821 = vadd.f32 0.0, %v820
    %v822 = vpop.f32.mrf.mxu0
    %823 = vdwg.mxu0
    %824 = vmatpush.bf16.msra.mxu0 %v764
    %825 = vmatpush.bf16.msra.mxu0 %v760
    %826 = vmatpush.bf16.msra.mxu0 %v756
    %827 = vmatpush.bf16.msra.mxu0 %v752
    %828 = vmatpush.bf16.msra.mxu0 %v748
    %829 = vmatpush.bf16.msra.mxu0 %v744
    %830 = vmatpush.bf16.msra.mxu0 %v740
    %831 = vmatpush.bf16.msra.mxu0 %v736
    %832 = vmatmul.bf16.gmra.mxu0 %v605
    %v833 = vpop.f32.mrf.mxu0
    %v834 = vadd.f32 0.0, %v833
    %v835 = vpop.f32.mrf.mxu0
    %836 = vdwg.mxu0
    %837 = vmatpush.bf16.msra.mxu0 %v765
    %838 = vmatpush.bf16.msra.mxu0 %v761
    %839 = vmatpush.bf16.msra.mxu0 %v757
    %840 = vmatpush.bf16.msra.mxu0 %v753
    %841 = vmatpush.bf16.msra.mxu0 %v749
    %842 = vmatpush.bf16.msra.mxu0 %v745
    %843 = vmatpush.bf16.msra.mxu0 %v741
    %844 = vmatpush.bf16.msra.mxu0 %v737
    %845 = vmatmul.bf16.gmra.mxu0 %v605
    %v846 = vpop.f32.mrf.mxu0
    %v847 = vadd.f32 0.0, %v846
    %v848 = vpop.f32.mrf.mxu0
    %849 = vdwg.mxu0
    %v850 = vadd.f32 %v601, %v808
    %v851 = vadd.f32 %v602, %v821
    %v852 = vadd.f32 %v603, %v834
    %v853 = vadd.f32 %v604, %v847
    %v854 = vmul.f32 %v850, 0.5
    %v855 = vtanh.pop %v854
    %v856 = vmul.f32 %v855, 0.5
    %v857 = vadd.f32 %v856, 0.5
    %v858 = vmul.f32 %v851, 0.5
    %v859 = vtanh.pop %v858
    %v860 = vmul.f32 %v859, 0.5
    %v861 = vadd.f32 %v860, 0.5
    %v862 = vtanh.pop %v852
    %v863 = vmul.f32 %v861, %v593
    %v864 = vmul.f32 %v857, %v862
    %v865 = vadd.f32 %v863, %v864
    %v866 = vmul.f32 %v853, 0.5
    %v867 = vtanh.pop %v866
    %v868 = vmul.f32 %v867, 0.5
    %v869 = vadd.f32 %v868, 0.5
    %v870 = vtanh.pop %v865
    %v871 = vmul.f32 %v869, %v870
    %872 = vst [vmem:[#allocation3 + $0x8] sm:$0xff] %v871
    %v873 = vld [vmem:[#allocation2 + $0x40] sm:$0xff]
    %v874 = vld [vmem:[#allocation2 + $0x48] sm:$0xff]
    %v875 = vld [vmem:[#allocation2 + $0x50] sm:$0xff]
    %v876 = vld [vmem:[#allocation2 + $0x58] sm:$0xff]
    %v877 = vpack.c.bf16 %v871, %v871
    %v878 = vld [vmem:[#allocation5] sm:$0xff]
    %v879 = vld [vmem:[#allocation5 + $0x8] sm:$0xff]
    %v880 = vld [vmem:[#allocation5 + $0x10] sm:$0xff]
    %v881 = vld [vmem:[#allocation5 + $0x18] sm:$0xff]
    %v882 = vld [vmem:[#allocation5 + $0x20] sm:$0xff]
    %v883 = vld [vmem:[#allocation5 + $0x28] sm:$0xff]
    %v884 = vld [vmem:[#allocation5 + $0x30] sm:$0xff]
    %v885 = vld [vmem:[#allocation5 + $0x38] sm:$0xff]
    %v886 = vld [vmem:[#allocation5 + $0x40] sm:$0xff]
    %v887 = vld [vmem:[#allocation5 + $0x48] sm:$0xff]
    %v888 = vld [vmem:[#allocation5 + $0x50] sm:$0xff]
    %v889 = vld [vmem:[#allocation5 + $0x58] sm:$0xff]
    %v890 = vld [vmem:[#allocation5 + $0x60] sm:$0xff]
    %v891 = vld [vmem:[#allocation5 + $0x68] sm:$0xff]
    %v892 = vld [vmem:[#allocation5 + $0x70] sm:$0xff]
    %v893 = vld [vmem:[#allocation5 + $0x78] sm:$0xff]
    %v894 = vld [vmem:[#allocation5 + $0x80] sm:$0xff]
    %v895 = vld [vmem:[#allocation5 + $0x88] sm:$0xff]
    %v896 = vld [vmem:[#allocation5 + $0x90] sm:$0xff]
    %v897 = vld [vmem:[#allocation5 + $0x98] sm:$0xff]
    %v898 = vld [vmem:[#allocation5 + $0xa0] sm:$0xff]
    %v899 = vld [vmem:[#allocation5 + $0xa8] sm:$0xff]
    %v900 = vld [vmem:[#allocation5 + $0xb0] sm:$0xff]
    %v901 = vld [vmem:[#allocation5 + $0xb8] sm:$0xff]
    %v902 = vld [vmem:[#allocation5 + $0xc0] sm:$0xff]
    %v903 = vld [vmem:[#allocation5 + $0xc8] sm:$0xff]
    %v904 = vld [vmem:[#allocation5 + $0xd0] sm:$0xff]
    %v905 = vld [vmem:[#allocation5 + $0xd8] sm:$0xff]
    %v906 = vld [vmem:[#allocation5 + $0xe0] sm:$0xff]
    %v907 = vld [vmem:[#allocation5 + $0xe8] sm:$0xff]
    %v908 = vld [vmem:[#allocation5 + $0xf0] sm:$0xff]
    %v909 = vld [vmem:[#allocation5 + $0xf8] sm:$0xff]
    %v942 = vunpack.c.l.b16 %v878
    %v943 = vunpack.c.h.b16 %v878
    %v944 = vunpack.c.l.b16 %v879
    %v945 = vunpack.c.h.b16 %v879
    %v946 = vunpack.c.l.b16 %v880
    %v947 = vunpack.c.h.b16 %v880
    %v948 = vunpack.c.l.b16 %v881
    %v949 = vunpack.c.h.b16 %v881
    %v950 = vunpack.c.l.b16 %v882
    %v951 = vunpack.c.h.b16 %v882
    %v952 = vunpack.c.l.b16 %v883
    %v953 = vunpack.c.h.b16 %v883
    %v954 = vunpack.c.l.b16 %v884
    %v955 = vunpack.c.h.b16 %v884
    %v956 = vunpack.c.l.b16 %v885
    %v957 = vunpack.c.h.b16 %v885
    %v958 = vunpack.c.l.b16 %v886
    %v959 = vunpack.c.h.b16 %v886
    %v960 = vunpack.c.l.b16 %v887
    %v961 = vunpack.c.h.b16 %v887
    %v962 = vunpack.c.l.b16 %v888
    %v963 = vunpack.c.h.b16 %v888
    %v964 = vunpack.c.l.b16 %v889
    %v965 = vunpack.c.h.b16 %v889
    %v966 = vunpack.c.l.b16 %v890
    %v967 = vunpack.c.h.b16 %v890
    %v968 = vunpack.c.l.b16 %v891
    %v969 = vunpack.c.h.b16 %v891
    %v970 = vunpack.c.l.b16 %v892
    %v971 = vunpack.c.h.b16 %v892
    %v972 = vunpack.c.l.b16 %v893
    %v973 = vunpack.c.h.b16 %v893
    %v974 = vunpack.c.l.b16 %v894
    %v975 = vunpack.c.h.b16 %v894
    %v976 = vunpack.c.l.b16 %v895
    %v977 = vunpack.c.h.b16 %v895
    %v978 = vunpack.c.l.b16 %v896
    %v979 = vunpack.c.h.b16 %v896
    %v980 = vunpack.c.l.b16 %v897
    %v981 = vunpack.c.h.b16 %v897
    %v982 = vunpack.c.l.b16 %v898
    %v983 = vunpack.c.h.b16 %v898
    %v984 = vunpack.c.l.b16 %v899
    %v985 = vunpack.c.h.b16 %v899
    %v986 = vunpack.c.l.b16 %v900
    %v987 = vunpack.c.h.b16 %v900
    %v988 = vunpack.c.l.b16 %v901
    %v989 = vunpack.c.h.b16 %v901
    %v990 = vunpack.c.l.b16 %v902
    %v991 = vunpack.c.h.b16 %v902
    %v992 = vunpack.c.l.b16 %v903
    %v993 = vunpack.c.h.b16 %v903
    %v994 = vunpack.c.l.b16 %v904
    %v995 = vunpack.c.h.b16 %v904
    %v996 = vunpack.c.l.b16 %v905
    %v997 = vunpack.c.h.b16 %v905
    %v998 = vunpack.c.l.b16 %v906
    %v999 = vunpack.c.h.b16 %v906
    %v1000 = vunpack.c.l.b16 %v907
    %v1001 = vunpack.c.h.b16 %v907
    %v1002 = vunpack.c.l.b16 %v908
    %v1003 = vunpack.c.h.b16 %v908
    %v1004 = vunpack.c.l.b16 %v909
    %v1005 = vunpack.c.h.b16 %v909
    %v1006 = vpack.c.b16 %v946, %v942
    %v1007 = vpack.c.b16 %v947, %v943
    %v1008 = vpack.c.b16 %v948, %v944
    %v1009 = vpack.c.b16 %v949, %v945
    %v1010 = vpack.c.b16 %v954, %v950
    %v1011 = vpack.c.b16 %v955, %v951
    %v1012 = vpack.c.b16 %v956, %v952
    %v1013 = vpack.c.b16 %v957, %v953
    %v1014 = vpack.c.b16 %v962, %v958
    %v1015 = vpack.c.b16 %v963, %v959
    %v1016 = vpack.c.b16 %v964, %v960
    %v1017 = vpack.c.b16 %v965, %v961
    %v1018 = vpack.c.b16 %v970, %v966
    %v1019 = vpack.c.b16 %v971, %v967
    %v1020 = vpack.c.b16 %v972, %v968
    %v1021 = vpack.c.b16 %v973, %v969
    %v1022 = vpack.c.b16 %v978, %v974
    %v1023 = vpack.c.b16 %v979, %v975
    %v1024 = vpack.c.b16 %v980, %v976
    %v1025 = vpack.c.b16 %v981, %v977
    %v1026 = vpack.c.b16 %v986, %v982
    %v1027 = vpack.c.b16 %v987, %v983
    %v1028 = vpack.c.b16 %v988, %v984
    %v1029 = vpack.c.b16 %v989, %v985
    %v1030 = vpack.c.b16 %v994, %v990
    %v1031 = vpack.c.b16 %v995, %v991
    %v1032 = vpack.c.b16 %v996, %v992
    %v1033 = vpack.c.b16 %v997, %v993
    %v1034 = vpack.c.b16 %v1002, %v998
    %v1035 = vpack.c.b16 %v1003, %v999
    %v1036 = vpack.c.b16 %v1004, %v1000
    %v1037 = vpack.c.b16 %v1005, %v1001
    %1070 = vmatpush.bf16.msra.mxu0 %v1034
    %1071 = vmatpush.bf16.msra.mxu0 %v1030
    %1072 = vmatpush.bf16.msra.mxu0 %v1026
    %1073 = vmatpush.bf16.msra.mxu0 %v1022
    %1074 = vmatpush.bf16.msra.mxu0 %v1018
    %1075 = vmatpush.bf16.msra.mxu0 %v1014
    %1076 = vmatpush.bf16.msra.mxu0 %v1010
    %1077 = vmatpush.bf16.msra.mxu0 %v1006
    %1078 = vmatmul.bf16.gmra.mxu0 %v877
    %v1079 = vpop.f32.mrf.mxu0
    %v1080 = vadd.f32 0.0, %v1079
    %v1081 = vpop.f32.mrf.mxu0
    %1082 = vdwg.mxu0
    %1083 = vmatpush.bf16.msra.mxu0 %v1035
    %1084 = vmatpush.bf16.msra.mxu0 %v1031
    %1085 = vmatpush.bf16.msra.mxu0 %v1027
    %1086 = vmatpush.bf16.msra.mxu0 %v1023
    %1087 = vmatpush.bf16.msra.mxu0 %v1019
    %1088 = vmatpush.bf16.msra.mxu0 %v1015
    %1089 = vmatpush.bf16.msra.mxu0 %v1011
    %1090 = vmatpush.bf16.msra.mxu0 %v1007
    %1091 = vmatmul.bf16.gmra.mxu0 %v877
    %v1092 = vpop.f32.mrf.mxu0
    %v1093 = vadd.f32 0.0, %v1092
    %v1094 = vpop.f32.mrf.mxu0
    %1095 = vdwg.mxu0
    %1096 = vmatpush.bf16.msra.mxu0 %v1036
    %1097 = vmatpush.bf16.msra.mxu0 %v1032
    %1098 = vmatpush.bf16.msra.mxu0 %v1028
    %1099 = vmatpush.bf16.msra.mxu0 %v1024
    %1100 = vmatpush.bf16.msra.mxu0 %v1020
    %1101 = vmatpush.bf16.msra.mxu0 %v1016
    %1102 = vmatpush.bf16.msra.mxu0 %v1012
    %1103 = vmatpush.bf16.msra.mxu0 %v1008
    %1104 = vmatmul.bf16.gmra.mxu0 %v877
    %v1105 = vpop.f32.mrf.mxu0
    %v1106 = vadd.f32 0.0, %v1105
    %v1107 = vpop.f32.mrf.mxu0
    %1108 = vdwg.mxu0
    %1109 = vmatpush.bf16.msra.mxu0 %v1037
    %1110 = vmatpush.bf16.msra.mxu0 %v1033
    %1111 = vmatpush.bf16.msra.mxu0 %v1029
    %1112 = vmatpush.bf16.msra.mxu0 %v1025
    %1113 = vmatpush.bf16.msra.mxu0 %v1021
    %1114 = vmatpush.bf16.msra.mxu0 %v1017
    %1115 = vmatpush.bf16.msra.mxu0 %v1013
    %1116 = vmatpush.bf16.msra.mxu0 %v1009
    %1117 = vmatmul.bf16.gmra.mxu0 %v877
    %v1118 = vpop.f32.mrf.mxu0
    %v1119 = vadd.f32 0.0, %v1118
    %v1120 = vpop.f32.mrf.mxu0
    %1121 = vdwg.mxu0
    %v1122 = vadd.f32 %v873, %v1080
    %v1123 = vadd.f32 %v874, %v1093
    %v1124 = vadd.f32 %v875, %v1106
    %v1125 = vadd.f32 %v876, %v1119
    %v1126 = vmul.f32 %v1122, 0.5
    %v1127 = vtanh.pop %v1126
    %v1128 = vmul.f32 %v1127, 0.5
    %v1129 = vadd.f32 %v1128, 0.5
    %v1130 = vmul.f32 %v1123, 0.5
    %v1131 = vtanh.pop %v1130
    %v1132 = vmul.f32 %v1131, 0.5
    %v1133 = vadd.f32 %v1132, 0.5
    %v1134 = vtanh.pop %v1124
    %v1135 = vmul.f32 %v1133, %v865
    %v1136 = vmul.f32 %v1129, %v1134
    %v1137 = vadd.f32 %v1135, %v1136
    %v1138 = vmul.f32 %v1125, 0.5
    %v1139 = vtanh.pop %v1138
    %v1140 = vmul.f32 %v1139, 0.5
    %v1141 = vadd.f32 %v1140, 0.5
    %v1142 = vtanh.pop %v1137
    %v1143 = vmul.f32 %v1141, %v1142
    %1144 = vst [vmem:[#allocation3 + $0x10] sm:$0xff] %v1143
    %v1145 = vld [vmem:[#allocation2 + $0x60] sm:$0xff]
    %v1146 = vld [vmem:[#allocation2 + $0x68] sm:$0xff]
    %v1147 = vld [vmem:[#allocation2 + $0x70] sm:$0xff]
    %v1148 = vld [vmem:[#allocation2 + $0x78] sm:$0xff]
    %v1149 = vpack.c.bf16 %v1143, %v1143
    %v1150 = vld [vmem:[#allocation5] sm:$0xff]
    %v1151 = vld [vmem:[#allocation5 + $0x8] sm:$0xff]
    %v1152 = vld [vmem:[#allocation5 + $0x10] sm:$0xff]
    %v1153 = vld [vmem:[#allocation5 + $0x18] sm:$0xff]
    %v1154 = vld [vmem:[#allocation5 + $0x20] sm:$0xff]
    %v1155 = vld [vmem:[#allocation5 + $0x28] sm:$0xff]
    %v1156 = vld [vmem:[#allocation5 + $0x30] sm:$0xff]
    %v1157 = vld [vmem:[#allocation5 + $0x38] sm:$0xff]
    %v1158 = vld [vmem:[#allocation5 + $0x40] sm:$0xff]
    %v1159 = vld [vmem:[#allocation5 + $0x48] sm:$0xff]
    %v1160 = vld [vmem:[#allocation5 + $0x50] sm:$0xff]
    %v1161 = vld [vmem:[#allocation5 + $0x58] sm:$0xff]
    %v1162 = vld [vmem:[#allocation5 + $0x60] sm:$0xff]
    %v1163 = vld [vmem:[#allocation5 + $0x68] sm:$0xff]
    %v1164 = vld [vmem:[#allocation5 + $0x70] sm:$0xff]
    %v1165 = vld [vmem:[#allocation5 + $0x78] sm:$0xff]
    %v1166 = vld [vmem:[#allocation5 + $0x80] sm:$0xff]
    %v1167 = vld [vmem:[#allocation5 + $0x88] sm:$0xff]
    %v1168 = vld [vmem:[#allocation5 + $0x90] sm:$0xff]
    %v1169 = vld [vmem:[#allocation5 + $0x98] sm:$0xff]
    %v1170 = vld [vmem:[#allocation5 + $0xa0] sm:$0xff]
    %v1171 = vld [vmem:[#allocation5 + $0xa8] sm:$0xff]
    %v1172 = vld [vmem:[#allocation5 + $0xb0] sm:$0xff]
    %v1173 = vld [vmem:[#allocation5 + $0xb8] sm:$0xff]
    %v1174 = vld [vmem:[#allocation5 + $0xc0] sm:$0xff]
    %v1175 = vld [vmem:[#allocation5 + $0xc8] sm:$0xff]
    %v1176 = vld [vmem:[#allocation5 + $0xd0] sm:$0xff]
    %v1177 = vld [vmem:[#allocation5 + $0xd8] sm:$0xff]
    %v1178 = vld [vmem:[#allocation5 + $0xe0] sm:$0xff]
    %v1179 = vld [vmem:[#allocation5 + $0xe8] sm:$0xff]
    %v1180 = vld [vmem:[#allocation5 + $0xf0] sm:$0xff]
    %v1181 = vld [vmem:[#allocation5 + $0xf8] sm:$0xff]
    %v1214 = vunpack.c.l.b16 %v1150
    %v1215 = vunpack.c.h.b16 %v1150
    %v1216 = vunpack.c.l.b16 %v1151
    %v1217 = vunpack.c.h.b16 %v1151
    %v1218 = vunpack.c.l.b16 %v1152
    %v1219 = vunpack.c.h.b16 %v1152
    %v1220 = vunpack.c.l.b16 %v1153
    %v1221 = vunpack.c.h.b16 %v1153
    %v1222 = vunpack.c.l.b16 %v1154
    %v1223 = vunpack.c.h.b16 %v1154
    %v1224 = vunpack.c.l.b16 %v1155
    %v1225 = vunpack.c.h.b16 %v1155
    %v1226 = vunpack.c.l.b16 %v1156
    %v1227 = vunpack.c.h.b16 %v1156
    %v1228 = vunpack.c.l.b16 %v1157
    %v1229 = vunpack.c.h.b16 %v1157
    %v1230 = vunpack.c.l.b16 %v1158
    %v1231 = vunpack.c.h.b16 %v1158
    %v1232 = vunpack.c.l.b16 %v1159
    %v1233 = vunpack.c.h.b16 %v1159
    %v1234 = vunpack.c.l.b16 %v1160
    %v1235 = vunpack.c.h.b16 %v1160
    %v1236 = vunpack.c.l.b16 %v1161
    %v1237 = vunpack.c.h.b16 %v1161
    %v1238 = vunpack.c.l.b16 %v1162
    %v1239 = vunpack.c.h.b16 %v1162
    %v1240 = vunpack.c.l.b16 %v1163
    %v1241 = vunpack.c.h.b16 %v1163
    %v1242 = vunpack.c.l.b16 %v1164
    %v1243 = vunpack.c.h.b16 %v1164
    %v1244 = vunpack.c.l.b16 %v1165
    %v1245 = vunpack.c.h.b16 %v1165
    %v1246 = vunpack.c.l.b16 %v1166
    %v1247 = vunpack.c.h.b16 %v1166
    %v1248 = vunpack.c.l.b16 %v1167
    %v1249 = vunpack.c.h.b16 %v1167
    %v1250 = vunpack.c.l.b16 %v1168
    %v1251 = vunpack.c.h.b16 %v1168
    %v1252 = vunpack.c.l.b16 %v1169
    %v1253 = vunpack.c.h.b16 %v1169
    %v1254 = vunpack.c.l.b16 %v1170
    %v1255 = vunpack.c.h.b16 %v1170
    %v1256 = vunpack.c.l.b16 %v1171
    %v1257 = vunpack.c.h.b16 %v1171
    %v1258 = vunpack.c.l.b16 %v1172
    %v1259 = vunpack.c.h.b16 %v1172
    %v1260 = vunpack.c.l.b16 %v1173
    %v1261 = vunpack.c.h.b16 %v1173
    %v1262 = vunpack.c.l.b16 %v1174
    %v1263 = vunpack.c.h.b16 %v1174
    %v1264 = vunpack.c.l.b16 %v1175
    %v1265 = vunpack.c.h.b16 %v1175
    %v1266 = vunpack.c.l.b16 %v1176
    %v1267 = vunpack.c.h.b16 %v1176
    %v1268 = vunpack.c.l.b16 %v1177
    %v1269 = vunpack.c.h.b16 %v1177
    %v1270 = vunpack.c.l.b16 %v1178
    %v1271 = vunpack.c.h.b16 %v1178
    %v1272 = vunpack.c.l.b16 %v1179
    %v1273 = vunpack.c.h.b16 %v1179
    %v1274 = vunpack.c.l.b16 %v1180
    %v1275 = vunpack.c.h.b16 %v1180
    %v1276 = vunpack.c.l.b16 %v1181
    %v1277 = vunpack.c.h.b16 %v1181
    %v1278 = vpack.c.b16 %v1218, %v1214
    %v1279 = vpack.c.b16 %v1219, %v1215
    %v1280 = vpack.c.b16 %v1220, %v1216
    %v1281 = vpack.c.b16 %v1221, %v1217
    %v1282 = vpack.c.b16 %v1226, %v1222
    %v1283 = vpack.c.b16 %v1227, %v1223
    %v1284 = vpack.c.b16 %v1228, %v1224
    %v1285 = vpack.c.b16 %v1229, %v1225
    %v1286 = vpack.c.b16 %v1234, %v1230
    %v1287 = vpack.c.b16 %v1235, %v1231
    %v1288 = vpack.c.b16 %v1236, %v1232
    %v1289 = vpack.c.b16 %v1237, %v1233
    %v1290 = vpack.c.b16 %v1242, %v1238
    %v1291 = vpack.c.b16 %v1243, %v1239
    %v1292 = vpack.c.b16 %v1244, %v1240
    %v1293 = vpack.c.b16 %v1245, %v1241
    %v1294 = vpack.c.b16 %v1250, %v1246
    %v1295 = vpack.c.b16 %v1251, %v1247
    %v1296 = vpack.c.b16 %v1252, %v1248
    %v1297 = vpack.c.b16 %v1253, %v1249
    %v1298 = vpack.c.b16 %v1258, %v1254
    %v1299 = vpack.c.b16 %v1259, %v1255
    %v1300 = vpack.c.b16 %v1260, %v1256
    %v1301 = vpack.c.b16 %v1261, %v1257
    %v1302 = vpack.c.b16 %v1266, %v1262
    %v1303 = vpack.c.b16 %v1267, %v1263
    %v1304 = vpack.c.b16 %v1268, %v1264
    %v1305 = vpack.c.b16 %v1269, %v1265
    %v1306 = vpack.c.b16 %v1274, %v1270
    %v1307 = vpack.c.b16 %v1275, %v1271
    %v1308 = vpack.c.b16 %v1276, %v1272
    %v1309 = vpack.c.b16 %v1277, %v1273
    %1342 = vmatpush.bf16.msra.mxu0 %v1306
    %1343 = vmatpush.bf16.msra.mxu0 %v1302
    %1344 = vmatpush.bf16.msra.mxu0 %v1298
    %1345 = vmatpush.bf16.msra.mxu0 %v1294
    %1346 = vmatpush.bf16.msra.mxu0 %v1290
    %1347 = vmatpush.bf16.msra.mxu0 %v1286
    %1348 = vmatpush.bf16.msra.mxu0 %v1282
    %1349 = vmatpush.bf16.msra.mxu0 %v1278
    %1350 = vmatmul.bf16.gmra.mxu0 %v1149
    %v1351 = vpop.f32.mrf.mxu0
    %v1352 = vadd.f32 0.0, %v1351
    %v1353 = vpop.f32.mrf.mxu0
    %1354 = vdwg.mxu0
    %1355 = vmatpush.bf16.msra.mxu0 %v1307
    %1356 = vmatpush.bf16.msra.mxu0 %v1303
    %1357 = vmatpush.bf16.msra.mxu0 %v1299
    %1358 = vmatpush.bf16.msra.mxu0 %v1295
    %1359 = vmatpush.bf16.msra.mxu0 %v1291
    %1360 = vmatpush.bf16.msra.mxu0 %v1287
    %1361 = vmatpush.bf16.msra.mxu0 %v1283
    %1362 = vmatpush.bf16.msra.mxu0 %v1279
    %1363 = vmatmul.bf16.gmra.mxu0 %v1149
    %v1364 = vpop.f32.mrf.mxu0
    %v1365 = vadd.f32 0.0, %v1364
    %v1366 = vpop.f32.mrf.mxu0
    %1367 = vdwg.mxu0
    %1368 = vmatpush.bf16.msra.mxu0 %v1308
    %1369 = vmatpush.bf16.msra.mxu0 %v1304
    %1370 = vmatpush.bf16.msra.mxu0 %v1300
    %1371 = vmatpush.bf16.msra.mxu0 %v1296
    %1372 = vmatpush.bf16.msra.mxu0 %v1292
    %1373 = vmatpush.bf16.msra.mxu0 %v1288
    %1374 = vmatpush.bf16.msra.mxu0 %v1284
    %1375 = vmatpush.bf16.msra.mxu0 %v1280
    %1376 = vmatmul.bf16.gmra.mxu0 %v1149
    %v1377 = vpop.f32.mrf.mxu0
    %v1378 = vadd.f32 0.0, %v1377
    %v1379 = vpop.f32.mrf.mxu0
    %1380 = vdwg.mxu0
    %1381 = vmatpush.bf16.msra.mxu0 %v1309
    %1382 = vmatpush.bf16.msra.mxu0 %v1305
    %1383 = vmatpush.bf16.msra.mxu0 %v1301
    %1384 = vmatpush.bf16.msra.mxu0 %v1297
    %1385 = vmatpush.bf16.msra.mxu0 %v1293
    %1386 = vmatpush.bf16.msra.mxu0 %v1289
    %1387 = vmatpush.bf16.msra.mxu0 %v1285
    %1388 = vmatpush.bf16.msra.mxu0 %v1281
    %1389 = vmatmul.bf16.gmra.mxu0 %v1149
    %v1390 = vpop.f32.mrf.mxu0
    %v1391 = vadd.f32 0.0, %v1390
    %v1392 = vpop.f32.mrf.mxu0
    %1393 = vdwg.mxu0
    %v1394 = vadd.f32 %v1145, %v1352
    %v1395 = vadd.f32 %v1146, %v1365
    %v1396 = vadd.f32 %v1147, %v1378
    %v1397 = vadd.f32 %v1148, %v1391
    %v1398 = vmul.f32 %v1394, 0.5
    %v1399 = vtanh.pop %v1398
    %v1400 = vmul.f32 %v1399, 0.5
    %v1401 = vadd.f32 %v1400, 0.5
    %v1402 = vmul.f32 %v1395, 0.5
    %v1403 = vtanh.pop %v1402
    %v1404 = vmul.f32 %v1403, 0.5
    %v1405 = vadd.f32 %v1404, 0.5
    %v1406 = vtanh.pop %v1396
    %v1407 = vmul.f32 %v1405, %v1137
    %v1408 = vmul.f32 %v1401, %v1406
    %v1409 = vadd.f32 %v1407, %v1408
    %v1410 = vmul.f32 %v1397, 0.5
    %v1411 = vtanh.pop %v1410
    %v1412 = vmul.f32 %v1411, 0.5
    %v1413 = vadd.f32 %v1412, 0.5
    %v1414 = vtanh.pop %v1409
    %v1415 = vmul.f32 %v1413, %v1414
    %1416 = vst [vmem:[#allocation3 + $0x18] sm:$0xff] %v1415
    %v1417 = vld [vmem:[#allocation2 + $0x80] sm:$0xff]
    %v1418 = vld [vmem:[#allocation2 + $0x88] sm:$0xff]
    %v1419 = vld [vmem:[#allocation2 + $0x90] sm:$0xff]
    %v1420 = vld [vmem:[#allocation2 + $0x98] sm:$0xff]
    %v1421 = vpack.c.bf16 %v1415, %v1415
    %v1422 = vld [vmem:[#allocation5] sm:$0xff]
    %v1423 = vld [vmem:[#allocation5 + $0x8] sm:$0xff]
    %v1424 = vld [vmem:[#allocation5 + $0x10] sm:$0xff]
    %v1425 = vld [vmem:[#allocation5 + $0x18] sm:$0xff]
    %v1426 = vld [vmem:[#allocation5 + $0x20] sm:$0xff]
    %v1427 = vld [vmem:[#allocation5 + $0x28] sm:$0xff]
    %v1428 = vld [vmem:[#allocation5 + $0x30] sm:$0xff]
    %v1429 = vld [vmem:[#allocation5 + $0x38] sm:$0xff]
    %v1430 = vld [vmem:[#allocation5 + $0x40] sm:$0xff]
    %v1431 = vld [vmem:[#allocation5 + $0x48] sm:$0xff]
    %v1432 = vld [vmem:[#allocation5 + $0x50] sm:$0xff]
    %v1433 = vld [vmem:[#allocation5 + $0x58] sm:$0xff]
    %v1434 = vld [vmem:[#allocation5 + $0x60] sm:$0xff]
    %v1435 = vld [vmem:[#allocation5 + $0x68] sm:$0xff]
    %v1436 = vld [vmem:[#allocation5 + $0x70] sm:$0xff]
    %v1437 = vld [vmem:[#allocation5 + $0x78] sm:$0xff]
    %v1438 = vld [vmem:[#allocation5 + $0x80] sm:$0xff]
    %v1439 = vld [vmem:[#allocation5 + $0x88] sm:$0xff]
    %v1440 = vld [vmem:[#allocation5 + $0x90] sm:$0xff]
    %v1441 = vld [vmem:[#allocation5 + $0x98] sm:$0xff]
    %v1442 = vld [vmem:[#allocation5 + $0xa0] sm:$0xff]
    %v1443 = vld [vmem:[#allocation5 + $0xa8] sm:$0xff]
    %v1444 = vld [vmem:[#allocation5 + $0xb0] sm:$0xff]
    %v1445 = vld [vmem:[#allocation5 + $0xb8] sm:$0xff]
    %v1446 = vld [vmem:[#allocation5 + $0xc0] sm:$0xff]
    %v1447 = vld [vmem:[#allocation5 + $0xc8] sm:$0xff]
    %v1448 = vld [vmem:[#allocation5 + $0xd0] sm:$0xff]
    %v1449 = vld [vmem:[#allocation5 + $0xd8] sm:$0xff]
    %v1450 = vld [vmem:[#allocation5 + $0xe0] sm:$0xff]
    %v1451 = vld [vmem:[#allocation5 + $0xe8] sm:$0xff]
    %v1452 = vld [vmem:[#allocation5 + $0xf0] sm:$0xff]
    %v1453 = vld [vmem:[#allocation5 + $0xf8] sm:$0xff]
    %v1486 = vunpack.c.l.b16 %v1422
    %v1487 = vunpack.c.h.b16 %v1422
    %v1488 = vunpack.c.l.b16 %v1423
    %v1489 = vunpack.c.h.b16 %v1423
    %v1490 = vunpack.c.l.b16 %v1424
    %v1491 = vunpack.c.h.b16 %v1424
    %v1492 = vunpack.c.l.b16 %v1425
    %v1493 = vunpack.c.h.b16 %v1425
    %v1494 = vunpack.c.l.b16 %v1426
    %v1495 = vunpack.c.h.b16 %v1426
    %v1496 = vunpack.c.l.b16 %v1427
    %v1497 = vunpack.c.h.b16 %v1427
    %v1498 = vunpack.c.l.b16 %v1428
    %v1499 = vunpack.c.h.b16 %v1428
    %v1500 = vunpack.c.l.b16 %v1429
    %v1501 = vunpack.c.h.b16 %v1429
    %v1502 = vunpack.c.l.b16 %v1430
    %v1503 = vunpack.c.h.b16 %v1430
    %v1504 = vunpack.c.l.b16 %v1431
    %v1505 = vunpack.c.h.b16 %v1431
    %v1506 = vunpack.c.l.b16 %v1432
    %v1507 = vunpack.c.h.b16 %v1432
    %v1508 = vunpack.c.l.b16 %v1433
    %v1509 = vunpack.c.h.b16 %v1433
    %v1510 = vunpack.c.l.b16 %v1434
    %v1511 = vunpack.c.h.b16 %v1434
    %v1512 = vunpack.c.l.b16 %v1435
    %v1513 = vunpack.c.h.b16 %v1435
    %v1514 = vunpack.c.l.b16 %v1436
    %v1515 = vunpack.c.h.b16 %v1436
    %v1516 = vunpack.c.l.b16 %v1437
    %v1517 = vunpack.c.h.b16 %v1437
    %v1518 = vunpack.c.l.b16 %v1438
    %v1519 = vunpack.c.h.b16 %v1438
    %v1520 = vunpack.c.l.b16 %v1439
    %v1521 = vunpack.c.h.b16 %v1439
    %v1522 = vunpack.c.l.b16 %v1440
    %v1523 = vunpack.c.h.b16 %v1440
    %v1524 = vunpack.c.l.b16 %v1441
    %v1525 = vunpack.c.h.b16 %v1441
    %v1526 = vunpack.c.l.b16 %v1442
    %v1527 = vunpack.c.h.b16 %v1442
    %v1528 = vunpack.c.l.b16 %v1443
    %v1529 = vunpack.c.h.b16 %v1443
    %v1530 = vunpack.c.l.b16 %v1444
    %v1531 = vunpack.c.h.b16 %v1444
    %v1532 = vunpack.c.l.b16 %v1445
    %v1533 = vunpack.c.h.b16 %v1445
    %v1534 = vunpack.c.l.b16 %v1446
    %v1535 = vunpack.c.h.b16 %v1446
    %v1536 = vunpack.c.l.b16 %v1447
    %v1537 = vunpack.c.h.b16 %v1447
    %v1538 = vunpack.c.l.b16 %v1448
    %v1539 = vunpack.c.h.b16 %v1448
    %v1540 = vunpack.c.l.b16 %v1449
    %v1541 = vunpack.c.h.b16 %v1449
    %v1542 = vunpack.c.l.b16 %v1450
    %v1543 = vunpack.c.h.b16 %v1450
    %v1544 = vunpack.c.l.b16 %v1451
    %v1545 = vunpack.c.h.b16 %v1451
    %v1546 = vunpack.c.l.b16 %v1452
    %v1547 = vunpack.c.h.b16 %v1452
    %v1548 = vunpack.c.l.b16 %v1453
    %v1549 = vunpack.c.h.b16 %v1453
    %v1550 = vpack.c.b16 %v1490, %v1486
    %v1551 = vpack.c.b16 %v1491, %v1487
    %v1552 = vpack.c.b16 %v1492, %v1488
    %v1553 = vpack.c.b16 %v1493, %v1489
    %v1554 = vpack.c.b16 %v1498, %v1494
    %v1555 = vpack.c.b16 %v1499, %v1495
    %v1556 = vpack.c.b16 %v1500, %v1496
    %v1557 = vpack.c.b16 %v1501, %v1497
    %v1558 = vpack.c.b16 %v1506, %v1502
    %v1559 = vpack.c.b16 %v1507, %v1503
    %v1560 = vpack.c.b16 %v1508, %v1504
    %v1561 = vpack.c.b16 %v1509, %v1505
    %v1562 = vpack.c.b16 %v1514, %v1510
    %v1563 = vpack.c.b16 %v1515, %v1511
    %v1564 = vpack.c.b16 %v1516, %v1512
    %v1565 = vpack.c.b16 %v1517, %v1513
    %v1566 = vpack.c.b16 %v1522, %v1518
    %v1567 = vpack.c.b16 %v1523, %v1519
    %v1568 = vpack.c.b16 %v1524, %v1520
    %v1569 = vpack.c.b16 %v1525, %v1521
    %v1570 = vpack.c.b16 %v1530, %v1526
    %v1571 = vpack.c.b16 %v1531, %v1527
    %v1572 = vpack.c.b16 %v1532, %v1528
    %v1573 = vpack.c.b16 %v1533, %v1529
    %v1574 = vpack.c.b16 %v1538, %v1534
    %v1575 = vpack.c.b16 %v1539, %v1535
    %v1576 = vpack.c.b16 %v1540, %v1536
    %v1577 = vpack.c.b16 %v1541, %v1537
    %v1578 = vpack.c.b16 %v1546, %v1542
    %v1579 = vpack.c.b16 %v1547, %v1543
    %v1580 = vpack.c.b16 %v1548, %v1544
    %v1581 = vpack.c.b16 %v1549, %v1545
    %1614 = vmatpush.bf16.msra.mxu0 %v1578
    %1615 = vmatpush.bf16.msra.mxu0 %v1574
    %1616 = vmatpush.bf16.msra.mxu0 %v1570
    %1617 = vmatpush.bf16.msra.mxu0 %v1566
    %1618 = vmatpush.bf16.msra.mxu0 %v1562
    %1619 = vmatpush.bf16.msra.mxu0 %v1558
    %1620 = vmatpush.bf16.msra.mxu0 %v1554
    %1621 = vmatpush.bf16.msra.mxu0 %v1550
    %1622 = vmatmul.bf16.gmra.mxu0 %v1421
    %v1623 = vpop.f32.mrf.mxu0
    %v1624 = vadd.f32 0.0, %v1623
    %v1625 = vpop.f32.mrf.mxu0
    %1626 = vdwg.mxu0
    %1627 = vmatpush.bf16.msra.mxu0 %v1579
    %1628 = vmatpush.bf16.msra.mxu0 %v1575
    %1629 = vmatpush.bf16.msra.mxu0 %v1571
    %1630 = vmatpush.bf16.msra.mxu0 %v1567
    %1631 = vmatpush.bf16.msra.mxu0 %v1563
    %1632 = vmatpush.bf16.msra.mxu0 %v1559
    %1633 = vmatpush.bf16.msra.mxu0 %v1555
    %1634 = vmatpush.bf16.msra.mxu0 %v1551
    %1635 = vmatmul.bf16.gmra.mxu0 %v1421
    %v1636 = vpop.f32.mrf.mxu0
    %v1637 = vadd.f32 0.0, %v1636
    %v1638 = vpop.f32.mrf.mxu0
    %1639 = vdwg.mxu0
    %1640 = vmatpush.bf16.msra.mxu0 %v1580
    %1641 = vmatpush.bf16.msra.mxu0 %v1576
    %1642 = vmatpush.bf16.msra.mxu0 %v1572
    %1643 = vmatpush.bf16.msra.mxu0 %v1568
    %1644 = vmatpush.bf16.msra.mxu0 %v1564
    %1645 = vmatpush.bf16.msra.mxu0 %v1560
    %1646 = vmatpush.bf16.msra.mxu0 %v1556
    %1647 = vmatpush.bf16.msra.mxu0 %v1552
    %1648 = vmatmul.bf16.gmra.mxu0 %v1421
    %v1649 = vpop.f32.mrf.mxu0
    %v1650 = vadd.f32 0.0, %v1649
    %v1651 = vpop.f32.mrf.mxu0
    %1652 = vdwg.mxu0
    %1653 = vmatpush.bf16.msra.mxu0 %v1581
    %1654 = vmatpush.bf16.msra.mxu0 %v1577
    %1655 = vmatpush.bf16.msra.mxu0 %v1573
    %1656 = vmatpush.bf16.msra.mxu0 %v1569
    %1657 = vmatpush.bf16.msra.mxu0 %v1565
    %1658 = vmatpush.bf16.msra.mxu0 %v1561
    %1659 = vmatpush.bf16.msra.mxu0 %v1557
    %1660 = vmatpush.bf16.msra.mxu0 %v1553
    %1661 = vmatmul.bf16.gmra.mxu0 %v1421
    %v1662 = vpop.f32.mrf.mxu0
    %v1663 = vadd.f32 0.0, %v1662
    %v1664 = vpop.f32.mrf.mxu0
    %1665 = vdwg.mxu0
    %v1666 = vadd.f32 %v1417, %v1624
    %v1667 = vadd.f32 %v1418, %v1637
    %v1668 = vadd.f32 %v1419, %v1650
    %v1669 = vadd.f32 %v1420, %v1663
    %v1670 = vmul.f32 %v1666, 0.5
    %v1671 = vtanh.pop %v1670
    %v1672 = vmul.f32 %v1671, 0.5
    %v1673 = vadd.f32 %v1672, 0.5
    %v1674 = vmul.f32 %v1667, 0.5
    %v1675 = vtanh.pop %v1674
    %v1676 = vmul.f32 %v1675, 0.5
    %v1677 = vadd.f32 %v1676, 0.5
    %v1678 = vtanh.pop %v1668
    %v1679 = vmul.f32 %v1677, %v1409
    %v1680 = vmul.f32 %v1673, %v1678
    %v1681 = vadd.f32 %v1679, %v1680
    %v1682 = vmul.f32 %v1669, 0.5
    %v1683 = vtanh.pop %v1682
    %v1684 = vmul.f32 %v1683, 0.5
    %v1685 = vadd.f32 %v1684, 0.5
    %v1686 = vtanh.pop %v1681
    %v1687 = vmul.f32 %v1685, %v1686
    %1688 = vst [vmem:[#allocation3 + $0x20] sm:$0xff] %v1687
    %v1689 = vld [vmem:[#allocation2 + $0xa0] sm:$0xff]
    %v1690 = vld [vmem:[#allocation2 + $0xa8] sm:$0xff]
    %v1691 = vld [vmem:[#allocation2 + $0xb0] sm:$0xff]
    %v1692 = vld [vmem:[#allocation2 + $0xb8] sm:$0xff]
    %v1693 = vpack.c.bf16 %v1687, %v1687
    %v1694 = vld [vmem:[#allocation5] sm:$0xff]
    %v1695 = vld [vmem:[#allocation5 + $0x8] sm:$0xff]
    %v1696 = vld [vmem:[#allocation5 + $0x10] sm:$0xff]
    %v1697 = vld [vmem:[#allocation5 + $0x18] sm:$0xff]
    %v1698 = vld [vmem:[#allocation5 + $0x20] sm:$0xff]
    %v1699 = vld [vmem:[#allocation5 + $0x28] sm:$0xff]
    %v1700 = vld [vmem:[#allocation5 + $0x30] sm:$0xff]
    %v1701 = vld [vmem:[#allocation5 + $0x38] sm:$0xff]
    %v1702 = vld [vmem:[#allocation5 + $0x40] sm:$0xff]
    %v1703 = vld [vmem:[#allocation5 + $0x48] sm:$0xff]
    %v1704 = vld [vmem:[#allocation5 + $0x50] sm:$0xff]
    %v1705 = vld [vmem:[#allocation5 + $0x58] sm:$0xff]
    %v1706 = vld [vmem:[#allocation5 + $0x60] sm:$0xff]
    %v1707 = vld [vmem:[#allocation5 + $0x68] sm:$0xff]
    %v1708 = vld [vmem:[#allocation5 + $0x70] sm:$0xff]
    %v1709 = vld [vmem:[#allocation5 + $0x78] sm:$0xff]
    %v1710 = vld [vmem:[#allocation5 + $0x80] sm:$0xff]
    %v1711 = vld [vmem:[#allocation5 + $0x88] sm:$0xff]
    %v1712 = vld [vmem:[#allocation5 + $0x90] sm:$0xff]
    %v1713 = vld [vmem:[#allocation5 + $0x98] sm:$0xff]
    %v1714 = vld [vmem:[#allocation5 + $0xa0] sm:$0xff]
    %v1715 = vld [vmem:[#allocation5 + $0xa8] sm:$0xff]
    %v1716 = vld [vmem:[#allocation5 + $0xb0] sm:$0xff]
    %v1717 = vld [vmem:[#allocation5 + $0xb8] sm:$0xff]
    %v1718 = vld [vmem:[#allocation5 + $0xc0] sm:$0xff]
    %v1719 = vld [vmem:[#allocation5 + $0xc8] sm:$0xff]
    %v1720 = vld [vmem:[#allocation5 + $0xd0] sm:$0xff]
    %v1721 = vld [vmem:[#allocation5 + $0xd8] sm:$0xff]
    %v1722 = vld [vmem:[#allocation5 + $0xe0] sm:$0xff]
    %v1723 = vld [vmem:[#allocation5 + $0xe8] sm:$0xff]
    %v1724 = vld [vmem:[#allocation5 + $0xf0] sm:$0xff]
    %v1725 = vld [vmem:[#allocation5 + $0xf8] sm:$0xff]
    %v1758 = vunpack.c.l.b16 %v1694
    %v1759 = vunpack.c.h.b16 %v1694
    %v1760 = vunpack.c.l.b16 %v1695
    %v1761 = vunpack.c.h.b16 %v1695
    %v1762 = vunpack.c.l.b16 %v1696
    %v1763 = vunpack.c.h.b16 %v1696
    %v1764 = vunpack.c.l.b16 %v1697
    %v1765 = vunpack.c.h.b16 %v1697
    %v1766 = vunpack.c.l.b16 %v1698
    %v1767 = vunpack.c.h.b16 %v1698
    %v1768 = vunpack.c.l.b16 %v1699
    %v1769 = vunpack.c.h.b16 %v1699
    %v1770 = vunpack.c.l.b16 %v1700
    %v1771 = vunpack.c.h.b16 %v1700
    %v1772 = vunpack.c.l.b16 %v1701
    %v1773 = vunpack.c.h.b16 %v1701
    %v1774 = vunpack.c.l.b16 %v1702
    %v1775 = vunpack.c.h.b16 %v1702
    %v1776 = vunpack.c.l.b16 %v1703
    %v1777 = vunpack.c.h.b16 %v1703
    %v1778 = vunpack.c.l.b16 %v1704
    %v1779 = vunpack.c.h.b16 %v1704
    %v1780 = vunpack.c.l.b16 %v1705
    %v1781 = vunpack.c.h.b16 %v1705
    %v1782 = vunpack.c.l.b16 %v1706
    %v1783 = vunpack.c.h.b16 %v1706
    %v1784 = vunpack.c.l.b16 %v1707
    %v1785 = vunpack.c.h.b16 %v1707
    %v1786 = vunpack.c.l.b16 %v1708
    %v1787 = vunpack.c.h.b16 %v1708
    %v1788 = vunpack.c.l.b16 %v1709
    %v1789 = vunpack.c.h.b16 %v1709
    %v1790 = vunpack.c.l.b16 %v1710
    %v1791 = vunpack.c.h.b16 %v1710
    %v1792 = vunpack.c.l.b16 %v1711
    %v1793 = vunpack.c.h.b16 %v1711
    %v1794 = vunpack.c.l.b16 %v1712
    %v1795 = vunpack.c.h.b16 %v1712
    %v1796 = vunpack.c.l.b16 %v1713
    %v1797 = vunpack.c.h.b16 %v1713
    %v1798 = vunpack.c.l.b16 %v1714
    %v1799 = vunpack.c.h.b16 %v1714
    %v1800 = vunpack.c.l.b16 %v1715
    %v1801 = vunpack.c.h.b16 %v1715
    %v1802 = vunpack.c.l.b16 %v1716
    %v1803 = vunpack.c.h.b16 %v1716
    %v1804 = vunpack.c.l.b16 %v1717
    %v1805 = vunpack.c.h.b16 %v1717
    %v1806 = vunpack.c.l.b16 %v1718
    %v1807 = vunpack.c.h.b16 %v1718
    %v1808 = vunpack.c.l.b16 %v1719
    %v1809 = vunpack.c.h.b16 %v1719
    %v1810 = vunpack.c.l.b16 %v1720
    %v1811 = vunpack.c.h.b16 %v1720
    %v1812 = vunpack.c.l.b16 %v1721
    %v1813 = vunpack.c.h.b16 %v1721
    %v1814 = vunpack.c.l.b16 %v1722
    %v1815 = vunpack.c.h.b16 %v1722
    %v1816 = vunpack.c.l.b16 %v1723
    %v1817 = vunpack.c.h.b16 %v1723
    %v1818 = vunpack.c.l.b16 %v1724
    %v1819 = vunpack.c.h.b16 %v1724
    %v1820 = vunpack.c.l.b16 %v1725
    %v1821 = vunpack.c.h.b16 %v1725
    %v1822 = vpack.c.b16 %v1762, %v1758
    %v1823 = vpack.c.b16 %v1763, %v1759
    %v1824 = vpack.c.b16 %v1764, %v1760
    %v1825 = vpack.c.b16 %v1765, %v1761
    %v1826 = vpack.c.b16 %v1770, %v1766
    %v1827 = vpack.c.b16 %v1771, %v1767
    %v1828 = vpack.c.b16 %v1772, %v1768
    %v1829 = vpack.c.b16 %v1773, %v1769
    %v1830 = vpack.c.b16 %v1778, %v1774
    %v1831 = vpack.c.b16 %v1779, %v1775
    %v1832 = vpack.c.b16 %v1780, %v1776
    %v1833 = vpack.c.b16 %v1781, %v1777
    %v1834 = vpack.c.b16 %v1786, %v1782
    %v1835 = vpack.c.b16 %v1787, %v1783
    %v1836 = vpack.c.b16 %v1788, %v1784
    %v1837 = vpack.c.b16 %v1789, %v1785
    %v1838 = vpack.c.b16 %v1794, %v1790
    %v1839 = vpack.c.b16 %v1795, %v1791
    %v1840 = vpack.c.b16 %v1796, %v1792
    %v1841 = vpack.c.b16 %v1797, %v1793
    %v1842 = vpack.c.b16 %v1802, %v1798
    %v1843 = vpack.c.b16 %v1803, %v1799
    %v1844 = vpack.c.b16 %v1804, %v1800
    %v1845 = vpack.c.b16 %v1805, %v1801
    %v1846 = vpack.c.b16 %v1810, %v1806
    %v1847 = vpack.c.b16 %v1811, %v1807
    %v1848 = vpack.c.b16 %v1812, %v1808
    %v1849 = vpack.c.b16 %v1813, %v1809
    %v1850 = vpack.c.b16 %v1818, %v1814
    %v1851 = vpack.c.b16 %v1819, %v1815
    %v1852 = vpack.c.b16 %v1820, %v1816
    %v1853 = vpack.c.b16 %v1821, %v1817
    %1886 = vmatpush.bf16.msra.mxu0 %v1850
    %1887 = vmatpush.bf16.msra.mxu0 %v1846
    %1888 = vmatpush.bf16.msra.mxu0 %v1842
    %1889 = vmatpush.bf16.msra.mxu0 %v1838
    %1890 = vmatpush.bf16.msra.mxu0 %v1834
    %1891 = vmatpush.bf16.msra.mxu0 %v1830
    %1892 = vmatpush.bf16.msra.mxu0 %v1826
    %1893 = vmatpush.bf16.msra.mxu0 %v1822
    %1894 = vmatmul.bf16.gmra.mxu0 %v1693
    %v1895 = vpop.f32.mrf.mxu0
    %v1896 = vadd.f32 0.0, %v1895
    %v1897 = vpop.f32.mrf.mxu0
    %1898 = vdwg.mxu0
    %1899 = vmatpush.bf16.msra.mxu0 %v1851
    %1900 = vmatpush.bf16.msra.mxu0 %v1847
    %1901 = vmatpush.bf16.msra.mxu0 %v1843
    %1902 = vmatpush.bf16.msra.mxu0 %v1839
    %1903 = vmatpush.bf16.msra.mxu0 %v1835
    %1904 = vmatpush.bf16.msra.mxu0 %v1831
    %1905 = vmatpush.bf16.msra.mxu0 %v1827
    %1906 = vmatpush.bf16.msra.mxu0 %v1823
    %1907 = vmatmul.bf16.gmra.mxu0 %v1693
    %v1908 = vpop.f32.mrf.mxu0
    %v1909 = vadd.f32 0.0, %v1908
    %v1910 = vpop.f32.mrf.mxu0
    %1911 = vdwg.mxu0
    %1912 = vmatpush.bf16.msra.mxu0 %v1852
    %1913 = vmatpush.bf16.msra.mxu0 %v1848
    %1914 = vmatpush.bf16.msra.mxu0 %v1844
    %1915 = vmatpush.bf16.msra.mxu0 %v1840
    %1916 = vmatpush.bf16.msra.mxu0 %v1836
    %1917 = vmatpush.bf16.msra.mxu0 %v1832
    %1918 = vmatpush.bf16.msra.mxu0 %v1828
    %1919 = vmatpush.bf16.msra.mxu0 %v1824
    %1920 = vmatmul.bf16.gmra.mxu0 %v1693
    %v1921 = vpop.f32.mrf.mxu0
    %v1922 = vadd.f32 0.0, %v1921
    %v1923 = vpop.f32.mrf.mxu0
    %1924 = vdwg.mxu0
    %1925 = vmatpush.bf16.msra.mxu0 %v1853
    %1926 = vmatpush.bf16.msra.mxu0 %v1849
    %1927 = vmatpush.bf16.msra.mxu0 %v1845
    %1928 = vmatpush.bf16.msra.mxu0 %v1841
    %1929 = vmatpush.bf16.msra.mxu0 %v1837
    %1930 = vmatpush.bf16.msra.mxu0 %v1833
    %1931 = vmatpush.bf16.msra.mxu0 %v1829
    %1932 = vmatpush.bf16.msra.mxu0 %v1825
    %1933 = vmatmul.bf16.gmra.mxu0 %v1693
    %v1934 = vpop.f32.mrf.mxu0
    %v1935 = vadd.f32 0.0, %v1934
    %v1936 = vpop.f32.mrf.mxu0
    %1937 = vdwg.mxu0
    %v1938 = vadd.f32 %v1689, %v1896
    %v1939 = vadd.f32 %v1690, %v1909
    %v1940 = vadd.f32 %v1691, %v1922
    %v1941 = vadd.f32 %v1692, %v1935
    %v1942 = vmul.f32 %v1938, 0.5
    %v1943 = vtanh.pop %v1942
    %v1944 = vmul.f32 %v1943, 0.5
    %v1945 = vadd.f32 %v1944, 0.5
    %v1946 = vmul.f32 %v1939, 0.5
    %v1947 = vtanh.pop %v1946
    %v1948 = vmul.f32 %v1947, 0.5
    %v1949 = vadd.f32 %v1948, 0.5
    %v1950 = vtanh.pop %v1940
    %v1951 = vmul.f32 %v1949, %v1681
    %v1952 = vmul.f32 %v1945, %v1950
    %v1953 = vadd.f32 %v1951, %v1952
    %v1954 = vmul.f32 %v1941, 0.5
    %v1955 = vtanh.pop %v1954
    %v1956 = vmul.f32 %v1955, 0.5
    %v1957 = vadd.f32 %v1956, 0.5
    %v1958 = vtanh.pop %v1953
    %v1959 = vmul.f32 %v1957, %v1958
    %1960 = vst [vmem:[#allocation3 + $0x28] sm:$0xff] %v1959
    %v1961 = vld [vmem:[#allocation2 + $0xc0] sm:$0xff]
    %v1962 = vld [vmem:[#allocation2 + $0xc8] sm:$0xff]
    %v1963 = vld [vmem:[#allocation2 + $0xd0] sm:$0xff]
    %v1964 = vld [vmem:[#allocation2 + $0xd8] sm:$0xff]
    %v1965 = vpack.c.bf16 %v1959, %v1959
    %v1966 = vld [vmem:[#allocation5] sm:$0xff]
    %v1967 = vld [vmem:[#allocation5 + $0x8] sm:$0xff]
    %v1968 = vld [vmem:[#allocation5 + $0x10] sm:$0xff]
    %v1969 = vld [vmem:[#allocation5 + $0x18] sm:$0xff]
    %v1970 = vld [vmem:[#allocation5 + $0x20] sm:$0xff]
    %v1971 = vld [vmem:[#allocation5 + $0x28] sm:$0xff]
    %v1972 = vld [vmem:[#allocation5 + $0x30] sm:$0xff]
    %v1973 = vld [vmem:[#allocation5 + $0x38] sm:$0xff]
    %v1974 = vld [vmem:[#allocation5 + $0x40] sm:$0xff]
    %v1975 = vld [vmem:[#allocation5 + $0x48] sm:$0xff]
    %v1976 = vld [vmem:[#allocation5 + $0x50] sm:$0xff]
    %v1977 = vld [vmem:[#allocation5 + $0x58] sm:$0xff]
    %v1978 = vld [vmem:[#allocation5 + $0x60] sm:$0xff]
    %v1979 = vld [vmem:[#allocation5 + $0x68] sm:$0xff]
    %v1980 = vld [vmem:[#allocation5 + $0x70] sm:$0xff]
    %v1981 = vld [vmem:[#allocation5 + $0x78] sm:$0xff]
    %v1982 = vld [vmem:[#allocation5 + $0x80] sm:$0xff]
    %v1983 = vld [vmem:[#allocation5 + $0x88] sm:$0xff]
    %v1984 = vld [vmem:[#allocation5 + $0x90] sm:$0xff]
    %v1985 = vld [vmem:[#allocation5 + $0x98] sm:$0xff]
    %v1986 = vld [vmem:[#allocation5 + $0xa0] sm:$0xff]
    %v1987 = vld [vmem:[#allocation5 + $0xa8] sm:$0xff]
    %v1988 = vld [vmem:[#allocation5 + $0xb0] sm:$0xff]
    %v1989 = vld [vmem:[#allocation5 + $0xb8] sm:$0xff]
    %v1990 = vld [vmem:[#allocation5 + $0xc0] sm:$0xff]
    %v1991 = vld [vmem:[#allocation5 + $0xc8] sm:$0xff]
    %v1992 = vld [vmem:[#allocation5 + $0xd0] sm:$0xff]
    %v1993 = vld [vmem:[#allocation5 + $0xd8] sm:$0xff]
    %v1994 = vld [vmem:[#allocation5 + $0xe0] sm:$0xff]
    %v1995 = vld [vmem:[#allocation5 + $0xe8] sm:$0xff]
    %v1996 = vld [vmem:[#allocation5 + $0xf0] sm:$0xff]
    %v1997 = vld [vmem:[#allocation5 + $0xf8] sm:$0xff]
    %v2030 = vunpack.c.l.b16 %v1966
    %v2031 = vunpack.c.h.b16 %v1966
    %v2032 = vunpack.c.l.b16 %v1967
    %v2033 = vunpack.c.h.b16 %v1967
    %v2034 = vunpack.c.l.b16 %v1968
    %v2035 = vunpack.c.h.b16 %v1968
    %v2036 = vunpack.c.l.b16 %v1969
    %v2037 = vunpack.c.h.b16 %v1969
    %v2038 = vunpack.c.l.b16 %v1970
    %v2039 = vunpack.c.h.b16 %v1970
    %v2040 = vunpack.c.l.b16 %v1971
    %v2041 = vunpack.c.h.b16 %v1971
    %v2042 = vunpack.c.l.b16 %v1972
    %v2043 = vunpack.c.h.b16 %v1972
    %v2044 = vunpack.c.l.b16 %v1973
    %v2045 = vunpack.c.h.b16 %v1973
    %v2046 = vunpack.c.l.b16 %v1974
    %v2047 = vunpack.c.h.b16 %v1974
    %v2048 = vunpack.c.l.b16 %v1975
    %v2049 = vunpack.c.h.b16 %v1975
    %v2050 = vunpack.c.l.b16 %v1976
    %v2051 = vunpack.c.h.b16 %v1976
    %v2052 = vunpack.c.l.b16 %v1977
    %v2053 = vunpack.c.h.b16 %v1977
    %v2054 = vunpack.c.l.b16 %v1978
    %v2055 = vunpack.c.h.b16 %v1978
    %v2056 = vunpack.c.l.b16 %v1979
    %v2057 = vunpack.c.h.b16 %v1979
    %v2058 = vunpack.c.l.b16 %v1980
    %v2059 = vunpack.c.h.b16 %v1980
    %v2060 = vunpack.c.l.b16 %v1981
    %v2061 = vunpack.c.h.b16 %v1981
    %v2062 = vunpack.c.l.b16 %v1982
    %v2063 = vunpack.c.h.b16 %v1982
    %v2064 = vunpack.c.l.b16 %v1983
    %v2065 = vunpack.c.h.b16 %v1983
    %v2066 = vunpack.c.l.b16 %v1984
    %v2067 = vunpack.c.h.b16 %v1984
    %v2068 = vunpack.c.l.b16 %v1985
    %v2069 = vunpack.c.h.b16 %v1985
    %v2070 = vunpack.c.l.b16 %v1986
    %v2071 = vunpack.c.h.b16 %v1986
    %v2072 = vunpack.c.l.b16 %v1987
    %v2073 = vunpack.c.h.b16 %v1987
    %v2074 = vunpack.c.l.b16 %v1988
    %v2075 = vunpack.c.h.b16 %v1988
    %v2076 = vunpack.c.l.b16 %v1989
    %v2077 = vunpack.c.h.b16 %v1989
    %v2078 = vunpack.c.l.b16 %v1990
    %v2079 = vunpack.c.h.b16 %v1990
    %v2080 = vunpack.c.l.b16 %v1991
    %v2081 = vunpack.c.h.b16 %v1991
    %v2082 = vunpack.c.l.b16 %v1992
    %v2083 = vunpack.c.h.b16 %v1992
    %v2084 = vunpack.c.l.b16 %v1993
    %v2085 = vunpack.c.h.b16 %v1993
    %v2086 = vunpack.c.l.b16 %v1994
    %v2087 = vunpack.c.h.b16 %v1994
    %v2088 = vunpack.c.l.b16 %v1995
    %v2089 = vunpack.c.h.b16 %v1995
    %v2090 = vunpack.c.l.b16 %v1996
    %v2091 = vunpack.c.h.b16 %v1996
    %v2092 = vunpack.c.l.b16 %v1997
    %v2093 = vunpack.c.h.b16 %v1997
    %v2094 = vpack.c.b16 %v2034, %v2030
    %v2095 = vpack.c.b16 %v2035, %v2031
    %v2096 = vpack.c.b16 %v2036, %v2032
    %v2097 = vpack.c.b16 %v2037, %v2033
    %v2098 = vpack.c.b16 %v2042, %v2038
    %v2099 = vpack.c.b16 %v2043, %v2039
    %v2100 = vpack.c.b16 %v2044, %v2040
    %v2101 = vpack.c.b16 %v2045, %v2041
    %v2102 = vpack.c.b16 %v2050, %v2046
    %v2103 = vpack.c.b16 %v2051, %v2047
    %v2104 = vpack.c.b16 %v2052, %v2048
    %v2105 = vpack.c.b16 %v2053, %v2049
    %v2106 = vpack.c.b16 %v2058, %v2054
    %v2107 = vpack.c.b16 %v2059, %v2055
    %v2108 = vpack.c.b16 %v2060, %v2056
    %v2109 = vpack.c.b16 %v2061, %v2057
    %v2110 = vpack.c.b16 %v2066, %v2062
    %v2111 = vpack.c.b16 %v2067, %v2063
    %v2112 = vpack.c.b16 %v2068, %v2064
    %v2113 = vpack.c.b16 %v2069, %v2065
    %v2114 = vpack.c.b16 %v2074, %v2070
    %v2115 = vpack.c.b16 %v2075, %v2071
    %v2116 = vpack.c.b16 %v2076, %v2072
    %v2117 = vpack.c.b16 %v2077, %v2073
    %v2118 = vpack.c.b16 %v2082, %v2078
    %v2119 = vpack.c.b16 %v2083, %v2079
    %v2120 = vpack.c.b16 %v2084, %v2080
    %v2121 = vpack.c.b16 %v2085, %v2081
    %v2122 = vpack.c.b16 %v2090, %v2086
    %v2123 = vpack.c.b16 %v2091, %v2087
    %v2124 = vpack.c.b16 %v2092, %v2088
    %v2125 = vpack.c.b16 %v2093, %v2089
    %2158 = vmatpush.bf16.msra.mxu0 %v2122
    %2159 = vmatpush.bf16.msra.mxu0 %v2118
    %2160 = vmatpush.bf16.msra.mxu0 %v2114
    %2161 = vmatpush.bf16.msra.mxu0 %v2110
    %2162 = vmatpush.bf16.msra.mxu0 %v2106
    %2163 = vmatpush.bf16.msra.mxu0 %v2102
    %2164 = vmatpush.bf16.msra.mxu0 %v2098
    %2165 = vmatpush.bf16.msra.mxu0 %v2094
    %2166 = vmatmul.bf16.gmra.mxu0 %v1965
    %v2167 = vpop.f32.mrf.mxu0
    %v2168 = vadd.f32 0.0, %v2167
    %v2169 = vpop.f32.mrf.mxu0
    %2170 = vdwg.mxu0
    %2171 = vmatpush.bf16.msra.mxu0 %v2123
    %2172 = vmatpush.bf16.msra.mxu0 %v2119
    %2173 = vmatpush.bf16.msra.mxu0 %v2115
    %2174 = vmatpush.bf16.msra.mxu0 %v2111
    %2175 = vmatpush.bf16.msra.mxu0 %v2107
    %2176 = vmatpush.bf16.msra.mxu0 %v2103
    %2177 = vmatpush.bf16.msra.mxu0 %v2099
    %2178 = vmatpush.bf16.msra.mxu0 %v2095
    %2179 = vmatmul.bf16.gmra.mxu0 %v1965
    %v2180 = vpop.f32.mrf.mxu0
    %v2181 = vadd.f32 0.0, %v2180
    %v2182 = vpop.f32.mrf.mxu0
    %2183 = vdwg.mxu0
    %2184 = vmatpush.bf16.msra.mxu0 %v2124
    %2185 = vmatpush.bf16.msra.mxu0 %v2120
    %2186 = vmatpush.bf16.msra.mxu0 %v2116
    %2187 = vmatpush.bf16.msra.mxu0 %v2112
    %2188 = vmatpush.bf16.msra.mxu0 %v2108
    %2189 = vmatpush.bf16.msra.mxu0 %v2104
    %2190 = vmatpush.bf16.msra.mxu0 %v2100
    %2191 = vmatpush.bf16.msra.mxu0 %v2096
    %2192 = vmatmul.bf16.gmra.mxu0 %v1965
    %v2193 = vpop.f32.mrf.mxu0
    %v2194 = vadd.f32 0.0, %v2193
    %v2195 = vpop.f32.mrf.mxu0
    %2196 = vdwg.mxu0
    %2197 = vmatpush.bf16.msra.mxu0 %v2125
    %2198 = vmatpush.bf16.msra.mxu0 %v2121
    %2199 = vmatpush.bf16.msra.mxu0 %v2117
    %2200 = vmatpush.bf16.msra.mxu0 %v2113
    %2201 = vmatpush.bf16.msra.mxu0 %v2109
    %2202 = vmatpush.bf16.msra.mxu0 %v2105
    %2203 = vmatpush.bf16.msra.mxu0 %v2101
    %2204 = vmatpush.bf16.msra.mxu0 %v2097
    %2205 = vmatmul.bf16.gmra.mxu0 %v1965
    %v2206 = vpop.f32.mrf.mxu0
    %v2207 = vadd.f32 0.0, %v2206
    %v2208 = vpop.f32.mrf.mxu0
    %2209 = vdwg.mxu0
    %v2210 = vadd.f32 %v1961, %v2168
    %v2211 = vadd.f32 %v1962, %v2181
    %v2212 = vadd.f32 %v1963, %v2194
    %v2213 = vadd.f32 %v1964, %v2207
    %v2214 = vmul.f32 %v2210, 0.5
    %v2215 = vtanh.pop %v2214
    %v2216 = vmul.f32 %v2215, 0.5
    %v2217 = vadd.f32 %v2216, 0.5
    %v2218 = vmul.f32 %v2211, 0.5
    %v2219 = vtanh.pop %v2218
    %v2220 = vmul.f32 %v2219, 0.5
    %v2221 = vadd.f32 %v2220, 0.5
    %v2222 = vtanh.pop %v2212
    %v2223 = vmul.f32 %v2221, %v1953
    %v2224 = vmul.f32 %v2217, %v2222
    %v2225 = vadd.f32 %v2223, %v2224
    %v2226 = vmul.f32 %v2213, 0.5
    %v2227 = vtanh.pop %v2226
    %v2228 = vmul.f32 %v2227, 0.5
    %v2229 = vadd.f32 %v2228, 0.5
    %v2230 = vtanh.pop %v2225
    %v2231 = vmul.f32 %v2229, %v2230
    %2232 = vst [vmem:[#allocation3 + $0x30] sm:$0xff] %v2231
    %v2233 = vld [vmem:[#allocation2 + $0xe0] sm:$0xff]
    %v2234 = vld [vmem:[#allocation2 + $0xe8] sm:$0xff]
    %v2235 = vld [vmem:[#allocation2 + $0xf0] sm:$0xff]
    %v2236 = vld [vmem:[#allocation2 + $0xf8] sm:$0xff]
    %v2237 = vpack.c.bf16 %v2231, %v2231
    %v2238 = vld [vmem:[#allocation5] sm:$0xff]
    %v2239 = vld [vmem:[#allocation5 + $0x8] sm:$0xff]
    %v2240 = vld [vmem:[#allocation5 + $0x10] sm:$0xff]
    %v2241 = vld [vmem:[#allocation5 + $0x18] sm:$0xff]
    %v2242 = vld [vmem:[#allocation5 + $0x20] sm:$0xff]
    %v2243 = vld [vmem:[#allocation5 + $0x28] sm:$0xff]
    %v2244 = vld [vmem:[#allocation5 + $0x30] sm:$0xff]
    %v2245 = vld [vmem:[#allocation5 + $0x38] sm:$0xff]
    %v2246 = vld [vmem:[#allocation5 + $0x40] sm:$0xff]
    %v2247 = vld [vmem:[#allocation5 + $0x48] sm:$0xff]
    %v2248 = vld [vmem:[#allocation5 + $0x50] sm:$0xff]
    %v2249 = vld [vmem:[#allocation5 + $0x58] sm:$0xff]
    %v2250 = vld [vmem:[#allocation5 + $0x60] sm:$0xff]
    %v2251 = vld [vmem:[#allocation5 + $0x68] sm:$0xff]
    %v2252 = vld [vmem:[#allocation5 + $0x70] sm:$0xff]
    %v2253 = vld [vmem:[#allocation5 + $0x78] sm:$0xff]
    %v2254 = vld [vmem:[#allocation5 + $0x80] sm:$0xff]
    %v2255 = vld [vmem:[#allocation5 + $0x88] sm:$0xff]
    %v2256 = vld [vmem:[#allocation5 + $0x90] sm:$0xff]
    %v2257 = vld [vmem:[#allocation5 + $0x98] sm:$0xff]
    %v2258 = vld [vmem:[#allocation5 + $0xa0] sm:$0xff]
    %v2259 = vld [vmem:[#allocation5 + $0xa8] sm:$0xff]
    %v2260 = vld [vmem:[#allocation5 + $0xb0] sm:$0xff]
    %v2261 = vld [vmem:[#allocation5 + $0xb8] sm:$0xff]
    %v2262 = vld [vmem:[#allocation5 + $0xc0] sm:$0xff]
    %v2263 = vld [vmem:[#allocation5 + $0xc8] sm:$0xff]
    %v2264 = vld [vmem:[#allocation5 + $0xd0] sm:$0xff]
    %v2265 = vld [vmem:[#allocation5 + $0xd8] sm:$0xff]
    %v2266 = vld [vmem:[#allocation5 + $0xe0] sm:$0xff]
    %v2267 = vld [vmem:[#allocation5 + $0xe8] sm:$0xff]
    %v2268 = vld [vmem:[#allocation5 + $0xf0] sm:$0xff]
    %v2269 = vld [vmem:[#allocation5 + $0xf8] sm:$0xff]
    %v2302 = vunpack.c.l.b16 %v2238
    %v2303 = vunpack.c.h.b16 %v2238
    %v2304 = vunpack.c.l.b16 %v2239
    %v2305 = vunpack.c.h.b16 %v2239
    %v2306 = vunpack.c.l.b16 %v2240
    %v2307 = vunpack.c.h.b16 %v2240
    %v2308 = vunpack.c.l.b16 %v2241
    %v2309 = vunpack.c.h.b16 %v2241
    %v2310 = vunpack.c.l.b16 %v2242
    %v2311 = vunpack.c.h.b16 %v2242
    %v2312 = vunpack.c.l.b16 %v2243
    %v2313 = vunpack.c.h.b16 %v2243
    %v2314 = vunpack.c.l.b16 %v2244
    %v2315 = vunpack.c.h.b16 %v2244
    %v2316 = vunpack.c.l.b16 %v2245
    %v2317 = vunpack.c.h.b16 %v2245
    %v2318 = vunpack.c.l.b16 %v2246
    %v2319 = vunpack.c.h.b16 %v2246
    %v2320 = vunpack.c.l.b16 %v2247
    %v2321 = vunpack.c.h.b16 %v2247
    %v2322 = vunpack.c.l.b16 %v2248
    %v2323 = vunpack.c.h.b16 %v2248
    %v2324 = vunpack.c.l.b16 %v2249
    %v2325 = vunpack.c.h.b16 %v2249
    %v2326 = vunpack.c.l.b16 %v2250
    %v2327 = vunpack.c.h.b16 %v2250
    %v2328 = vunpack.c.l.b16 %v2251
    %v2329 = vunpack.c.h.b16 %v2251
    %v2330 = vunpack.c.l.b16 %v2252
    %v2331 = vunpack.c.h.b16 %v2252
    %v2332 = vunpack.c.l.b16 %v2253
    %v2333 = vunpack.c.h.b16 %v2253
    %v2334 = vunpack.c.l.b16 %v2254
    %v2335 = vunpack.c.h.b16 %v2254
    %v2336 = vunpack.c.l.b16 %v2255
    %v2337 = vunpack.c.h.b16 %v2255
    %v2338 = vunpack.c.l.b16 %v2256
    %v2339 = vunpack.c.h.b16 %v2256
    %v2340 = vunpack.c.l.b16 %v2257
    %v2341 = vunpack.c.h.b16 %v2257
    %v2342 = vunpack.c.l.b16 %v2258
    %v2343 = vunpack.c.h.b16 %v2258
    %v2344 = vunpack.c.l.b16 %v2259
    %v2345 = vunpack.c.h.b16 %v2259
    %v2346 = vunpack.c.l.b16 %v2260
    %v2347 = vunpack.c.h.b16 %v2260
    %v2348 = vunpack.c.l.b16 %v2261
    %v2349 = vunpack.c.h.b16 %v2261
    %v2350 = vunpack.c.l.b16 %v2262
    %v2351 = vunpack.c.h.b16 %v2262
    %v2352 = vunpack.c.l.b16 %v2263
    %v2353 = vunpack.c.h.b16 %v2263
    %v2354 = vunpack.c.l.b16 %v2264
    %v2355 = vunpack.c.h.b16 %v2264
    %v2356 = vunpack.c.l.b16 %v2265
    %v2357 = vunpack.c.h.b16 %v2265
    %v2358 = vunpack.c.l.b16 %v2266
    %v2359 = vunpack.c.h.b16 %v2266
    %v2360 = vunpack.c.l.b16 %v2267
    %v2361 = vunpack.c.h.b16 %v2267
    %v2362 = vunpack.c.l.b16 %v2268
    %v2363 = vunpack.c.h.b16 %v2268
    %v2364 = vunpack.c.l.b16 %v2269
    %v2365 = vunpack.c.h.b16 %v2269
    %v2366 = vpack.c.b16 %v2306, %v2302
    %v2367 = vpack.c.b16 %v2307, %v2303
    %v2368 = vpack.c.b16 %v2308, %v2304
    %v2369 = vpack.c.b16 %v2309, %v2305
    %v2370 = vpack.c.b16 %v2314, %v2310
    %v2371 = vpack.c.b16 %v2315, %v2311
    %v2372 = vpack.c.b16 %v2316, %v2312
    %v2373 = vpack.c.b16 %v2317, %v2313
    %v2374 = vpack.c.b16 %v2322, %v2318
    %v2375 = vpack.c.b16 %v2323, %v2319
    %v2376 = vpack.c.b16 %v2324, %v2320
    %v2377 = vpack.c.b16 %v2325, %v2321
    %v2378 = vpack.c.b16 %v2330, %v2326
    %v2379 = vpack.c.b16 %v2331, %v2327
    %v2380 = vpack.c.b16 %v2332, %v2328
    %v2381 = vpack.c.b16 %v2333, %v2329
    %v2382 = vpack.c.b16 %v2338, %v2334
    %v2383 = vpack.c.b16 %v2339, %v2335
    %v2384 = vpack.c.b16 %v2340, %v2336
    %v2385 = vpack.c.b16 %v2341, %v2337
    %v2386 = vpack.c.b16 %v2346, %v2342
    %v2387 = vpack.c.b16 %v2347, %v2343
    %v2388 = vpack.c.b16 %v2348, %v2344
    %v2389 = vpack.c.b16 %v2349, %v2345
    %v2390 = vpack.c.b16 %v2354, %v2350
    %v2391 = vpack.c.b16 %v2355, %v2351
    %v2392 = vpack.c.b16 %v2356, %v2352
    %v2393 = vpack.c.b16 %v2357, %v2353
    %v2394 = vpack.c.b16 %v2362, %v2358
    %v2395 = vpack.c.b16 %v2363, %v2359
    %v2396 = vpack.c.b16 %v2364, %v2360
    %v2397 = vpack.c.b16 %v2365, %v2361
    %2430 = vmatpush.bf16.msra.mxu0 %v2394
    %2431 = vmatpush.bf16.msra.mxu0 %v2390
    %2432 = vmatpush.bf16.msra.mxu0 %v2386
    %2433 = vmatpush.bf16.msra.mxu0 %v2382
    %2434 = vmatpush.bf16.msra.mxu0 %v2378
    %2435 = vmatpush.bf16.msra.mxu0 %v2374
    %2436 = vmatpush.bf16.msra.mxu0 %v2370
    %2437 = vmatpush.bf16.msra.mxu0 %v2366
    %2438 = vmatmul.bf16.gmra.mxu0 %v2237
    %v2439 = vpop.f32.mrf.mxu0
    %v2440 = vadd.f32 0.0, %v2439
    %v2441 = vpop.f32.mrf.mxu0
    %2442 = vdwg.mxu0
    %2443 = vmatpush.bf16.msra.mxu0 %v2395
    %2444 = vmatpush.bf16.msra.mxu0 %v2391
    %2445 = vmatpush.bf16.msra.mxu0 %v2387
    %2446 = vmatpush.bf16.msra.mxu0 %v2383
    %2447 = vmatpush.bf16.msra.mxu0 %v2379
    %2448 = vmatpush.bf16.msra.mxu0 %v2375
    %2449 = vmatpush.bf16.msra.mxu0 %v2371
    %2450 = vmatpush.bf16.msra.mxu0 %v2367
    %2451 = vmatmul.bf16.gmra.mxu0 %v2237
    %v2452 = vpop.f32.mrf.mxu0
    %v2453 = vadd.f32 0.0, %v2452
    %v2454 = vpop.f32.mrf.mxu0
    %2455 = vdwg.mxu0
    %2456 = vmatpush.bf16.msra.mxu0 %v2396
    %2457 = vmatpush.bf16.msra.mxu0 %v2392
    %2458 = vmatpush.bf16.msra.mxu0 %v2388
    %2459 = vmatpush.bf16.msra.mxu0 %v2384
    %2460 = vmatpush.bf16.msra.mxu0 %v2380
    %2461 = vmatpush.bf16.msra.mxu0 %v2376
    %2462 = vmatpush.bf16.msra.mxu0 %v2372
    %2463 = vmatpush.bf16.msra.mxu0 %v2368
    %2464 = vmatmul.bf16.gmra.mxu0 %v2237
    %v2465 = vpop.f32.mrf.mxu0
    %v2466 = vadd.f32 0.0, %v2465
    %v2467 = vpop.f32.mrf.mxu0
    %2468 = vdwg.mxu0
    %2469 = vmatpush.bf16.msra.mxu0 %v2397
    %2470 = vmatpush.bf16.msra.mxu0 %v2393
    %2471 = vmatpush.bf16.msra.mxu0 %v2389
    %2472 = vmatpush.bf16.msra.mxu0 %v2385
    %2473 = vmatpush.bf16.msra.mxu0 %v2381
    %2474 = vmatpush.bf16.msra.mxu0 %v2377
    %2475 = vmatpush.bf16.msra.mxu0 %v2373
    %2476 = vmatpush.bf16.msra.mxu0 %v2369
    %2477 = vmatmul.bf16.gmra.mxu0 %v2237
    %v2478 = vpop.f32.mrf.mxu0
    %v2479 = vadd.f32 0.0, %v2478
    %v2480 = vpop.f32.mrf.mxu0
    %2481 = vdwg.mxu0
    %v2482 = vadd.f32 %v2233, %v2440
    %v2483 = vadd.f32 %v2234, %v2453
    %v2484 = vadd.f32 %v2235, %v2466
    %v2485 = vadd.f32 %v2236, %v2479
    %v2486 = vmul.f32 %v2482, 0.5
    %v2487 = vtanh.pop %v2486
    %v2488 = vmul.f32 %v2487, 0.5
    %v2489 = vadd.f32 %v2488, 0.5
    %v2490 = vmul.f32 %v2483, 0.5
    %v2491 = vtanh.pop %v2490
    %v2492 = vmul.f32 %v2491, 0.5
    %v2493 = vadd.f32 %v2492, 0.5
    %v2494 = vtanh.pop %v2484
    %v2495 = vmul.f32 %v2493, %v2225
    %v2496 = vmul.f32 %v2489, %v2494
    %v2497 = vadd.f32 %v2495, %v2496
    %v2498 = vmul.f32 %v2485, 0.5
    %v2499 = vtanh.pop %v2498
    %v2500 = vmul.f32 %v2499, 0.5
    %v2501 = vadd.f32 %v2500, 0.5
    %v2502 = vtanh.pop %v2497
    %v2503 = vmul.f32 %v2501, %v2502
    %2504 = vst [vmem:[#allocation3 + $0x38] sm:$0xff] %v2503
    %v2505 = vld [vmem:[#allocation3] sm:$0xff]
    %v2506 = vld [vmem:[#allocation3 + $0x8] sm:$0xff]
    %v2507 = vld [vmem:[#allocation3 + $0x10] sm:$0xff]
    %v2508 = vld [vmem:[#allocation3 + $0x18] sm:$0xff]
    %v2509 = vld [vmem:[#allocation3 + $0x20] sm:$0xff]
    %v2510 = vld [vmem:[#allocation3 + $0x28] sm:$0xff]
    %v2511 = vld [vmem:[#allocation3 + $0x30] sm:$0xff]
    %v2512 = vld [vmem:[#allocation3 + $0x38] sm:$0xff]
    %v2513 = vpack.c.bf16 %v2506, %v2505
    %v2514 = vpack.c.bf16 %v2508, %v2507
    %v2515 = vpack.c.bf16 %v2510, %v2509
    %v2516 = vpack.c.bf16 %v2512, %v2511
    %v2517 = vld [vmem:[#allocation7] sm:$0xff]
    %v2518 = vld [vmem:[#allocation7 + $0x8] sm:$0xff]
    %v2519 = vld [vmem:[#allocation7 + $0x10] sm:$0xff]
    %v2520 = vld [vmem:[#allocation7 + $0x18] sm:$0xff]
    %v2521 = vld [vmem:[#allocation7 + $0x20] sm:$0xff]
    %v2522 = vld [vmem:[#allocation7 + $0x28] sm:$0xff]
    %v2523 = vld [vmem:[#allocation7 + $0x30] sm:$0xff]
    %v2524 = vld [vmem:[#allocation7 + $0x38] sm:$0xff]
    %v2525 = vld [vmem:[#allocation7 + $0x40] sm:$0xff]
    %v2526 = vld [vmem:[#allocation7 + $0x48] sm:$0xff]
    %v2527 = vld [vmem:[#allocation7 + $0x50] sm:$0xff]
    %v2528 = vld [vmem:[#allocation7 + $0x58] sm:$0xff]
    %v2529 = vld [vmem:[#allocation7 + $0x60] sm:$0xff]
    %v2530 = vld [vmem:[#allocation7 + $0x68] sm:$0xff]
    %v2531 = vld [vmem:[#allocation7 + $0x70] sm:$0xff]
    %v2532 = vld [vmem:[#allocation7 + $0x78] sm:$0xff]
    %v2533 = vld [vmem:[#allocation7 + $0x80] sm:$0xff]
    %v2534 = vld [vmem:[#allocation7 + $0x88] sm:$0xff]
    %v2535 = vld [vmem:[#allocation7 + $0x90] sm:$0xff]
    %v2536 = vld [vmem:[#allocation7 + $0x98] sm:$0xff]
    %v2537 = vld [vmem:[#allocation7 + $0xa0] sm:$0xff]
    %v2538 = vld [vmem:[#allocation7 + $0xa8] sm:$0xff]
    %v2539 = vld [vmem:[#allocation7 + $0xb0] sm:$0xff]
    %v2540 = vld [vmem:[#allocation7 + $0xb8] sm:$0xff]
    %v2541 = vld [vmem:[#allocation7 + $0xc0] sm:$0xff]
    %v2542 = vld [vmem:[#allocation7 + $0xc8] sm:$0xff]
    %v2543 = vld [vmem:[#allocation7 + $0xd0] sm:$0xff]
    %v2544 = vld [vmem:[#allocation7 + $0xd8] sm:$0xff]
    %v2545 = vld [vmem:[#allocation7 + $0xe0] sm:$0xff]
    %v2546 = vld [vmem:[#allocation7 + $0xe8] sm:$0xff]
    %v2547 = vld [vmem:[#allocation7 + $0xf0] sm:$0xff]
    %v2548 = vld [vmem:[#allocation7 + $0xf8] sm:$0xff]
    %v2549 = vld [vmem:[%s6] sm:$0xf]
    %v2551 = vperm.slane %v2549, 0
    %v2552 = vperm.slane %v2549, 1
    %v2553 = vperm.slane %v2549, 2
    %v2554 = vperm.slane %v2549, 3
    %v2591 = vunpack.c.l.b16 %v2517
    %v2592 = vunpack.c.h.b16 %v2517
    %v2593 = vunpack.c.l.b16 %v2518
    %v2594 = vunpack.c.h.b16 %v2518
    %v2595 = vunpack.c.l.b16 %v2519
    %v2596 = vunpack.c.h.b16 %v2519
    %v2597 = vunpack.c.l.b16 %v2520
    %v2598 = vunpack.c.h.b16 %v2520
    %v2599 = vunpack.c.l.b16 %v2521
    %v2600 = vunpack.c.h.b16 %v2521
    %v2601 = vunpack.c.l.b16 %v2522
    %v2602 = vunpack.c.h.b16 %v2522
    %v2603 = vunpack.c.l.b16 %v2523
    %v2604 = vunpack.c.h.b16 %v2523
    %v2605 = vunpack.c.l.b16 %v2524
    %v2606 = vunpack.c.h.b16 %v2524
    %v2607 = vunpack.c.l.b16 %v2525
    %v2608 = vunpack.c.h.b16 %v2525
    %v2609 = vunpack.c.l.b16 %v2526
    %v2610 = vunpack.c.h.b16 %v2526
    %v2611 = vunpack.c.l.b16 %v2527
    %v2612 = vunpack.c.h.b16 %v2527
    %v2613 = vunpack.c.l.b16 %v2528
    %v2614 = vunpack.c.h.b16 %v2528
    %v2615 = vunpack.c.l.b16 %v2529
    %v2616 = vunpack.c.h.b16 %v2529
    %v2617 = vunpack.c.l.b16 %v2530
    %v2618 = vunpack.c.h.b16 %v2530
    %v2619 = vunpack.c.l.b16 %v2531
    %v2620 = vunpack.c.h.b16 %v2531
    %v2621 = vunpack.c.l.b16 %v2532
    %v2622 = vunpack.c.h.b16 %v2532
    %v2623 = vunpack.c.l.b16 %v2533
    %v2624 = vunpack.c.h.b16 %v2533
    %v2625 = vunpack.c.l.b16 %v2534
    %v2626 = vunpack.c.h.b16 %v2534
    %v2627 = vunpack.c.l.b16 %v2535
    %v2628 = vunpack.c.h.b16 %v2535
    %v2629 = vunpack.c.l.b16 %v2536
    %v2630 = vunpack.c.h.b16 %v2536
    %v2631 = vunpack.c.l.b16 %v2537
    %v2632 = vunpack.c.h.b16 %v2537
    %v2633 = vunpack.c.l.b16 %v2538
    %v2634 = vunpack.c.h.b16 %v2538
    %v2635 = vunpack.c.l.b16 %v2539
    %v2636 = vunpack.c.h.b16 %v2539
    %v2637 = vunpack.c.l.b16 %v2540
    %v2638 = vunpack.c.h.b16 %v2540
    %v2639 = vunpack.c.l.b16 %v2541
    %v2640 = vunpack.c.h.b16 %v2541
    %v2641 = vunpack.c.l.b16 %v2542
    %v2642 = vunpack.c.h.b16 %v2542
    %v2643 = vunpack.c.l.b16 %v2543
    %v2644 = vunpack.c.h.b16 %v2543
    %v2645 = vunpack.c.l.b16 %v2544
    %v2646 = vunpack.c.h.b16 %v2544
    %v2647 = vunpack.c.l.b16 %v2545
    %v2648 = vunpack.c.h.b16 %v2545
    %v2649 = vunpack.c.l.b16 %v2546
    %v2650 = vunpack.c.h.b16 %v2546
    %v2651 = vunpack.c.l.b16 %v2547
    %v2652 = vunpack.c.h.b16 %v2547
    %v2653 = vunpack.c.l.b16 %v2548
    %v2654 = vunpack.c.h.b16 %v2548
    %v2655 = vpack.c.b16 %v2595, %v2591
    %v2656 = vpack.c.b16 %v2596, %v2592
    %v2657 = vpack.c.b16 %v2597, %v2593
    %v2658 = vpack.c.b16 %v2598, %v2594
    %v2659 = vpack.c.b16 %v2603, %v2599
    %v2660 = vpack.c.b16 %v2604, %v2600
    %v2661 = vpack.c.b16 %v2605, %v2601
    %v2662 = vpack.c.b16 %v2606, %v2602
    %v2663 = vpack.c.b16 %v2611, %v2607
    %v2664 = vpack.c.b16 %v2612, %v2608
    %v2665 = vpack.c.b16 %v2613, %v2609
    %v2666 = vpack.c.b16 %v2614, %v2610
    %v2667 = vpack.c.b16 %v2619, %v2615
    %v2668 = vpack.c.b16 %v2620, %v2616
    %v2669 = vpack.c.b16 %v2621, %v2617
    %v2670 = vpack.c.b16 %v2622, %v2618
    %v2671 = vpack.c.b16 %v2627, %v2623
    %v2672 = vpack.c.b16 %v2628, %v2624
    %v2673 = vpack.c.b16 %v2629, %v2625
    %v2674 = vpack.c.b16 %v2630, %v2626
    %v2675 = vpack.c.b16 %v2635, %v2631
    %v2676 = vpack.c.b16 %v2636, %v2632
    %v2677 = vpack.c.b16 %v2637, %v2633
    %v2678 = vpack.c.b16 %v2638, %v2634
    %v2679 = vpack.c.b16 %v2643, %v2639
    %v2680 = vpack.c.b16 %v2644, %v2640
    %v2681 = vpack.c.b16 %v2645, %v2641
    %v2682 = vpack.c.b16 %v2646, %v2642
    %v2683 = vpack.c.b16 %v2651, %v2647
    %v2684 = vpack.c.b16 %v2652, %v2648
    %v2685 = vpack.c.b16 %v2653, %v2649
    %v2686 = vpack.c.b16 %v2654, %v2650
    %2719 = vmatpush.bf16.msra.mxu0 %v2683
    %2720 = vmatpush.bf16.msra.mxu0 %v2679
    %2721 = vmatpush.bf16.msra.mxu0 %v2675
    %2722 = vmatpush.bf16.msra.mxu0 %v2671
    %2723 = vmatpush.bf16.msra.mxu0 %v2667
    %2724 = vmatpush.bf16.msra.mxu0 %v2663
    %2725 = vmatpush.bf16.msra.mxu0 %v2659
    %2726 = vmatpush.bf16.msra.mxu0 %v2655
    %2727 = vmatmul.bf16.gmra.mxu0 %v2513
    %v2728 = vpop.f32.mrf.mxu0
    %v2729 = vadd.f32 %v2551, %v2728
    %v2730 = vpop.f32.mrf.mxu0
    %v2731 = vadd.f32 %v2551, %v2730
    %2732 = vmatmul.bf16.gmra.mxu0 %v2514
    %v2733 = vpop.f32.mrf.mxu0
    %v2734 = vadd.f32 %v2551, %v2733
    %v2735 = vpop.f32.mrf.mxu0
    %v2736 = vadd.f32 %v2551, %v2735
    %2737 = vmatmul.bf16.gmra.mxu0 %v2515
    %v2738 = vpop.f32.mrf.mxu0
    %v2739 = vadd.f32 %v2551, %v2738
    %v2740 = vpop.f32.mrf.mxu0
    %v2741 = vadd.f32 %v2551, %v2740
    %2742 = vmatmul.bf16.gmra.mxu0 %v2516
    %v2743 = vpop.f32.mrf.mxu0
    %v2744 = vadd.f32 %v2551, %v2743
    %v2745 = vpop.f32.mrf.mxu0
    %v2746 = vadd.f32 %v2551, %v2745
    %2747 = vdwg.mxu0
    %2748 = vmatpush.bf16.msra.mxu0 %v2684
    %2749 = vmatpush.bf16.msra.mxu0 %v2680
    %2750 = vmatpush.bf16.msra.mxu0 %v2676
    %2751 = vmatpush.bf16.msra.mxu0 %v2672
    %2752 = vmatpush.bf16.msra.mxu0 %v2668
    %2753 = vmatpush.bf16.msra.mxu0 %v2664
    %2754 = vmatpush.bf16.msra.mxu0 %v2660
    %2755 = vmatpush.bf16.msra.mxu0 %v2656
    %2756 = vmatmul.bf16.gmra.mxu0 %v2513
    %v2757 = vpop.f32.mrf.mxu0
    %v2758 = vadd.f32 %v2552, %v2757
    %v2759 = vpop.f32.mrf.mxu0
    %v2760 = vadd.f32 %v2552, %v2759
    %2761 = vmatmul.bf16.gmra.mxu0 %v2514
    %v2762 = vpop.f32.mrf.mxu0
    %v2763 = vadd.f32 %v2552, %v2762
    %v2764 = vpop.f32.mrf.mxu0
    %v2765 = vadd.f32 %v2552, %v2764
    %2766 = vmatmul.bf16.gmra.mxu0 %v2515
    %v2767 = vpop.f32.mrf.mxu0
    %v2768 = vadd.f32 %v2552, %v2767
    %v2769 = vpop.f32.mrf.mxu0
    %v2770 = vadd.f32 %v2552, %v2769
    %2771 = vmatmul.bf16.gmra.mxu0 %v2516
    %v2772 = vpop.f32.mrf.mxu0
    %v2773 = vadd.f32 %v2552, %v2772
    %v2774 = vpop.f32.mrf.mxu0
    %v2775 = vadd.f32 %v2552, %v2774
    %2776 = vdwg.mxu0
    %2777 = vmatpush.bf16.msra.mxu0 %v2685
    %2778 = vmatpush.bf16.msra.mxu0 %v2681
    %2779 = vmatpush.bf16.msra.mxu0 %v2677
    %2780 = vmatpush.bf16.msra.mxu0 %v2673
    %2781 = vmatpush.bf16.msra.mxu0 %v2669
    %2782 = vmatpush.bf16.msra.mxu0 %v2665
    %2783 = vmatpush.bf16.msra.mxu0 %v2661
    %2784 = vmatpush.bf16.msra.mxu0 %v2657
    %2785 = vmatmul.bf16.gmra.mxu0 %v2513
    %v2786 = vpop.f32.mrf.mxu0
    %v2787 = vadd.f32 %v2553, %v2786
    %v2788 = vpop.f32.mrf.mxu0
    %v2789 = vadd.f32 %v2553, %v2788
    %2790 = vmatmul.bf16.gmra.mxu0 %v2514
    %v2791 = vpop.f32.mrf.mxu0
    %v2792 = vadd.f32 %v2553, %v2791
    %v2793 = vpop.f32.mrf.mxu0
    %v2794 = vadd.f32 %v2553, %v2793
    %2795 = vmatmul.bf16.gmra.mxu0 %v2515
    %v2796 = vpop.f32.mrf.mxu0
    %v2797 = vadd.f32 %v2553, %v2796
    %v2798 = vpop.f32.mrf.mxu0
    %v2799 = vadd.f32 %v2553, %v2798
    %2800 = vmatmul.bf16.gmra.mxu0 %v2516
    %v2801 = vpop.f32.mrf.mxu0
    %v2802 = vadd.f32 %v2553, %v2801
    %v2803 = vpop.f32.mrf.mxu0
    %v2804 = vadd.f32 %v2553, %v2803
    %2805 = vdwg.mxu0
    %2806 = vmatpush.bf16.msra.mxu0 %v2686
    %2807 = vmatpush.bf16.msra.mxu0 %v2682
    %2808 = vmatpush.bf16.msra.mxu0 %v2678
    %2809 = vmatpush.bf16.msra.mxu0 %v2674
    %2810 = vmatpush.bf16.msra.mxu0 %v2670
    %2811 = vmatpush.bf16.msra.mxu0 %v2666
    %2812 = vmatpush.bf16.msra.mxu0 %v2662
    %2813 = vmatpush.bf16.msra.mxu0 %v2658
    %2814 = vmatmul.bf16.gmra.mxu0 %v2513
    %v2815 = vpop.f32.mrf.mxu0
    %v2816 = vadd.f32 %v2554, %v2815
    %v2817 = vpop.f32.mrf.mxu0
    %v2818 = vadd.f32 %v2554, %v2817
    %2819 = vmatmul.bf16.gmra.mxu0 %v2514
    %v2820 = vpop.f32.mrf.mxu0
    %v2821 = vadd.f32 %v2554, %v2820
    %v2822 = vpop.f32.mrf.mxu0
    %v2823 = vadd.f32 %v2554, %v2822
    %2824 = vmatmul.bf16.gmra.mxu0 %v2515
    %v2825 = vpop.f32.mrf.mxu0
    %v2826 = vadd.f32 %v2554, %v2825
    %v2827 = vpop.f32.mrf.mxu0
    %v2828 = vadd.f32 %v2554, %v2827
    %2829 = vmatmul.bf16.gmra.mxu0 %v2516
    %v2830 = vpop.f32.mrf.mxu0
    %v2831 = vadd.f32 %v2554, %v2830
    %v2832 = vpop.f32.mrf.mxu0
    %v2833 = vadd.f32 %v2554, %v2832
    %2834 = vdwg.mxu0
    %2835 = vst [vmem:[#allocation2] sm:$0xff] %v2729
    %2836 = vst [vmem:[#allocation2 + $0x8] sm:$0xff] %v2758
    %2837 = vst [vmem:[#allocation2 + $0x10] sm:$0xff] %v2787
    %2838 = vst [vmem:[#allocation2 + $0x18] sm:$0xff] %v2816
    %2839 = vst [vmem:[#allocation2 + $0x20] sm:$0xff] %v2731
    %2840 = vst [vmem:[#allocation2 + $0x28] sm:$0xff] %v2760
    %2841 = vst [vmem:[#allocation2 + $0x30] sm:$0xff] %v2789
    %2842 = vst [vmem:[#allocation2 + $0x38] sm:$0xff] %v2818
    %2843 = vst [vmem:[#allocation2 + $0x40] sm:$0xff] %v2734
    %2844 = vst [vmem:[#allocation2 + $0x48] sm:$0xff] %v2763
    %2845 = vst [vmem:[#allocation2 + $0x50] sm:$0xff] %v2792
    %2846 = vst [vmem:[#allocation2 + $0x58] sm:$0xff] %v2821
    %2847 = vst [vmem:[#allocation2 + $0x60] sm:$0xff] %v2736
    %2848 = vst [vmem:[#allocation2 + $0x68] sm:$0xff] %v2765
    %2849 = vst [vmem:[#allocation2 + $0x70] sm:$0xff] %v2794
    %2850 = vst [vmem:[#allocation2 + $0x78] sm:$0xff] %v2823
    %2851 = vst [vmem:[#allocation2 + $0x80] sm:$0xff] %v2739
    %2852 = vst [vmem:[#allocation2 + $0x88] sm:$0xff] %v2768
    %2853 = vst [vmem:[#allocation2 + $0x90] sm:$0xff] %v2797
    %2854 = vst [vmem:[#allocation2 + $0x98] sm:$0xff] %v2826
    %2855 = vst [vmem:[#allocation2 + $0xa0] sm:$0xff] %v2741
    %2856 = vst [vmem:[#allocation2 + $0xa8] sm:$0xff] %v2770
    %2857 = vst [vmem:[#allocation2 + $0xb0] sm:$0xff] %v2799
    %2858 = vst [vmem:[#allocation2 + $0xb8] sm:$0xff] %v2828
    %2859 = vst [vmem:[#allocation2 + $0xc0] sm:$0xff] %v2744
    %2860 = vst [vmem:[#allocation2 + $0xc8] sm:$0xff] %v2773
    %2861 = vst [vmem:[#allocation2 + $0xd0] sm:$0xff] %v2802
    %2862 = vst [vmem:[#allocation2 + $0xd8] sm:$0xff] %v2831
    %2863 = vst [vmem:[#allocation2 + $0xe0] sm:$0xff] %v2746
    %2864 = vst [vmem:[#allocation2 + $0xe8] sm:$0xff] %v2775
    %2865 = vst [vmem:[#allocation2 + $0xf0] sm:$0xff] %v2804
    %2866 = vst [vmem:[#allocation2 + $0xf8] sm:$0xff] %v2833
    %v2867 = vld [vmem:[#allocation2] sm:$0xff]
    %v2868 = vld [vmem:[#allocation2 + $0x8] sm:$0xff]
    %v2869 = vld [vmem:[#allocation2 + $0x10] sm:$0xff]
    %v2870 = vld [vmem:[#allocation2 + $0x18] sm:$0xff]
    %v2871 = vld [vmem:[#allocation9] sm:$0xff]
    %v2872 = vld [vmem:[#allocation9 + $0x8] sm:$0xff]
    %v2873 = vld [vmem:[#allocation9 + $0x10] sm:$0xff]
    %v2874 = vld [vmem:[#allocation9 + $0x18] sm:$0xff]
    %v2875 = vld [vmem:[#allocation9 + $0x20] sm:$0xff]
    %v2876 = vld [vmem:[#allocation9 + $0x28] sm:$0xff]
    %v2877 = vld [vmem:[#allocation9 + $0x30] sm:$0xff]
    %v2878 = vld [vmem:[#allocation9 + $0x38] sm:$0xff]
    %v2879 = vld [vmem:[#allocation9 + $0x40] sm:$0xff]
    %v2880 = vld [vmem:[#allocation9 + $0x48] sm:$0xff]
    %v2881 = vld [vmem:[#allocation9 + $0x50] sm:$0xff]
    %v2882 = vld [vmem:[#allocation9 + $0x58] sm:$0xff]
    %v2883 = vld [vmem:[#allocation9 + $0x60] sm:$0xff]
    %v2884 = vld [vmem:[#allocation9 + $0x68] sm:$0xff]
    %v2885 = vld [vmem:[#allocation9 + $0x70] sm:$0xff]
    %v2886 = vld [vmem:[#allocation9 + $0x78] sm:$0xff]
    %v2887 = vld [vmem:[#allocation9 + $0x80] sm:$0xff]
    %v2888 = vld [vmem:[#allocation9 + $0x88] sm:$0xff]
    %v2889 = vld [vmem:[#allocation9 + $0x90] sm:$0xff]
    %v2890 = vld [vmem:[#allocation9 + $0x98] sm:$0xff]
    %v2891 = vld [vmem:[#allocation9 + $0xa0] sm:$0xff]
    %v2892 = vld [vmem:[#allocation9 + $0xa8] sm:$0xff]
    %v2893 = vld [vmem:[#allocation9 + $0xb0] sm:$0xff]
    %v2894 = vld [vmem:[#allocation9 + $0xb8] sm:$0xff]
    %v2895 = vld [vmem:[#allocation9 + $0xc0] sm:$0xff]
    %v2896 = vld [vmem:[#allocation9 + $0xc8] sm:$0xff]
    %v2897 = vld [vmem:[#allocation9 + $0xd0] sm:$0xff]
    %v2898 = vld [vmem:[#allocation9 + $0xd8] sm:$0xff]
    %v2899 = vld [vmem:[#allocation9 + $0xe0] sm:$0xff]
    %v2900 = vld [vmem:[#allocation9 + $0xe8] sm:$0xff]
    %v2901 = vld [vmem:[#allocation9 + $0xf0] sm:$0xff]
    %v2902 = vld [vmem:[#allocation9 + $0xf8] sm:$0xff]
    %v2935 = vunpack.c.l.b16 %v2871
    %v2936 = vunpack.c.h.b16 %v2871
    %v2937 = vunpack.c.l.b16 %v2872
    %v2938 = vunpack.c.h.b16 %v2872
    %v2939 = vunpack.c.l.b16 %v2873
    %v2940 = vunpack.c.h.b16 %v2873
    %v2941 = vunpack.c.l.b16 %v2874
    %v2942 = vunpack.c.h.b16 %v2874
    %v2943 = vunpack.c.l.b16 %v2875
    %v2944 = vunpack.c.h.b16 %v2875
    %v2945 = vunpack.c.l.b16 %v2876
    %v2946 = vunpack.c.h.b16 %v2876
    %v2947 = vunpack.c.l.b16 %v2877
    %v2948 = vunpack.c.h.b16 %v2877
    %v2949 = vunpack.c.l.b16 %v2878
    %v2950 = vunpack.c.h.b16 %v2878
    %v2951 = vunpack.c.l.b16 %v2879
    %v2952 = vunpack.c.h.b16 %v2879
    %v2953 = vunpack.c.l.b16 %v2880
    %v2954 = vunpack.c.h.b16 %v2880
    %v2955 = vunpack.c.l.b16 %v2881
    %v2956 = vunpack.c.h.b16 %v2881
    %v2957 = vunpack.c.l.b16 %v2882
    %v2958 = vunpack.c.h.b16 %v2882
    %v2959 = vunpack.c.l.b16 %v2883
    %v2960 = vunpack.c.h.b16 %v2883
    %v2961 = vunpack.c.l.b16 %v2884
    %v2962 = vunpack.c.h.b16 %v2884
    %v2963 = vunpack.c.l.b16 %v2885
    %v2964 = vunpack.c.h.b16 %v2885
    %v2965 = vunpack.c.l.b16 %v2886
    %v2966 = vunpack.c.h.b16 %v2886
    %v2967 = vunpack.c.l.b16 %v2887
    %v2968 = vunpack.c.h.b16 %v2887
    %v2969 = vunpack.c.l.b16 %v2888
    %v2970 = vunpack.c.h.b16 %v2888
    %v2971 = vunpack.c.l.b16 %v2889
    %v2972 = vunpack.c.h.b16 %v2889
    %v2973 = vunpack.c.l.b16 %v2890
    %v2974 = vunpack.c.h.b16 %v2890
    %v2975 = vunpack.c.l.b16 %v2891
    %v2976 = vunpack.c.h.b16 %v2891
    %v2977 = vunpack.c.l.b16 %v2892
    %v2978 = vunpack.c.h.b16 %v2892
    %v2979 = vunpack.c.l.b16 %v2893
    %v2980 = vunpack.c.h.b16 %v2893
    %v2981 = vunpack.c.l.b16 %v2894
    %v2982 = vunpack.c.h.b16 %v2894
    %v2983 = vunpack.c.l.b16 %v2895
    %v2984 = vunpack.c.h.b16 %v2895
    %v2985 = vunpack.c.l.b16 %v2896
    %v2986 = vunpack.c.h.b16 %v2896
    %v2987 = vunpack.c.l.b16 %v2897
    %v2988 = vunpack.c.h.b16 %v2897
    %v2989 = vunpack.c.l.b16 %v2898
    %v2990 = vunpack.c.h.b16 %v2898
    %v2991 = vunpack.c.l.b16 %v2899
    %v2992 = vunpack.c.h.b16 %v2899
    %v2993 = vunpack.c.l.b16 %v2900
    %v2994 = vunpack.c.h.b16 %v2900
    %v2995 = vunpack.c.l.b16 %v2901
    %v2996 = vunpack.c.h.b16 %v2901
    %v2997 = vunpack.c.l.b16 %v2902
    %v2998 = vunpack.c.h.b16 %v2902
    %v2999 = vpack.c.b16 %v2939, %v2935
    %v3000 = vpack.c.b16 %v2940, %v2936
    %v3001 = vpack.c.b16 %v2941, %v2937
    %v3002 = vpack.c.b16 %v2942, %v2938
    %v3003 = vpack.c.b16 %v2947, %v2943
    %v3004 = vpack.c.b16 %v2948, %v2944
    %v3005 = vpack.c.b16 %v2949, %v2945
    %v3006 = vpack.c.b16 %v2950, %v2946
    %v3007 = vpack.c.b16 %v2955, %v2951
    %v3008 = vpack.c.b16 %v2956, %v2952
    %v3009 = vpack.c.b16 %v2957, %v2953
    %v3010 = vpack.c.b16 %v2958, %v2954
    %v3011 = vpack.c.b16 %v2963, %v2959
    %v3012 = vpack.c.b16 %v2964, %v2960
    %v3013 = vpack.c.b16 %v2965, %v2961
    %v3014 = vpack.c.b16 %v2966, %v2962
    %v3015 = vpack.c.b16 %v2971, %v2967
    %v3016 = vpack.c.b16 %v2972, %v2968
    %v3017 = vpack.c.b16 %v2973, %v2969
    %v3018 = vpack.c.b16 %v2974, %v2970
    %v3019 = vpack.c.b16 %v2979, %v2975
    %v3020 = vpack.c.b16 %v2980, %v2976
    %v3021 = vpack.c.b16 %v2981, %v2977
    %v3022 = vpack.c.b16 %v2982, %v2978
    %v3023 = vpack.c.b16 %v2987, %v2983
    %v3024 = vpack.c.b16 %v2988, %v2984
    %v3025 = vpack.c.b16 %v2989, %v2985
    %v3026 = vpack.c.b16 %v2990, %v2986
    %v3027 = vpack.c.b16 %v2995, %v2991
    %v3028 = vpack.c.b16 %v2996, %v2992
    %v3029 = vpack.c.b16 %v2997, %v2993
    %v3030 = vpack.c.b16 %v2998, %v2994
    %3063 = vmatpush.bf16.msra.mxu0 %v3027
    %3064 = vmatpush.bf16.msra.mxu0 %v3023
    %3065 = vmatpush.bf16.msra.mxu0 %v3019
    %3066 = vmatpush.bf16.msra.mxu0 %v3015
    %3067 = vmatpush.bf16.msra.mxu0 %v3011
    %3068 = vmatpush.bf16.msra.mxu0 %v3007
    %3069 = vmatpush.bf16.msra.mxu0 %v3003
    %3070 = vmatpush.bf16.msra.mxu0 %v2999
    %3071 = vmatmul.bf16.gmra.mxu0 0
    %v3072 = vpop.f32.mrf.mxu0
    %v3073 = vadd.f32 0.0, %v3072
    %v3074 = vpop.f32.mrf.mxu0
    %3075 = vdwg.mxu0
    %3076 = vmatpush.bf16.msra.mxu0 %v3028
    %3077 = vmatpush.bf16.msra.mxu0 %v3024
    %3078 = vmatpush.bf16.msra.mxu0 %v3020
    %3079 = vmatpush.bf16.msra.mxu0 %v3016
    %3080 = vmatpush.bf16.msra.mxu0 %v3012
    %3081 = vmatpush.bf16.msra.mxu0 %v3008
    %3082 = vmatpush.bf16.msra.mxu0 %v3004
    %3083 = vmatpush.bf16.msra.mxu0 %v3000
    %3084 = vmatmul.bf16.gmra.mxu0 0
    %v3085 = vpop.f32.mrf.mxu0
    %v3086 = vadd.f32 0.0, %v3085
    %v3087 = vpop.f32.mrf.mxu0
    %3088 = vdwg.mxu0
    %3089 = vmatpush.bf16.msra.mxu0 %v3029
    %3090 = vmatpush.bf16.msra.mxu0 %v3025
    %3091 = vmatpush.bf16.msra.mxu0 %v3021
    %3092 = vmatpush.bf16.msra.mxu0 %v3017
    %3093 = vmatpush.bf16.msra.mxu0 %v3013
    %3094 = vmatpush.bf16.msra.mxu0 %v3009
    %3095 = vmatpush.bf16.msra.mxu0 %v3005
    %3096 = vmatpush.bf16.msra.mxu0 %v3001
    %3097 = vmatmul.bf16.gmra.mxu0 0
    %v3098 = vpop.f32.mrf.mxu0
    %v3099 = vadd.f32 0.0, %v3098
    %v3100 = vpop.f32.mrf.mxu0
    %3101 = vdwg.mxu0
    %3102 = vmatpush.bf16.msra.mxu0 %v3030
    %3103 = vmatpush.bf16.msra.mxu0 %v3026
    %3104 = vmatpush.bf16.msra.mxu0 %v3022
    %3105 = vmatpush.bf16.msra.mxu0 %v3018
    %3106 = vmatpush.bf16.msra.mxu0 %v3014
    %3107 = vmatpush.bf16.msra.mxu0 %v3010
    %3108 = vmatpush.bf16.msra.mxu0 %v3006
    %3109 = vmatpush.bf16.msra.mxu0 %v3002
    %3110 = vmatmul.bf16.gmra.mxu0 0
    %v3111 = vpop.f32.mrf.mxu0
    %v3112 = vadd.f32 0.0, %v3111
    %v3113 = vpop.f32.mrf.mxu0
    %3114 = vdwg.mxu0
    %v3115 = vadd.f32 %v2867, %v3073
    %v3116 = vadd.f32 %v2868, %v3086
    %v3117 = vadd.f32 %v2869, %v3099
    %v3118 = vadd.f32 %v2870, %v3112
    %v3119 = vmul.f32 %v3115, 0.5
    %v3120 = vtanh.pop %v3119
    %v3121 = vmul.f32 %v3120, 0.5
    %v3122 = vadd.f32 %v3121, 0.5
    %v3123 = vmul.f32 %v3116, 0.5
    %v3124 = vtanh.pop %v3123
    %v3125 = vmul.f32 %v3124, 0.5
    %v3126 = vadd.f32 %v3125, 0.5
    %v3127 = vtanh.pop %v3117
    %v3128 = vmul.f32 %v3126, 0.0
    %v3129 = vmul.f32 %v3122, %v3127
    %v3130 = vadd.f32 %v3128, %v3129
    %v3131 = vmul.f32 %v3118, 0.5
    %v3132 = vtanh.pop %v3131
    %v3133 = vmul.f32 %v3132, 0.5
    %v3134 = vadd.f32 %v3133, 0.5
    %v3135 = vtanh.pop %v3130
    %v3136 = vmul.f32 %v3134, %v3135
    %3137 = vst [vmem:[#allocation3] sm:$0xff] %v3136
    %v3138 = vld [vmem:[#allocation2 + $0x20] sm:$0xff]
    %v3139 = vld [vmem:[#allocation2 + $0x28] sm:$0xff]
    %v3140 = vld [vmem:[#allocation2 + $0x30] sm:$0xff]
    %v3141 = vld [vmem:[#allocation2 + $0x38] sm:$0xff]
    %v3142 = vpack.c.bf16 %v3136, %v3136
    %v3143 = vld [vmem:[#allocation9] sm:$0xff]
    %v3144 = vld [vmem:[#allocation9 + $0x8] sm:$0xff]
    %v3145 = vld [vmem:[#allocation9 + $0x10] sm:$0xff]
    %v3146 = vld [vmem:[#allocation9 + $0x18] sm:$0xff]
    %v3147 = vld [vmem:[#allocation9 + $0x20] sm:$0xff]
    %v3148 = vld [vmem:[#allocation9 + $0x28] sm:$0xff]
    %v3149 = vld [vmem:[#allocation9 + $0x30] sm:$0xff]
    %v3150 = vld [vmem:[#allocation9 + $0x38] sm:$0xff]
    %v3151 = vld [vmem:[#allocation9 + $0x40] sm:$0xff]
    %v3152 = vld [vmem:[#allocation9 + $0x48] sm:$0xff]
    %v3153 = vld [vmem:[#allocation9 + $0x50] sm:$0xff]
    %v3154 = vld [vmem:[#allocation9 + $0x58] sm:$0xff]
    %v3155 = vld [vmem:[#allocation9 + $0x60] sm:$0xff]
    %v3156 = vld [vmem:[#allocation9 + $0x68] sm:$0xff]
    %v3157 = vld [vmem:[#allocation9 + $0x70] sm:$0xff]
    %v3158 = vld [vmem:[#allocation9 + $0x78] sm:$0xff]
    %v3159 = vld [vmem:[#allocation9 + $0x80] sm:$0xff]
    %v3160 = vld [vmem:[#allocation9 + $0x88] sm:$0xff]
    %v3161 = vld [vmem:[#allocation9 + $0x90] sm:$0xff]
    %v3162 = vld [vmem:[#allocation9 + $0x98] sm:$0xff]
    %v3163 = vld [vmem:[#allocation9 + $0xa0] sm:$0xff]
    %v3164 = vld [vmem:[#allocation9 + $0xa8] sm:$0xff]
    %v3165 = vld [vmem:[#allocation9 + $0xb0] sm:$0xff]
    %v3166 = vld [vmem:[#allocation9 + $0xb8] sm:$0xff]
    %v3167 = vld [vmem:[#allocation9 + $0xc0] sm:$0xff]
    %v3168 = vld [vmem:[#allocation9 + $0xc8] sm:$0xff]
    %v3169 = vld [vmem:[#allocation9 + $0xd0] sm:$0xff]
    %v3170 = vld [vmem:[#allocation9 + $0xd8] sm:$0xff]
    %v3171 = vld [vmem:[#allocation9 + $0xe0] sm:$0xff]
    %v3172 = vld [vmem:[#allocation9 + $0xe8] sm:$0xff]
    %v3173 = vld [vmem:[#allocation9 + $0xf0] sm:$0xff]
    %v3174 = vld [vmem:[#allocation9 + $0xf8] sm:$0xff]
    %v3207 = vunpack.c.l.b16 %v3143
    %v3208 = vunpack.c.h.b16 %v3143
    %v3209 = vunpack.c.l.b16 %v3144
    %v3210 = vunpack.c.h.b16 %v3144
    %v3211 = vunpack.c.l.b16 %v3145
    %v3212 = vunpack.c.h.b16 %v3145
    %v3213 = vunpack.c.l.b16 %v3146
    %v3214 = vunpack.c.h.b16 %v3146
    %v3215 = vunpack.c.l.b16 %v3147
    %v3216 = vunpack.c.h.b16 %v3147
    %v3217 = vunpack.c.l.b16 %v3148
    %v3218 = vunpack.c.h.b16 %v3148
    %v3219 = vunpack.c.l.b16 %v3149
    %v3220 = vunpack.c.h.b16 %v3149
    %v3221 = vunpack.c.l.b16 %v3150
    %v3222 = vunpack.c.h.b16 %v3150
    %v3223 = vunpack.c.l.b16 %v3151
    %v3224 = vunpack.c.h.b16 %v3151
    %v3225 = vunpack.c.l.b16 %v3152
    %v3226 = vunpack.c.h.b16 %v3152
    %v3227 = vunpack.c.l.b16 %v3153
    %v3228 = vunpack.c.h.b16 %v3153
    %v3229 = vunpack.c.l.b16 %v3154
    %v3230 = vunpack.c.h.b16 %v3154
    %v3231 = vunpack.c.l.b16 %v3155
    %v3232 = vunpack.c.h.b16 %v3155
    %v3233 = vunpack.c.l.b16 %v3156
    %v3234 = vunpack.c.h.b16 %v3156
    %v3235 = vunpack.c.l.b16 %v3157
    %v3236 = vunpack.c.h.b16 %v3157
    %v3237 = vunpack.c.l.b16 %v3158
    %v3238 = vunpack.c.h.b16 %v3158
    %v3239 = vunpack.c.l.b16 %v3159
    %v3240 = vunpack.c.h.b16 %v3159
    %v3241 = vunpack.c.l.b16 %v3160
    %v3242 = vunpack.c.h.b16 %v3160
    %v3243 = vunpack.c.l.b16 %v3161
    %v3244 = vunpack.c.h.b16 %v3161
    %v3245 = vunpack.c.l.b16 %v3162
    %v3246 = vunpack.c.h.b16 %v3162
    %v3247 = vunpack.c.l.b16 %v3163
    %v3248 = vunpack.c.h.b16 %v3163
    %v3249 = vunpack.c.l.b16 %v3164
    %v3250 = vunpack.c.h.b16 %v3164
    %v3251 = vunpack.c.l.b16 %v3165
    %v3252 = vunpack.c.h.b16 %v3165
    %v3253 = vunpack.c.l.b16 %v3166
    %v3254 = vunpack.c.h.b16 %v3166
    %v3255 = vunpack.c.l.b16 %v3167
    %v3256 = vunpack.c.h.b16 %v3167
    %v3257 = vunpack.c.l.b16 %v3168
    %v3258 = vunpack.c.h.b16 %v3168
    %v3259 = vunpack.c.l.b16 %v3169
    %v3260 = vunpack.c.h.b16 %v3169
    %v3261 = vunpack.c.l.b16 %v3170
    %v3262 = vunpack.c.h.b16 %v3170
    %v3263 = vunpack.c.l.b16 %v3171
    %v3264 = vunpack.c.h.b16 %v3171
    %v3265 = vunpack.c.l.b16 %v3172
    %v3266 = vunpack.c.h.b16 %v3172
    %v3267 = vunpack.c.l.b16 %v3173
    %v3268 = vunpack.c.h.b16 %v3173
    %v3269 = vunpack.c.l.b16 %v3174
    %v3270 = vunpack.c.h.b16 %v3174
    %v3271 = vpack.c.b16 %v3211, %v3207
    %v3272 = vpack.c.b16 %v3212, %v3208
    %v3273 = vpack.c.b16 %v3213, %v3209
    %v3274 = vpack.c.b16 %v3214, %v3210
    %v3275 = vpack.c.b16 %v3219, %v3215
    %v3276 = vpack.c.b16 %v3220, %v3216
    %v3277 = vpack.c.b16 %v3221, %v3217
    %v3278 = vpack.c.b16 %v3222, %v3218
    %v3279 = vpack.c.b16 %v3227, %v3223
    %v3280 = vpack.c.b16 %v3228, %v3224
    %v3281 = vpack.c.b16 %v3229, %v3225
    %v3282 = vpack.c.b16 %v3230, %v3226
    %v3283 = vpack.c.b16 %v3235, %v3231
    %v3284 = vpack.c.b16 %v3236, %v3232
    %v3285 = vpack.c.b16 %v3237, %v3233
    %v3286 = vpack.c.b16 %v3238, %v3234
    %v3287 = vpack.c.b16 %v3243, %v3239
    %v3288 = vpack.c.b16 %v3244, %v3240
    %v3289 = vpack.c.b16 %v3245, %v3241
    %v3290 = vpack.c.b16 %v3246, %v3242
    %v3291 = vpack.c.b16 %v3251, %v3247
    %v3292 = vpack.c.b16 %v3252, %v3248
    %v3293 = vpack.c.b16 %v3253, %v3249
    %v3294 = vpack.c.b16 %v3254, %v3250
    %v3295 = vpack.c.b16 %v3259, %v3255
    %v3296 = vpack.c.b16 %v3260, %v3256
    %v3297 = vpack.c.b16 %v3261, %v3257
    %v3298 = vpack.c.b16 %v3262, %v3258
    %v3299 = vpack.c.b16 %v3267, %v3263
    %v3300 = vpack.c.b16 %v3268, %v3264
    %v3301 = vpack.c.b16 %v3269, %v3265
    %v3302 = vpack.c.b16 %v3270, %v3266
    %3335 = vmatpush.bf16.msra.mxu0 %v3299
    %3336 = vmatpush.bf16.msra.mxu0 %v3295
    %3337 = vmatpush.bf16.msra.mxu0 %v3291
    %3338 = vmatpush.bf16.msra.mxu0 %v3287
    %3339 = vmatpush.bf16.msra.mxu0 %v3283
    %3340 = vmatpush.bf16.msra.mxu0 %v3279
    %3341 = vmatpush.bf16.msra.mxu0 %v3275
    %3342 = vmatpush.bf16.msra.mxu0 %v3271
    %3343 = vmatmul.bf16.gmra.mxu0 %v3142
    %v3344 = vpop.f32.mrf.mxu0
    %v3345 = vadd.f32 0.0, %v3344
    %v3346 = vpop.f32.mrf.mxu0
    %3347 = vdwg.mxu0
    %3348 = vmatpush.bf16.msra.mxu0 %v3300
    %3349 = vmatpush.bf16.msra.mxu0 %v3296
    %3350 = vmatpush.bf16.msra.mxu0 %v3292
    %3351 = vmatpush.bf16.msra.mxu0 %v3288
    %3352 = vmatpush.bf16.msra.mxu0 %v3284
    %3353 = vmatpush.bf16.msra.mxu0 %v3280
    %3354 = vmatpush.bf16.msra.mxu0 %v3276
    %3355 = vmatpush.bf16.msra.mxu0 %v3272
    %3356 = vmatmul.bf16.gmra.mxu0 %v3142
    %v3357 = vpop.f32.mrf.mxu0
    %v3358 = vadd.f32 0.0, %v3357
    %v3359 = vpop.f32.mrf.mxu0
    %3360 = vdwg.mxu0
    %3361 = vmatpush.bf16.msra.mxu0 %v3301
    %3362 = vmatpush.bf16.msra.mxu0 %v3297
    %3363 = vmatpush.bf16.msra.mxu0 %v3293
    %3364 = vmatpush.bf16.msra.mxu0 %v3289
    %3365 = vmatpush.bf16.msra.mxu0 %v3285
    %3366 = vmatpush.bf16.msra.mxu0 %v3281
    %3367 = vmatpush.bf16.msra.mxu0 %v3277
    %3368 = vmatpush.bf16.msra.mxu0 %v3273
    %3369 = vmatmul.bf16.gmra.mxu0 %v3142
    %v3370 = vpop.f32.mrf.mxu0
    %v3371 = vadd.f32 0.0, %v3370
    %v3372 = vpop.f32.mrf.mxu0
    %3373 = vdwg.mxu0
    %3374 = vmatpush.bf16.msra.mxu0 %v3302
    %3375 = vmatpush.bf16.msra.mxu0 %v3298
    %3376 = vmatpush.bf16.msra.mxu0 %v3294
    %3377 = vmatpush.bf16.msra.mxu0 %v3290
    %3378 = vmatpush.bf16.msra.mxu0 %v3286
    %3379 = vmatpush.bf16.msra.mxu0 %v3282
    %3380 = vmatpush.bf16.msra.mxu0 %v3278
    %3381 = vmatpush.bf16.msra.mxu0 %v3274
    %3382 = vmatmul.bf16.gmra.mxu0 %v3142
    %v3383 = vpop.f32.mrf.mxu0
    %v3384 = vadd.f32 0.0, %v3383
    %v3385 = vpop.f32.mrf.mxu0
    %3386 = vdwg.mxu0
    %v3387 = vadd.f32 %v3138, %v3345
    %v3388 = vadd.f32 %v3139, %v3358
    %v3389 = vadd.f32 %v3140, %v3371
    %v3390 = vadd.f32 %v3141, %v3384
    %v3391 = vmul.f32 %v3387, 0.5
    %v3392 = vtanh.pop %v3391
    %v3393 = vmul.f32 %v3392, 0.5
    %v3394 = vadd.f32 %v3393, 0.5
    %v3395 = vmul.f32 %v3388, 0.5
    %v3396 = vtanh.pop %v3395
    %v3397 = vmul.f32 %v3396, 0.5
    %v3398 = vadd.f32 %v3397, 0.5
    %v3399 = vtanh.pop %v3389
    %v3400 = vmul.f32 %v3398, %v3130
    %v3401 = vmul.f32 %v3394, %v3399
    %v3402 = vadd.f32 %v3400, %v3401
    %v3403 = vmul.f32 %v3390, 0.5
    %v3404 = vtanh.pop %v3403
    %v3405 = vmul.f32 %v3404, 0.5
    %v3406 = vadd.f32 %v3405, 0.5
    %v3407 = vtanh.pop %v3402
    %v3408 = vmul.f32 %v3406, %v3407
    %3409 = vst [vmem:[#allocation3 + $0x8] sm:$0xff] %v3408
    %v3410 = vld [vmem:[#allocation2 + $0x40] sm:$0xff]
    %v3411 = vld [vmem:[#allocation2 + $0x48] sm:$0xff]
    %v3412 = vld [vmem:[#allocation2 + $0x50] sm:$0xff]
    %v3413 = vld [vmem:[#allocation2 + $0x58] sm:$0xff]
    %v3414 = vpack.c.bf16 %v3408, %v3408
    %v3415 = vld [vmem:[#allocation9] sm:$0xff]
    %v3416 = vld [vmem:[#allocation9 + $0x8] sm:$0xff]
    %v3417 = vld [vmem:[#allocation9 + $0x10] sm:$0xff]
    %v3418 = vld [vmem:[#allocation9 + $0x18] sm:$0xff]
    %v3419 = vld [vmem:[#allocation9 + $0x20] sm:$0xff]
    %v3420 = vld [vmem:[#allocation9 + $0x28] sm:$0xff]
    %v3421 = vld [vmem:[#allocation9 + $0x30] sm:$0xff]
    %v3422 = vld [vmem:[#allocation9 + $0x38] sm:$0xff]
    %v3423 = vld [vmem:[#allocation9 + $0x40] sm:$0xff]
    %v3424 = vld [vmem:[#allocation9 + $0x48] sm:$0xff]
    %v3425 = vld [vmem:[#allocation9 + $0x50] sm:$0xff]
    %v3426 = vld [vmem:[#allocation9 + $0x58] sm:$0xff]
    %v3427 = vld [vmem:[#allocation9 + $0x60] sm:$0xff]
    %v3428 = vld [vmem:[#allocation9 + $0x68] sm:$0xff]
    %v3429 = vld [vmem:[#allocation9 + $0x70] sm:$0xff]
    %v3430 = vld [vmem:[#allocation9 + $0x78] sm:$0xff]
    %v3431 = vld [vmem:[#allocation9 + $0x80] sm:$0xff]
    %v3432 = vld [vmem:[#allocation9 + $0x88] sm:$0xff]
    %v3433 = vld [vmem:[#allocation9 + $0x90] sm:$0xff]
    %v3434 = vld [vmem:[#allocation9 + $0x98] sm:$0xff]
    %v3435 = vld [vmem:[#allocation9 + $0xa0] sm:$0xff]
    %v3436 = vld [vmem:[#allocation9 + $0xa8] sm:$0xff]
    %v3437 = vld [vmem:[#allocation9 + $0xb0] sm:$0xff]
    %v3438 = vld [vmem:[#allocation9 + $0xb8] sm:$0xff]
    %v3439 = vld [vmem:[#allocation9 + $0xc0] sm:$0xff]
    %v3440 = vld [vmem:[#allocation9 + $0xc8] sm:$0xff]
    %v3441 = vld [vmem:[#allocation9 + $0xd0] sm:$0xff]
    %v3442 = vld [vmem:[#allocation9 + $0xd8] sm:$0xff]
    %v3443 = vld [vmem:[#allocation9 + $0xe0] sm:$0xff]
    %v3444 = vld [vmem:[#allocation9 + $0xe8] sm:$0xff]
    %v3445 = vld [vmem:[#allocation9 + $0xf0] sm:$0xff]
    %v3446 = vld [vmem:[#allocation9 + $0xf8] sm:$0xff]
    %v3479 = vunpack.c.l.b16 %v3415
    %v3480 = vunpack.c.h.b16 %v3415
    %v3481 = vunpack.c.l.b16 %v3416
    %v3482 = vunpack.c.h.b16 %v3416
    %v3483 = vunpack.c.l.b16 %v3417
    %v3484 = vunpack.c.h.b16 %v3417
    %v3485 = vunpack.c.l.b16 %v3418
    %v3486 = vunpack.c.h.b16 %v3418
    %v3487 = vunpack.c.l.b16 %v3419
    %v3488 = vunpack.c.h.b16 %v3419
    %v3489 = vunpack.c.l.b16 %v3420
    %v3490 = vunpack.c.h.b16 %v3420
    %v3491 = vunpack.c.l.b16 %v3421
    %v3492 = vunpack.c.h.b16 %v3421
    %v3493 = vunpack.c.l.b16 %v3422
    %v3494 = vunpack.c.h.b16 %v3422
    %v3495 = vunpack.c.l.b16 %v3423
    %v3496 = vunpack.c.h.b16 %v3423
    %v3497 = vunpack.c.l.b16 %v3424
    %v3498 = vunpack.c.h.b16 %v3424
    %v3499 = vunpack.c.l.b16 %v3425
    %v3500 = vunpack.c.h.b16 %v3425
    %v3501 = vunpack.c.l.b16 %v3426
    %v3502 = vunpack.c.h.b16 %v3426
    %v3503 = vunpack.c.l.b16 %v3427
    %v3504 = vunpack.c.h.b16 %v3427
    %v3505 = vunpack.c.l.b16 %v3428
    %v3506 = vunpack.c.h.b16 %v3428
    %v3507 = vunpack.c.l.b16 %v3429
    %v3508 = vunpack.c.h.b16 %v3429
    %v3509 = vunpack.c.l.b16 %v3430
    %v3510 = vunpack.c.h.b16 %v3430
    %v3511 = vunpack.c.l.b16 %v3431
    %v3512 = vunpack.c.h.b16 %v3431
    %v3513 = vunpack.c.l.b16 %v3432
    %v3514 = vunpack.c.h.b16 %v3432
    %v3515 = vunpack.c.l.b16 %v3433
    %v3516 = vunpack.c.h.b16 %v3433
    %v3517 = vunpack.c.l.b16 %v3434
    %v3518 = vunpack.c.h.b16 %v3434
    %v3519 = vunpack.c.l.b16 %v3435
    %v3520 = vunpack.c.h.b16 %v3435
    %v3521 = vunpack.c.l.b16 %v3436
    %v3522 = vunpack.c.h.b16 %v3436
    %v3523 = vunpack.c.l.b16 %v3437
    %v3524 = vunpack.c.h.b16 %v3437
    %v3525 = vunpack.c.l.b16 %v3438
    %v3526 = vunpack.c.h.b16 %v3438
    %v3527 = vunpack.c.l.b16 %v3439
    %v3528 = vunpack.c.h.b16 %v3439
    %v3529 = vunpack.c.l.b16 %v3440
    %v3530 = vunpack.c.h.b16 %v3440
    %v3531 = vunpack.c.l.b16 %v3441
    %v3532 = vunpack.c.h.b16 %v3441
    %v3533 = vunpack.c.l.b16 %v3442
    %v3534 = vunpack.c.h.b16 %v3442
    %v3535 = vunpack.c.l.b16 %v3443
    %v3536 = vunpack.c.h.b16 %v3443
    %v3537 = vunpack.c.l.b16 %v3444
    %v3538 = vunpack.c.h.b16 %v3444
    %v3539 = vunpack.c.l.b16 %v3445
    %v3540 = vunpack.c.h.b16 %v3445
    %v3541 = vunpack.c.l.b16 %v3446
    %v3542 = vunpack.c.h.b16 %v3446
    %v3543 = vpack.c.b16 %v3483, %v3479
    %v3544 = vpack.c.b16 %v3484, %v3480
    %v3545 = vpack.c.b16 %v3485, %v3481
    %v3546 = vpack.c.b16 %v3486, %v3482
    %v3547 = vpack.c.b16 %v3491, %v3487
    %v3548 = vpack.c.b16 %v3492, %v3488
    %v3549 = vpack.c.b16 %v3493, %v3489
    %v3550 = vpack.c.b16 %v3494, %v3490
    %v3551 = vpack.c.b16 %v3499, %v3495
    %v3552 = vpack.c.b16 %v3500, %v3496
    %v3553 = vpack.c.b16 %v3501, %v3497
    %v3554 = vpack.c.b16 %v3502, %v3498
    %v3555 = vpack.c.b16 %v3507, %v3503
    %v3556 = vpack.c.b16 %v3508, %v3504
    %v3557 = vpack.c.b16 %v3509, %v3505
    %v3558 = vpack.c.b16 %v3510, %v3506
    %v3559 = vpack.c.b16 %v3515, %v3511
    %v3560 = vpack.c.b16 %v3516, %v3512
    %v3561 = vpack.c.b16 %v3517, %v3513
    %v3562 = vpack.c.b16 %v3518, %v3514
    %v3563 = vpack.c.b16 %v3523, %v3519
    %v3564 = vpack.c.b16 %v3524, %v3520
    %v3565 = vpack.c.b16 %v3525, %v3521
    %v3566 = vpack.c.b16 %v3526, %v3522
    %v3567 = vpack.c.b16 %v3531, %v3527
    %v3568 = vpack.c.b16 %v3532, %v3528
    %v3569 = vpack.c.b16 %v3533, %v3529
    %v3570 = vpack.c.b16 %v3534, %v3530
    %v3571 = vpack.c.b16 %v3539, %v3535
    %v3572 = vpack.c.b16 %v3540, %v3536
    %v3573 = vpack.c.b16 %v3541, %v3537
    %v3574 = vpack.c.b16 %v3542, %v3538
    %3607 = vmatpush.bf16.msra.mxu0 %v3571
    %3608 = vmatpush.bf16.msra.mxu0 %v3567
    %3609 = vmatpush.bf16.msra.mxu0 %v3563
    %3610 = vmatpush.bf16.msra.mxu0 %v3559
    %3611 = vmatpush.bf16.msra.mxu0 %v3555
    %3612 = vmatpush.bf16.msra.mxu0 %v3551
    %3613 = vmatpush.bf16.msra.mxu0 %v3547
    %3614 = vmatpush.bf16.msra.mxu0 %v3543
    %3615 = vmatmul.bf16.gmra.mxu0 %v3414
    %v3616 = vpop.f32.mrf.mxu0
    %v3617 = vadd.f32 0.0, %v3616
    %v3618 = vpop.f32.mrf.mxu0
    %3619 = vdwg.mxu0
    %3620 = vmatpush.bf16.msra.mxu0 %v3572
    %3621 = vmatpush.bf16.msra.mxu0 %v3568
    %3622 = vmatpush.bf16.msra.mxu0 %v3564
    %3623 = vmatpush.bf16.msra.mxu0 %v3560
    %3624 = vmatpush.bf16.msra.mxu0 %v3556
    %3625 = vmatpush.bf16.msra.mxu0 %v3552
    %3626 = vmatpush.bf16.msra.mxu0 %v3548
    %3627 = vmatpush.bf16.msra.mxu0 %v3544
    %3628 = vmatmul.bf16.gmra.mxu0 %v3414
    %v3629 = vpop.f32.mrf.mxu0
    %v3630 = vadd.f32 0.0, %v3629
    %v3631 = vpop.f32.mrf.mxu0
    %3632 = vdwg.mxu0
    %3633 = vmatpush.bf16.msra.mxu0 %v3573
    %3634 = vmatpush.bf16.msra.mxu0 %v3569
    %3635 = vmatpush.bf16.msra.mxu0 %v3565
    %3636 = vmatpush.bf16.msra.mxu0 %v3561
    %3637 = vmatpush.bf16.msra.mxu0 %v3557
    %3638 = vmatpush.bf16.msra.mxu0 %v3553
    %3639 = vmatpush.bf16.msra.mxu0 %v3549
    %3640 = vmatpush.bf16.msra.mxu0 %v3545
    %3641 = vmatmul.bf16.gmra.mxu0 %v3414
    %v3642 = vpop.f32.mrf.mxu0
    %v3643 = vadd.f32 0.0, %v3642
    %v3644 = vpop.f32.mrf.mxu0
    %3645 = vdwg.mxu0
    %3646 = vmatpush.bf16.msra.mxu0 %v3574
    %3647 = vmatpush.bf16.msra.mxu0 %v3570
    %3648 = vmatpush.bf16.msra.mxu0 %v3566
    %3649 = vmatpush.bf16.msra.mxu0 %v3562
    %3650 = vmatpush.bf16.msra.mxu0 %v3558
    %3651 = vmatpush.bf16.msra.mxu0 %v3554
    %3652 = vmatpush.bf16.msra.mxu0 %v3550
    %3653 = vmatpush.bf16.msra.mxu0 %v3546
    %3654 = vmatmul.bf16.gmra.mxu0 %v3414
    %v3655 = vpop.f32.mrf.mxu0
    %v3656 = vadd.f32 0.0, %v3655
    %v3657 = vpop.f32.mrf.mxu0
    %3658 = vdwg.mxu0
    %v3659 = vadd.f32 %v3410, %v3617
    %v3660 = vadd.f32 %v3411, %v3630
    %v3661 = vadd.f32 %v3412, %v3643
    %v3662 = vadd.f32 %v3413, %v3656
    %v3663 = vmul.f32 %v3659, 0.5
    %v3664 = vtanh.pop %v3663
    %v3665 = vmul.f32 %v3664, 0.5
    %v3666 = vadd.f32 %v3665, 0.5
    %v3667 = vmul.f32 %v3660, 0.5
    %v3668 = vtanh.pop %v3667
    %v3669 = vmul.f32 %v3668, 0.5
    %v3670 = vadd.f32 %v3669, 0.5
    %v3671 = vtanh.pop %v3661
    %v3672 = vmul.f32 %v3670, %v3402
    %v3673 = vmul.f32 %v3666, %v3671
    %v3674 = vadd.f32 %v3672, %v3673
    %v3675 = vmul.f32 %v3662, 0.5
    %v3676 = vtanh.pop %v3675
    %v3677 = vmul.f32 %v3676, 0.5
    %v3678 = vadd.f32 %v3677, 0.5
    %v3679 = vtanh.pop %v3674
    %v3680 = vmul.f32 %v3678, %v3679
    %3681 = vst [vmem:[#allocation3 + $0x10] sm:$0xff] %v3680
    %v3682 = vld [vmem:[#allocation2 + $0x60] sm:$0xff]
    %v3683 = vld [vmem:[#allocation2 + $0x68] sm:$0xff]
    %v3684 = vld [vmem:[#allocation2 + $0x70] sm:$0xff]
    %v3685 = vld [vmem:[#allocation2 + $0x78] sm:$0xff]
    %v3686 = vpack.c.bf16 %v3680, %v3680
    %v3687 = vld [vmem:[#allocation9] sm:$0xff]
    %v3688 = vld [vmem:[#allocation9 + $0x8] sm:$0xff]
    %v3689 = vld [vmem:[#allocation9 + $0x10] sm:$0xff]
    %v3690 = vld [vmem:[#allocation9 + $0x18] sm:$0xff]
    %v3691 = vld [vmem:[#allocation9 + $0x20] sm:$0xff]
    %v3692 = vld [vmem:[#allocation9 + $0x28] sm:$0xff]
    %v3693 = vld [vmem:[#allocation9 + $0x30] sm:$0xff]
    %v3694 = vld [vmem:[#allocation9 + $0x38] sm:$0xff]
    %v3695 = vld [vmem:[#allocation9 + $0x40] sm:$0xff]
    %v3696 = vld [vmem:[#allocation9 + $0x48] sm:$0xff]
    %v3697 = vld [vmem:[#allocation9 + $0x50] sm:$0xff]
    %v3698 = vld [vmem:[#allocation9 + $0x58] sm:$0xff]
    %v3699 = vld [vmem:[#allocation9 + $0x60] sm:$0xff]
    %v3700 = vld [vmem:[#allocation9 + $0x68] sm:$0xff]
    %v3701 = vld [vmem:[#allocation9 + $0x70] sm:$0xff]
    %v3702 = vld [vmem:[#allocation9 + $0x78] sm:$0xff]
    %v3703 = vld [vmem:[#allocation9 + $0x80] sm:$0xff]
    %v3704 = vld [vmem:[#allocation9 + $0x88] sm:$0xff]
    %v3705 = vld [vmem:[#allocation9 + $0x90] sm:$0xff]
    %v3706 = vld [vmem:[#allocation9 + $0x98] sm:$0xff]
    %v3707 = vld [vmem:[#allocation9 + $0xa0] sm:$0xff]
    %v3708 = vld [vmem:[#allocation9 + $0xa8] sm:$0xff]
    %v3709 = vld [vmem:[#allocation9 + $0xb0] sm:$0xff]
    %v3710 = vld [vmem:[#allocation9 + $0xb8] sm:$0xff]
    %v3711 = vld [vmem:[#allocation9 + $0xc0] sm:$0xff]
    %v3712 = vld [vmem:[#allocation9 + $0xc8] sm:$0xff]
    %v3713 = vld [vmem:[#allocation9 + $0xd0] sm:$0xff]
    %v3714 = vld [vmem:[#allocation9 + $0xd8] sm:$0xff]
    %v3715 = vld [vmem:[#allocation9 + $0xe0] sm:$0xff]
    %v3716 = vld [vmem:[#allocation9 + $0xe8] sm:$0xff]
    %v3717 = vld [vmem:[#allocation9 + $0xf0] sm:$0xff]
    %v3718 = vld [vmem:[#allocation9 + $0xf8] sm:$0xff]
    %v3751 = vunpack.c.l.b16 %v3687
    %v3752 = vunpack.c.h.b16 %v3687
    %v3753 = vunpack.c.l.b16 %v3688
    %v3754 = vunpack.c.h.b16 %v3688
    %v3755 = vunpack.c.l.b16 %v3689
    %v3756 = vunpack.c.h.b16 %v3689
    %v3757 = vunpack.c.l.b16 %v3690
    %v3758 = vunpack.c.h.b16 %v3690
    %v3759 = vunpack.c.l.b16 %v3691
    %v3760 = vunpack.c.h.b16 %v3691
    %v3761 = vunpack.c.l.b16 %v3692
    %v3762 = vunpack.c.h.b16 %v3692
    %v3763 = vunpack.c.l.b16 %v3693
    %v3764 = vunpack.c.h.b16 %v3693
    %v3765 = vunpack.c.l.b16 %v3694
    %v3766 = vunpack.c.h.b16 %v3694
    %v3767 = vunpack.c.l.b16 %v3695
    %v3768 = vunpack.c.h.b16 %v3695
    %v3769 = vunpack.c.l.b16 %v3696
    %v3770 = vunpack.c.h.b16 %v3696
    %v3771 = vunpack.c.l.b16 %v3697
    %v3772 = vunpack.c.h.b16 %v3697
    %v3773 = vunpack.c.l.b16 %v3698
    %v3774 = vunpack.c.h.b16 %v3698
    %v3775 = vunpack.c.l.b16 %v3699
    %v3776 = vunpack.c.h.b16 %v3699
    %v3777 = vunpack.c.l.b16 %v3700
    %v3778 = vunpack.c.h.b16 %v3700
    %v3779 = vunpack.c.l.b16 %v3701
    %v3780 = vunpack.c.h.b16 %v3701
    %v3781 = vunpack.c.l.b16 %v3702
    %v3782 = vunpack.c.h.b16 %v3702
    %v3783 = vunpack.c.l.b16 %v3703
    %v3784 = vunpack.c.h.b16 %v3703
    %v3785 = vunpack.c.l.b16 %v3704
    %v3786 = vunpack.c.h.b16 %v3704
    %v3787 = vunpack.c.l.b16 %v3705
    %v3788 = vunpack.c.h.b16 %v3705
    %v3789 = vunpack.c.l.b16 %v3706
    %v3790 = vunpack.c.h.b16 %v3706
    %v3791 = vunpack.c.l.b16 %v3707
    %v3792 = vunpack.c.h.b16 %v3707
    %v3793 = vunpack.c.l.b16 %v3708
    %v3794 = vunpack.c.h.b16 %v3708
    %v3795 = vunpack.c.l.b16 %v3709
    %v3796 = vunpack.c.h.b16 %v3709
    %v3797 = vunpack.c.l.b16 %v3710
    %v3798 = vunpack.c.h.b16 %v3710
    %v3799 = vunpack.c.l.b16 %v3711
    %v3800 = vunpack.c.h.b16 %v3711
    %v3801 = vunpack.c.l.b16 %v3712
    %v3802 = vunpack.c.h.b16 %v3712
    %v3803 = vunpack.c.l.b16 %v3713
    %v3804 = vunpack.c.h.b16 %v3713
    %v3805 = vunpack.c.l.b16 %v3714
    %v3806 = vunpack.c.h.b16 %v3714
    %v3807 = vunpack.c.l.b16 %v3715
    %v3808 = vunpack.c.h.b16 %v3715
    %v3809 = vunpack.c.l.b16 %v3716
    %v3810 = vunpack.c.h.b16 %v3716
    %v3811 = vunpack.c.l.b16 %v3717
    %v3812 = vunpack.c.h.b16 %v3717
    %v3813 = vunpack.c.l.b16 %v3718
    %v3814 = vunpack.c.h.b16 %v3718
    %v3815 = vpack.c.b16 %v3755, %v3751
    %v3816 = vpack.c.b16 %v3756, %v3752
    %v3817 = vpack.c.b16 %v3757, %v3753
    %v3818 = vpack.c.b16 %v3758, %v3754
    %v3819 = vpack.c.b16 %v3763, %v3759
    %v3820 = vpack.c.b16 %v3764, %v3760
    %v3821 = vpack.c.b16 %v3765, %v3761
    %v3822 = vpack.c.b16 %v3766, %v3762
    %v3823 = vpack.c.b16 %v3771, %v3767
    %v3824 = vpack.c.b16 %v3772, %v3768
    %v3825 = vpack.c.b16 %v3773, %v3769
    %v3826 = vpack.c.b16 %v3774, %v3770
    %v3827 = vpack.c.b16 %v3779, %v3775
    %v3828 = vpack.c.b16 %v3780, %v3776
    %v3829 = vpack.c.b16 %v3781, %v3777
    %v3830 = vpack.c.b16 %v3782, %v3778
    %v3831 = vpack.c.b16 %v3787, %v3783
    %v3832 = vpack.c.b16 %v3788, %v3784
    %v3833 = vpack.c.b16 %v3789, %v3785
    %v3834 = vpack.c.b16 %v3790, %v3786
    %v3835 = vpack.c.b16 %v3795, %v3791
    %v3836 = vpack.c.b16 %v3796, %v3792
    %v3837 = vpack.c.b16 %v3797, %v3793
    %v3838 = vpack.c.b16 %v3798, %v3794
    %v3839 = vpack.c.b16 %v3803, %v3799
    %v3840 = vpack.c.b16 %v3804, %v3800
    %v3841 = vpack.c.b16 %v3805, %v3801
    %v3842 = vpack.c.b16 %v3806, %v3802
    %v3843 = vpack.c.b16 %v3811, %v3807
    %v3844 = vpack.c.b16 %v3812, %v3808
    %v3845 = vpack.c.b16 %v3813, %v3809
    %v3846 = vpack.c.b16 %v3814, %v3810
    %3879 = vmatpush.bf16.msra.mxu0 %v3843
    %3880 = vmatpush.bf16.msra.mxu0 %v3839
    %3881 = vmatpush.bf16.msra.mxu0 %v3835
    %3882 = vmatpush.bf16.msra.mxu0 %v3831
    %3883 = vmatpush.bf16.msra.mxu0 %v3827
    %3884 = vmatpush.bf16.msra.mxu0 %v3823
    %3885 = vmatpush.bf16.msra.mxu0 %v3819
    %3886 = vmatpush.bf16.msra.mxu0 %v3815
    %3887 = vmatmul.bf16.gmra.mxu0 %v3686
    %v3888 = vpop.f32.mrf.mxu0
    %v3889 = vadd.f32 0.0, %v3888
    %v3890 = vpop.f32.mrf.mxu0
    %3891 = vdwg.mxu0
    %3892 = vmatpush.bf16.msra.mxu0 %v3844
    %3893 = vmatpush.bf16.msra.mxu0 %v3840
    %3894 = vmatpush.bf16.msra.mxu0 %v3836
    %3895 = vmatpush.bf16.msra.mxu0 %v3832
    %3896 = vmatpush.bf16.msra.mxu0 %v3828
    %3897 = vmatpush.bf16.msra.mxu0 %v3824
    %3898 = vmatpush.bf16.msra.mxu0 %v3820
    %3899 = vmatpush.bf16.msra.mxu0 %v3816
    %3900 = vmatmul.bf16.gmra.mxu0 %v3686
    %v3901 = vpop.f32.mrf.mxu0
    %v3902 = vadd.f32 0.0, %v3901
    %v3903 = vpop.f32.mrf.mxu0
    %3904 = vdwg.mxu0
    %3905 = vmatpush.bf16.msra.mxu0 %v3845
    %3906 = vmatpush.bf16.msra.mxu0 %v3841
    %3907 = vmatpush.bf16.msra.mxu0 %v3837
    %3908 = vmatpush.bf16.msra.mxu0 %v3833
    %3909 = vmatpush.bf16.msra.mxu0 %v3829
    %3910 = vmatpush.bf16.msra.mxu0 %v3825
    %3911 = vmatpush.bf16.msra.mxu0 %v3821
    %3912 = vmatpush.bf16.msra.mxu0 %v3817
    %3913 = vmatmul.bf16.gmra.mxu0 %v3686
    %v3914 = vpop.f32.mrf.mxu0
    %v3915 = vadd.f32 0.0, %v3914
    %v3916 = vpop.f32.mrf.mxu0
    %3917 = vdwg.mxu0
    %3918 = vmatpush.bf16.msra.mxu0 %v3846
    %3919 = vmatpush.bf16.msra.mxu0 %v3842
    %3920 = vmatpush.bf16.msra.mxu0 %v3838
    %3921 = vmatpush.bf16.msra.mxu0 %v3834
    %3922 = vmatpush.bf16.msra.mxu0 %v3830
    %3923 = vmatpush.bf16.msra.mxu0 %v3826
    %3924 = vmatpush.bf16.msra.mxu0 %v3822
    %3925 = vmatpush.bf16.msra.mxu0 %v3818
    %3926 = vmatmul.bf16.gmra.mxu0 %v3686
    %v3927 = vpop.f32.mrf.mxu0
    %v3928 = vadd.f32 0.0, %v3927
    %v3929 = vpop.f32.mrf.mxu0
    %3930 = vdwg.mxu0
    %v3931 = vadd.f32 %v3682, %v3889
    %v3932 = vadd.f32 %v3683, %v3902
    %v3933 = vadd.f32 %v3684, %v3915
    %v3934 = vadd.f32 %v3685, %v3928
    %v3935 = vmul.f32 %v3931, 0.5
    %v3936 = vtanh.pop %v3935
    %v3937 = vmul.f32 %v3936, 0.5
    %v3938 = vadd.f32 %v3937, 0.5
    %v3939 = vmul.f32 %v3932, 0.5
    %v3940 = vtanh.pop %v3939
    %v3941 = vmul.f32 %v3940, 0.5
    %v3942 = vadd.f32 %v3941, 0.5
    %v3943 = vtanh.pop %v3933
    %v3944 = vmul.f32 %v3942, %v3674
    %v3945 = vmul.f32 %v3938, %v3943
    %v3946 = vadd.f32 %v3944, %v3945
    %v3947 = vmul.f32 %v3934, 0.5
    %v3948 = vtanh.pop %v3947
    %v3949 = vmul.f32 %v3948, 0.5
    %v3950 = vadd.f32 %v3949, 0.5
    %v3951 = vtanh.pop %v3946
    %v3952 = vmul.f32 %v3950, %v3951
    %3953 = vst [vmem:[#allocation3 + $0x18] sm:$0xff] %v3952
    %v3954 = vld [vmem:[#allocation2 + $0x80] sm:$0xff]
    %v3955 = vld [vmem:[#allocation2 + $0x88] sm:$0xff]
    %v3956 = vld [vmem:[#allocation2 + $0x90] sm:$0xff]
    %v3957 = vld [vmem:[#allocation2 + $0x98] sm:$0xff]
    %v3958 = vpack.c.bf16 %v3952, %v3952
    %v3959 = vld [vmem:[#allocation9] sm:$0xff]
    %v3960 = vld [vmem:[#allocation9 + $0x8] sm:$0xff]
    %v3961 = vld [vmem:[#allocation9 + $0x10] sm:$0xff]
    %v3962 = vld [vmem:[#allocation9 + $0x18] sm:$0xff]
    %v3963 = vld [vmem:[#allocation9 + $0x20] sm:$0xff]
    %v3964 = vld [vmem:[#allocation9 + $0x28] sm:$0xff]
    %v3965 = vld [vmem:[#allocation9 + $0x30] sm:$0xff]
    %v3966 = vld [vmem:[#allocation9 + $0x38] sm:$0xff]
    %v3967 = vld [vmem:[#allocation9 + $0x40] sm:$0xff]
    %v3968 = vld [vmem:[#allocation9 + $0x48] sm:$0xff]
    %v3969 = vld [vmem:[#allocation9 + $0x50] sm:$0xff]
    %v3970 = vld [vmem:[#allocation9 + $0x58] sm:$0xff]
    %v3971 = vld [vmem:[#allocation9 + $0x60] sm:$0xff]
    %v3972 = vld [vmem:[#allocation9 + $0x68] sm:$0xff]
    %v3973 = vld [vmem:[#allocation9 + $0x70] sm:$0xff]
    %v3974 = vld [vmem:[#allocation9 + $0x78] sm:$0xff]
    %v3975 = vld [vmem:[#allocation9 + $0x80] sm:$0xff]
    %v3976 = vld [vmem:[#allocation9 + $0x88] sm:$0xff]
    %v3977 = vld [vmem:[#allocation9 + $0x90] sm:$0xff]
    %v3978 = vld [vmem:[#allocation9 + $0x98] sm:$0xff]
    %v3979 = vld [vmem:[#allocation9 + $0xa0] sm:$0xff]
    %v3980 = vld [vmem:[#allocation9 + $0xa8] sm:$0xff]
    %v3981 = vld [vmem:[#allocation9 + $0xb0] sm:$0xff]
    %v3982 = vld [vmem:[#allocation9 + $0xb8] sm:$0xff]
    %v3983 = vld [vmem:[#allocation9 + $0xc0] sm:$0xff]
    %v3984 = vld [vmem:[#allocation9 + $0xc8] sm:$0xff]
    %v3985 = vld [vmem:[#allocation9 + $0xd0] sm:$0xff]
    %v3986 = vld [vmem:[#allocation9 + $0xd8] sm:$0xff]
    %v3987 = vld [vmem:[#allocation9 + $0xe0] sm:$0xff]
    %v3988 = vld [vmem:[#allocation9 + $0xe8] sm:$0xff]
    %v3989 = vld [vmem:[#allocation9 + $0xf0] sm:$0xff]
    %v3990 = vld [vmem:[#allocation9 + $0xf8] sm:$0xff]
    %v4023 = vunpack.c.l.b16 %v3959
    %v4024 = vunpack.c.h.b16 %v3959
    %v4025 = vunpack.c.l.b16 %v3960
    %v4026 = vunpack.c.h.b16 %v3960
    %v4027 = vunpack.c.l.b16 %v3961
    %v4028 = vunpack.c.h.b16 %v3961
    %v4029 = vunpack.c.l.b16 %v3962
    %v4030 = vunpack.c.h.b16 %v3962
    %v4031 = vunpack.c.l.b16 %v3963
    %v4032 = vunpack.c.h.b16 %v3963
    %v4033 = vunpack.c.l.b16 %v3964
    %v4034 = vunpack.c.h.b16 %v3964
    %v4035 = vunpack.c.l.b16 %v3965
    %v4036 = vunpack.c.h.b16 %v3965
    %v4037 = vunpack.c.l.b16 %v3966
    %v4038 = vunpack.c.h.b16 %v3966
    %v4039 = vunpack.c.l.b16 %v3967
    %v4040 = vunpack.c.h.b16 %v3967
    %v4041 = vunpack.c.l.b16 %v3968
    %v4042 = vunpack.c.h.b16 %v3968
    %v4043 = vunpack.c.l.b16 %v3969
    %v4044 = vunpack.c.h.b16 %v3969
    %v4045 = vunpack.c.l.b16 %v3970
    %v4046 = vunpack.c.h.b16 %v3970
    %v4047 = vunpack.c.l.b16 %v3971
    %v4048 = vunpack.c.h.b16 %v3971
    %v4049 = vunpack.c.l.b16 %v3972
    %v4050 = vunpack.c.h.b16 %v3972
    %v4051 = vunpack.c.l.b16 %v3973
    %v4052 = vunpack.c.h.b16 %v3973
    %v4053 = vunpack.c.l.b16 %v3974
    %v4054 = vunpack.c.h.b16 %v3974
    %v4055 = vunpack.c.l.b16 %v3975
    %v4056 = vunpack.c.h.b16 %v3975
    %v4057 = vunpack.c.l.b16 %v3976
    %v4058 = vunpack.c.h.b16 %v3976
    %v4059 = vunpack.c.l.b16 %v3977
    %v4060 = vunpack.c.h.b16 %v3977
    %v4061 = vunpack.c.l.b16 %v3978
    %v4062 = vunpack.c.h.b16 %v3978
    %v4063 = vunpack.c.l.b16 %v3979
    %v4064 = vunpack.c.h.b16 %v3979
    %v4065 = vunpack.c.l.b16 %v3980
    %v4066 = vunpack.c.h.b16 %v3980
    %v4067 = vunpack.c.l.b16 %v3981
    %v4068 = vunpack.c.h.b16 %v3981
    %v4069 = vunpack.c.l.b16 %v3982
    %v4070 = vunpack.c.h.b16 %v3982
    %v4071 = vunpack.c.l.b16 %v3983
    %v4072 = vunpack.c.h.b16 %v3983
    %v4073 = vunpack.c.l.b16 %v3984
    %v4074 = vunpack.c.h.b16 %v3984
    %v4075 = vunpack.c.l.b16 %v3985
    %v4076 = vunpack.c.h.b16 %v3985
    %v4077 = vunpack.c.l.b16 %v3986
    %v4078 = vunpack.c.h.b16 %v3986
    %v4079 = vunpack.c.l.b16 %v3987
    %v4080 = vunpack.c.h.b16 %v3987
    %v4081 = vunpack.c.l.b16 %v3988
    %v4082 = vunpack.c.h.b16 %v3988
    %v4083 = vunpack.c.l.b16 %v3989
    %v4084 = vunpack.c.h.b16 %v3989
    %v4085 = vunpack.c.l.b16 %v3990
    %v4086 = vunpack.c.h.b16 %v3990
    %v4087 = vpack.c.b16 %v4027, %v4023
    %v4088 = vpack.c.b16 %v4028, %v4024
    %v4089 = vpack.c.b16 %v4029, %v4025
    %v4090 = vpack.c.b16 %v4030, %v4026
    %v4091 = vpack.c.b16 %v4035, %v4031
    %v4092 = vpack.c.b16 %v4036, %v4032
    %v4093 = vpack.c.b16 %v4037, %v4033
    %v4094 = vpack.c.b16 %v4038, %v4034
    %v4095 = vpack.c.b16 %v4043, %v4039
    %v4096 = vpack.c.b16 %v4044, %v4040
    %v4097 = vpack.c.b16 %v4045, %v4041
    %v4098 = vpack.c.b16 %v4046, %v4042
    %v4099 = vpack.c.b16 %v4051, %v4047
    %v4100 = vpack.c.b16 %v4052, %v4048
    %v4101 = vpack.c.b16 %v4053, %v4049
    %v4102 = vpack.c.b16 %v4054, %v4050
    %v4103 = vpack.c.b16 %v4059, %v4055
    %v4104 = vpack.c.b16 %v4060, %v4056
    %v4105 = vpack.c.b16 %v4061, %v4057
    %v4106 = vpack.c.b16 %v4062, %v4058
    %v4107 = vpack.c.b16 %v4067, %v4063
    %v4108 = vpack.c.b16 %v4068, %v4064
    %v4109 = vpack.c.b16 %v4069, %v4065
    %v4110 = vpack.c.b16 %v4070, %v4066
    %v4111 = vpack.c.b16 %v4075, %v4071
    %v4112 = vpack.c.b16 %v4076, %v4072
    %v4113 = vpack.c.b16 %v4077, %v4073
    %v4114 = vpack.c.b16 %v4078, %v4074
    %v4115 = vpack.c.b16 %v4083, %v4079
    %v4116 = vpack.c.b16 %v4084, %v4080
    %v4117 = vpack.c.b16 %v4085, %v4081
    %v4118 = vpack.c.b16 %v4086, %v4082
    %4151 = vmatpush.bf16.msra.mxu0 %v4115
    %4152 = vmatpush.bf16.msra.mxu0 %v4111
    %4153 = vmatpush.bf16.msra.mxu0 %v4107
    %4154 = vmatpush.bf16.msra.mxu0 %v4103
    %4155 = vmatpush.bf16.msra.mxu0 %v4099
    %4156 = vmatpush.bf16.msra.mxu0 %v4095
    %4157 = vmatpush.bf16.msra.mxu0 %v4091
    %4158 = vmatpush.bf16.msra.mxu0 %v4087
    %4159 = vmatmul.bf16.gmra.mxu0 %v3958
    %v4160 = vpop.f32.mrf.mxu0
    %v4161 = vadd.f32 0.0, %v4160
    %v4162 = vpop.f32.mrf.mxu0
    %4163 = vdwg.mxu0
    %4164 = vmatpush.bf16.msra.mxu0 %v4116
    %4165 = vmatpush.bf16.msra.mxu0 %v4112
    %4166 = vmatpush.bf16.msra.mxu0 %v4108
    %4167 = vmatpush.bf16.msra.mxu0 %v4104
    %4168 = vmatpush.bf16.msra.mxu0 %v4100
    %4169 = vmatpush.bf16.msra.mxu0 %v4096
    %4170 = vmatpush.bf16.msra.mxu0 %v4092
    %4171 = vmatpush.bf16.msra.mxu0 %v4088
    %4172 = vmatmul.bf16.gmra.mxu0 %v3958
    %v4173 = vpop.f32.mrf.mxu0
    %v4174 = vadd.f32 0.0, %v4173
    %v4175 = vpop.f32.mrf.mxu0
    %4176 = vdwg.mxu0
    %4177 = vmatpush.bf16.msra.mxu0 %v4117
    %4178 = vmatpush.bf16.msra.mxu0 %v4113
    %4179 = vmatpush.bf16.msra.mxu0 %v4109
    %4180 = vmatpush.bf16.msra.mxu0 %v4105
    %4181 = vmatpush.bf16.msra.mxu0 %v4101
    %4182 = vmatpush.bf16.msra.mxu0 %v4097
    %4183 = vmatpush.bf16.msra.mxu0 %v4093
    %4184 = vmatpush.bf16.msra.mxu0 %v4089
    %4185 = vmatmul.bf16.gmra.mxu0 %v3958
    %v4186 = vpop.f32.mrf.mxu0
    %v4187 = vadd.f32 0.0, %v4186
    %v4188 = vpop.f32.mrf.mxu0
    %4189 = vdwg.mxu0
    %4190 = vmatpush.bf16.msra.mxu0 %v4118
    %4191 = vmatpush.bf16.msra.mxu0 %v4114
    %4192 = vmatpush.bf16.msra.mxu0 %v4110
    %4193 = vmatpush.bf16.msra.mxu0 %v4106
    %4194 = vmatpush.bf16.msra.mxu0 %v4102
    %4195 = vmatpush.bf16.msra.mxu0 %v4098
    %4196 = vmatpush.bf16.msra.mxu0 %v4094
    %4197 = vmatpush.bf16.msra.mxu0 %v4090
    %4198 = vmatmul.bf16.gmra.mxu0 %v3958
    %v4199 = vpop.f32.mrf.mxu0
    %v4200 = vadd.f32 0.0, %v4199
    %v4201 = vpop.f32.mrf.mxu0
    %4202 = vdwg.mxu0
    %v4203 = vadd.f32 %v3954, %v4161
    %v4204 = vadd.f32 %v3955, %v4174
    %v4205 = vadd.f32 %v3956, %v4187
    %v4206 = vadd.f32 %v3957, %v4200
    %v4207 = vmul.f32 %v4203, 0.5
    %v4208 = vtanh.pop %v4207
    %v4209 = vmul.f32 %v4208, 0.5
    %v4210 = vadd.f32 %v4209, 0.5
    %v4211 = vmul.f32 %v4204, 0.5
    %v4212 = vtanh.pop %v4211
    %v4213 = vmul.f32 %v4212, 0.5
    %v4214 = vadd.f32 %v4213, 0.5
    %v4215 = vtanh.pop %v4205
    %v4216 = vmul.f32 %v4214, %v3946
    %v4217 = vmul.f32 %v4210, %v4215
    %v4218 = vadd.f32 %v4216, %v4217
    %v4219 = vmul.f32 %v4206, 0.5
    %v4220 = vtanh.pop %v4219
    %v4221 = vmul.f32 %v4220, 0.5
    %v4222 = vadd.f32 %v4221, 0.5
    %v4223 = vtanh.pop %v4218
    %v4224 = vmul.f32 %v4222, %v4223
    %4225 = vst [vmem:[#allocation3 + $0x20] sm:$0xff] %v4224
    %v4226 = vld [vmem:[#allocation2 + $0xa0] sm:$0xff]
    %v4227 = vld [vmem:[#allocation2 + $0xa8] sm:$0xff]
    %v4228 = vld [vmem:[#allocation2 + $0xb0] sm:$0xff]
    %v4229 = vld [vmem:[#allocation2 + $0xb8] sm:$0xff]
    %v4230 = vpack.c.bf16 %v4224, %v4224
    %v4231 = vld [vmem:[#allocation9] sm:$0xff]
    %v4232 = vld [vmem:[#allocation9 + $0x8] sm:$0xff]
    %v4233 = vld [vmem:[#allocation9 + $0x10] sm:$0xff]
    %v4234 = vld [vmem:[#allocation9 + $0x18] sm:$0xff]
    %v4235 = vld [vmem:[#allocation9 + $0x20] sm:$0xff]
    %v4236 = vld [vmem:[#allocation9 + $0x28] sm:$0xff]
    %v4237 = vld [vmem:[#allocation9 + $0x30] sm:$0xff]
    %v4238 = vld [vmem:[#allocation9 + $0x38] sm:$0xff]
    %v4239 = vld [vmem:[#allocation9 + $0x40] sm:$0xff]
    %v4240 = vld [vmem:[#allocation9 + $0x48] sm:$0xff]
    %v4241 = vld [vmem:[#allocation9 + $0x50] sm:$0xff]
    %v4242 = vld [vmem:[#allocation9 + $0x58] sm:$0xff]
    %v4243 = vld [vmem:[#allocation9 + $0x60] sm:$0xff]
    %v4244 = vld [vmem:[#allocation9 + $0x68] sm:$0xff]
    %v4245 = vld [vmem:[#allocation9 + $0x70] sm:$0xff]
    %v4246 = vld [vmem:[#allocation9 + $0x78] sm:$0xff]
    %v4247 = vld [vmem:[#allocation9 + $0x80] sm:$0xff]
    %v4248 = vld [vmem:[#allocation9 + $0x88] sm:$0xff]
    %v4249 = vld [vmem:[#allocation9 + $0x90] sm:$0xff]
    %v4250 = vld [vmem:[#allocation9 + $0x98] sm:$0xff]
    %v4251 = vld [vmem:[#allocation9 + $0xa0] sm:$0xff]
    %v4252 = vld [vmem:[#allocation9 + $0xa8] sm:$0xff]
    %v4253 = vld [vmem:[#allocation9 + $0xb0] sm:$0xff]
    %v4254 = vld [vmem:[#allocation9 + $0xb8] sm:$0xff]
    %v4255 = vld [vmem:[#allocation9 + $0xc0] sm:$0xff]
    %v4256 = vld [vmem:[#allocation9 + $0xc8] sm:$0xff]
    %v4257 = vld [vmem:[#allocation9 + $0xd0] sm:$0xff]
    %v4258 = vld [vmem:[#allocation9 + $0xd8] sm:$0xff]
    %v4259 = vld [vmem:[#allocation9 + $0xe0] sm:$0xff]
    %v4260 = vld [vmem:[#allocation9 + $0xe8] sm:$0xff]
    %v4261 = vld [vmem:[#allocation9 + $0xf0] sm:$0xff]
    %v4262 = vld [vmem:[#allocation9 + $0xf8] sm:$0xff]
    %v4295 = vunpack.c.l.b16 %v4231
    %v4296 = vunpack.c.h.b16 %v4231
    %v4297 = vunpack.c.l.b16 %v4232
    %v4298 = vunpack.c.h.b16 %v4232
    %v4299 = vunpack.c.l.b16 %v4233
    %v4300 = vunpack.c.h.b16 %v4233
    %v4301 = vunpack.c.l.b16 %v4234
    %v4302 = vunpack.c.h.b16 %v4234
    %v4303 = vunpack.c.l.b16 %v4235
    %v4304 = vunpack.c.h.b16 %v4235
    %v4305 = vunpack.c.l.b16 %v4236
    %v4306 = vunpack.c.h.b16 %v4236
    %v4307 = vunpack.c.l.b16 %v4237
    %v4308 = vunpack.c.h.b16 %v4237
    %v4309 = vunpack.c.l.b16 %v4238
    %v4310 = vunpack.c.h.b16 %v4238
    %v4311 = vunpack.c.l.b16 %v4239
    %v4312 = vunpack.c.h.b16 %v4239
    %v4313 = vunpack.c.l.b16 %v4240
    %v4314 = vunpack.c.h.b16 %v4240
    %v4315 = vunpack.c.l.b16 %v4241
    %v4316 = vunpack.c.h.b16 %v4241
    %v4317 = vunpack.c.l.b16 %v4242
    %v4318 = vunpack.c.h.b16 %v4242
    %v4319 = vunpack.c.l.b16 %v4243
    %v4320 = vunpack.c.h.b16 %v4243
    %v4321 = vunpack.c.l.b16 %v4244
    %v4322 = vunpack.c.h.b16 %v4244
    %v4323 = vunpack.c.l.b16 %v4245
    %v4324 = vunpack.c.h.b16 %v4245
    %v4325 = vunpack.c.l.b16 %v4246
    %v4326 = vunpack.c.h.b16 %v4246
    %v4327 = vunpack.c.l.b16 %v4247
    %v4328 = vunpack.c.h.b16 %v4247
    %v4329 = vunpack.c.l.b16 %v4248
    %v4330 = vunpack.c.h.b16 %v4248
    %v4331 = vunpack.c.l.b16 %v4249
    %v4332 = vunpack.c.h.b16 %v4249
    %v4333 = vunpack.c.l.b16 %v4250
    %v4334 = vunpack.c.h.b16 %v4250
    %v4335 = vunpack.c.l.b16 %v4251
    %v4336 = vunpack.c.h.b16 %v4251
    %v4337 = vunpack.c.l.b16 %v4252
    %v4338 = vunpack.c.h.b16 %v4252
    %v4339 = vunpack.c.l.b16 %v4253
    %v4340 = vunpack.c.h.b16 %v4253
    %v4341 = vunpack.c.l.b16 %v4254
    %v4342 = vunpack.c.h.b16 %v4254
    %v4343 = vunpack.c.l.b16 %v4255
    %v4344 = vunpack.c.h.b16 %v4255
    %v4345 = vunpack.c.l.b16 %v4256
    %v4346 = vunpack.c.h.b16 %v4256
    %v4347 = vunpack.c.l.b16 %v4257
    %v4348 = vunpack.c.h.b16 %v4257
    %v4349 = vunpack.c.l.b16 %v4258
    %v4350 = vunpack.c.h.b16 %v4258
    %v4351 = vunpack.c.l.b16 %v4259
    %v4352 = vunpack.c.h.b16 %v4259
    %v4353 = vunpack.c.l.b16 %v4260
    %v4354 = vunpack.c.h.b16 %v4260
    %v4355 = vunpack.c.l.b16 %v4261
    %v4356 = vunpack.c.h.b16 %v4261
    %v4357 = vunpack.c.l.b16 %v4262
    %v4358 = vunpack.c.h.b16 %v4262
    %v4359 = vpack.c.b16 %v4299, %v4295
    %v4360 = vpack.c.b16 %v4300, %v4296
    %v4361 = vpack.c.b16 %v4301, %v4297
    %v4362 = vpack.c.b16 %v4302, %v4298
    %v4363 = vpack.c.b16 %v4307, %v4303
    %v4364 = vpack.c.b16 %v4308, %v4304
    %v4365 = vpack.c.b16 %v4309, %v4305
    %v4366 = vpack.c.b16 %v4310, %v4306
    %v4367 = vpack.c.b16 %v4315, %v4311
    %v4368 = vpack.c.b16 %v4316, %v4312
    %v4369 = vpack.c.b16 %v4317, %v4313
    %v4370 = vpack.c.b16 %v4318, %v4314
    %v4371 = vpack.c.b16 %v4323, %v4319
    %v4372 = vpack.c.b16 %v4324, %v4320
    %v4373 = vpack.c.b16 %v4325, %v4321
    %v4374 = vpack.c.b16 %v4326, %v4322
    %v4375 = vpack.c.b16 %v4331, %v4327
    %v4376 = vpack.c.b16 %v4332, %v4328
    %v4377 = vpack.c.b16 %v4333, %v4329
    %v4378 = vpack.c.b16 %v4334, %v4330
    %v4379 = vpack.c.b16 %v4339, %v4335
    %v4380 = vpack.c.b16 %v4340, %v4336
    %v4381 = vpack.c.b16 %v4341, %v4337
    %v4382 = vpack.c.b16 %v4342, %v4338
    %v4383 = vpack.c.b16 %v4347, %v4343
    %v4384 = vpack.c.b16 %v4348, %v4344
    %v4385 = vpack.c.b16 %v4349, %v4345
    %v4386 = vpack.c.b16 %v4350, %v4346
    %v4387 = vpack.c.b16 %v4355, %v4351
    %v4388 = vpack.c.b16 %v4356, %v4352
    %v4389 = vpack.c.b16 %v4357, %v4353
    %v4390 = vpack.c.b16 %v4358, %v4354
    %4423 = vmatpush.bf16.msra.mxu0 %v4387
    %4424 = vmatpush.bf16.msra.mxu0 %v4383
    %4425 = vmatpush.bf16.msra.mxu0 %v4379
    %4426 = vmatpush.bf16.msra.mxu0 %v4375
    %4427 = vmatpush.bf16.msra.mxu0 %v4371
    %4428 = vmatpush.bf16.msra.mxu0 %v4367
    %4429 = vmatpush.bf16.msra.mxu0 %v4363
    %4430 = vmatpush.bf16.msra.mxu0 %v4359
    %4431 = vmatmul.bf16.gmra.mxu0 %v4230
    %v4432 = vpop.f32.mrf.mxu0
    %v4433 = vadd.f32 0.0, %v4432
    %v4434 = vpop.f32.mrf.mxu0
    %4435 = vdwg.mxu0
    %4436 = vmatpush.bf16.msra.mxu0 %v4388
    %4437 = vmatpush.bf16.msra.mxu0 %v4384
    %4438 = vmatpush.bf16.msra.mxu0 %v4380
    %4439 = vmatpush.bf16.msra.mxu0 %v4376
    %4440 = vmatpush.bf16.msra.mxu0 %v4372
    %4441 = vmatpush.bf16.msra.mxu0 %v4368
    %4442 = vmatpush.bf16.msra.mxu0 %v4364
    %4443 = vmatpush.bf16.msra.mxu0 %v4360
    %4444 = vmatmul.bf16.gmra.mxu0 %v4230
    %v4445 = vpop.f32.mrf.mxu0
    %v4446 = vadd.f32 0.0, %v4445
    %v4447 = vpop.f32.mrf.mxu0
    %4448 = vdwg.mxu0
    %4449 = vmatpush.bf16.msra.mxu0 %v4389
    %4450 = vmatpush.bf16.msra.mxu0 %v4385
    %4451 = vmatpush.bf16.msra.mxu0 %v4381
    %4452 = vmatpush.bf16.msra.mxu0 %v4377
    %4453 = vmatpush.bf16.msra.mxu0 %v4373
    %4454 = vmatpush.bf16.msra.mxu0 %v4369
    %4455 = vmatpush.bf16.msra.mxu0 %v4365
    %4456 = vmatpush.bf16.msra.mxu0 %v4361
    %4457 = vmatmul.bf16.gmra.mxu0 %v4230
    %v4458 = vpop.f32.mrf.mxu0
    %v4459 = vadd.f32 0.0, %v4458
    %v4460 = vpop.f32.mrf.mxu0
    %4461 = vdwg.mxu0
    %4462 = vmatpush.bf16.msra.mxu0 %v4390
    %4463 = vmatpush.bf16.msra.mxu0 %v4386
    %4464 = vmatpush.bf16.msra.mxu0 %v4382
    %4465 = vmatpush.bf16.msra.mxu0 %v4378
    %4466 = vmatpush.bf16.msra.mxu0 %v4374
    %4467 = vmatpush.bf16.msra.mxu0 %v4370
    %4468 = vmatpush.bf16.msra.mxu0 %v4366
    %4469 = vmatpush.bf16.msra.mxu0 %v4362
    %4470 = vmatmul.bf16.gmra.mxu0 %v4230
    %v4471 = vpop.f32.mrf.mxu0
    %v4472 = vadd.f32 0.0, %v4471
    %v4473 = vpop.f32.mrf.mxu0
    %4474 = vdwg.mxu0
    %v4475 = vadd.f32 %v4226, %v4433
    %v4476 = vadd.f32 %v4227, %v4446
    %v4477 = vadd.f32 %v4228, %v4459
    %v4478 = vadd.f32 %v4229, %v4472
    %v4479 = vmul.f32 %v4475, 0.5
    %v4480 = vtanh.pop %v4479
    %v4481 = vmul.f32 %v4480, 0.5
    %v4482 = vadd.f32 %v4481, 0.5
    %v4483 = vmul.f32 %v4476, 0.5
    %v4484 = vtanh.pop %v4483
    %v4485 = vmul.f32 %v4484, 0.5
    %v4486 = vadd.f32 %v4485, 0.5
    %v4487 = vtanh.pop %v4477
    %v4488 = vmul.f32 %v4486, %v4218
    %v4489 = vmul.f32 %v4482, %v4487
    %v4490 = vadd.f32 %v4488, %v4489
    %v4491 = vmul.f32 %v4478, 0.5
    %v4492 = vtanh.pop %v4491
    %v4493 = vmul.f32 %v4492, 0.5
    %v4494 = vadd.f32 %v4493, 0.5
    %v4495 = vtanh.pop %v4490
    %v4496 = vmul.f32 %v4494, %v4495
    %4497 = vst [vmem:[#allocation3 + $0x28] sm:$0xff] %v4496
    %v4498 = vld [vmem:[#allocation2 + $0xc0] sm:$0xff]
    %v4499 = vld [vmem:[#allocation2 + $0xc8] sm:$0xff]
    %v4500 = vld [vmem:[#allocation2 + $0xd0] sm:$0xff]
    %v4501 = vld [vmem:[#allocation2 + $0xd8] sm:$0xff]
    %v4502 = vpack.c.bf16 %v4496, %v4496
    %v4503 = vld [vmem:[#allocation9] sm:$0xff]
    %v4504 = vld [vmem:[#allocation9 + $0x8] sm:$0xff]
    %v4505 = vld [vmem:[#allocation9 + $0x10] sm:$0xff]
    %v4506 = vld [vmem:[#allocation9 + $0x18] sm:$0xff]
    %v4507 = vld [vmem:[#allocation9 + $0x20] sm:$0xff]
    %v4508 = vld [vmem:[#allocation9 + $0x28] sm:$0xff]
    %v4509 = vld [vmem:[#allocation9 + $0x30] sm:$0xff]
    %v4510 = vld [vmem:[#allocation9 + $0x38] sm:$0xff]
    %v4511 = vld [vmem:[#allocation9 + $0x40] sm:$0xff]
    %v4512 = vld [vmem:[#allocation9 + $0x48] sm:$0xff]
    %v4513 = vld [vmem:[#allocation9 + $0x50] sm:$0xff]
    %v4514 = vld [vmem:[#allocation9 + $0x58] sm:$0xff]
    %v4515 = vld [vmem:[#allocation9 + $0x60] sm:$0xff]
    %v4516 = vld [vmem:[#allocation9 + $0x68] sm:$0xff]
    %v4517 = vld [vmem:[#allocation9 + $0x70] sm:$0xff]
    %v4518 = vld [vmem:[#allocation9 + $0x78] sm:$0xff]
    %v4519 = vld [vmem:[#allocation9 + $0x80] sm:$0xff]
    %v4520 = vld [vmem:[#allocation9 + $0x88] sm:$0xff]
    %v4521 = vld [vmem:[#allocation9 + $0x90] sm:$0xff]
    %v4522 = vld [vmem:[#allocation9 + $0x98] sm:$0xff]
    %v4523 = vld [vmem:[#allocation9 + $0xa0] sm:$0xff]
    %v4524 = vld [vmem:[#allocation9 + $0xa8] sm:$0xff]
    %v4525 = vld [vmem:[#allocation9 + $0xb0] sm:$0xff]
    %v4526 = vld [vmem:[#allocation9 + $0xb8] sm:$0xff]
    %v4527 = vld [vmem:[#allocation9 + $0xc0] sm:$0xff]
    %v4528 = vld [vmem:[#allocation9 + $0xc8] sm:$0xff]
    %v4529 = vld [vmem:[#allocation9 + $0xd0] sm:$0xff]
    %v4530 = vld [vmem:[#allocation9 + $0xd8] sm:$0xff]
    %v4531 = vld [vmem:[#allocation9 + $0xe0] sm:$0xff]
    %v4532 = vld [vmem:[#allocation9 + $0xe8] sm:$0xff]
    %v4533 = vld [vmem:[#allocation9 + $0xf0] sm:$0xff]
    %v4534 = vld [vmem:[#allocation9 + $0xf8] sm:$0xff]
    %v4567 = vunpack.c.l.b16 %v4503
    %v4568 = vunpack.c.h.b16 %v4503
    %v4569 = vunpack.c.l.b16 %v4504
    %v4570 = vunpack.c.h.b16 %v4504
    %v4571 = vunpack.c.l.b16 %v4505
    %v4572 = vunpack.c.h.b16 %v4505
    %v4573 = vunpack.c.l.b16 %v4506
    %v4574 = vunpack.c.h.b16 %v4506
    %v4575 = vunpack.c.l.b16 %v4507
    %v4576 = vunpack.c.h.b16 %v4507
    %v4577 = vunpack.c.l.b16 %v4508
    %v4578 = vunpack.c.h.b16 %v4508
    %v4579 = vunpack.c.l.b16 %v4509
    %v4580 = vunpack.c.h.b16 %v4509
    %v4581 = vunpack.c.l.b16 %v4510
    %v4582 = vunpack.c.h.b16 %v4510
    %v4583 = vunpack.c.l.b16 %v4511
    %v4584 = vunpack.c.h.b16 %v4511
    %v4585 = vunpack.c.l.b16 %v4512
    %v4586 = vunpack.c.h.b16 %v4512
    %v4587 = vunpack.c.l.b16 %v4513
    %v4588 = vunpack.c.h.b16 %v4513
    %v4589 = vunpack.c.l.b16 %v4514
    %v4590 = vunpack.c.h.b16 %v4514
    %v4591 = vunpack.c.l.b16 %v4515
    %v4592 = vunpack.c.h.b16 %v4515
    %v4593 = vunpack.c.l.b16 %v4516
    %v4594 = vunpack.c.h.b16 %v4516
    %v4595 = vunpack.c.l.b16 %v4517
    %v4596 = vunpack.c.h.b16 %v4517
    %v4597 = vunpack.c.l.b16 %v4518
    %v4598 = vunpack.c.h.b16 %v4518
    %v4599 = vunpack.c.l.b16 %v4519
    %v4600 = vunpack.c.h.b16 %v4519
    %v4601 = vunpack.c.l.b16 %v4520
    %v4602 = vunpack.c.h.b16 %v4520
    %v4603 = vunpack.c.l.b16 %v4521
    %v4604 = vunpack.c.h.b16 %v4521
    %v4605 = vunpack.c.l.b16 %v4522
    %v4606 = vunpack.c.h.b16 %v4522
    %v4607 = vunpack.c.l.b16 %v4523
    %v4608 = vunpack.c.h.b16 %v4523
    %v4609 = vunpack.c.l.b16 %v4524
    %v4610 = vunpack.c.h.b16 %v4524
    %v4611 = vunpack.c.l.b16 %v4525
    %v4612 = vunpack.c.h.b16 %v4525
    %v4613 = vunpack.c.l.b16 %v4526
    %v4614 = vunpack.c.h.b16 %v4526
    %v4615 = vunpack.c.l.b16 %v4527
    %v4616 = vunpack.c.h.b16 %v4527
    %v4617 = vunpack.c.l.b16 %v4528
    %v4618 = vunpack.c.h.b16 %v4528
    %v4619 = vunpack.c.l.b16 %v4529
    %v4620 = vunpack.c.h.b16 %v4529
    %v4621 = vunpack.c.l.b16 %v4530
    %v4622 = vunpack.c.h.b16 %v4530
    %v4623 = vunpack.c.l.b16 %v4531
    %v4624 = vunpack.c.h.b16 %v4531
    %v4625 = vunpack.c.l.b16 %v4532
    %v4626 = vunpack.c.h.b16 %v4532
    %v4627 = vunpack.c.l.b16 %v4533
    %v4628 = vunpack.c.h.b16 %v4533
    %v4629 = vunpack.c.l.b16 %v4534
    %v4630 = vunpack.c.h.b16 %v4534
    %v4631 = vpack.c.b16 %v4571, %v4567
    %v4632 = vpack.c.b16 %v4572, %v4568
    %v4633 = vpack.c.b16 %v4573, %v4569
    %v4634 = vpack.c.b16 %v4574, %v4570
    %v4635 = vpack.c.b16 %v4579, %v4575
    %v4636 = vpack.c.b16 %v4580, %v4576
    %v4637 = vpack.c.b16 %v4581, %v4577
    %v4638 = vpack.c.b16 %v4582, %v4578
    %v4639 = vpack.c.b16 %v4587, %v4583
    %v4640 = vpack.c.b16 %v4588, %v4584
    %v4641 = vpack.c.b16 %v4589, %v4585
    %v4642 = vpack.c.b16 %v4590, %v4586
    %v4643 = vpack.c.b16 %v4595, %v4591
    %v4644 = vpack.c.b16 %v4596, %v4592
    %v4645 = vpack.c.b16 %v4597, %v4593
    %v4646 = vpack.c.b16 %v4598, %v4594
    %v4647 = vpack.c.b16 %v4603, %v4599
    %v4648 = vpack.c.b16 %v4604, %v4600
    %v4649 = vpack.c.b16 %v4605, %v4601
    %v4650 = vpack.c.b16 %v4606, %v4602
    %v4651 = vpack.c.b16 %v4611, %v4607
    %v4652 = vpack.c.b16 %v4612, %v4608
    %v4653 = vpack.c.b16 %v4613, %v4609
    %v4654 = vpack.c.b16 %v4614, %v4610
    %v4655 = vpack.c.b16 %v4619, %v4615
    %v4656 = vpack.c.b16 %v4620, %v4616
    %v4657 = vpack.c.b16 %v4621, %v4617
    %v4658 = vpack.c.b16 %v4622, %v4618
    %v4659 = vpack.c.b16 %v4627, %v4623
    %v4660 = vpack.c.b16 %v4628, %v4624
    %v4661 = vpack.c.b16 %v4629, %v4625
    %v4662 = vpack.c.b16 %v4630, %v4626
    %4695 = vmatpush.bf16.msra.mxu0 %v4659
    %4696 = vmatpush.bf16.msra.mxu0 %v4655
    %4697 = vmatpush.bf16.msra.mxu0 %v4651
    %4698 = vmatpush.bf16.msra.mxu0 %v4647
    %4699 = vmatpush.bf16.msra.mxu0 %v4643
    %4700 = vmatpush.bf16.msra.mxu0 %v4639
    %4701 = vmatpush.bf16.msra.mxu0 %v4635
    %4702 = vmatpush.bf16.msra.mxu0 %v4631
    %4703 = vmatmul.bf16.gmra.mxu0 %v4502
    %v4704 = vpop.f32.mrf.mxu0
    %v4705 = vadd.f32 0.0, %v4704
    %v4706 = vpop.f32.mrf.mxu0
    %4707 = vdwg.mxu0
    %4708 = vmatpush.bf16.msra.mxu0 %v4660
    %4709 = vmatpush.bf16.msra.mxu0 %v4656
    %4710 = vmatpush.bf16.msra.mxu0 %v4652
    %4711 = vmatpush.bf16.msra.mxu0 %v4648
    %4712 = vmatpush.bf16.msra.mxu0 %v4644
    %4713 = vmatpush.bf16.msra.mxu0 %v4640
    %4714 = vmatpush.bf16.msra.mxu0 %v4636
    %4715 = vmatpush.bf16.msra.mxu0 %v4632
    %4716 = vmatmul.bf16.gmra.mxu0 %v4502
    %v4717 = vpop.f32.mrf.mxu0
    %v4718 = vadd.f32 0.0, %v4717
    %v4719 = vpop.f32.mrf.mxu0
    %4720 = vdwg.mxu0
    %4721 = vmatpush.bf16.msra.mxu0 %v4661
    %4722 = vmatpush.bf16.msra.mxu0 %v4657
    %4723 = vmatpush.bf16.msra.mxu0 %v4653
    %4724 = vmatpush.bf16.msra.mxu0 %v4649
    %4725 = vmatpush.bf16.msra.mxu0 %v4645
    %4726 = vmatpush.bf16.msra.mxu0 %v4641
    %4727 = vmatpush.bf16.msra.mxu0 %v4637
    %4728 = vmatpush.bf16.msra.mxu0 %v4633
    %4729 = vmatmul.bf16.gmra.mxu0 %v4502
    %v4730 = vpop.f32.mrf.mxu0
    %v4731 = vadd.f32 0.0, %v4730
    %v4732 = vpop.f32.mrf.mxu0
    %4733 = vdwg.mxu0
    %4734 = vmatpush.bf16.msra.mxu0 %v4662
    %4735 = vmatpush.bf16.msra.mxu0 %v4658
    %4736 = vmatpush.bf16.msra.mxu0 %v4654
    %4737 = vmatpush.bf16.msra.mxu0 %v4650
    %4738 = vmatpush.bf16.msra.mxu0 %v4646
    %4739 = vmatpush.bf16.msra.mxu0 %v4642
    %4740 = vmatpush.bf16.msra.mxu0 %v4638
    %4741 = vmatpush.bf16.msra.mxu0 %v4634
    %4742 = vmatmul.bf16.gmra.mxu0 %v4502
    %v4743 = vpop.f32.mrf.mxu0
    %v4744 = vadd.f32 0.0, %v4743
    %v4745 = vpop.f32.mrf.mxu0
    %4746 = vdwg.mxu0
    %v4747 = vadd.f32 %v4498, %v4705
    %v4748 = vadd.f32 %v4499, %v4718
    %v4749 = vadd.f32 %v4500, %v4731
    %v4750 = vadd.f32 %v4501, %v4744
    %v4751 = vmul.f32 %v4747, 0.5
    %v4752 = vtanh.pop %v4751
    %v4753 = vmul.f32 %v4752, 0.5
    %v4754 = vadd.f32 %v4753, 0.5
    %v4755 = vmul.f32 %v4748, 0.5
    %v4756 = vtanh.pop %v4755
    %v4757 = vmul.f32 %v4756, 0.5
    %v4758 = vadd.f32 %v4757, 0.5
    %v4759 = vtanh.pop %v4749
    %v4760 = vmul.f32 %v4758, %v4490
    %v4761 = vmul.f32 %v4754, %v4759
    %v4762 = vadd.f32 %v4760, %v4761
    %v4763 = vmul.f32 %v4750, 0.5
    %v4764 = vtanh.pop %v4763
    %v4765 = vmul.f32 %v4764, 0.5
    %v4766 = vadd.f32 %v4765, 0.5
    %v4767 = vtanh.pop %v4762
    %v4768 = vmul.f32 %v4766, %v4767
    %4769 = vst [vmem:[#allocation3 + $0x30] sm:$0xff] %v4768
    %v4770 = vld [vmem:[#allocation2 + $0xe0] sm:$0xff]
    %v4771 = vld [vmem:[#allocation2 + $0xe8] sm:$0xff]
    %v4772 = vld [vmem:[#allocation2 + $0xf0] sm:$0xff]
    %v4773 = vld [vmem:[#allocation2 + $0xf8] sm:$0xff]
    %v4774 = vpack.c.bf16 %v4768, %v4768
    %v4775 = vld [vmem:[#allocation9] sm:$0xff]
    %v4776 = vld [vmem:[#allocation9 + $0x8] sm:$0xff]
    %v4777 = vld [vmem:[#allocation9 + $0x10] sm:$0xff]
    %v4778 = vld [vmem:[#allocation9 + $0x18] sm:$0xff]
    %v4779 = vld [vmem:[#allocation9 + $0x20] sm:$0xff]
    %v4780 = vld [vmem:[#allocation9 + $0x28] sm:$0xff]
    %v4781 = vld [vmem:[#allocation9 + $0x30] sm:$0xff]
    %v4782 = vld [vmem:[#allocation9 + $0x38] sm:$0xff]
    %v4783 = vld [vmem:[#allocation9 + $0x40] sm:$0xff]
    %v4784 = vld [vmem:[#allocation9 + $0x48] sm:$0xff]
    %v4785 = vld [vmem:[#allocation9 + $0x50] sm:$0xff]
    %v4786 = vld [vmem:[#allocation9 + $0x58] sm:$0xff]
    %v4787 = vld [vmem:[#allocation9 + $0x60] sm:$0xff]
    %v4788 = vld [vmem:[#allocation9 + $0x68] sm:$0xff]
    %v4789 = vld [vmem:[#allocation9 + $0x70] sm:$0xff]
    %v4790 = vld [vmem:[#allocation9 + $0x78] sm:$0xff]
    %v4791 = vld [vmem:[#allocation9 + $0x80] sm:$0xff]
    %v4792 = vld [vmem:[#allocation9 + $0x88] sm:$0xff]
    %v4793 = vld [vmem:[#allocation9 + $0x90] sm:$0xff]
    %v4794 = vld [vmem:[#allocation9 + $0x98] sm:$0xff]
    %v4795 = vld [vmem:[#allocation9 + $0xa0] sm:$0xff]
    %v4796 = vld [vmem:[#allocation9 + $0xa8] sm:$0xff]
    %v4797 = vld [vmem:[#allocation9 + $0xb0] sm:$0xff]
    %v4798 = vld [vmem:[#allocation9 + $0xb8] sm:$0xff]
    %v4799 = vld [vmem:[#allocation9 + $0xc0] sm:$0xff]
    %v4800 = vld [vmem:[#allocation9 + $0xc8] sm:$0xff]
    %v4801 = vld [vmem:[#allocation9 + $0xd0] sm:$0xff]
    %v4802 = vld [vmem:[#allocation9 + $0xd8] sm:$0xff]
    %v4803 = vld [vmem:[#allocation9 + $0xe0] sm:$0xff]
    %v4804 = vld [vmem:[#allocation9 + $0xe8] sm:$0xff]
    %v4805 = vld [vmem:[#allocation9 + $0xf0] sm:$0xff]
    %v4806 = vld [vmem:[#allocation9 + $0xf8] sm:$0xff]
    %v4839 = vunpack.c.l.b16 %v4775
    %v4840 = vunpack.c.h.b16 %v4775
    %v4841 = vunpack.c.l.b16 %v4776
    %v4842 = vunpack.c.h.b16 %v4776
    %v4843 = vunpack.c.l.b16 %v4777
    %v4844 = vunpack.c.h.b16 %v4777
    %v4845 = vunpack.c.l.b16 %v4778
    %v4846 = vunpack.c.h.b16 %v4778
    %v4847 = vunpack.c.l.b16 %v4779
    %v4848 = vunpack.c.h.b16 %v4779
    %v4849 = vunpack.c.l.b16 %v4780
    %v4850 = vunpack.c.h.b16 %v4780
    %v4851 = vunpack.c.l.b16 %v4781
    %v4852 = vunpack.c.h.b16 %v4781
    %v4853 = vunpack.c.l.b16 %v4782
    %v4854 = vunpack.c.h.b16 %v4782
    %v4855 = vunpack.c.l.b16 %v4783
    %v4856 = vunpack.c.h.b16 %v4783
    %v4857 = vunpack.c.l.b16 %v4784
    %v4858 = vunpack.c.h.b16 %v4784
    %v4859 = vunpack.c.l.b16 %v4785
    %v4860 = vunpack.c.h.b16 %v4785
    %v4861 = vunpack.c.l.b16 %v4786
    %v4862 = vunpack.c.h.b16 %v4786
    %v4863 = vunpack.c.l.b16 %v4787
    %v4864 = vunpack.c.h.b16 %v4787
    %v4865 = vunpack.c.l.b16 %v4788
    %v4866 = vunpack.c.h.b16 %v4788
    %v4867 = vunpack.c.l.b16 %v4789
    %v4868 = vunpack.c.h.b16 %v4789
    %v4869 = vunpack.c.l.b16 %v4790
    %v4870 = vunpack.c.h.b16 %v4790
    %v4871 = vunpack.c.l.b16 %v4791
    %v4872 = vunpack.c.h.b16 %v4791
    %v4873 = vunpack.c.l.b16 %v4792
    %v4874 = vunpack.c.h.b16 %v4792
    %v4875 = vunpack.c.l.b16 %v4793
    %v4876 = vunpack.c.h.b16 %v4793
    %v4877 = vunpack.c.l.b16 %v4794
    %v4878 = vunpack.c.h.b16 %v4794
    %v4879 = vunpack.c.l.b16 %v4795
    %v4880 = vunpack.c.h.b16 %v4795
    %v4881 = vunpack.c.l.b16 %v4796
    %v4882 = vunpack.c.h.b16 %v4796
    %v4883 = vunpack.c.l.b16 %v4797
    %v4884 = vunpack.c.h.b16 %v4797
    %v4885 = vunpack.c.l.b16 %v4798
    %v4886 = vunpack.c.h.b16 %v4798
    %v4887 = vunpack.c.l.b16 %v4799
    %v4888 = vunpack.c.h.b16 %v4799
    %v4889 = vunpack.c.l.b16 %v4800
    %v4890 = vunpack.c.h.b16 %v4800
    %v4891 = vunpack.c.l.b16 %v4801
    %v4892 = vunpack.c.h.b16 %v4801
    %v4893 = vunpack.c.l.b16 %v4802
    %v4894 = vunpack.c.h.b16 %v4802
    %v4895 = vunpack.c.l.b16 %v4803
    %v4896 = vunpack.c.h.b16 %v4803
    %v4897 = vunpack.c.l.b16 %v4804
    %v4898 = vunpack.c.h.b16 %v4804
    %v4899 = vunpack.c.l.b16 %v4805
    %v4900 = vunpack.c.h.b16 %v4805
    %v4901 = vunpack.c.l.b16 %v4806
    %v4902 = vunpack.c.h.b16 %v4806
    %v4903 = vpack.c.b16 %v4843, %v4839
    %v4904 = vpack.c.b16 %v4844, %v4840
    %v4905 = vpack.c.b16 %v4845, %v4841
    %v4906 = vpack.c.b16 %v4846, %v4842
    %v4907 = vpack.c.b16 %v4851, %v4847
    %v4908 = vpack.c.b16 %v4852, %v4848
    %v4909 = vpack.c.b16 %v4853, %v4849
    %v4910 = vpack.c.b16 %v4854, %v4850
    %v4911 = vpack.c.b16 %v4859, %v4855
    %v4912 = vpack.c.b16 %v4860, %v4856
    %v4913 = vpack.c.b16 %v4861, %v4857
    %v4914 = vpack.c.b16 %v4862, %v4858
    %v4915 = vpack.c.b16 %v4867, %v4863
    %v4916 = vpack.c.b16 %v4868, %v4864
    %v4917 = vpack.c.b16 %v4869, %v4865
    %v4918 = vpack.c.b16 %v4870, %v4866
    %v4919 = vpack.c.b16 %v4875, %v4871
    %v4920 = vpack.c.b16 %v4876, %v4872
    %v4921 = vpack.c.b16 %v4877, %v4873
    %v4922 = vpack.c.b16 %v4878, %v4874
    %v4923 = vpack.c.b16 %v4883, %v4879
    %v4924 = vpack.c.b16 %v4884, %v4880
    %v4925 = vpack.c.b16 %v4885, %v4881
    %v4926 = vpack.c.b16 %v4886, %v4882
    %v4927 = vpack.c.b16 %v4891, %v4887
    %v4928 = vpack.c.b16 %v4892, %v4888
    %v4929 = vpack.c.b16 %v4893, %v4889
    %v4930 = vpack.c.b16 %v4894, %v4890
    %v4931 = vpack.c.b16 %v4899, %v4895
    %v4932 = vpack.c.b16 %v4900, %v4896
    %v4933 = vpack.c.b16 %v4901, %v4897
    %v4934 = vpack.c.b16 %v4902, %v4898
    %4967 = vmatpush.bf16.msra.mxu0 %v4931
    %4968 = vmatpush.bf16.msra.mxu0 %v4927
    %4969 = vmatpush.bf16.msra.mxu0 %v4923
    %4970 = vmatpush.bf16.msra.mxu0 %v4919
    %4971 = vmatpush.bf16.msra.mxu0 %v4915
    %4972 = vmatpush.bf16.msra.mxu0 %v4911
    %4973 = vmatpush.bf16.msra.mxu0 %v4907
    %4974 = vmatpush.bf16.msra.mxu0 %v4903
    %4975 = vmatmul.bf16.gmra.mxu0 %v4774
    %v4976 = vpop.f32.mrf.mxu0
    %v4977 = vadd.f32 0.0, %v4976
    %v4978 = vpop.f32.mrf.mxu0
    %4979 = vdwg.mxu0
    %4980 = vmatpush.bf16.msra.mxu0 %v4932
    %4981 = vmatpush.bf16.msra.mxu0 %v4928
    %4982 = vmatpush.bf16.msra.mxu0 %v4924
    %4983 = vmatpush.bf16.msra.mxu0 %v4920
    %4984 = vmatpush.bf16.msra.mxu0 %v4916
    %4985 = vmatpush.bf16.msra.mxu0 %v4912
    %4986 = vmatpush.bf16.msra.mxu0 %v4908
    %4987 = vmatpush.bf16.msra.mxu0 %v4904
    %4988 = vmatmul.bf16.gmra.mxu0 %v4774
    %v4989 = vpop.f32.mrf.mxu0
    %v4990 = vadd.f32 0.0, %v4989
    %v4991 = vpop.f32.mrf.mxu0
    %4992 = vdwg.mxu0
    %4993 = vmatpush.bf16.msra.mxu0 %v4933
    %4994 = vmatpush.bf16.msra.mxu0 %v4929
    %4995 = vmatpush.bf16.msra.mxu0 %v4925
    %4996 = vmatpush.bf16.msra.mxu0 %v4921
    %4997 = vmatpush.bf16.msra.mxu0 %v4917
    %4998 = vmatpush.bf16.msra.mxu0 %v4913
    %4999 = vmatpush.bf16.msra.mxu0 %v4909
    %5000 = vmatpush.bf16.msra.mxu0 %v4905
    %5001 = vmatmul.bf16.gmra.mxu0 %v4774
    %v5002 = vpop.f32.mrf.mxu0
    %v5003 = vadd.f32 0.0, %v5002
    %v5004 = vpop.f32.mrf.mxu0
    %5005 = vdwg.mxu0
    %5006 = vmatpush.bf16.msra.mxu0 %v4934
    %5007 = vmatpush.bf16.msra.mxu0 %v4930
    %5008 = vmatpush.bf16.msra.mxu0 %v4926
    %5009 = vmatpush.bf16.msra.mxu0 %v4922
    %5010 = vmatpush.bf16.msra.mxu0 %v4918
    %5011 = vmatpush.bf16.msra.mxu0 %v4914
    %5012 = vmatpush.bf16.msra.mxu0 %v4910
    %5013 = vmatpush.bf16.msra.mxu0 %v4906
    %5014 = vmatmul.bf16.gmra.mxu0 %v4774
    %v5015 = vpop.f32.mrf.mxu0
    %v5016 = vadd.f32 0.0, %v5015
    %v5017 = vpop.f32.mrf.mxu0
    %5018 = vdwg.mxu0
    %v5019 = vadd.f32 %v4770, %v4977
    %v5020 = vadd.f32 %v4771, %v4990
    %v5021 = vadd.f32 %v4772, %v5003
    %v5022 = vadd.f32 %v4773, %v5016
    %v5023 = vmul.f32 %v5019, 0.5
    %v5024 = vtanh.pop %v5023
    %v5025 = vmul.f32 %v5024, 0.5
    %v5026 = vadd.f32 %v5025, 0.5
    %v5027 = vmul.f32 %v5020, 0.5
    %v5028 = vtanh.pop %v5027
    %v5029 = vmul.f32 %v5028, 0.5
    %v5030 = vadd.f32 %v5029, 0.5
    %v5031 = vtanh.pop %v5021
    %v5032 = vmul.f32 %v5030, %v4762
    %v5033 = vmul.f32 %v5026, %v5031
    %v5034 = vadd.f32 %v5032, %v5033
    %v5035 = vmul.f32 %v5022, 0.5
    %v5036 = vtanh.pop %v5035
    %v5037 = vmul.f32 %v5036, 0.5
    %v5038 = vadd.f32 %v5037, 0.5
    %v5039 = vtanh.pop %v5034
    %v5040 = vmul.f32 %v5038, %v5039
    %5041 = vst [vmem:[#allocation3 + $0x38] sm:$0xff] %v5040
    %v5042 = vld [vmem:[#allocation3] sm:$0xff]
    %v5043 = vld [vmem:[#allocation3 + $0x8] sm:$0xff]
    %v5044 = vld [vmem:[#allocation3 + $0x10] sm:$0xff]
    %v5045 = vld [vmem:[#allocation3 + $0x18] sm:$0xff]
    %v5046 = vld [vmem:[#allocation3 + $0x20] sm:$0xff]
    %v5047 = vld [vmem:[#allocation3 + $0x28] sm:$0xff]
    %v5048 = vld [vmem:[#allocation3 + $0x30] sm:$0xff]
    %v5049 = vld [vmem:[#allocation3 + $0x38] sm:$0xff]
    %v5050 = vpack.c.bf16 %v5043, %v5042
    %v5051 = vpack.c.bf16 %v5045, %v5044
    %v5052 = vpack.c.bf16 %v5047, %v5046
    %v5053 = vpack.c.bf16 %v5049, %v5048
    %v5054 = vld [vmem:[#allocation10] sm:$0xff]
    %v5055 = vld [vmem:[#allocation10 + $0x8] sm:$0xff]
    %v5056 = vld [vmem:[#allocation10 + $0x10] sm:$0xff]
    %v5057 = vld [vmem:[#allocation10 + $0x18] sm:$0xff]
    %v5058 = vld [vmem:[#allocation10 + $0x20] sm:$0xff]
    %v5059 = vld [vmem:[#allocation10 + $0x28] sm:$0xff]
    %v5060 = vld [vmem:[#allocation10 + $0x30] sm:$0xff]
    %v5061 = vld [vmem:[#allocation10 + $0x38] sm:$0xff]
    %v5062 = vld [vmem:[#allocation10 + $0x40] sm:$0xff]
    %v5063 = vld [vmem:[#allocation10 + $0x48] sm:$0xff]
    %v5064 = vld [vmem:[#allocation10 + $0x50] sm:$0xff]
    %v5065 = vld [vmem:[#allocation10 + $0x58] sm:$0xff]
    %v5066 = vld [vmem:[#allocation10 + $0x60] sm:$0xff]
    %v5067 = vld [vmem:[#allocation10 + $0x68] sm:$0xff]
    %v5068 = vld [vmem:[#allocation10 + $0x70] sm:$0xff]
    %v5069 = vld [vmem:[#allocation10 + $0x78] sm:$0xff]
    %v5070 = vld [vmem:[#allocation10 + $0x80] sm:$0xff]
    %v5071 = vld [vmem:[#allocation10 + $0x88] sm:$0xff]
    %v5072 = vld [vmem:[#allocation10 + $0x90] sm:$0xff]
    %v5073 = vld [vmem:[#allocation10 + $0x98] sm:$0xff]
    %v5074 = vld [vmem:[#allocation10 + $0xa0] sm:$0xff]
    %v5075 = vld [vmem:[#allocation10 + $0xa8] sm:$0xff]
    %v5076 = vld [vmem:[#allocation10 + $0xb0] sm:$0xff]
    %v5077 = vld [vmem:[#allocation10 + $0xb8] sm:$0xff]
    %v5078 = vld [vmem:[#allocation10 + $0xc0] sm:$0xff]
    %v5079 = vld [vmem:[#allocation10 + $0xc8] sm:$0xff]
    %v5080 = vld [vmem:[#allocation10 + $0xd0] sm:$0xff]
    %v5081 = vld [vmem:[#allocation10 + $0xd8] sm:$0xff]
    %v5082 = vld [vmem:[#allocation10 + $0xe0] sm:$0xff]
    %v5083 = vld [vmem:[#allocation10 + $0xe8] sm:$0xff]
    %v5084 = vld [vmem:[#allocation10 + $0xf0] sm:$0xff]
    %v5085 = vld [vmem:[#allocation10 + $0xf8] sm:$0xff]
    %v5086 = vld [vmem:[%s9] sm:$0xf]
    %v5088 = vperm.slane %v5086, 0
    %v5089 = vperm.slane %v5086, 1
    %v5090 = vperm.slane %v5086, 2
    %v5091 = vperm.slane %v5086, 3
    %v5128 = vunpack.c.l.b16 %v5054
    %v5129 = vunpack.c.h.b16 %v5054
    %v5130 = vunpack.c.l.b16 %v5055
    %v5131 = vunpack.c.h.b16 %v5055
    %v5132 = vunpack.c.l.b16 %v5056
    %v5133 = vunpack.c.h.b16 %v5056
    %v5134 = vunpack.c.l.b16 %v5057
    %v5135 = vunpack.c.h.b16 %v5057
    %v5136 = vunpack.c.l.b16 %v5058
    %v5137 = vunpack.c.h.b16 %v5058
    %v5138 = vunpack.c.l.b16 %v5059
    %v5139 = vunpack.c.h.b16 %v5059
    %v5140 = vunpack.c.l.b16 %v5060
    %v5141 = vunpack.c.h.b16 %v5060
    %v5142 = vunpack.c.l.b16 %v5061
    %v5143 = vunpack.c.h.b16 %v5061
    %v5144 = vunpack.c.l.b16 %v5062
    %v5145 = vunpack.c.h.b16 %v5062
    %v5146 = vunpack.c.l.b16 %v5063
    %v5147 = vunpack.c.h.b16 %v5063
    %v5148 = vunpack.c.l.b16 %v5064
    %v5149 = vunpack.c.h.b16 %v5064
    %v5150 = vunpack.c.l.b16 %v5065
    %v5151 = vunpack.c.h.b16 %v5065
    %v5152 = vunpack.c.l.b16 %v5066
    %v5153 = vunpack.c.h.b16 %v5066
    %v5154 = vunpack.c.l.b16 %v5067
    %v5155 = vunpack.c.h.b16 %v5067
    %v5156 = vunpack.c.l.b16 %v5068
    %v5157 = vunpack.c.h.b16 %v5068
    %v5158 = vunpack.c.l.b16 %v5069
    %v5159 = vunpack.c.h.b16 %v5069
    %v5160 = vunpack.c.l.b16 %v5070
    %v5161 = vunpack.c.h.b16 %v5070
    %v5162 = vunpack.c.l.b16 %v5071
    %v5163 = vunpack.c.h.b16 %v5071
    %v5164 = vunpack.c.l.b16 %v5072
    %v5165 = vunpack.c.h.b16 %v5072
    %v5166 = vunpack.c.l.b16 %v5073
    %v5167 = vunpack.c.h.b16 %v5073
    %v5168 = vunpack.c.l.b16 %v5074
    %v5169 = vunpack.c.h.b16 %v5074
    %v5170 = vunpack.c.l.b16 %v5075
    %v5171 = vunpack.c.h.b16 %v5075
    %v5172 = vunpack.c.l.b16 %v5076
    %v5173 = vunpack.c.h.b16 %v5076
    %v5174 = vunpack.c.l.b16 %v5077
    %v5175 = vunpack.c.h.b16 %v5077
    %v5176 = vunpack.c.l.b16 %v5078
    %v5177 = vunpack.c.h.b16 %v5078
    %v5178 = vunpack.c.l.b16 %v5079
    %v5179 = vunpack.c.h.b16 %v5079
    %v5180 = vunpack.c.l.b16 %v5080
    %v5181 = vunpack.c.h.b16 %v5080
    %v5182 = vunpack.c.l.b16 %v5081
    %v5183 = vunpack.c.h.b16 %v5081
    %v5184 = vunpack.c.l.b16 %v5082
    %v5185 = vunpack.c.h.b16 %v5082
    %v5186 = vunpack.c.l.b16 %v5083
    %v5187 = vunpack.c.h.b16 %v5083
    %v5188 = vunpack.c.l.b16 %v5084
    %v5189 = vunpack.c.h.b16 %v5084
    %v5190 = vunpack.c.l.b16 %v5085
    %v5191 = vunpack.c.h.b16 %v5085
    %v5192 = vpack.c.b16 %v5132, %v5128
    %v5193 = vpack.c.b16 %v5133, %v5129
    %v5194 = vpack.c.b16 %v5134, %v5130
    %v5195 = vpack.c.b16 %v5135, %v5131
    %v5196 = vpack.c.b16 %v5140, %v5136
    %v5197 = vpack.c.b16 %v5141, %v5137
    %v5198 = vpack.c.b16 %v5142, %v5138
    %v5199 = vpack.c.b16 %v5143, %v5139
    %v5200 = vpack.c.b16 %v5148, %v5144
    %v5201 = vpack.c.b16 %v5149, %v5145
    %v5202 = vpack.c.b16 %v5150, %v5146
    %v5203 = vpack.c.b16 %v5151, %v5147
    %v5204 = vpack.c.b16 %v5156, %v5152
    %v5205 = vpack.c.b16 %v5157, %v5153
    %v5206 = vpack.c.b16 %v5158, %v5154
    %v5207 = vpack.c.b16 %v5159, %v5155
    %v5208 = vpack.c.b16 %v5164, %v5160
    %v5209 = vpack.c.b16 %v5165, %v5161
    %v5210 = vpack.c.b16 %v5166, %v5162
    %v5211 = vpack.c.b16 %v5167, %v5163
    %v5212 = vpack.c.b16 %v5172, %v5168
    %v5213 = vpack.c.b16 %v5173, %v5169
    %v5214 = vpack.c.b16 %v5174, %v5170
    %v5215 = vpack.c.b16 %v5175, %v5171
    %v5216 = vpack.c.b16 %v5180, %v5176
    %v5217 = vpack.c.b16 %v5181, %v5177
    %v5218 = vpack.c.b16 %v5182, %v5178
    %v5219 = vpack.c.b16 %v5183, %v5179
    %v5220 = vpack.c.b16 %v5188, %v5184
    %v5221 = vpack.c.b16 %v5189, %v5185
    %v5222 = vpack.c.b16 %v5190, %v5186
    %v5223 = vpack.c.b16 %v5191, %v5187
    %5256 = vmatpush.bf16.msra.mxu0 %v5220
    %5257 = vmatpush.bf16.msra.mxu0 %v5216
    %5258 = vmatpush.bf16.msra.mxu0 %v5212
    %5259 = vmatpush.bf16.msra.mxu0 %v5208
    %5260 = vmatpush.bf16.msra.mxu0 %v5204
    %5261 = vmatpush.bf16.msra.mxu0 %v5200
    %5262 = vmatpush.bf16.msra.mxu0 %v5196
    %5263 = vmatpush.bf16.msra.mxu0 %v5192
    %5264 = vmatmul.bf16.gmra.mxu0 %v5050
    %v5265 = vpop.f32.mrf.mxu0
    %v5266 = vadd.f32 %v5088, %v5265
    %v5267 = vpop.f32.mrf.mxu0
    %v5268 = vadd.f32 %v5088, %v5267
    %5269 = vmatmul.bf16.gmra.mxu0 %v5051
    %v5270 = vpop.f32.mrf.mxu0
    %v5271 = vadd.f32 %v5088, %v5270
    %v5272 = vpop.f32.mrf.mxu0
    %v5273 = vadd.f32 %v5088, %v5272
    %5274 = vmatmul.bf16.gmra.mxu0 %v5052
    %v5275 = vpop.f32.mrf.mxu0
    %v5276 = vadd.f32 %v5088, %v5275
    %v5277 = vpop.f32.mrf.mxu0
    %v5278 = vadd.f32 %v5088, %v5277
    %5279 = vmatmul.bf16.gmra.mxu0 %v5053
    %v5280 = vpop.f32.mrf.mxu0
    %v5281 = vadd.f32 %v5088, %v5280
    %v5282 = vpop.f32.mrf.mxu0
    %v5283 = vadd.f32 %v5088, %v5282
    %5284 = vdwg.mxu0
    %5285 = vmatpush.bf16.msra.mxu0 %v5221
    %5286 = vmatpush.bf16.msra.mxu0 %v5217
    %5287 = vmatpush.bf16.msra.mxu0 %v5213
    %5288 = vmatpush.bf16.msra.mxu0 %v5209
    %5289 = vmatpush.bf16.msra.mxu0 %v5205
    %5290 = vmatpush.bf16.msra.mxu0 %v5201
    %5291 = vmatpush.bf16.msra.mxu0 %v5197
    %5292 = vmatpush.bf16.msra.mxu0 %v5193
    %5293 = vmatmul.bf16.gmra.mxu0 %v5050
    %v5294 = vpop.f32.mrf.mxu0
    %v5295 = vadd.f32 %v5089, %v5294
    %v5296 = vpop.f32.mrf.mxu0
    %v5297 = vadd.f32 %v5089, %v5296
    %5298 = vmatmul.bf16.gmra.mxu0 %v5051
    %v5299 = vpop.f32.mrf.mxu0
    %v5300 = vadd.f32 %v5089, %v5299
    %v5301 = vpop.f32.mrf.mxu0
    %v5302 = vadd.f32 %v5089, %v5301
    %5303 = vmatmul.bf16.gmra.mxu0 %v5052
    %v5304 = vpop.f32.mrf.mxu0
    %v5305 = vadd.f32 %v5089, %v5304
    %v5306 = vpop.f32.mrf.mxu0
    %v5307 = vadd.f32 %v5089, %v5306
    %5308 = vmatmul.bf16.gmra.mxu0 %v5053
    %v5309 = vpop.f32.mrf.mxu0
    %v5310 = vadd.f32 %v5089, %v5309
    %v5311 = vpop.f32.mrf.mxu0
    %v5312 = vadd.f32 %v5089, %v5311
    %5313 = vdwg.mxu0
    %5314 = vmatpush.bf16.msra.mxu0 %v5222
    %5315 = vmatpush.bf16.msra.mxu0 %v5218
    %5316 = vmatpush.bf16.msra.mxu0 %v5214
    %5317 = vmatpush.bf16.msra.mxu0 %v5210
    %5318 = vmatpush.bf16.msra.mxu0 %v5206
    %5319 = vmatpush.bf16.msra.mxu0 %v5202
    %5320 = vmatpush.bf16.msra.mxu0 %v5198
    %5321 = vmatpush.bf16.msra.mxu0 %v5194
    %5322 = vmatmul.bf16.gmra.mxu0 %v5050
    %v5323 = vpop.f32.mrf.mxu0
    %v5324 = vadd.f32 %v5090, %v5323
    %v5325 = vpop.f32.mrf.mxu0
    %v5326 = vadd.f32 %v5090, %v5325
    %5327 = vmatmul.bf16.gmra.mxu0 %v5051
    %v5328 = vpop.f32.mrf.mxu0
    %v5329 = vadd.f32 %v5090, %v5328
    %v5330 = vpop.f32.mrf.mxu0
    %v5331 = vadd.f32 %v5090, %v5330
    %5332 = vmatmul.bf16.gmra.mxu0 %v5052
    %v5333 = vpop.f32.mrf.mxu0
    %v5334 = vadd.f32 %v5090, %v5333
    %v5335 = vpop.f32.mrf.mxu0
    %v5336 = vadd.f32 %v5090, %v5335
    %5337 = vmatmul.bf16.gmra.mxu0 %v5053
    %v5338 = vpop.f32.mrf.mxu0
    %v5339 = vadd.f32 %v5090, %v5338
    %v5340 = vpop.f32.mrf.mxu0
    %v5341 = vadd.f32 %v5090, %v5340
    %5342 = vdwg.mxu0
    %5343 = vmatpush.bf16.msra.mxu0 %v5223
    %5344 = vmatpush.bf16.msra.mxu0 %v5219
    %5345 = vmatpush.bf16.msra.mxu0 %v5215
    %5346 = vmatpush.bf16.msra.mxu0 %v5211
    %5347 = vmatpush.bf16.msra.mxu0 %v5207
    %5348 = vmatpush.bf16.msra.mxu0 %v5203
    %5349 = vmatpush.bf16.msra.mxu0 %v5199
    %5350 = vmatpush.bf16.msra.mxu0 %v5195
    %5351 = vmatmul.bf16.gmra.mxu0 %v5050
    %v5352 = vpop.f32.mrf.mxu0
    %v5353 = vadd.f32 %v5091, %v5352
    %v5354 = vpop.f32.mrf.mxu0
    %v5355 = vadd.f32 %v5091, %v5354
    %5356 = vmatmul.bf16.gmra.mxu0 %v5051
    %v5357 = vpop.f32.mrf.mxu0
    %v5358 = vadd.f32 %v5091, %v5357
    %v5359 = vpop.f32.mrf.mxu0
    %v5360 = vadd.f32 %v5091, %v5359
    %5361 = vmatmul.bf16.gmra.mxu0 %v5052
    %v5362 = vpop.f32.mrf.mxu0
    %v5363 = vadd.f32 %v5091, %v5362
    %v5364 = vpop.f32.mrf.mxu0
    %v5365 = vadd.f32 %v5091, %v5364
    %5366 = vmatmul.bf16.gmra.mxu0 %v5053
    %v5367 = vpop.f32.mrf.mxu0
    %v5368 = vadd.f32 %v5091, %v5367
    %v5369 = vpop.f32.mrf.mxu0
    %v5370 = vadd.f32 %v5091, %v5369
    %5371 = vdwg.mxu0
    %5372 = vst [vmem:[#allocation2] sm:$0xff] %v5266
    %5373 = vst [vmem:[#allocation2 + $0x8] sm:$0xff] %v5295
    %5374 = vst [vmem:[#allocation2 + $0x10] sm:$0xff] %v5324
    %5375 = vst [vmem:[#allocation2 + $0x18] sm:$0xff] %v5353
    %5376 = vst [vmem:[#allocation2 + $0x20] sm:$0xff] %v5268
    %5377 = vst [vmem:[#allocation2 + $0x28] sm:$0xff] %v5297
    %5378 = vst [vmem:[#allocation2 + $0x30] sm:$0xff] %v5326
    %5379 = vst [vmem:[#allocation2 + $0x38] sm:$0xff] %v5355
    %5380 = vst [vmem:[#allocation2 + $0x40] sm:$0xff] %v5271
    %5381 = vst [vmem:[#allocation2 + $0x48] sm:$0xff] %v5300
    %5382 = vst [vmem:[#allocation2 + $0x50] sm:$0xff] %v5329
    %5383 = vst [vmem:[#allocation2 + $0x58] sm:$0xff] %v5358
    %5384 = vst [vmem:[#allocation2 + $0x60] sm:$0xff] %v5273
    %5385 = vst [vmem:[#allocation2 + $0x68] sm:$0xff] %v5302
    %5386 = vst [vmem:[#allocation2 + $0x70] sm:$0xff] %v5331
    %5387 = vst [vmem:[#allocation2 + $0x78] sm:$0xff] %v5360
    %5388 = vst [vmem:[#allocation2 + $0x80] sm:$0xff] %v5276
    %5389 = vst [vmem:[#allocation2 + $0x88] sm:$0xff] %v5305
    %5390 = vst [vmem:[#allocation2 + $0x90] sm:$0xff] %v5334
    %5391 = vst [vmem:[#allocation2 + $0x98] sm:$0xff] %v5363
    %5392 = vst [vmem:[#allocation2 + $0xa0] sm:$0xff] %v5278
    %5393 = vst [vmem:[#allocation2 + $0xa8] sm:$0xff] %v5307
    %5394 = vst [vmem:[#allocation2 + $0xb0] sm:$0xff] %v5336
    %5395 = vst [vmem:[#allocation2 + $0xb8] sm:$0xff] %v5365
    %5396 = vst [vmem:[#allocation2 + $0xc0] sm:$0xff] %v5281
    %5397 = vst [vmem:[#allocation2 + $0xc8] sm:$0xff] %v5310
    %5398 = vst [vmem:[#allocation2 + $0xd0] sm:$0xff] %v5339
    %5399 = vst [vmem:[#allocation2 + $0xd8] sm:$0xff] %v5368
    %5400 = vst [vmem:[#allocation2 + $0xe0] sm:$0xff] %v5283
    %5401 = vst [vmem:[#allocation2 + $0xe8] sm:$0xff] %v5312
    %5402 = vst [vmem:[#allocation2 + $0xf0] sm:$0xff] %v5341
    %5403 = vst [vmem:[#allocation2 + $0xf8] sm:$0xff] %v5370
    %v5404 = vld [vmem:[#allocation2] sm:$0xff]
    %v5405 = vld [vmem:[#allocation2 + $0x8] sm:$0xff]
    %v5406 = vld [vmem:[#allocation2 + $0x10] sm:$0xff]
    %v5407 = vld [vmem:[#allocation2 + $0x18] sm:$0xff]
    %v5408 = vld [vmem:[#allocation12] sm:$0xff]
    %v5409 = vld [vmem:[#allocation12 + $0x8] sm:$0xff]
    %v5410 = vld [vmem:[#allocation12 + $0x10] sm:$0xff]
    %v5411 = vld [vmem:[#allocation12 + $0x18] sm:$0xff]
    %v5412 = vld [vmem:[#allocation12 + $0x20] sm:$0xff]
    %v5413 = vld [vmem:[#allocation12 + $0x28] sm:$0xff]
    %v5414 = vld [vmem:[#allocation12 + $0x30] sm:$0xff]
    %v5415 = vld [vmem:[#allocation12 + $0x38] sm:$0xff]
    %v5416 = vld [vmem:[#allocation12 + $0x40] sm:$0xff]
    %v5417 = vld [vmem:[#allocation12 + $0x48] sm:$0xff]
    %v5418 = vld [vmem:[#allocation12 + $0x50] sm:$0xff]
    %v5419 = vld [vmem:[#allocation12 + $0x58] sm:$0xff]
    %v5420 = vld [vmem:[#allocation12 + $0x60] sm:$0xff]
    %v5421 = vld [vmem:[#allocation12 + $0x68] sm:$0xff]
    %v5422 = vld [vmem:[#allocation12 + $0x70] sm:$0xff]
    %v5423 = vld [vmem:[#allocation12 + $0x78] sm:$0xff]
    %v5424 = vld [vmem:[#allocation12 + $0x80] sm:$0xff]
    %v5425 = vld [vmem:[#allocation12 + $0x88] sm:$0xff]
    %v5426 = vld [vmem:[#allocation12 + $0x90] sm:$0xff]
    %v5427 = vld [vmem:[#allocation12 + $0x98] sm:$0xff]
    %v5428 = vld [vmem:[#allocation12 + $0xa0] sm:$0xff]
    %v5429 = vld [vmem:[#allocation12 + $0xa8] sm:$0xff]
    %v5430 = vld [vmem:[#allocation12 + $0xb0] sm:$0xff]
    %v5431 = vld [vmem:[#allocation12 + $0xb8] sm:$0xff]
    %v5432 = vld [vmem:[#allocation12 + $0xc0] sm:$0xff]
    %v5433 = vld [vmem:[#allocation12 + $0xc8] sm:$0xff]
    %v5434 = vld [vmem:[#allocation12 + $0xd0] sm:$0xff]
    %v5435 = vld [vmem:[#allocation12 + $0xd8] sm:$0xff]
    %v5436 = vld [vmem:[#allocation12 + $0xe0] sm:$0xff]
    %v5437 = vld [vmem:[#allocation12 + $0xe8] sm:$0xff]
    %v5438 = vld [vmem:[#allocation12 + $0xf0] sm:$0xff]
    %v5439 = vld [vmem:[#allocation12 + $0xf8] sm:$0xff]
    %v5472 = vunpack.c.l.b16 %v5408
    %v5473 = vunpack.c.h.b16 %v5408
    %v5474 = vunpack.c.l.b16 %v5409
    %v5475 = vunpack.c.h.b16 %v5409
    %v5476 = vunpack.c.l.b16 %v5410
    %v5477 = vunpack.c.h.b16 %v5410
    %v5478 = vunpack.c.l.b16 %v5411
    %v5479 = vunpack.c.h.b16 %v5411
    %v5480 = vunpack.c.l.b16 %v5412
    %v5481 = vunpack.c.h.b16 %v5412
    %v5482 = vunpack.c.l.b16 %v5413
    %v5483 = vunpack.c.h.b16 %v5413
    %v5484 = vunpack.c.l.b16 %v5414
    %v5485 = vunpack.c.h.b16 %v5414
    %v5486 = vunpack.c.l.b16 %v5415
    %v5487 = vunpack.c.h.b16 %v5415
    %v5488 = vunpack.c.l.b16 %v5416
    %v5489 = vunpack.c.h.b16 %v5416
    %v5490 = vunpack.c.l.b16 %v5417
    %v5491 = vunpack.c.h.b16 %v5417
    %v5492 = vunpack.c.l.b16 %v5418
    %v5493 = vunpack.c.h.b16 %v5418
    %v5494 = vunpack.c.l.b16 %v5419
    %v5495 = vunpack.c.h.b16 %v5419
    %v5496 = vunpack.c.l.b16 %v5420
    %v5497 = vunpack.c.h.b16 %v5420
    %v5498 = vunpack.c.l.b16 %v5421
    %v5499 = vunpack.c.h.b16 %v5421
    %v5500 = vunpack.c.l.b16 %v5422
    %v5501 = vunpack.c.h.b16 %v5422
    %v5502 = vunpack.c.l.b16 %v5423
    %v5503 = vunpack.c.h.b16 %v5423
    %v5504 = vunpack.c.l.b16 %v5424
    %v5505 = vunpack.c.h.b16 %v5424
    %v5506 = vunpack.c.l.b16 %v5425
    %v5507 = vunpack.c.h.b16 %v5425
    %v5508 = vunpack.c.l.b16 %v5426
    %v5509 = vunpack.c.h.b16 %v5426
    %v5510 = vunpack.c.l.b16 %v5427
    %v5511 = vunpack.c.h.b16 %v5427
    %v5512 = vunpack.c.l.b16 %v5428
    %v5513 = vunpack.c.h.b16 %v5428
    %v5514 = vunpack.c.l.b16 %v5429
    %v5515 = vunpack.c.h.b16 %v5429
    %v5516 = vunpack.c.l.b16 %v5430
    %v5517 = vunpack.c.h.b16 %v5430
    %v5518 = vunpack.c.l.b16 %v5431
    %v5519 = vunpack.c.h.b16 %v5431
    %v5520 = vunpack.c.l.b16 %v5432
    %v5521 = vunpack.c.h.b16 %v5432
    %v5522 = vunpack.c.l.b16 %v5433
    %v5523 = vunpack.c.h.b16 %v5433
    %v5524 = vunpack.c.l.b16 %v5434
    %v5525 = vunpack.c.h.b16 %v5434
    %v5526 = vunpack.c.l.b16 %v5435
    %v5527 = vunpack.c.h.b16 %v5435
    %v5528 = vunpack.c.l.b16 %v5436
    %v5529 = vunpack.c.h.b16 %v5436
    %v5530 = vunpack.c.l.b16 %v5437
    %v5531 = vunpack.c.h.b16 %v5437
    %v5532 = vunpack.c.l.b16 %v5438
    %v5533 = vunpack.c.h.b16 %v5438
    %v5534 = vunpack.c.l.b16 %v5439
    %v5535 = vunpack.c.h.b16 %v5439
    %v5536 = vpack.c.b16 %v5476, %v5472
    %v5537 = vpack.c.b16 %v5477, %v5473
    %v5538 = vpack.c.b16 %v5478, %v5474
    %v5539 = vpack.c.b16 %v5479, %v5475
    %v5540 = vpack.c.b16 %v5484, %v5480
    %v5541 = vpack.c.b16 %v5485, %v5481
    %v5542 = vpack.c.b16 %v5486, %v5482
    %v5543 = vpack.c.b16 %v5487, %v5483
    %v5544 = vpack.c.b16 %v5492, %v5488
    %v5545 = vpack.c.b16 %v5493, %v5489
    %v5546 = vpack.c.b16 %v5494, %v5490
    %v5547 = vpack.c.b16 %v5495, %v5491
    %v5548 = vpack.c.b16 %v5500, %v5496
    %v5549 = vpack.c.b16 %v5501, %v5497
    %v5550 = vpack.c.b16 %v5502, %v5498
    %v5551 = vpack.c.b16 %v5503, %v5499
    %v5552 = vpack.c.b16 %v5508, %v5504
    %v5553 = vpack.c.b16 %v5509, %v5505
    %v5554 = vpack.c.b16 %v5510, %v5506
    %v5555 = vpack.c.b16 %v5511, %v5507
    %v5556 = vpack.c.b16 %v5516, %v5512
    %v5557 = vpack.c.b16 %v5517, %v5513
    %v5558 = vpack.c.b16 %v5518, %v5514
    %v5559 = vpack.c.b16 %v5519, %v5515
    %v5560 = vpack.c.b16 %v5524, %v5520
    %v5561 = vpack.c.b16 %v5525, %v5521
    %v5562 = vpack.c.b16 %v5526, %v5522
    %v5563 = vpack.c.b16 %v5527, %v5523
    %v5564 = vpack.c.b16 %v5532, %v5528
    %v5565 = vpack.c.b16 %v5533, %v5529
    %v5566 = vpack.c.b16 %v5534, %v5530
    %v5567 = vpack.c.b16 %v5535, %v5531
    %5600 = vmatpush.bf16.msra.mxu0 %v5564
    %5601 = vmatpush.bf16.msra.mxu0 %v5560
    %5602 = vmatpush.bf16.msra.mxu0 %v5556
    %5603 = vmatpush.bf16.msra.mxu0 %v5552
    %5604 = vmatpush.bf16.msra.mxu0 %v5548
    %5605 = vmatpush.bf16.msra.mxu0 %v5544
    %5606 = vmatpush.bf16.msra.mxu0 %v5540
    %5607 = vmatpush.bf16.msra.mxu0 %v5536
    %5608 = vmatmul.bf16.gmra.mxu0 0
    %v5609 = vpop.f32.mrf.mxu0
    %v5610 = vadd.f32 0.0, %v5609
    %v5611 = vpop.f32.mrf.mxu0
    %5612 = vdwg.mxu0
    %5613 = vmatpush.bf16.msra.mxu0 %v5565
    %5614 = vmatpush.bf16.msra.mxu0 %v5561
    %5615 = vmatpush.bf16.msra.mxu0 %v5557
    %5616 = vmatpush.bf16.msra.mxu0 %v5553
    %5617 = vmatpush.bf16.msra.mxu0 %v5549
    %5618 = vmatpush.bf16.msra.mxu0 %v5545
    %5619 = vmatpush.bf16.msra.mxu0 %v5541
    %5620 = vmatpush.bf16.msra.mxu0 %v5537
    %5621 = vmatmul.bf16.gmra.mxu0 0
    %v5622 = vpop.f32.mrf.mxu0
    %v5623 = vadd.f32 0.0, %v5622
    %v5624 = vpop.f32.mrf.mxu0
    %5625 = vdwg.mxu0
    %5626 = vmatpush.bf16.msra.mxu0 %v5566
    %5627 = vmatpush.bf16.msra.mxu0 %v5562
    %5628 = vmatpush.bf16.msra.mxu0 %v5558
    %5629 = vmatpush.bf16.msra.mxu0 %v5554
    %5630 = vmatpush.bf16.msra.mxu0 %v5550
    %5631 = vmatpush.bf16.msra.mxu0 %v5546
    %5632 = vmatpush.bf16.msra.mxu0 %v5542
    %5633 = vmatpush.bf16.msra.mxu0 %v5538
    %5634 = vmatmul.bf16.gmra.mxu0 0
    %v5635 = vpop.f32.mrf.mxu0
    %v5636 = vadd.f32 0.0, %v5635
    %v5637 = vpop.f32.mrf.mxu0
    %5638 = vdwg.mxu0
    %5639 = vmatpush.bf16.msra.mxu0 %v5567
    %5640 = vmatpush.bf16.msra.mxu0 %v5563
    %5641 = vmatpush.bf16.msra.mxu0 %v5559
    %5642 = vmatpush.bf16.msra.mxu0 %v5555
    %5643 = vmatpush.bf16.msra.mxu0 %v5551
    %5644 = vmatpush.bf16.msra.mxu0 %v5547
    %5645 = vmatpush.bf16.msra.mxu0 %v5543
    %5646 = vmatpush.bf16.msra.mxu0 %v5539
    %5647 = vmatmul.bf16.gmra.mxu0 0
    %v5648 = vpop.f32.mrf.mxu0
    %v5649 = vadd.f32 0.0, %v5648
    %v5650 = vpop.f32.mrf.mxu0
    %5651 = vdwg.mxu0
    %v5652 = vadd.f32 %v5404, %v5610
    %v5653 = vadd.f32 %v5405, %v5623
    %v5654 = vadd.f32 %v5406, %v5636
    %v5655 = vadd.f32 %v5407, %v5649
    %v5656 = vmul.f32 %v5652, 0.5
    %v5657 = vtanh.pop %v5656
    %v5658 = vmul.f32 %v5657, 0.5
    %v5659 = vadd.f32 %v5658, 0.5
    %v5660 = vmul.f32 %v5653, 0.5
    %v5661 = vtanh.pop %v5660
    %v5662 = vmul.f32 %v5661, 0.5
    %v5663 = vadd.f32 %v5662, 0.5
    %v5664 = vtanh.pop %v5654
    %v5665 = vmul.f32 %v5663, 0.0
    %v5666 = vmul.f32 %v5659, %v5664
    %v5667 = vadd.f32 %v5665, %v5666
    %v5668 = vmul.f32 %v5655, 0.5
    %v5669 = vtanh.pop %v5668
    %v5670 = vmul.f32 %v5669, 0.5
    %v5671 = vadd.f32 %v5670, 0.5
    %v5672 = vtanh.pop %v5667
    %v5673 = vmul.f32 %v5671, %v5672
    %v5674 = vld [vmem:[#allocation2 + $0x20] sm:$0xff]
    %v5675 = vld [vmem:[#allocation2 + $0x28] sm:$0xff]
    %v5676 = vld [vmem:[#allocation2 + $0x30] sm:$0xff]
    %v5677 = vld [vmem:[#allocation2 + $0x38] sm:$0xff]
    %v5678 = vpack.c.bf16 %v5673, %v5673
    %5679 = vmatpush.bf16.msra.mxu0 %v5564
    %5680 = vmatpush.bf16.msra.mxu0 %v5560
    %5681 = vmatpush.bf16.msra.mxu0 %v5556
    %5682 = vmatpush.bf16.msra.mxu0 %v5552
    %5683 = vmatpush.bf16.msra.mxu0 %v5548
    %5684 = vmatpush.bf16.msra.mxu0 %v5544
    %5685 = vmatpush.bf16.msra.mxu0 %v5540
    %5686 = vmatpush.bf16.msra.mxu0 %v5536
    %5687 = vmatmul.bf16.gmra.mxu0 %v5678
    %v5688 = vpop.f32.mrf.mxu0
    %v5689 = vadd.f32 0.0, %v5688
    %v5690 = vpop.f32.mrf.mxu0
    %5691 = vdwg.mxu0
    %5692 = vmatpush.bf16.msra.mxu0 %v5565
    %5693 = vmatpush.bf16.msra.mxu0 %v5561
    %5694 = vmatpush.bf16.msra.mxu0 %v5557
    %5695 = vmatpush.bf16.msra.mxu0 %v5553
    %5696 = vmatpush.bf16.msra.mxu0 %v5549
    %5697 = vmatpush.bf16.msra.mxu0 %v5545
    %5698 = vmatpush.bf16.msra.mxu0 %v5541
    %5699 = vmatpush.bf16.msra.mxu0 %v5537
    %5700 = vmatmul.bf16.gmra.mxu0 %v5678
    %v5701 = vpop.f32.mrf.mxu0
    %v5702 = vadd.f32 0.0, %v5701
    %v5703 = vpop.f32.mrf.mxu0
    %5704 = vdwg.mxu0
    %5705 = vmatpush.bf16.msra.mxu0 %v5566
    %5706 = vmatpush.bf16.msra.mxu0 %v5562
    %5707 = vmatpush.bf16.msra.mxu0 %v5558
    %5708 = vmatpush.bf16.msra.mxu0 %v5554
    %5709 = vmatpush.bf16.msra.mxu0 %v5550
    %5710 = vmatpush.bf16.msra.mxu0 %v5546
    %5711 = vmatpush.bf16.msra.mxu0 %v5542
    %5712 = vmatpush.bf16.msra.mxu0 %v5538
    %5713 = vmatmul.bf16.gmra.mxu0 %v5678
    %v5714 = vpop.f32.mrf.mxu0
    %v5715 = vadd.f32 0.0, %v5714
    %v5716 = vpop.f32.mrf.mxu0
    %5717 = vdwg.mxu0
    %5718 = vmatpush.bf16.msra.mxu0 %v5567
    %5719 = vmatpush.bf16.msra.mxu0 %v5563
    %5720 = vmatpush.bf16.msra.mxu0 %v5559
    %5721 = vmatpush.bf16.msra.mxu0 %v5555
    %5722 = vmatpush.bf16.msra.mxu0 %v5551
    %5723 = vmatpush.bf16.msra.mxu0 %v5547
    %5724 = vmatpush.bf16.msra.mxu0 %v5543
    %5725 = vmatpush.bf16.msra.mxu0 %v5539
    %5726 = vmatmul.bf16.gmra.mxu0 %v5678
    %v5727 = vpop.f32.mrf.mxu0
    %v5728 = vadd.f32 0.0, %v5727
    %v5729 = vpop.f32.mrf.mxu0
    %5730 = vdwg.mxu0
    %v5731 = vadd.f32 %v5674, %v5689
    %v5732 = vadd.f32 %v5675, %v5702
    %v5733 = vadd.f32 %v5676, %v5715
    %v5734 = vadd.f32 %v5677, %v5728
    %v5735 = vmul.f32 %v5731, 0.5
    %v5736 = vtanh.pop %v5735
    %v5737 = vmul.f32 %v5736, 0.5
    %v5738 = vadd.f32 %v5737, 0.5
    %v5739 = vmul.f32 %v5732, 0.5
    %v5740 = vtanh.pop %v5739
    %v5741 = vmul.f32 %v5740, 0.5
    %v5742 = vadd.f32 %v5741, 0.5
    %v5743 = vtanh.pop %v5733
    %v5744 = vmul.f32 %v5742, %v5667
    %v5745 = vmul.f32 %v5738, %v5743
    %v5746 = vadd.f32 %v5744, %v5745
    %v5747 = vmul.f32 %v5734, 0.5
    %v5748 = vtanh.pop %v5747
    %v5749 = vmul.f32 %v5748, 0.5
    %v5750 = vadd.f32 %v5749, 0.5
    %v5751 = vtanh.pop %v5746
    %v5752 = vmul.f32 %v5750, %v5751
    %v5753 = vld [vmem:[#allocation2 + $0x40] sm:$0xff]
    %v5754 = vld [vmem:[#allocation2 + $0x48] sm:$0xff]
    %v5755 = vld [vmem:[#allocation2 + $0x50] sm:$0xff]
    %v5756 = vld [vmem:[#allocation2 + $0x58] sm:$0xff]
    %v5757 = vpack.c.bf16 %v5752, %v5752
    %5758 = vmatpush.bf16.msra.mxu0 %v5564
    %5759 = vmatpush.bf16.msra.mxu0 %v5560
    %5760 = vmatpush.bf16.msra.mxu0 %v5556
    %5761 = vmatpush.bf16.msra.mxu0 %v5552
    %5762 = vmatpush.bf16.msra.mxu0 %v5548
    %5763 = vmatpush.bf16.msra.mxu0 %v5544
    %5764 = vmatpush.bf16.msra.mxu0 %v5540
    %5765 = vmatpush.bf16.msra.mxu0 %v5536
    %5766 = vmatmul.bf16.gmra.mxu0 %v5757
    %v5767 = vpop.f32.mrf.mxu0
    %v5768 = vadd.f32 0.0, %v5767
    %v5769 = vpop.f32.mrf.mxu0
    %5770 = vdwg.mxu0
    %5771 = vmatpush.bf16.msra.mxu0 %v5565
    %5772 = vmatpush.bf16.msra.mxu0 %v5561
    %5773 = vmatpush.bf16.msra.mxu0 %v5557
    %5774 = vmatpush.bf16.msra.mxu0 %v5553
    %5775 = vmatpush.bf16.msra.mxu0 %v5549
    %5776 = vmatpush.bf16.msra.mxu0 %v5545
    %5777 = vmatpush.bf16.msra.mxu0 %v5541
    %5778 = vmatpush.bf16.msra.mxu0 %v5537
    %5779 = vmatmul.bf16.gmra.mxu0 %v5757
    %v5780 = vpop.f32.mrf.mxu0
    %v5781 = vadd.f32 0.0, %v5780
    %v5782 = vpop.f32.mrf.mxu0
    %5783 = vdwg.mxu0
    %5784 = vmatpush.bf16.msra.mxu0 %v5566
    %5785 = vmatpush.bf16.msra.mxu0 %v5562
    %5786 = vmatpush.bf16.msra.mxu0 %v5558
    %5787 = vmatpush.bf16.msra.mxu0 %v5554
    %5788 = vmatpush.bf16.msra.mxu0 %v5550
    %5789 = vmatpush.bf16.msra.mxu0 %v5546
    %5790 = vmatpush.bf16.msra.mxu0 %v5542
    %5791 = vmatpush.bf16.msra.mxu0 %v5538
    %5792 = vmatmul.bf16.gmra.mxu0 %v5757
    %v5793 = vpop.f32.mrf.mxu0
    %v5794 = vadd.f32 0.0, %v5793
    %v5795 = vpop.f32.mrf.mxu0
    %5796 = vdwg.mxu0
    %5797 = vmatpush.bf16.msra.mxu0 %v5567
    %5798 = vmatpush.bf16.msra.mxu0 %v5563
    %5799 = vmatpush.bf16.msra.mxu0 %v5559
    %5800 = vmatpush.bf16.msra.mxu0 %v5555
    %5801 = vmatpush.bf16.msra.mxu0 %v5551
    %5802 = vmatpush.bf16.msra.mxu0 %v5547
    %5803 = vmatpush.bf16.msra.mxu0 %v5543
    %5804 = vmatpush.bf16.msra.mxu0 %v5539
    %5805 = vmatmul.bf16.gmra.mxu0 %v5757
    %v5806 = vpop.f32.mrf.mxu0
    %v5807 = vadd.f32 0.0, %v5806
    %v5808 = vpop.f32.mrf.mxu0
    %5809 = vdwg.mxu0
    %v5810 = vadd.f32 %v5753, %v5768
    %v5811 = vadd.f32 %v5754, %v5781
    %v5812 = vadd.f32 %v5755, %v5794
    %v5813 = vadd.f32 %v5756, %v5807
    %v5814 = vmul.f32 %v5810, 0.5
    %v5815 = vtanh.pop %v5814
    %v5816 = vmul.f32 %v5815, 0.5
    %v5817 = vadd.f32 %v5816, 0.5
    %v5818 = vmul.f32 %v5811, 0.5
    %v5819 = vtanh.pop %v5818
    %v5820 = vmul.f32 %v5819, 0.5
    %v5821 = vadd.f32 %v5820, 0.5
    %v5822 = vtanh.pop %v5812
    %v5823 = vmul.f32 %v5821, %v5746
    %v5824 = vmul.f32 %v5817, %v5822
    %v5825 = vadd.f32 %v5823, %v5824
    %v5826 = vmul.f32 %v5813, 0.5
    %v5827 = vtanh.pop %v5826
    %v5828 = vmul.f32 %v5827, 0.5
    %v5829 = vadd.f32 %v5828, 0.5
    %v5830 = vtanh.pop %v5825
    %v5831 = vmul.f32 %v5829, %v5830
    %v5832 = vld [vmem:[#allocation2 + $0x60] sm:$0xff]
    %v5833 = vld [vmem:[#allocation2 + $0x68] sm:$0xff]
    %v5834 = vld [vmem:[#allocation2 + $0x70] sm:$0xff]
    %v5835 = vld [vmem:[#allocation2 + $0x78] sm:$0xff]
    %v5836 = vpack.c.bf16 %v5831, %v5831
    %5837 = vmatpush.bf16.msra.mxu0 %v5564
    %5838 = vmatpush.bf16.msra.mxu0 %v5560
    %5839 = vmatpush.bf16.msra.mxu0 %v5556
    %5840 = vmatpush.bf16.msra.mxu0 %v5552
    %5841 = vmatpush.bf16.msra.mxu0 %v5548
    %5842 = vmatpush.bf16.msra.mxu0 %v5544
    %5843 = vmatpush.bf16.msra.mxu0 %v5540
    %5844 = vmatpush.bf16.msra.mxu0 %v5536
    %5845 = vmatmul.bf16.gmra.mxu0 %v5836
    %v5846 = vpop.f32.mrf.mxu0
    %v5847 = vadd.f32 0.0, %v5846
    %v5848 = vpop.f32.mrf.mxu0
    %5849 = vdwg.mxu0
    %5850 = vmatpush.bf16.msra.mxu0 %v5565
    %5851 = vmatpush.bf16.msra.mxu0 %v5561
    %5852 = vmatpush.bf16.msra.mxu0 %v5557
    %5853 = vmatpush.bf16.msra.mxu0 %v5553
    %5854 = vmatpush.bf16.msra.mxu0 %v5549
    %5855 = vmatpush.bf16.msra.mxu0 %v5545
    %5856 = vmatpush.bf16.msra.mxu0 %v5541
    %5857 = vmatpush.bf16.msra.mxu0 %v5537
    %5858 = vmatmul.bf16.gmra.mxu0 %v5836
    %v5859 = vpop.f32.mrf.mxu0
    %v5860 = vadd.f32 0.0, %v5859
    %v5861 = vpop.f32.mrf.mxu0
    %5862 = vdwg.mxu0
    %5863 = vmatpush.bf16.msra.mxu0 %v5566
    %5864 = vmatpush.bf16.msra.mxu0 %v5562
    %5865 = vmatpush.bf16.msra.mxu0 %v5558
    %5866 = vmatpush.bf16.msra.mxu0 %v5554
    %5867 = vmatpush.bf16.msra.mxu0 %v5550
    %5868 = vmatpush.bf16.msra.mxu0 %v5546
    %5869 = vmatpush.bf16.msra.mxu0 %v5542
    %5870 = vmatpush.bf16.msra.mxu0 %v5538
    %5871 = vmatmul.bf16.gmra.mxu0 %v5836
    %v5872 = vpop.f32.mrf.mxu0
    %v5873 = vadd.f32 0.0, %v5872
    %v5874 = vpop.f32.mrf.mxu0
    %5875 = vdwg.mxu0
    %5876 = vmatpush.bf16.msra.mxu0 %v5567
    %5877 = vmatpush.bf16.msra.mxu0 %v5563
    %5878 = vmatpush.bf16.msra.mxu0 %v5559
    %5879 = vmatpush.bf16.msra.mxu0 %v5555
    %5880 = vmatpush.bf16.msra.mxu0 %v5551
    %5881 = vmatpush.bf16.msra.mxu0 %v5547
    %5882 = vmatpush.bf16.msra.mxu0 %v5543
    %5883 = vmatpush.bf16.msra.mxu0 %v5539
    %5884 = vmatmul.bf16.gmra.mxu0 %v5836
    %v5885 = vpop.f32.mrf.mxu0
    %v5886 = vadd.f32 0.0, %v5885
    %v5887 = vpop.f32.mrf.mxu0
    %5888 = vdwg.mxu0
    %v5889 = vadd.f32 %v5832, %v5847
    %v5890 = vadd.f32 %v5833, %v5860
    %v5891 = vadd.f32 %v5834, %v5873
    %v5892 = vadd.f32 %v5835, %v5886
    %v5893 = vmul.f32 %v5889, 0.5
    %v5894 = vtanh.pop %v5893
    %v5895 = vmul.f32 %v5894, 0.5
    %v5896 = vadd.f32 %v5895, 0.5
    %v5897 = vmul.f32 %v5890, 0.5
    %v5898 = vtanh.pop %v5897
    %v5899 = vmul.f32 %v5898, 0.5
    %v5900 = vadd.f32 %v5899, 0.5
    %v5901 = vtanh.pop %v5891
    %v5902 = vmul.f32 %v5900, %v5825
    %v5903 = vmul.f32 %v5896, %v5901
    %v5904 = vadd.f32 %v5902, %v5903
    %v5905 = vmul.f32 %v5892, 0.5
    %v5906 = vtanh.pop %v5905
    %v5907 = vmul.f32 %v5906, 0.5
    %v5908 = vadd.f32 %v5907, 0.5
    %v5909 = vtanh.pop %v5904
    %v5910 = vmul.f32 %v5908, %v5909
    %v5911 = vld [vmem:[#allocation2 + $0x80] sm:$0xff]
    %v5912 = vld [vmem:[#allocation2 + $0x88] sm:$0xff]
    %v5913 = vld [vmem:[#allocation2 + $0x90] sm:$0xff]
    %v5914 = vld [vmem:[#allocation2 + $0x98] sm:$0xff]
    %v5915 = vpack.c.bf16 %v5910, %v5910
    %5916 = vmatpush.bf16.msra.mxu0 %v5564
    %5917 = vmatpush.bf16.msra.mxu0 %v5560
    %5918 = vmatpush.bf16.msra.mxu0 %v5556
    %5919 = vmatpush.bf16.msra.mxu0 %v5552
    %5920 = vmatpush.bf16.msra.mxu0 %v5548
    %5921 = vmatpush.bf16.msra.mxu0 %v5544
    %5922 = vmatpush.bf16.msra.mxu0 %v5540
    %5923 = vmatpush.bf16.msra.mxu0 %v5536
    %5924 = vmatmul.bf16.gmra.mxu0 %v5915
    %v5925 = vpop.f32.mrf.mxu0
    %v5926 = vadd.f32 0.0, %v5925
    %v5927 = vpop.f32.mrf.mxu0
    %5928 = vdwg.mxu0
    %5929 = vmatpush.bf16.msra.mxu0 %v5565
    %5930 = vmatpush.bf16.msra.mxu0 %v5561
    %5931 = vmatpush.bf16.msra.mxu0 %v5557
    %5932 = vmatpush.bf16.msra.mxu0 %v5553
    %5933 = vmatpush.bf16.msra.mxu0 %v5549
    %5934 = vmatpush.bf16.msra.mxu0 %v5545
    %5935 = vmatpush.bf16.msra.mxu0 %v5541
    %5936 = vmatpush.bf16.msra.mxu0 %v5537
    %5937 = vmatmul.bf16.gmra.mxu0 %v5915
    %v5938 = vpop.f32.mrf.mxu0
    %v5939 = vadd.f32 0.0, %v5938
    %v5940 = vpop.f32.mrf.mxu0
    %5941 = vdwg.mxu0
    %5942 = vmatpush.bf16.msra.mxu0 %v5566
    %5943 = vmatpush.bf16.msra.mxu0 %v5562
    %5944 = vmatpush.bf16.msra.mxu0 %v5558
    %5945 = vmatpush.bf16.msra.mxu0 %v5554
    %5946 = vmatpush.bf16.msra.mxu0 %v5550
    %5947 = vmatpush.bf16.msra.mxu0 %v5546
    %5948 = vmatpush.bf16.msra.mxu0 %v5542
    %5949 = vmatpush.bf16.msra.mxu0 %v5538
    %5950 = vmatmul.bf16.gmra.mxu0 %v5915
    %v5951 = vpop.f32.mrf.mxu0
    %v5952 = vadd.f32 0.0, %v5951
    %v5953 = vpop.f32.mrf.mxu0
    %5954 = vdwg.mxu0
    %5955 = vmatpush.bf16.msra.mxu0 %v5567
    %5956 = vmatpush.bf16.msra.mxu0 %v5563
    %5957 = vmatpush.bf16.msra.mxu0 %v5559
    %5958 = vmatpush.bf16.msra.mxu0 %v5555
    %5959 = vmatpush.bf16.msra.mxu0 %v5551
    %5960 = vmatpush.bf16.msra.mxu0 %v5547
    %5961 = vmatpush.bf16.msra.mxu0 %v5543
    %5962 = vmatpush.bf16.msra.mxu0 %v5539
    %5963 = vmatmul.bf16.gmra.mxu0 %v5915
    %v5964 = vpop.f32.mrf.mxu0
    %v5965 = vadd.f32 0.0, %v5964
    %v5966 = vpop.f32.mrf.mxu0
    %5967 = vdwg.mxu0
    %v5968 = vadd.f32 %v5911, %v5926
    %v5969 = vadd.f32 %v5912, %v5939
    %v5970 = vadd.f32 %v5913, %v5952
    %v5971 = vadd.f32 %v5914, %v5965
    %v5972 = vmul.f32 %v5968, 0.5
    %v5973 = vtanh.pop %v5972
    %v5974 = vmul.f32 %v5973, 0.5
    %v5975 = vadd.f32 %v5974, 0.5
    %v5976 = vmul.f32 %v5969, 0.5
    %v5977 = vtanh.pop %v5976
    %v5978 = vmul.f32 %v5977, 0.5
    %v5979 = vadd.f32 %v5978, 0.5
    %v5980 = vtanh.pop %v5970
    %v5981 = vmul.f32 %v5979, %v5904
    %v5982 = vmul.f32 %v5975, %v5980
    %v5983 = vadd.f32 %v5981, %v5982
    %v5984 = vmul.f32 %v5971, 0.5
    %v5985 = vtanh.pop %v5984
    %v5986 = vmul.f32 %v5985, 0.5
    %v5987 = vadd.f32 %v5986, 0.5
    %v5988 = vtanh.pop %v5983
    %v5989 = vmul.f32 %v5987, %v5988
    %v5990 = vld [vmem:[#allocation2 + $0xa0] sm:$0xff]
    %v5991 = vld [vmem:[#allocation2 + $0xa8] sm:$0xff]
    %v5992 = vld [vmem:[#allocation2 + $0xb0] sm:$0xff]
    %v5993 = vld [vmem:[#allocation2 + $0xb8] sm:$0xff]
    %v5994 = vpack.c.bf16 %v5989, %v5989
    %5995 = vmatpush.bf16.msra.mxu0 %v5564
    %5996 = vmatpush.bf16.msra.mxu0 %v5560
    %5997 = vmatpush.bf16.msra.mxu0 %v5556
    %5998 = vmatpush.bf16.msra.mxu0 %v5552
    %5999 = vmatpush.bf16.msra.mxu0 %v5548
    %6000 = vmatpush.bf16.msra.mxu0 %v5544
    %6001 = vmatpush.bf16.msra.mxu0 %v5540
    %6002 = vmatpush.bf16.msra.mxu0 %v5536
    %6003 = vmatmul.bf16.gmra.mxu0 %v5994
    %v6004 = vpop.f32.mrf.mxu0
    %v6005 = vadd.f32 0.0, %v6004
    %v6006 = vpop.f32.mrf.mxu0
    %6007 = vdwg.mxu0
    %6008 = vmatpush.bf16.msra.mxu0 %v5565
    %6009 = vmatpush.bf16.msra.mxu0 %v5561
    %6010 = vmatpush.bf16.msra.mxu0 %v5557
    %6011 = vmatpush.bf16.msra.mxu0 %v5553
    %6012 = vmatpush.bf16.msra.mxu0 %v5549
    %6013 = vmatpush.bf16.msra.mxu0 %v5545
    %6014 = vmatpush.bf16.msra.mxu0 %v5541
    %6015 = vmatpush.bf16.msra.mxu0 %v5537
    %6016 = vmatmul.bf16.gmra.mxu0 %v5994
    %v6017 = vpop.f32.mrf.mxu0
    %v6018 = vadd.f32 0.0, %v6017
    %v6019 = vpop.f32.mrf.mxu0
    %6020 = vdwg.mxu0
    %6021 = vmatpush.bf16.msra.mxu0 %v5566
    %6022 = vmatpush.bf16.msra.mxu0 %v5562
    %6023 = vmatpush.bf16.msra.mxu0 %v5558
    %6024 = vmatpush.bf16.msra.mxu0 %v5554
    %6025 = vmatpush.bf16.msra.mxu0 %v5550
    %6026 = vmatpush.bf16.msra.mxu0 %v5546
    %6027 = vmatpush.bf16.msra.mxu0 %v5542
    %6028 = vmatpush.bf16.msra.mxu0 %v5538
    %6029 = vmatmul.bf16.gmra.mxu0 %v5994
    %v6030 = vpop.f32.mrf.mxu0
    %v6031 = vadd.f32 0.0, %v6030
    %v6032 = vpop.f32.mrf.mxu0
    %6033 = vdwg.mxu0
    %6034 = vmatpush.bf16.msra.mxu0 %v5567
    %6035 = vmatpush.bf16.msra.mxu0 %v5563
    %6036 = vmatpush.bf16.msra.mxu0 %v5559
    %6037 = vmatpush.bf16.msra.mxu0 %v5555
    %6038 = vmatpush.bf16.msra.mxu0 %v5551
    %6039 = vmatpush.bf16.msra.mxu0 %v5547
    %6040 = vmatpush.bf16.msra.mxu0 %v5543
    %6041 = vmatpush.bf16.msra.mxu0 %v5539
    %6042 = vmatmul.bf16.gmra.mxu0 %v5994
    %v6043 = vpop.f32.mrf.mxu0
    %v6044 = vadd.f32 0.0, %v6043
    %v6045 = vpop.f32.mrf.mxu0
    %6046 = vdwg.mxu0
    %v6047 = vadd.f32 %v5990, %v6005
    %v6048 = vadd.f32 %v5991, %v6018
    %v6049 = vadd.f32 %v5992, %v6031
    %v6050 = vadd.f32 %v5993, %v6044
    %v6051 = vmul.f32 %v6047, 0.5
    %v6052 = vtanh.pop %v6051
    %v6053 = vmul.f32 %v6052, 0.5
    %v6054 = vadd.f32 %v6053, 0.5
    %v6055 = vmul.f32 %v6048, 0.5
    %v6056 = vtanh.pop %v6055
    %v6057 = vmul.f32 %v6056, 0.5
    %v6058 = vadd.f32 %v6057, 0.5
    %v6059 = vtanh.pop %v6049
    %v6060 = vmul.f32 %v6058, %v5983
    %v6061 = vmul.f32 %v6054, %v6059
    %v6062 = vadd.f32 %v6060, %v6061
    %v6063 = vmul.f32 %v6050, 0.5
    %v6064 = vtanh.pop %v6063
    %v6065 = vmul.f32 %v6064, 0.5
    %v6066 = vadd.f32 %v6065, 0.5
    %v6067 = vtanh.pop %v6062
    %v6068 = vmul.f32 %v6066, %v6067
    %v6069 = vld [vmem:[#allocation2 + $0xc0] sm:$0xff]
    %v6070 = vld [vmem:[#allocation2 + $0xc8] sm:$0xff]
    %v6071 = vld [vmem:[#allocation2 + $0xd0] sm:$0xff]
    %v6072 = vld [vmem:[#allocation2 + $0xd8] sm:$0xff]
    %v6073 = vpack.c.bf16 %v6068, %v6068
    %6074 = vmatpush.bf16.msra.mxu0 %v5564
    %6075 = vmatpush.bf16.msra.mxu0 %v5560
    %6076 = vmatpush.bf16.msra.mxu0 %v5556
    %6077 = vmatpush.bf16.msra.mxu0 %v5552
    %6078 = vmatpush.bf16.msra.mxu0 %v5548
    %6079 = vmatpush.bf16.msra.mxu0 %v5544
    %6080 = vmatpush.bf16.msra.mxu0 %v5540
    %6081 = vmatpush.bf16.msra.mxu0 %v5536
    %6082 = vmatmul.bf16.gmra.mxu0 %v6073
    %v6083 = vpop.f32.mrf.mxu0
    %v6084 = vadd.f32 0.0, %v6083
    %v6085 = vpop.f32.mrf.mxu0
    %6086 = vdwg.mxu0
    %6087 = vmatpush.bf16.msra.mxu0 %v5565
    %6088 = vmatpush.bf16.msra.mxu0 %v5561
    %6089 = vmatpush.bf16.msra.mxu0 %v5557
    %6090 = vmatpush.bf16.msra.mxu0 %v5553
    %6091 = vmatpush.bf16.msra.mxu0 %v5549
    %6092 = vmatpush.bf16.msra.mxu0 %v5545
    %6093 = vmatpush.bf16.msra.mxu0 %v5541
    %6094 = vmatpush.bf16.msra.mxu0 %v5537
    %6095 = vmatmul.bf16.gmra.mxu0 %v6073
    %v6096 = vpop.f32.mrf.mxu0
    %v6097 = vadd.f32 0.0, %v6096
    %v6098 = vpop.f32.mrf.mxu0
    %6099 = vdwg.mxu0
    %6100 = vmatpush.bf16.msra.mxu0 %v5566
    %6101 = vmatpush.bf16.msra.mxu0 %v5562
    %6102 = vmatpush.bf16.msra.mxu0 %v5558
    %6103 = vmatpush.bf16.msra.mxu0 %v5554
    %6104 = vmatpush.bf16.msra.mxu0 %v5550
    %6105 = vmatpush.bf16.msra.mxu0 %v5546
    %6106 = vmatpush.bf16.msra.mxu0 %v5542
    %6107 = vmatpush.bf16.msra.mxu0 %v5538
    %6108 = vmatmul.bf16.gmra.mxu0 %v6073
    %v6109 = vpop.f32.mrf.mxu0
    %v6110 = vadd.f32 0.0, %v6109
    %v6111 = vpop.f32.mrf.mxu0
    %6112 = vdwg.mxu0
    %6113 = vmatpush.bf16.msra.mxu0 %v5567
    %6114 = vmatpush.bf16.msra.mxu0 %v5563
    %6115 = vmatpush.bf16.msra.mxu0 %v5559
    %6116 = vmatpush.bf16.msra.mxu0 %v5555
    %6117 = vmatpush.bf16.msra.mxu0 %v5551
    %6118 = vmatpush.bf16.msra.mxu0 %v5547
    %6119 = vmatpush.bf16.msra.mxu0 %v5543
    %6120 = vmatpush.bf16.msra.mxu0 %v5539
    %6121 = vmatmul.bf16.gmra.mxu0 %v6073
    %v6122 = vpop.f32.mrf.mxu0
    %v6123 = vadd.f32 0.0, %v6122
    %v6124 = vpop.f32.mrf.mxu0
    %6125 = vdwg.mxu0
    %v6126 = vadd.f32 %v6069, %v6084
    %v6127 = vadd.f32 %v6070, %v6097
    %v6128 = vadd.f32 %v6071, %v6110
    %v6129 = vadd.f32 %v6072, %v6123
    %v6130 = vmul.f32 %v6126, 0.5
    %v6131 = vtanh.pop %v6130
    %v6132 = vmul.f32 %v6131, 0.5
    %v6133 = vadd.f32 %v6132, 0.5
    %v6134 = vmul.f32 %v6127, 0.5
    %v6135 = vtanh.pop %v6134
    %v6136 = vmul.f32 %v6135, 0.5
    %v6137 = vadd.f32 %v6136, 0.5
    %v6138 = vtanh.pop %v6128
    %v6139 = vmul.f32 %v6137, %v6062
    %v6140 = vmul.f32 %v6133, %v6138
    %v6141 = vadd.f32 %v6139, %v6140
    %v6142 = vmul.f32 %v6129, 0.5
    %v6143 = vtanh.pop %v6142
    %v6144 = vmul.f32 %v6143, 0.5
    %v6145 = vadd.f32 %v6144, 0.5
    %v6146 = vtanh.pop %v6141
    %v6147 = vmul.f32 %v6145, %v6146
    %v6148 = vld [vmem:[#allocation2 + $0xe0] sm:$0xff]
    %v6149 = vld [vmem:[#allocation2 + $0xe8] sm:$0xff]
    %v6150 = vld [vmem:[#allocation2 + $0xf0] sm:$0xff]
    %v6151 = vld [vmem:[#allocation2 + $0xf8] sm:$0xff]
    %v6152 = vpack.c.bf16 %v6147, %v6147
    %6153 = vmatpush.bf16.msra.mxu0 %v5564
    %6154 = vmatpush.bf16.msra.mxu0 %v5560
    %6155 = vmatpush.bf16.msra.mxu0 %v5556
    %6156 = vmatpush.bf16.msra.mxu0 %v5552
    %6157 = vmatpush.bf16.msra.mxu0 %v5548
    %6158 = vmatpush.bf16.msra.mxu0 %v5544
    %6159 = vmatpush.bf16.msra.mxu0 %v5540
    %6160 = vmatpush.bf16.msra.mxu0 %v5536
    %6161 = vmatmul.bf16.gmra.mxu0 %v6152
    %v6162 = vpop.f32.mrf.mxu0
    %v6163 = vadd.f32 0.0, %v6162
    %v6164 = vpop.f32.mrf.mxu0
    %6165 = vdwg.mxu0
    %6166 = vmatpush.bf16.msra.mxu0 %v5565
    %6167 = vmatpush.bf16.msra.mxu0 %v5561
    %6168 = vmatpush.bf16.msra.mxu0 %v5557
    %6169 = vmatpush.bf16.msra.mxu0 %v5553
    %6170 = vmatpush.bf16.msra.mxu0 %v5549
    %6171 = vmatpush.bf16.msra.mxu0 %v5545
    %6172 = vmatpush.bf16.msra.mxu0 %v5541
    %6173 = vmatpush.bf16.msra.mxu0 %v5537
    %6174 = vmatmul.bf16.gmra.mxu0 %v6152
    %v6175 = vpop.f32.mrf.mxu0
    %v6176 = vadd.f32 0.0, %v6175
    %v6177 = vpop.f32.mrf.mxu0
    %6178 = vdwg.mxu0
    %6179 = vmatpush.bf16.msra.mxu0 %v5566
    %6180 = vmatpush.bf16.msra.mxu0 %v5562
    %6181 = vmatpush.bf16.msra.mxu0 %v5558
    %6182 = vmatpush.bf16.msra.mxu0 %v5554
    %6183 = vmatpush.bf16.msra.mxu0 %v5550
    %6184 = vmatpush.bf16.msra.mxu0 %v5546
    %6185 = vmatpush.bf16.msra.mxu0 %v5542
    %6186 = vmatpush.bf16.msra.mxu0 %v5538
    %6187 = vmatmul.bf16.gmra.mxu0 %v6152
    %v6188 = vpop.f32.mrf.mxu0
    %v6189 = vadd.f32 0.0, %v6188
    %v6190 = vpop.f32.mrf.mxu0
    %6191 = vdwg.mxu0
    %6192 = vmatpush.bf16.msra.mxu0 %v5567
    %6193 = vmatpush.bf16.msra.mxu0 %v5563
    %6194 = vmatpush.bf16.msra.mxu0 %v5559
    %6195 = vmatpush.bf16.msra.mxu0 %v5555
    %6196 = vmatpush.bf16.msra.mxu0 %v5551
    %6197 = vmatpush.bf16.msra.mxu0 %v5547
    %6198 = vmatpush.bf16.msra.mxu0 %v5543
    %6199 = vmatpush.bf16.msra.mxu0 %v5539
    %6200 = vmatmul.bf16.gmra.mxu0 %v6152
    %v6201 = vpop.f32.mrf.mxu0
    %v6202 = vadd.f32 0.0, %v6201
    %v6203 = vpop.f32.mrf.mxu0
    %6204 = vdwg.mxu0
    %v6205 = vadd.f32 %v6148, %v6163
    %v6206 = vadd.f32 %v6149, %v6176
    %v6207 = vadd.f32 %v6150, %v6189
    %v6208 = vadd.f32 %v6151, %v6202
    %v6209 = vmul.f32 %v6205, 0.5
    %v6210 = vtanh.pop %v6209
    %v6211 = vmul.f32 %v6210, 0.5
    %v6212 = vadd.f32 %v6211, 0.5
    %v6213 = vmul.f32 %v6206, 0.5
    %v6214 = vtanh.pop %v6213
    %v6215 = vmul.f32 %v6214, 0.5
    %v6216 = vadd.f32 %v6215, 0.5
    %v6217 = vtanh.pop %v6207
    %v6218 = vmul.f32 %v6216, %v6141
    %v6219 = vmul.f32 %v6212, %v6217
    %v6220 = vadd.f32 %v6218, %v6219
    %v6221 = vmul.f32 %v6208, 0.5
    %v6222 = vtanh.pop %v6221
    %v6223 = vmul.f32 %v6222, 0.5
    %v6224 = vadd.f32 %v6223, 0.5
    %v6225 = vtanh.pop %v6220
    %v6226 = vmul.f32 %v6224, %v6225
    %v6227 = vld [vmem:[%s10] sm:$0x1]
    %v6228 = vld [vmem:[#allocation4] sm:$0x1]
    %v6230 = vperm.slane %v6227, 0
    %v6232 = vmul.f32 %v6226, %v6230
    %6233 = vadd.xlane.f32.xlu0 %v6232
    %v6234 = vpop.xlane.xlu0 %6233
    %v6236 = vperm.slane %v6228, 0
    %v6238 = vadd.f32 %v6234, %v6236
    %vm6239 = vcmask 1024
    %6240 = vst.msk [vmem:[%s12] sm:$0x3] %vm6239, %v6238
    // Predicated region
    $region70: #{lstm_model_forward.1} parent=1 // pred_check
      _
    $region71: #{lstm_model_forward.1} parent=1 // pred_check_branch
      %6242 = sbr.rel (0) target = $region73
    $region72: #{lstm_model_forward.1} parent=1 // pred_region
      _
    $region73: #{lstm_model_forward.1} parent=1 // pred_fallthru
      _
    // Predicated region
    $region74: #{lstm_model_forward.1} parent=1 // pred_check
      _
    $region75: #{lstm_model_forward.1} parent=1 // pred_check_branch
      %6244 = sbr.rel (0) target = $region77
    $region76: #{lstm_model_forward.1} parent=1 // pred_region
      _
    $region77: #{lstm_model_forward.1} parent=1 // pred_fallthru
      _
    %6245 = vsyncpa [#allocation6], 1
    %6246 = vsyncpa [#allocation8], 1
    %6247 = vsyncpa [#allocation11], 1

</llo_original>
